<compile_context>
chip_gen: v6e
topology: v6e:2x2x1
jax: 0.10.0
libtpu: 0.0.40
codegen_flags: <defaults>
</compile_context>

<pallas_src>
import jax
import jax.numpy as jnp
import numpy as np
from jax.experimental import pallas as pl
from jax.experimental.pallas import tpu as pltpu

# Hyperparameters chosen so 2 * (num_layers * 2 * hidden) == 1024, matching
# the reference module's nn.Linear(1024, num_classes).
NUM_CLASSES = 3
VOCAB_SIZE = 100
HIDDEN = 128
NUM_LAYERS = 2
EMB_DIM = 128
BATCH = 2
SEQ = 8

CPAD = 128            # lane-dense padded width for the classifier output
NEG_INF = -1e30       # pad-bias so padded logits vanish under softmax


# ----------------------------- Pallas kernel -------------------------------

def _bilstm_kernel(x_ref, wih0_ref, whh0f_ref, whh0b_ref, b0_ref,
                   wih1_ref, whh1f_ref, whh1b_ref, b1_ref,
                   h0_ref, c0_ref, wout_ref, bout_ref,
                   out_ref, gx_scr, y_scr, feat_scr):
    """Whole BILSTM forward in one VMEM-resident kernel.

    x_ref:     (T*B, E)   time-major flattened embeddings (row = t*B + b)
    wihL_ref:  (I_L, 8H)  fwd||bwd input-projection weights (transposed)
    whhL{f,b}: (H, 4H)    hidden-projection weights (transposed), per direction
    bL_ref:    (1, 8H)    combined (b_ih + b_hh), fwd||bwd
    h0/c0:     (2L, B, H) initial states in PyTorch stacking order
    wout_ref:  (4LH, CPAD) zero-padded classifier weight; bout_ref: (1, CPAD)
    out_ref:   (B, CPAD)  log-softmax (first NUM_CLASSES lanes are valid)
    """
    L = h0_ref.shape[0] // 2
    B = h0_ref.shape[1]
    H = h0_ref.shape[2]
    T = x_ref.shape[0] // B
    G = 4 * H

    def cell(gates, c_prev):
        # PyTorch gate order: i, f, g, o (lane slices land on 128 boundaries).
        i_g = jax.nn.sigmoid(gates[:, 0:H])
        f_g = jax.nn.sigmoid(gates[:, H:2 * H])
        g_g = jnp.tanh(gates[:, 2 * H:3 * H])
        o_g = jax.nn.sigmoid(gates[:, 3 * H:4 * H])
        c_new = f_g * c_prev + i_g * g_g
        h_new = o_g * jnp.tanh(c_new)
        return h_new, c_new

    layer_refs = ((wih0_ref, whh0f_ref, whh0b_ref, b0_ref),
                  (wih1_ref, whh1f_ref, whh1b_ref, b1_ref))

    x_val = x_ref[...]                            # (T*B, E) layer-0 input
    for l in range(L):
        wih_ref, whhf_ref, whhb_ref, b_ref = layer_refs[l]

        # Hoisted input projection for BOTH directions: one MXU matmul and one
        # bias broadcast per layer instead of per timestep.
        gx_scr[...] = (jnp.dot(x_val, wih_ref[...],
                               preferred_element_type=jnp.float32)
                       + b_ref[...])

        h_f = h0_ref[2 * l]                       # (B, H) carried in vregs
        c_f = c0_ref[2 * l]
        h_b = h0_ref[2 * l + 1]
        c_b = c0_ref[2 * l + 1]

        # Fully unrolled time loop; fwd + bwd recurrences fused per step.
        for t in range(T):
            tb = T - 1 - t
            g_f = gx_scr[t * B:(t + 1) * B, 0:G] + jnp.dot(
                h_f, whhf_ref[...], preferred_element_type=jnp.float32)
            g_b = gx_scr[tb * B:(tb + 1) * B, G:2 * G] + jnp.dot(
                h_b, whhb_ref[...], preferred_element_type=jnp.float32)
            h_f, c_f = cell(g_f, c_f)
            h_b, c_b = cell(g_b, c_b)
            if l + 1 < L:                         # only the next layer uses it
                y_scr[t * B:(t + 1) * B, 0:H] = h_f
                y_scr[tb * B:(tb + 1) * B, H:2 * H] = h_b

        # Scatter final states straight into the torch h_n.view(B,-1) /
        # c_n.view(B,-1) feature layout (static (1,H) stores, no reshape).
        for d, (h_fin, c_fin) in enumerate(((h_f, c_f), (h_b, c_b))):
            idx = 2 * l + d                       # PyTorch stacking index
            for bb in range(B):
                flat = idx * B + bb
                r, j = flat // (2 * L), flat % (2 * L)
                feat_scr[r:r + 1, j * H:(j + 1) * H] = h_fin[bb:bb + 1, :]
                feat_scr[r:r + 1,
                         (2 * L + j) * H:(2 * L + j + 1) * H] = (
                    c_fin[bb:bb + 1, :])

        if l + 1 < L:
            x_val = y_scr[...]                    # (T*B, 2H) next layer input

    # Classifier head: Linear(4LH -> CPAD) + log_softmax over lane-dense
    # padded logits (pad columns carry -1e30 bias so they vanish).
    logits = (jnp.dot(feat_scr[...], wout_ref[...],
                      preferred_element_type=jnp.float32) + bout_ref[...])
    m = jnp.max(logits, axis=1, keepdims=True)
    s = logits - m
    lse = jnp.log(jnp.sum(jnp.exp(s), axis=1, keepdims=True))
    out_ref[...] = s - lse


# ------------------------------ Model forward -------------------------------

def bilstm_forward(kp, tokens, h0, c0):
    B = tokens.shape[0]
    # Gather embeddings directly into time-major flattened layout (row t*B+b);
    # no separate transpose pass over the activations.
    flat_ids = jnp.transpose(tokens).reshape(-1)
    x2d = jnp.take(kp["embed"], flat_ids, axis=0).astype(jnp.float32)

    vmem = pl.BlockSpec(memory_space=pltpu.MemorySpace.VMEM)
    out_pad = pl.pallas_call(
        _bilstm_kernel,
        out_shape=jax.ShapeDtypeStruct((B, CPAD), jnp.float32),
        in_specs=[vmem] * 13,
        out_specs=vmem,
        scratch_shapes=[
            pltpu.VMEM((SEQ * BATCH, 8 * HIDDEN), jnp.float32),        # gates_x
            pltpu.VMEM((SEQ * BATCH, 2 * HIDDEN), jnp.float32),        # layer out
            pltpu.VMEM((BATCH, 4 * NUM_LAYERS * HIDDEN), jnp.float32),  # features
        ],
    )(x2d, kp["wih0"], kp["whh0f"], kp["whh0b"], kp["b0"],
      kp["wih1"], kp["whh1f"], kp["whh1b"], kp["b1"],
      h0, c0, kp["wout"], kp["bout"])
    return out_pad[:, :NUM_CLASSES]


def pack_kernel_params(params):
    """Pack per-direction weights into the fused-kernel layout (done once)."""
    kp = {"embed": params["embed"]}
    for l in range(NUM_LAYERS):
        lp = params["lstm"][l]
        kp[f"wih{l}"] = jnp.concatenate(
            [lp["fwd"]["w_ih_t"], lp["bwd"]["w_ih_t"]], axis=1)   # (I, 8H)
        kp[f"b{l}"] = jnp.concatenate(
            [lp["fwd"]["b"], lp["bwd"]["b"]], axis=1)             # (1, 8H)
        kp[f"whh{l}f"] = lp["fwd"]["w_hh_t"]                      # (H, 4H)
        kp[f"whh{l}b"] = lp["bwd"]["w_hh_t"]
    w_t = params["linear_w_t"]                                    # (1024, C)
    kp["wout"] = jnp.zeros((w_t.shape[0], CPAD),
                           jnp.float32).at[:, :NUM_CLASSES].set(w_t)
    kp["bout"] = jnp.full((1, CPAD), NEG_INF,
                          jnp.float32).at[:, :NUM_CLASSES].set(
                              params["linear_b"])
    return kp


# --------------------------- Pure-JAX reference ----------------------------

def ref_forward(params, tokens, h0, c0):
    emb = jnp.take(params["embed"], tokens, axis=0)
    x_seq = jnp.transpose(emb, (1, 0, 2))
    h_finals, c_finals = [], []
    for layer in range(NUM_LAYERS):
        lp = params["lstm"][layer]
        outs = {}
        for d, name in enumerate(("fwd", "bwd")):
            p = lp[name]
            seq = x_seq if name == "fwd" else jnp.flip(x_seq, axis=0)
            h = h0[2 * layer + d]
            c = c0[2 * layer + d]
            hs = []
            for t in range(seq.shape[0]):
                gates = seq[t] @ p["w_ih_t"] + h @ p["w_hh_t"] + p["b"]
                i, f, g, o = jnp.split(gates, 4, axis=1)
                i = jax.nn.sigmoid(i)
                f = jax.nn.sigmoid(f)
                g = jnp.tanh(g)
                o = jax.nn.sigmoid(o)
                c = f * c + i * g
                h = o * jnp.tanh(c)
                hs.append(h)
            out = jnp.stack(hs, axis=0)
            if name == "bwd":
                out = jnp.flip(out, axis=0)
            outs[name] = out
            h_finals.append(h)
            c_finals.append(c)
        x_seq = jnp.concatenate([outs["fwd"], outs["bwd"]], axis=-1)
    h_n = jnp.stack(h_finals, axis=0)
    c_n = jnp.stack(c_finals, axis=0)
    B = tokens.shape[0]
    feats = jnp.concatenate([h_n.reshape(B, -1), c_n.reshape(B, -1)], axis=1)
    logits = feats @ params["linear_w_t"] + params["linear_b"]
    return jax.nn.log_softmax(logits, axis=1)


# --------------------------------- Main -------------------------------------

if __name__ == "__main__":
    key = jax.random.PRNGKey(0)
    keys = jax.random.split(key, 32)
    _k = iter(range(32))

    def nxt():
        return keys[next(_k)]

    params = {}
    # embed.weight.uniform_(-0.1, 0.1)
    params["embed"] = jax.random.uniform(
        nxt(), (VOCAB_SIZE, EMB_DIM), jnp.float32, -0.1, 0.1)

    # LSTM params (PyTorch default init: U(-1/sqrt(H), 1/sqrt(H)))
    stdv = 1.0 / (HIDDEN ** 0.5)
    lstm_params = []
    for layer in range(NUM_LAYERS):
        in_size = EMB_DIM if layer == 0 else 2 * HIDDEN
        layer_p = {}
        for name in ("fwd", "bwd"):
            w_ih = jax.random.uniform(nxt(), (4 * HIDDEN, in_size),
                                      jnp.float32, -stdv, stdv)
            w_hh = jax.random.uniform(nxt(), (4 * HIDDEN, HIDDEN),
                                      jnp.float32, -stdv, stdv)
            b_ih = jax.random.uniform(nxt(), (4 * HIDDEN,),
                                      jnp.float32, -stdv, stdv)
            b_hh = jax.random.uniform(nxt(), (4 * HIDDEN,),
                                      jnp.float32, -stdv, stdv)
            layer_p[name] = {"w_ih_t": w_ih.T, "w_hh_t": w_hh.T,
                             "b": (b_ih + b_hh)[None, :]}
        lstm_params.append(layer_p)
    params["lstm"] = lstm_params

    # linear.weight.uniform_(-0.1, 0.1); linear.bias.fill_(0)
    lin_w = jax.random.uniform(
        nxt(), (NUM_CLASSES, 2 * NUM_LAYERS * 2 * HIDDEN),
        jnp.float32, -0.1, 0.1)
    params["linear_w_t"] = lin_w.T                       # (1024, NUM_CLASSES)
    params["linear_b"] = jnp.zeros((1, NUM_CLASSES), jnp.float32)

    # Inputs: token ids (B, T) and initial (h0, c0) of shape (L*2, B, H).
    tokens = jax.random.randint(nxt(), (BATCH, SEQ), 0, VOCAB_SIZE,
                                dtype=jnp.int32)
    h0 = 0.1 * jax.random.normal(nxt(), (NUM_LAYERS * 2, BATCH, HIDDEN),
                                 jnp.float32)
    c0 = 0.1 * jax.random.normal(nxt(), (NUM_LAYERS * 2, BATCH, HIDDEN),
                                 jnp.float32)

    kparams = pack_kernel_params(params)
    out = jax.jit(bilstm_forward)(kparams, tokens, h0, c0)
    out = jax.block_until_ready(out)
    assert out.shape == (BATCH, NUM_CLASSES)

    ref = ref_forward(params, tokens, h0, c0)
    np.testing.assert_allclose(np.asarray(out), np.asarray(ref),
                               rtol=1e-4, atol=1e-4)
    print("KERNEL_OK")
</pallas_src>

<mosaic_0001>
module attributes {stable_mosaic.version = 11 : i64} {
  func.func @_bilstm_kernel(%arg0: memref<16x128xf32, #tpu.memory_space<vmem>>, %arg1: memref<128x1024xf32, #tpu.memory_space<vmem>>, %arg2: memref<128x512xf32, #tpu.memory_space<vmem>>, %arg3: memref<128x512xf32, #tpu.memory_space<vmem>>, %arg4: memref<1x1024xf32, #tpu.memory_space<vmem>>, %arg5: memref<256x1024xf32, #tpu.memory_space<vmem>>, %arg6: memref<128x512xf32, #tpu.memory_space<vmem>>, %arg7: memref<128x512xf32, #tpu.memory_space<vmem>>, %arg8: memref<1x1024xf32, #tpu.memory_space<vmem>>, %arg9: memref<4x2x128xf32, #tpu.memory_space<vmem>>, %arg10: memref<4x2x128xf32, #tpu.memory_space<vmem>>, %arg11: memref<1024x128xf32, #tpu.memory_space<vmem>>, %arg12: memref<1x128xf32, #tpu.memory_space<vmem>>, %arg13: memref<2x128xf32, #tpu.memory_space<vmem>>, %arg14: memref<16x1024xf32, #tpu.memory_space<vmem>>, %arg15: memref<16x256xf32, #tpu.memory_space<vmem>>, %arg16: memref<2x1024xf32, #tpu.memory_space<vmem>>) attributes {dimension_semantics = [], scalar_prefetch = 0 : i64, scratch_operands = 3 : i64, tpu.core_type = #tpu.core_type<tc>} {
    %c0 = arith.constant 0 : index
    %c0_0 = arith.constant 0 : index
    %0 = vector.load %arg0[%c0, %c0_0] : memref<16x128xf32, #tpu.memory_space<vmem>>, vector<16x128xf32>
    %c0_1 = arith.constant 0 : index
    %c0_2 = arith.constant 0 : index
    %1 = vector.load %arg1[%c0_1, %c0_2] : memref<128x1024xf32, #tpu.memory_space<vmem>>, vector<128x1024xf32>
    %cst = arith.constant dense<0.000000e+00> : vector<16x1024xf32>
    %2 = tpu.matmul %0, %1, %cst {dimension_numbers = #tpu.dot_dimension_numbers<[1], [0], [0], [1], [0, 0, 1, 1], [], []>} : vector<16x128xf32>, vector<128x1024xf32>, vector<16x1024xf32> -> vector<16x1024xf32>
    %c0_3 = arith.constant 0 : index
    %c0_4 = arith.constant 0 : index
    %3 = vector.load %arg4[%c0_3, %c0_4] : memref<1x1024xf32, #tpu.memory_space<vmem>>, vector<1x1024xf32>
    %4 = vector.broadcast %3 : vector<1x1024xf32> to vector<16x1024xf32>
    %5 = arith.addf %2, %4 : vector<16x1024xf32>
    %c0_5 = arith.constant 0 : index
    %c0_6 = arith.constant 0 : index
    %6 = vector.load %arg14[%c0_5, %c0_6] : memref<16x1024xf32, #tpu.memory_space<vmem>>, vector<16x1024xf32>
    tpu.vector_store %arg14[%c0_5, %c0_6], %5 {strides = array<i32>} : memref<16x1024xf32, #tpu.memory_space<vmem>>, vector<16x1024xf32>,
    %c0_7 = arith.constant 0 : index
    %c0_8 = arith.constant 0 : index
    %c0_9 = arith.constant 0 : index
    %7 = vector.load %arg9[%c0_7, %c0_8, %c0_9] : memref<4x2x128xf32, #tpu.memory_space<vmem>>, vector<1x2x128xf32>
    %8 = vector.shape_cast %7 : vector<1x2x128xf32> to vector<2x128xf32>
    %c0_10 = arith.constant 0 : index
    %c0_11 = arith.constant 0 : index
    %c0_12 = arith.constant 0 : index
    %9 = vector.load %arg10[%c0_10, %c0_11, %c0_12] : memref<4x2x128xf32, #tpu.memory_space<vmem>>, vector<1x2x128xf32>
    %10 = vector.shape_cast %9 : vector<1x2x128xf32> to vector<2x128xf32>
    %c1 = arith.constant 1 : index
    %c0_13 = arith.constant 0 : index
    %c0_14 = arith.constant 0 : index
    %11 = vector.load %arg9[%c1, %c0_13, %c0_14] : memref<4x2x128xf32, #tpu.memory_space<vmem>>, vector<1x2x128xf32>
    %12 = vector.shape_cast %11 : vector<1x2x128xf32> to vector<2x128xf32>
    %c1_15 = arith.constant 1 : index
    %c0_16 = arith.constant 0 : index
    %c0_17 = arith.constant 0 : index
    %13 = vector.load %arg10[%c1_15, %c0_16, %c0_17] : memref<4x2x128xf32, #tpu.memory_space<vmem>>, vector<1x2x128xf32>
    %14 = vector.shape_cast %13 : vector<1x2x128xf32> to vector<2x128xf32>
    %c0_18 = arith.constant 0 : index
    %c0_19 = arith.constant 0 : index
    %15 = vector.load %arg14[%c0_18, %c0_19] : memref<16x1024xf32, #tpu.memory_space<vmem>>, vector<2x512xf32>
    %c0_20 = arith.constant 0 : index
    %c0_21 = arith.constant 0 : index
    %16 = vector.load %arg2[%c0_20, %c0_21] : memref<128x512xf32, #tpu.memory_space<vmem>>, vector<128x512xf32>
    %cst_22 = arith.constant dense<0.000000e+00> : vector<2x512xf32>
    %17 = tpu.matmul %8, %16, %cst_22 {dimension_numbers = #tpu.dot_dimension_numbers<[1], [0], [0], [1], [0, 0, 1, 1], [], []>} : vector<2x128xf32>, vector<128x512xf32>, vector<2x512xf32> -> vector<2x512xf32>
    %18 = arith.addf %15, %17 : vector<2x512xf32>
    %c14 = arith.constant 14 : index
    %c512 = arith.constant 512 : index
    %19 = vector.load %arg14[%c14, %c512] : memref<16x1024xf32, #tpu.memory_space<vmem>>, vector<2x512xf32>
    %c0_23 = arith.constant 0 : index
    %c0_24 = arith.constant 0 : index
    %20 = vector.load %arg3[%c0_23, %c0_24] : memref<128x512xf32, #tpu.memory_space<vmem>>, vector<128x512xf32>
    %cst_25 = arith.constant dense<0.000000e+00> : vector<2x512xf32>
    %21 = tpu.matmul %12, %20, %cst_25 {dimension_numbers = #tpu.dot_dimension_numbers<[1], [0], [0], [1], [0, 0, 1, 1], [], []>} : vector<2x128xf32>, vector<128x512xf32>, vector<2x512xf32> -> vector<2x512xf32>
    %22 = arith.addf %19, %21 : vector<2x512xf32>
    %23 = vector.extract_strided_slice %18 {offsets = [0, 0], sizes = [2, 128], strides = [1, 1]} : vector<2x512xf32> to vector<2x128xf32>
    %24 = arith.negf %23 : vector<2x128xf32>
    %25 = math.exp %24 : vector<2x128xf32>
    %cst_26 = arith.constant 1.000000e+00 : f32
    %26 = vector.broadcast %cst_26 : f32 to vector<2x128xf32>
    %27 = arith.addf %26, %25 : vector<2x128xf32>
    %28 = arith.divf %26, %27 : vector<2x128xf32>
    %29 = vector.extract_strided_slice %18 {offsets = [0, 128], sizes = [2, 128], strides = [1, 1]} : vector<2x512xf32> to vector<2x128xf32>
    %30 = arith.negf %29 : vector<2x128xf32>
    %31 = math.exp %30 : vector<2x128xf32>
    %cst_27 = arith.constant 1.000000e+00 : f32
    %32 = vector.broadcast %cst_27 : f32 to vector<2x128xf32>
    %33 = arith.addf %32, %31 : vector<2x128xf32>
    %34 = arith.divf %32, %33 : vector<2x128xf32>
    %35 = vector.extract_strided_slice %18 {offsets = [0, 256], sizes = [2, 128], strides = [1, 1]} : vector<2x512xf32> to vector<2x128xf32>
    %36 = math.tanh %35 : vector<2x128xf32>
    %37 = vector.extract_strided_slice %18 {offsets = [0, 384], sizes = [2, 128], strides = [1, 1]} : vector<2x512xf32> to vector<2x128xf32>
    %38 = arith.negf %37 : vector<2x128xf32>
    %39 = math.exp %38 : vector<2x128xf32>
    %cst_28 = arith.constant 1.000000e+00 : f32
    %40 = vector.broadcast %cst_28 : f32 to vector<2x128xf32>
    %41 = arith.addf %40, %39 : vector<2x128xf32>
    %42 = arith.divf %40, %41 : vector<2x128xf32>
    %43 = arith.mulf %34, %10 : vector<2x128xf32>
    %44 = arith.mulf %28, %36 : vector<2x128xf32>
    %45 = arith.addf %43, %44 : vector<2x128xf32>
    %46 = math.tanh %45 : vector<2x128xf32>
    %47 = arith.mulf %42, %46 : vector<2x128xf32>
    %48 = vector.extract_strided_slice %22 {offsets = [0, 0], sizes = [2, 128], strides = [1, 1]} : vector<2x512xf32> to vector<2x128xf32>
    %49 = arith.negf %48 : vector<2x128xf32>
    %50 = math.exp %49 : vector<2x128xf32>
    %cst_29 = arith.constant 1.000000e+00 : f32
    %51 = vector.broadcast %cst_29 : f32 to vector<2x128xf32>
    %52 = arith.addf %51, %50 : vector<2x128xf32>
    %53 = arith.divf %51, %52 : vector<2x128xf32>
    %54 = vector.extract_strided_slice %22 {offsets = [0, 128], sizes = [2, 128], strides = [1, 1]} : vector<2x512xf32> to vector<2x128xf32>
    %55 = arith.negf %54 : vector<2x128xf32>
    %56 = math.exp %55 : vector<2x128xf32>
    %cst_30 = arith.constant 1.000000e+00 : f32
    %57 = vector.broadcast %cst_30 : f32 to vector<2x128xf32>
    %58 = arith.addf %57, %56 : vector<2x128xf32>
    %59 = arith.divf %57, %58 : vector<2x128xf32>
    %60 = vector.extract_strided_slice %22 {offsets = [0, 256], sizes = [2, 128], strides = [1, 1]} : vector<2x512xf32> to vector<2x128xf32>
    %61 = math.tanh %60 : vector<2x128xf32>
    %62 = vector.extract_strided_slice %22 {offsets = [0, 384], sizes = [2, 128], strides = [1, 1]} : vector<2x512xf32> to vector<2x128xf32>
    %63 = arith.negf %62 : vector<2x128xf32>
    %64 = math.exp %63 : vector<2x128xf32>
    %cst_31 = arith.constant 1.000000e+00 : f32
    %65 = vector.broadcast %cst_31 : f32 to vector<2x128xf32>
    %66 = arith.addf %65, %64 : vector<2x128xf32>
    %67 = arith.divf %65, %66 : vector<2x128xf32>
    %68 = arith.mulf %59, %14 : vector<2x128xf32>
    %69 = arith.mulf %53, %61 : vector<2x128xf32>
    %70 = arith.addf %68, %69 : vector<2x128xf32>
    %71 = math.tanh %70 : vector<2x128xf32>
    %72 = arith.mulf %67, %71 : vector<2x128xf32>
    %c0_32 = arith.constant 0 : index
    %c0_33 = arith.constant 0 : index
    %73 = vector.load %arg15[%c0_32, %c0_33] : memref<16x256xf32, #tpu.memory_space<vmem>>, vector<2x128xf32>
    tpu.vector_store %arg15[%c0_32, %c0_33], %47 {strides = array<i32>} : memref<16x256xf32, #tpu.memory_space<vmem>>, vector<2x128xf32>,
    %c14_34 = arith.constant 14 : index
    %c128 = arith.constant 128 : index
    %74 = vector.load %arg15[%c14_34, %c128] : memref<16x256xf32, #tpu.memory_space<vmem>>, vector<2x128xf32>
    tpu.vector_store %arg15[%c14_34, %c128], %72 {strides = array<i32>} : memref<16x256xf32, #tpu.memory_space<vmem>>, vector<2x128xf32>,
    %c2 = arith.constant 2 : index
    %c0_35 = arith.constant 0 : index
    %75 = vector.load %arg14[%c2, %c0_35] : memref<16x1024xf32, #tpu.memory_space<vmem>>, vector<2x512xf32>
    %c0_36 = arith.constant 0 : index
    %c0_37 = arith.constant 0 : index
    %76 = vector.load %arg2[%c0_36, %c0_37] : memref<128x512xf32, #tpu.memory_space<vmem>>, vector<128x512xf32>
    %cst_38 = arith.constant dense<0.000000e+00> : vector<2x512xf32>
    %77 = tpu.matmul %47, %76, %cst_38 {dimension_numbers = #tpu.dot_dimension_numbers<[1], [0], [0], [1], [0, 0, 1, 1], [], []>} : vector<2x128xf32>, vector<128x512xf32>, vector<2x512xf32> -> vector<2x512xf32>
    %78 = arith.addf %75, %77 : vector<2x512xf32>
    %c12 = arith.constant 12 : index
    %c512_39 = arith.constant 512 : index
    %79 = vector.load %arg14[%c12, %c512_39] : memref<16x1024xf32, #tpu.memory_space<vmem>>, vector<2x512xf32>
    %c0_40 = arith.constant 0 : index
    %c0_41 = arith.constant 0 : index
    %80 = vector.load %arg3[%c0_40, %c0_41] : memref<128x512xf32, #tpu.memory_space<vmem>>, vector<128x512xf32>
    %cst_42 = arith.constant dense<0.000000e+00> : vector<2x512xf32>
    %81 = tpu.matmul %72, %80, %cst_42 {dimension_numbers = #tpu.dot_dimension_numbers<[1], [0], [0], [1], [0, 0, 1, 1], [], []>} : vector<2x128xf32>, vector<128x512xf32>, vector<2x512xf32> -> vector<2x512xf32>
    %82 = arith.addf %79, %81 : vector<2x512xf32>
    %83 = vector.extract_strided_slice %78 {offsets = [0, 0], sizes = [2, 128], strides = [1, 1]} : vector<2x512xf32> to vector<2x128xf32>
    %84 = arith.negf %83 : vector<2x128xf32>
    %85 = math.exp %84 : vector<2x128xf32>
    %cst_43 = arith.constant 1.000000e+00 : f32
    %86 = vector.broadcast %cst_43 : f32 to vector<2x128xf32>
    %87 = arith.addf %86, %85 : vector<2x128xf32>
    %88 = arith.divf %86, %87 : vector<2x128xf32>
    %89 = vector.extract_strided_slice %78 {offsets = [0, 128], sizes = [2, 128], strides = [1, 1]} : vector<2x512xf32> to vector<2x128xf32>
    %90 = arith.negf %89 : vector<2x128xf32>
    %91 = math.exp %90 : vector<2x128xf32>
    %cst_44 = arith.constant 1.000000e+00 : f32
    %92 = vector.broadcast %cst_44 : f32 to vector<2x128xf32>
    %93 = arith.addf %92, %91 : vector<2x128xf32>
    %94 = arith.divf %92, %93 : vector<2x128xf32>
    %95 = vector.extract_strided_slice %78 {offsets = [0, 256], sizes = [2, 128], strides = [1, 1]} : vector<2x512xf32> to vector<2x128xf32>
    %96 = math.tanh %95 : vector<2x128xf32>
    %97 = vector.extract_strided_slice %78 {offsets = [0, 384], sizes = [2, 128], strides = [1, 1]} : vector<2x512xf32> to vector<2x128xf32>
    %98 = arith.negf %97 : vector<2x128xf32>
    %99 = math.exp %98 : vector<2x128xf32>
    %cst_45 = arith.constant 1.000000e+00 : f32
    %100 = vector.broadcast %cst_45 : f32 to vector<2x128xf32>
    %101 = arith.addf %100, %99 : vector<2x128xf32>
    %102 = arith.divf %100, %101 : vector<2x128xf32>
    %103 = arith.mulf %94, %45 : vector<2x128xf32>
    %104 = arith.mulf %88, %96 : vector<2x128xf32>
    %105 = arith.addf %103, %104 : vector<2x128xf32>
    %106 = math.tanh %105 : vector<2x128xf32>
    %107 = arith.mulf %102, %106 : vector<2x128xf32>
    %108 = vector.extract_strided_slice %82 {offsets = [0, 0], sizes = [2, 128], strides = [1, 1]} : vector<2x512xf32> to vector<2x128xf32>
    %109 = arith.negf %108 : vector<2x128xf32>
    %110 = math.exp %109 : vector<2x128xf32>
    %cst_46 = arith.constant 1.000000e+00 : f32
    %111 = vector.broadcast %cst_46 : f32 to vector<2x128xf32>
    %112 = arith.addf %111, %110 : vector<2x128xf32>
    %113 = arith.divf %111, %112 : vector<2x128xf32>
    %114 = vector.extract_strided_slice %82 {offsets = [0, 128], sizes = [2, 128], strides = [1, 1]} : vector<2x512xf32> to vector<2x128xf32>
    %115 = arith.negf %114 : vector<2x128xf32>
    %116 = math.exp %115 : vector<2x128xf32>
    %cst_47 = arith.constant 1.000000e+00 : f32
    %117 = vector.broadcast %cst_47 : f32 to vector<2x128xf32>
    %118 = arith.addf %117, %116 : vector<2x128xf32>
    %119 = arith.divf %117, %118 : vector<2x128xf32>
    %120 = vector.extract_strided_slice %82 {offsets = [0, 256], sizes = [2, 128], strides = [1, 1]} : vector<2x512xf32> to vector<2x128xf32>
    %121 = math.tanh %120 : vector<2x128xf32>
    %122 = vector.extract_strided_slice %82 {offsets = [0, 384], sizes = [2, 128], strides = [1, 1]} : vector<2x512xf32> to vector<2x128xf32>
    %123 = arith.negf %122 : vector<2x128xf32>
    %124 = math.exp %123 : vector<2x128xf32>
    %cst_48 = arith.constant 1.000000e+00 : f32
    %125 = vector.broadcast %cst_48 : f32 to vector<2x128xf32>
    %126 = arith.addf %125, %124 : vector<2x128xf32>
    %127 = arith.divf %125, %126 : vector<2x128xf32>
    %128 = arith.mulf %119, %70 : vector<2x128xf32>
    %129 = arith.mulf %113, %121 : vector<2x128xf32>
    %130 = arith.addf %128, %129 : vector<2x128xf32>
    %131 = math.tanh %130 : vector<2x128xf32>
    %132 = arith.mulf %127, %131 : vector<2x128xf32>
    %c2_49 = arith.constant 2 : index
    %c0_50 = arith.constant 0 : index
    %133 = vector.load %arg15[%c2_49, %c0_50] : memref<16x256xf32, #tpu.memory_space<vmem>>, vector<2x128xf32>
    tpu.vector_store %arg15[%c2_49, %c0_50], %107 {strides = array<i32>} : memref<16x256xf32, #tpu.memory_space<vmem>>, vector<2x128xf32>,
    %c12_51 = arith.constant 12 : index
    %c128_52 = arith.constant 128 : index
    %134 = vector.load %arg15[%c12_51, %c128_52] : memref<16x256xf32, #tpu.memory_space<vmem>>, vector<2x128xf32>
    tpu.vector_store %arg15[%c12_51, %c128_52], %132 {strides = array<i32>} : memref<16x256xf32, #tpu.memory_space<vmem>>, vector<2x128xf32>,
    %c4 = arith.constant 4 : index
    %c0_53 = arith.constant 0 : index
    %135 = vector.load %arg14[%c4, %c0_53] : memref<16x1024xf32, #tpu.memory_space<vmem>>, vector<2x512xf32>
    %c0_54 = arith.constant 0 : index
    %c0_55 = arith.constant 0 : index
    %136 = vector.load %arg2[%c0_54, %c0_55] : memref<128x512xf32, #tpu.memory_space<vmem>>, vector<128x512xf32>
    %cst_56 = arith.constant dense<0.000000e+00> : vector<2x512xf32>
    %137 = tpu.matmul %107, %136, %cst_56 {dimension_numbers = #tpu.dot_dimension_numbers<[1], [0], [0], [1], [0, 0, 1, 1], [], []>} : vector<2x128xf32>, vector<128x512xf32>, vector<2x512xf32> -> vector<2x512xf32>
    %138 = arith.addf %135, %137 : vector<2x512xf32>
    %c10 = arith.constant 10 : index
    %c512_57 = arith.constant 512 : index
    %139 = vector.load %arg14[%c10, %c512_57] : memref<16x1024xf32, #tpu.memory_space<vmem>>, vector<2x512xf32>
    %c0_58 = arith.constant 0 : index
    %c0_59 = arith.constant 0 : index
    %140 = vector.load %arg3[%c0_58, %c0_59] : memref<128x512xf32, #tpu.memory_space<vmem>>, vector<128x512xf32>
    %cst_60 = arith.constant dense<0.000000e+00> : vector<2x512xf32>
    %141 = tpu.matmul %132, %140, %cst_60 {dimension_numbers = #tpu.dot_dimension_numbers<[1], [0], [0], [1], [0, 0, 1, 1], [], []>} : vector<2x128xf32>, vector<128x512xf32>, vector<2x512xf32> -> vector<2x512xf32>
    %142 = arith.addf %139, %141 : vector<2x512xf32>
    %143 = vector.extract_strided_slice %138 {offsets = [0, 0], sizes = [2, 128], strides = [1, 1]} : vector<2x512xf32> to vector<2x128xf32>
    %144 = arith.negf %143 : vector<2x128xf32>
    %145 = math.exp %144 : vector<2x128xf32>
    %cst_61 = arith.constant 1.000000e+00 : f32
    %146 = vector.broadcast %cst_61 : f32 to vector<2x128xf32>
    %147 = arith.addf %146, %145 : vector<2x128xf32>
    %148 = arith.divf %146, %147 : vector<2x128xf32>
    %149 = vector.extract_strided_slice %138 {offsets = [0, 128], sizes = [2, 128], strides = [1, 1]} : vector<2x512xf32> to vector<2x128xf32>
    %150 = arith.negf %149 : vector<2x128xf32>
    %151 = math.exp %150 : vector<2x128xf32>
    %cst_62 = arith.constant 1.000000e+00 : f32
    %152 = vector.broadcast %cst_62 : f32 to vector<2x128xf32>
    %153 = arith.addf %152, %151 : vector<2x128xf32>
    %154 = arith.divf %152, %153 : vector<2x128xf32>
    %155 = vector.extract_strided_slice %138 {offsets = [0, 256], sizes = [2, 128], strides = [1, 1]} : vector<2x512xf32> to vector<2x128xf32>
    %156 = math.tanh %155 : vector<2x128xf32>
    %157 = vector.extract_strided_slice %138 {offsets = [0, 384], sizes = [2, 128], strides = [1, 1]} : vector<2x512xf32> to vector<2x128xf32>
    %158 = arith.negf %157 : vector<2x128xf32>
    %159 = math.exp %158 : vector<2x128xf32>
    %cst_63 = arith.constant 1.000000e+00 : f32
    %160 = vector.broadcast %cst_63 : f32 to vector<2x128xf32>
    %161 = arith.addf %160, %159 : vector<2x128xf32>
    %162 = arith.divf %160, %161 : vector<2x128xf32>
    %163 = arith.mulf %154, %105 : vector<2x128xf32>
    %164 = arith.mulf %148, %156 : vector<2x128xf32>
    %165 = arith.addf %163, %164 : vector<2x128xf32>
    %166 = math.tanh %165 : vector<2x128xf32>
    %167 = arith.mulf %162, %166 : vector<2x128xf32>
    %168 = vector.extract_strided_slice %142 {offsets = [0, 0], sizes = [2, 128], strides = [1, 1]} : vector<2x512xf32> to vector<2x128xf32>
    %169 = arith.negf %168 : vector<2x128xf32>
    %170 = math.exp %169 : vector<2x128xf32>
    %cst_64 = arith.constant 1.000000e+00 : f32
    %171 = vector.broadcast %cst_64 : f32 to vector<2x128xf32>
    %172 = arith.addf %171, %170 : vector<2x128xf32>
    %173 = arith.divf %171, %172 : vector<2x128xf32>
    %174 = vector.extract_strided_slice %142 {offsets = [0, 128], sizes = [2, 128], strides = [1, 1]} : vector<2x512xf32> to vector<2x128xf32>
    %175 = arith.negf %174 : vector<2x128xf32>
    %176 = math.exp %175 : vector<2x128xf32>
    %cst_65 = arith.constant 1.000000e+00 : f32
    %177 = vector.broadcast %cst_65 : f32 to vector<2x128xf32>
    %178 = arith.addf %177, %176 : vector<2x128xf32>
    %179 = arith.divf %177, %178 : vector<2x128xf32>
    %180 = vector.extract_strided_slice %142 {offsets = [0, 256], sizes = [2, 128], strides = [1, 1]} : vector<2x512xf32> to vector<2x128xf32>
    %181 = math.tanh %180 : vector<2x128xf32>
    %182 = vector.extract_strided_slice %142 {offsets = [0, 384], sizes = [2, 128], strides = [1, 1]} : vector<2x512xf32> to vector<2x128xf32>
    %183 = arith.negf %182 : vector<2x128xf32>
    %184 = math.exp %183 : vector<2x128xf32>
    %cst_66 = arith.constant 1.000000e+00 : f32
    %185 = vector.broadcast %cst_66 : f32 to vector<2x128xf32>
    %186 = arith.addf %185, %184 : vector<2x128xf32>
    %187 = arith.divf %185, %186 : vector<2x128xf32>
    %188 = arith.mulf %179, %130 : vector<2x128xf32>
    %189 = arith.mulf %173, %181 : vector<2x128xf32>
    %190 = arith.addf %188, %189 : vector<2x128xf32>
    %191 = math.tanh %190 : vector<2x128xf32>
    %192 = arith.mulf %187, %191 : vector<2x128xf32>
    %c4_67 = arith.constant 4 : index
    %c0_68 = arith.constant 0 : index
    %193 = vector.load %arg15[%c4_67, %c0_68] : memref<16x256xf32, #tpu.memory_space<vmem>>, vector<2x128xf32>
    tpu.vector_store %arg15[%c4_67, %c0_68], %167 {strides = array<i32>} : memref<16x256xf32, #tpu.memory_space<vmem>>, vector<2x128xf32>,
    %c10_69 = arith.constant 10 : index
    %c128_70 = arith.constant 128 : index
    %194 = vector.load %arg15[%c10_69, %c128_70] : memref<16x256xf32, #tpu.memory_space<vmem>>, vector<2x128xf32>
    tpu.vector_store %arg15[%c10_69, %c128_70], %192 {strides = array<i32>} : memref<16x256xf32, #tpu.memory_space<vmem>>, vector<2x128xf32>,
    %c6 = arith.constant 6 : index
    %c0_71 = arith.constant 0 : index
    %195 = vector.load %arg14[%c6, %c0_71] : memref<16x1024xf32, #tpu.memory_space<vmem>>, vector<2x512xf32>
    %c0_72 = arith.constant 0 : index
    %c0_73 = arith.constant 0 : index
    %196 = vector.load %arg2[%c0_72, %c0_73] : memref<128x512xf32, #tpu.memory_space<vmem>>, vector<128x512xf32>
    %cst_74 = arith.constant dense<0.000000e+00> : vector<2x512xf32>
    %197 = tpu.matmul %167, %196, %cst_74 {dimension_numbers = #tpu.dot_dimension_numbers<[1], [0], [0], [1], [0, 0, 1, 1], [], []>} : vector<2x128xf32>, vector<128x512xf32>, vector<2x512xf32> -> vector<2x512xf32>
    %198 = arith.addf %195, %197 : vector<2x512xf32>
    %c8 = arith.constant 8 : index
    %c512_75 = arith.constant 512 : index
    %199 = vector.load %arg14[%c8, %c512_75] : memref<16x1024xf32, #tpu.memory_space<vmem>>, vector<2x512xf32>
    %c0_76 = arith.constant 0 : index
    %c0_77 = arith.constant 0 : index
    %200 = vector.load %arg3[%c0_76, %c0_77] : memref<128x512xf32, #tpu.memory_space<vmem>>, vector<128x512xf32>
    %cst_78 = arith.constant dense<0.000000e+00> : vector<2x512xf32>
    %201 = tpu.matmul %192, %200, %cst_78 {dimension_numbers = #tpu.dot_dimension_numbers<[1], [0], [0], [1], [0, 0, 1, 1], [], []>} : vector<2x128xf32>, vector<128x512xf32>, vector<2x512xf32> -> vector<2x512xf32>
    %202 = arith.addf %199, %201 : vector<2x512xf32>
    %203 = vector.extract_strided_slice %198 {offsets = [0, 0], sizes = [2, 128], strides = [1, 1]} : vector<2x512xf32> to vector<2x128xf32>
    %204 = arith.negf %203 : vector<2x128xf32>
    %205 = math.exp %204 : vector<2x128xf32>
    %cst_79 = arith.constant 1.000000e+00 : f32
    %206 = vector.broadcast %cst_79 : f32 to vector<2x128xf32>
    %207 = arith.addf %206, %205 : vector<2x128xf32>
    %208 = arith.divf %206, %207 : vector<2x128xf32>
    %209 = vector.extract_strided_slice %198 {offsets = [0, 128], sizes = [2, 128], strides = [1, 1]} : vector<2x512xf32> to vector<2x128xf32>
    %210 = arith.negf %209 : vector<2x128xf32>
    %211 = math.exp %210 : vector<2x128xf32>
    %cst_80 = arith.constant 1.000000e+00 : f32
    %212 = vector.broadcast %cst_80 : f32 to vector<2x128xf32>
    %213 = arith.addf %212, %211 : vector<2x128xf32>
    %214 = arith.divf %212, %213 : vector<2x128xf32>
    %215 = vector.extract_strided_slice %198 {offsets = [0, 256], sizes = [2, 128], strides = [1, 1]} : vector<2x512xf32> to vector<2x128xf32>
    %216 = math.tanh %215 : vector<2x128xf32>
    %217 = vector.extract_strided_slice %198 {offsets = [0, 384], sizes = [2, 128], strides = [1, 1]} : vector<2x512xf32> to vector<2x128xf32>
    %218 = arith.negf %217 : vector<2x128xf32>
    %219 = math.exp %218 : vector<2x128xf32>
    %cst_81 = arith.constant 1.000000e+00 : f32
    %220 = vector.broadcast %cst_81 : f32 to vector<2x128xf32>
    %221 = arith.addf %220, %219 : vector<2x128xf32>
    %222 = arith.divf %220, %221 : vector<2x128xf32>
    %223 = arith.mulf %214, %165 : vector<2x128xf32>
    %224 = arith.mulf %208, %216 : vector<2x128xf32>
    %225 = arith.addf %223, %224 : vector<2x128xf32>
    %226 = math.tanh %225 : vector<2x128xf32>
    %227 = arith.mulf %222, %226 : vector<2x128xf32>
    %228 = vector.extract_strided_slice %202 {offsets = [0, 0], sizes = [2, 128], strides = [1, 1]} : vector<2x512xf32> to vector<2x128xf32>
    %229 = arith.negf %228 : vector<2x128xf32>
    %230 = math.exp %229 : vector<2x128xf32>
    %cst_82 = arith.constant 1.000000e+00 : f32
    %231 = vector.broadcast %cst_82 : f32 to vector<2x128xf32>
    %232 = arith.addf %231, %230 : vector<2x128xf32>
    %233 = arith.divf %231, %232 : vector<2x128xf32>
    %234 = vector.extract_strided_slice %202 {offsets = [0, 128], sizes = [2, 128], strides = [1, 1]} : vector<2x512xf32> to vector<2x128xf32>
    %235 = arith.negf %234 : vector<2x128xf32>
    %236 = math.exp %235 : vector<2x128xf32>
    %cst_83 = arith.constant 1.000000e+00 : f32
    %237 = vector.broadcast %cst_83 : f32 to vector<2x128xf32>
    %238 = arith.addf %237, %236 : vector<2x128xf32>
    %239 = arith.divf %237, %238 : vector<2x128xf32>
    %240 = vector.extract_strided_slice %202 {offsets = [0, 256], sizes = [2, 128], strides = [1, 1]} : vector<2x512xf32> to vector<2x128xf32>
    %241 = math.tanh %240 : vector<2x128xf32>
    %242 = vector.extract_strided_slice %202 {offsets = [0, 384], sizes = [2, 128], strides = [1, 1]} : vector<2x512xf32> to vector<2x128xf32>
    %243 = arith.negf %242 : vector<2x128xf32>
    %244 = math.exp %243 : vector<2x128xf32>
    %cst_84 = arith.constant 1.000000e+00 : f32
    %245 = vector.broadcast %cst_84 : f32 to vector<2x128xf32>
    %246 = arith.addf %245, %244 : vector<2x128xf32>
    %247 = arith.divf %245, %246 : vector<2x128xf32>
    %248 = arith.mulf %239, %190 : vector<2x128xf32>
    %249 = arith.mulf %233, %241 : vector<2x128xf32>
    %250 = arith.addf %248, %249 : vector<2x128xf32>
    %251 = math.tanh %250 : vector<2x128xf32>
    %252 = arith.mulf %247, %251 : vector<2x128xf32>
    %c6_85 = arith.constant 6 : index
    %c0_86 = arith.constant 0 : index
    %253 = vector.load %arg15[%c6_85, %c0_86] : memref<16x256xf32, #tpu.memory_space<vmem>>, vector<2x128xf32>
    tpu.vector_store %arg15[%c6_85, %c0_86], %227 {strides = array<i32>} : memref<16x256xf32, #tpu.memory_space<vmem>>, vector<2x128xf32>,
    %c8_87 = arith.constant 8 : index
    %c128_88 = arith.constant 128 : index
    %254 = vector.load %arg15[%c8_87, %c128_88] : memref<16x256xf32, #tpu.memory_space<vmem>>, vector<2x128xf32>
    tpu.vector_store %arg15[%c8_87, %c128_88], %252 {strides = array<i32>} : memref<16x256xf32, #tpu.memory_space<vmem>>, vector<2x128xf32>,
    %c8_89 = arith.constant 8 : index
    %c0_90 = arith.constant 0 : index
    %255 = vector.load %arg14[%c8_89, %c0_90] : memref<16x1024xf32, #tpu.memory_space<vmem>>, vector<2x512xf32>
    %c0_91 = arith.constant 0 : index
    %c0_92 = arith.constant 0 : index
    %256 = vector.load %arg2[%c0_91, %c0_92] : memref<128x512xf32, #tpu.memory_space<vmem>>, vector<128x512xf32>
    %cst_93 = arith.constant dense<0.000000e+00> : vector<2x512xf32>
    %257 = tpu.matmul %227, %256, %cst_93 {dimension_numbers = #tpu.dot_dimension_numbers<[1], [0], [0], [1], [0, 0, 1, 1], [], []>} : vector<2x128xf32>, vector<128x512xf32>, vector<2x512xf32> -> vector<2x512xf32>
    %258 = arith.addf %255, %257 : vector<2x512xf32>
    %c6_94 = arith.constant 6 : index
    %c512_95 = arith.constant 512 : index
    %259 = vector.load %arg14[%c6_94, %c512_95] : memref<16x1024xf32, #tpu.memory_space<vmem>>, vector<2x512xf32>
    %c0_96 = arith.constant 0 : index
    %c0_97 = arith.constant 0 : index
    %260 = vector.load %arg3[%c0_96, %c0_97] : memref<128x512xf32, #tpu.memory_space<vmem>>, vector<128x512xf32>
    %cst_98 = arith.constant dense<0.000000e+00> : vector<2x512xf32>
    %261 = tpu.matmul %252, %260, %cst_98 {dimension_numbers = #tpu.dot_dimension_numbers<[1], [0], [0], [1], [0, 0, 1, 1], [], []>} : vector<2x128xf32>, vector<128x512xf32>, vector<2x512xf32> -> vector<2x512xf32>
    %262 = arith.addf %259, %261 : vector<2x512xf32>
    %263 = vector.extract_strided_slice %258 {offsets = [0, 0], sizes = [2, 128], strides = [1, 1]} : vector<2x512xf32> to vector<2x128xf32>
    %264 = arith.negf %263 : vector<2x128xf32>
    %265 = math.exp %264 : vector<2x128xf32>
    %cst_99 = arith.constant 1.000000e+00 : f32
    %266 = vector.broadcast %cst_99 : f32 to vector<2x128xf32>
    %267 = arith.addf %266, %265 : vector<2x128xf32>
    %268 = arith.divf %266, %267 : vector<2x128xf32>
    %269 = vector.extract_strided_slice %258 {offsets = [0, 128], sizes = [2, 128], strides = [1, 1]} : vector<2x512xf32> to vector<2x128xf32>
    %270 = arith.negf %269 : vector<2x128xf32>
    %271 = math.exp %270 : vector<2x128xf32>
    %cst_100 = arith.constant 1.000000e+00 : f32
    %272 = vector.broadcast %cst_100 : f32 to vector<2x128xf32>
    %273 = arith.addf %272, %271 : vector<2x128xf32>
    %274 = arith.divf %272, %273 : vector<2x128xf32>
    %275 = vector.extract_strided_slice %258 {offsets = [0, 256], sizes = [2, 128], strides = [1, 1]} : vector<2x512xf32> to vector<2x128xf32>
    %276 = math.tanh %275 : vector<2x128xf32>
    %277 = vector.extract_strided_slice %258 {offsets = [0, 384], sizes = [2, 128], strides = [1, 1]} : vector<2x512xf32> to vector<2x128xf32>
    %278 = arith.negf %277 : vector<2x128xf32>
    %279 = math.exp %278 : vector<2x128xf32>
    %cst_101 = arith.constant 1.000000e+00 : f32
    %280 = vector.broadcast %cst_101 : f32 to vector<2x128xf32>
    %281 = arith.addf %280, %279 : vector<2x128xf32>
    %282 = arith.divf %280, %281 : vector<2x128xf32>
    %283 = arith.mulf %274, %225 : vector<2x128xf32>
    %284 = arith.mulf %268, %276 : vector<2x128xf32>
    %285 = arith.addf %283, %284 : vector<2x128xf32>
    %286 = math.tanh %285 : vector<2x128xf32>
    %287 = arith.mulf %282, %286 : vector<2x128xf32>
    %288 = vector.extract_strided_slice %262 {offsets = [0, 0], sizes = [2, 128], strides = [1, 1]} : vector<2x512xf32> to vector<2x128xf32>
    %289 = arith.negf %288 : vector<2x128xf32>
    %290 = math.exp %289 : vector<2x128xf32>
    %cst_102 = arith.constant 1.000000e+00 : f32
    %291 = vector.broadcast %cst_102 : f32 to vector<2x128xf32>
    %292 = arith.addf %291, %290 : vector<2x128xf32>
    %293 = arith.divf %291, %292 : vector<2x128xf32>
    %294 = vector.extract_strided_slice %262 {offsets = [0, 128], sizes = [2, 128], strides = [1, 1]} : vector<2x512xf32> to vector<2x128xf32>
    %295 = arith.negf %294 : vector<2x128xf32>
    %296 = math.exp %295 : vector<2x128xf32>
    %cst_103 = arith.constant 1.000000e+00 : f32
    %297 = vector.broadcast %cst_103 : f32 to vector<2x128xf32>
    %298 = arith.addf %297, %296 : vector<2x128xf32>
    %299 = arith.divf %297, %298 : vector<2x128xf32>
    %300 = vector.extract_strided_slice %262 {offsets = [0, 256], sizes = [2, 128], strides = [1, 1]} : vector<2x512xf32> to vector<2x128xf32>
    %301 = math.tanh %300 : vector<2x128xf32>
    %302 = vector.extract_strided_slice %262 {offsets = [0, 384], sizes = [2, 128], strides = [1, 1]} : vector<2x512xf32> to vector<2x128xf32>
    %303 = arith.negf %302 : vector<2x128xf32>
    %304 = math.exp %303 : vector<2x128xf32>
    %cst_104 = arith.constant 1.000000e+00 : f32
    %305 = vector.broadcast %cst_104 : f32 to vector<2x128xf32>
    %306 = arith.addf %305, %304 : vector<2x128xf32>
    %307 = arith.divf %305, %306 : vector<2x128xf32>
    %308 = arith.mulf %299, %250 : vector<2x128xf32>
    %309 = arith.mulf %293, %301 : vector<2x128xf32>
    %310 = arith.addf %308, %309 : vector<2x128xf32>
    %311 = math.tanh %310 : vector<2x128xf32>
    %312 = arith.mulf %307, %311 : vector<2x128xf32>
    %c8_105 = arith.constant 8 : index
    %c0_106 = arith.constant 0 : index
    %313 = vector.load %arg15[%c8_105, %c0_106] : memref<16x256xf32, #tpu.memory_space<vmem>>, vector<2x128xf32>
    tpu.vector_store %arg15[%c8_105, %c0_106], %287 {strides = array<i32>} : memref<16x256xf32, #tpu.memory_space<vmem>>, vector<2x128xf32>,
    %c6_107 = arith.constant 6 : index
    %c128_108 = arith.constant 128 : index
    %314 = vector.load %arg15[%c6_107, %c128_108] : memref<16x256xf32, #tpu.memory_space<vmem>>, vector<2x128xf32>
    tpu.vector_store %arg15[%c6_107, %c128_108], %312 {strides = array<i32>} : memref<16x256xf32, #tpu.memory_space<vmem>>, vector<2x128xf32>,
    %c10_109 = arith.constant 10 : index
    %c0_110 = arith.constant 0 : index
    %315 = vector.load %arg14[%c10_109, %c0_110] : memref<16x1024xf32, #tpu.memory_space<vmem>>, vector<2x512xf32>
    %c0_111 = arith.constant 0 : index
    %c0_112 = arith.constant 0 : index
    %316 = vector.load %arg2[%c0_111, %c0_112] : memref<128x512xf32, #tpu.memory_space<vmem>>, vector<128x512xf32>
    %cst_113 = arith.constant dense<0.000000e+00> : vector<2x512xf32>
    %317 = tpu.matmul %287, %316, %cst_113 {dimension_numbers = #tpu.dot_dimension_numbers<[1], [0], [0], [1], [0, 0, 1, 1], [], []>} : vector<2x128xf32>, vector<128x512xf32>, vector<2x512xf32> -> vector<2x512xf32>
    %318 = arith.addf %315, %317 : vector<2x512xf32>
    %c4_114 = arith.constant 4 : index
    %c512_115 = arith.constant 512 : index
    %319 = vector.load %arg14[%c4_114, %c512_115] : memref<16x1024xf32, #tpu.memory_space<vmem>>, vector<2x512xf32>
    %c0_116 = arith.constant 0 : index
    %c0_117 = arith.constant 0 : index
    %320 = vector.load %arg3[%c0_116, %c0_117] : memref<128x512xf32, #tpu.memory_space<vmem>>, vector<128x512xf32>
    %cst_118 = arith.constant dense<0.000000e+00> : vector<2x512xf32>
    %321 = tpu.matmul %312, %320, %cst_118 {dimension_numbers = #tpu.dot_dimension_numbers<[1], [0], [0], [1], [0, 0, 1, 1], [], []>} : vector<2x128xf32>, vector<128x512xf32>, vector<2x512xf32> -> vector<2x512xf32>
    %322 = arith.addf %319, %321 : vector<2x512xf32>
    %323 = vector.extract_strided_slice %318 {offsets = [0, 0], sizes = [2, 128], strides = [1, 1]} : vector<2x512xf32> to vector<2x128xf32>
    %324 = arith.negf %323 : vector<2x128xf32>
    %325 = math.exp %324 : vector<2x128xf32>
    %cst_119 = arith.constant 1.000000e+00 : f32
    %326 = vector.broadcast %cst_119 : f32 to vector<2x128xf32>
    %327 = arith.addf %326, %325 : vector<2x128xf32>
    %328 = arith.divf %326, %327 : vector<2x128xf32>
    %329 = vector.extract_strided_slice %318 {offsets = [0, 128], sizes = [2, 128], strides = [1, 1]} : vector<2x512xf32> to vector<2x128xf32>
    %330 = arith.negf %329 : vector<2x128xf32>
    %331 = math.exp %330 : vector<2x128xf32>
    %cst_120 = arith.constant 1.000000e+00 : f32
    %332 = vector.broadcast %cst_120 : f32 to vector<2x128xf32>
    %333 = arith.addf %332, %331 : vector<2x128xf32>
    %334 = arith.divf %332, %333 : vector<2x128xf32>
    %335 = vector.extract_strided_slice %318 {offsets = [0, 256], sizes = [2, 128], strides = [1, 1]} : vector<2x512xf32> to vector<2x128xf32>
    %336 = math.tanh %335 : vector<2x128xf32>
    %337 = vector.extract_strided_slice %318 {offsets = [0, 384], sizes = [2, 128], strides = [1, 1]} : vector<2x512xf32> to vector<2x128xf32>
    %338 = arith.negf %337 : vector<2x128xf32>
    %339 = math.exp %338 : vector<2x128xf32>
    %cst_121 = arith.constant 1.000000e+00 : f32
    %340 = vector.broadcast %cst_121 : f32 to vector<2x128xf32>
    %341 = arith.addf %340, %339 : vector<2x128xf32>
    %342 = arith.divf %340, %341 : vector<2x128xf32>
    %343 = arith.mulf %334, %285 : vector<2x128xf32>
    %344 = arith.mulf %328, %336 : vector<2x128xf32>
    %345 = arith.addf %343, %344 : vector<2x128xf32>
    %346 = math.tanh %345 : vector<2x128xf32>
    %347 = arith.mulf %342, %346 : vector<2x128xf32>
    %348 = vector.extract_strided_slice %322 {offsets = [0, 0], sizes = [2, 128], strides = [1, 1]} : vector<2x512xf32> to vector<2x128xf32>
    %349 = arith.negf %348 : vector<2x128xf32>
    %350 = math.exp %349 : vector<2x128xf32>
    %cst_122 = arith.constant 1.000000e+00 : f32
    %351 = vector.broadcast %cst_122 : f32 to vector<2x128xf32>
    %352 = arith.addf %351, %350 : vector<2x128xf32>
    %353 = arith.divf %351, %352 : vector<2x128xf32>
    %354 = vector.extract_strided_slice %322 {offsets = [0, 128], sizes = [2, 128], strides = [1, 1]} : vector<2x512xf32> to vector<2x128xf32>
    %355 = arith.negf %354 : vector<2x128xf32>
    %356 = math.exp %355 : vector<2x128xf32>
    %cst_123 = arith.constant 1.000000e+00 : f32
    %357 = vector.broadcast %cst_123 : f32 to vector<2x128xf32>
    %358 = arith.addf %357, %356 : vector<2x128xf32>
    %359 = arith.divf %357, %358 : vector<2x128xf32>
    %360 = vector.extract_strided_slice %322 {offsets = [0, 256], sizes = [2, 128], strides = [1, 1]} : vector<2x512xf32> to vector<2x128xf32>
    %361 = math.tanh %360 : vector<2x128xf32>
    %362 = vector.extract_strided_slice %322 {offsets = [0, 384], sizes = [2, 128], strides = [1, 1]} : vector<2x512xf32> to vector<2x128xf32>
    %363 = arith.negf %362 : vector<2x128xf32>
    %364 = math.exp %363 : vector<2x128xf32>
    %cst_124 = arith.constant 1.000000e+00 : f32
    %365 = vector.broadcast %cst_124 : f32 to vector<2x128xf32>
    %366 = arith.addf %365, %364 : vector<2x128xf32>
    %367 = arith.divf %365, %366 : vector<2x128xf32>
    %368 = arith.mulf %359, %310 : vector<2x128xf32>
    %369 = arith.mulf %353, %361 : vector<2x128xf32>
    %370 = arith.addf %368, %369 : vector<2x128xf32>
    %371 = math.tanh %370 : vector<2x128xf32>
    %372 = arith.mulf %367, %371 : vector<2x128xf32>
    %c10_125 = arith.constant 10 : index
    %c0_126 = arith.constant 0 : index
    %373 = vector.load %arg15[%c10_125, %c0_126] : memref<16x256xf32, #tpu.memory_space<vmem>>, vector<2x128xf32>
    tpu.vector_store %arg15[%c10_125, %c0_126], %347 {strides = array<i32>} : memref<16x256xf32, #tpu.memory_space<vmem>>, vector<2x128xf32>,
    %c4_127 = arith.constant 4 : index
    %c128_128 = arith.constant 128 : index
    %374 = vector.load %arg15[%c4_127, %c128_128] : memref<16x256xf32, #tpu.memory_space<vmem>>, vector<2x128xf32>
    tpu.vector_store %arg15[%c4_127, %c128_128], %372 {strides = array<i32>} : memref<16x256xf32, #tpu.memory_space<vmem>>, vector<2x128xf32>,
    %c12_129 = arith.constant 12 : index
    %c0_130 = arith.constant 0 : index
    %375 = vector.load %arg14[%c12_129, %c0_130] : memref<16x1024xf32, #tpu.memory_space<vmem>>, vector<2x512xf32>
    %c0_131 = arith.constant 0 : index
    %c0_132 = arith.constant 0 : index
    %376 = vector.load %arg2[%c0_131, %c0_132] : memref<128x512xf32, #tpu.memory_space<vmem>>, vector<128x512xf32>
    %cst_133 = arith.constant dense<0.000000e+00> : vector<2x512xf32>
    %377 = tpu.matmul %347, %376, %cst_133 {dimension_numbers = #tpu.dot_dimension_numbers<[1], [0], [0], [1], [0, 0, 1, 1], [], []>} : vector<2x128xf32>, vector<128x512xf32>, vector<2x512xf32> -> vector<2x512xf32>
    %378 = arith.addf %375, %377 : vector<2x512xf32>
    %c2_134 = arith.constant 2 : index
    %c512_135 = arith.constant 512 : index
    %379 = vector.load %arg14[%c2_134, %c512_135] : memref<16x1024xf32, #tpu.memory_space<vmem>>, vector<2x512xf32>
    %c0_136 = arith.constant 0 : index
    %c0_137 = arith.constant 0 : index
    %380 = vector.load %arg3[%c0_136, %c0_137] : memref<128x512xf32, #tpu.memory_space<vmem>>, vector<128x512xf32>
    %cst_138 = arith.constant dense<0.000000e+00> : vector<2x512xf32>
    %381 = tpu.matmul %372, %380, %cst_138 {dimension_numbers = #tpu.dot_dimension_numbers<[1], [0], [0], [1], [0, 0, 1, 1], [], []>} : vector<2x128xf32>, vector<128x512xf32>, vector<2x512xf32> -> vector<2x512xf32>
    %382 = arith.addf %379, %381 : vector<2x512xf32>
    %383 = vector.extract_strided_slice %378 {offsets = [0, 0], sizes = [2, 128], strides = [1, 1]} : vector<2x512xf32> to vector<2x128xf32>
    %384 = arith.negf %383 : vector<2x128xf32>
    %385 = math.exp %384 : vector<2x128xf32>
    %cst_139 = arith.constant 1.000000e+00 : f32
    %386 = vector.broadcast %cst_139 : f32 to vector<2x128xf32>
    %387 = arith.addf %386, %385 : vector<2x128xf32>
    %388 = arith.divf %386, %387 : vector<2x128xf32>
    %389 = vector.extract_strided_slice %378 {offsets = [0, 128], sizes = [2, 128], strides = [1, 1]} : vector<2x512xf32> to vector<2x128xf32>
    %390 = arith.negf %389 : vector<2x128xf32>
    %391 = math.exp %390 : vector<2x128xf32>
    %cst_140 = arith.constant 1.000000e+00 : f32
    %392 = vector.broadcast %cst_140 : f32 to vector<2x128xf32>
    %393 = arith.addf %392, %391 : vector<2x128xf32>
    %394 = arith.divf %392, %393 : vector<2x128xf32>
    %395 = vector.extract_strided_slice %378 {offsets = [0, 256], sizes = [2, 128], strides = [1, 1]} : vector<2x512xf32> to vector<2x128xf32>
    %396 = math.tanh %395 : vector<2x128xf32>
    %397 = vector.extract_strided_slice %378 {offsets = [0, 384], sizes = [2, 128], strides = [1, 1]} : vector<2x512xf32> to vector<2x128xf32>
    %398 = arith.negf %397 : vector<2x128xf32>
    %399 = math.exp %398 : vector<2x128xf32>
    %cst_141 = arith.constant 1.000000e+00 : f32
    %400 = vector.broadcast %cst_141 : f32 to vector<2x128xf32>
    %401 = arith.addf %400, %399 : vector<2x128xf32>
    %402 = arith.divf %400, %401 : vector<2x128xf32>
    %403 = arith.mulf %394, %345 : vector<2x128xf32>
    %404 = arith.mulf %388, %396 : vector<2x128xf32>
    %405 = arith.addf %403, %404 : vector<2x128xf32>
    %406 = math.tanh %405 : vector<2x128xf32>
    %407 = arith.mulf %402, %406 : vector<2x128xf32>
    %408 = vector.extract_strided_slice %382 {offsets = [0, 0], sizes = [2, 128], strides = [1, 1]} : vector<2x512xf32> to vector<2x128xf32>
    %409 = arith.negf %408 : vector<2x128xf32>
    %410 = math.exp %409 : vector<2x128xf32>
    %cst_142 = arith.constant 1.000000e+00 : f32
    %411 = vector.broadcast %cst_142 : f32 to vector<2x128xf32>
    %412 = arith.addf %411, %410 : vector<2x128xf32>
    %413 = arith.divf %411, %412 : vector<2x128xf32>
    %414 = vector.extract_strided_slice %382 {offsets = [0, 128], sizes = [2, 128], strides = [1, 1]} : vector<2x512xf32> to vector<2x128xf32>
    %415 = arith.negf %414 : vector<2x128xf32>
    %416 = math.exp %415 : vector<2x128xf32>
    %cst_143 = arith.constant 1.000000e+00 : f32
    %417 = vector.broadcast %cst_143 : f32 to vector<2x128xf32>
    %418 = arith.addf %417, %416 : vector<2x128xf32>
    %419 = arith.divf %417, %418 : vector<2x128xf32>
    %420 = vector.extract_strided_slice %382 {offsets = [0, 256], sizes = [2, 128], strides = [1, 1]} : vector<2x512xf32> to vector<2x128xf32>
    %421 = math.tanh %420 : vector<2x128xf32>
    %422 = vector.extract_strided_slice %382 {offsets = [0, 384], sizes = [2, 128], strides = [1, 1]} : vector<2x512xf32> to vector<2x128xf32>
    %423 = arith.negf %422 : vector<2x128xf32>
    %424 = math.exp %423 : vector<2x128xf32>
    %cst_144 = arith.constant 1.000000e+00 : f32
    %425 = vector.broadcast %cst_144 : f32 to vector<2x128xf32>
    %426 = arith.addf %425, %424 : vector<2x128xf32>
    %427 = arith.divf %425, %426 : vector<2x128xf32>
    %428 = arith.mulf %419, %370 : vector<2x128xf32>
    %429 = arith.mulf %413, %421 : vector<2x128xf32>
    %430 = arith.addf %428, %429 : vector<2x128xf32>
    %431 = math.tanh %430 : vector<2x128xf32>
    %432 = arith.mulf %427, %431 : vector<2x128xf32>
    %c12_145 = arith.constant 12 : index
    %c0_146 = arith.constant 0 : index
    %433 = vector.load %arg15[%c12_145, %c0_146] : memref<16x256xf32, #tpu.memory_space<vmem>>, vector<2x128xf32>
    tpu.vector_store %arg15[%c12_145, %c0_146], %407 {strides = array<i32>} : memref<16x256xf32, #tpu.memory_space<vmem>>, vector<2x128xf32>,
    %c2_147 = arith.constant 2 : index
    %c128_148 = arith.constant 128 : index
    %434 = vector.load %arg15[%c2_147, %c128_148] : memref<16x256xf32, #tpu.memory_space<vmem>>, vector<2x128xf32>
    tpu.vector_store %arg15[%c2_147, %c128_148], %432 {strides = array<i32>} : memref<16x256xf32, #tpu.memory_space<vmem>>, vector<2x128xf32>,
    %c14_149 = arith.constant 14 : index
    %c0_150 = arith.constant 0 : index
    %435 = vector.load %arg14[%c14_149, %c0_150] : memref<16x1024xf32, #tpu.memory_space<vmem>>, vector<2x512xf32>
    %c0_151 = arith.constant 0 : index
    %c0_152 = arith.constant 0 : index
    %436 = vector.load %arg2[%c0_151, %c0_152] : memref<128x512xf32, #tpu.memory_space<vmem>>, vector<128x512xf32>
    %cst_153 = arith.constant dense<0.000000e+00> : vector<2x512xf32>
    %437 = tpu.matmul %407, %436, %cst_153 {dimension_numbers = #tpu.dot_dimension_numbers<[1], [0], [0], [1], [0, 0, 1, 1], [], []>} : vector<2x128xf32>, vector<128x512xf32>, vector<2x512xf32> -> vector<2x512xf32>
    %438 = arith.addf %435, %437 : vector<2x512xf32>
    %c0_154 = arith.constant 0 : index
    %c512_155 = arith.constant 512 : index
    %439 = vector.load %arg14[%c0_154, %c512_155] : memref<16x1024xf32, #tpu.memory_space<vmem>>, vector<2x512xf32>
    %c0_156 = arith.constant 0 : index
    %c0_157 = arith.constant 0 : index
    %440 = vector.load %arg3[%c0_156, %c0_157] : memref<128x512xf32, #tpu.memory_space<vmem>>, vector<128x512xf32>
    %cst_158 = arith.constant dense<0.000000e+00> : vector<2x512xf32>
    %441 = tpu.matmul %432, %440, %cst_158 {dimension_numbers = #tpu.dot_dimension_numbers<[1], [0], [0], [1], [0, 0, 1, 1], [], []>} : vector<2x128xf32>, vector<128x512xf32>, vector<2x512xf32> -> vector<2x512xf32>
    %442 = arith.addf %439, %441 : vector<2x512xf32>
    %443 = vector.extract_strided_slice %438 {offsets = [0, 0], sizes = [2, 128], strides = [1, 1]} : vector<2x512xf32> to vector<2x128xf32>
    %444 = arith.negf %443 : vector<2x128xf32>
    %445 = math.exp %444 : vector<2x128xf32>
    %cst_159 = arith.constant 1.000000e+00 : f32
    %446 = vector.broadcast %cst_159 : f32 to vector<2x128xf32>
    %447 = arith.addf %446, %445 : vector<2x128xf32>
    %448 = arith.divf %446, %447 : vector<2x128xf32>
    %449 = vector.extract_strided_slice %438 {offsets = [0, 128], sizes = [2, 128], strides = [1, 1]} : vector<2x512xf32> to vector<2x128xf32>
    %450 = arith.negf %449 : vector<2x128xf32>
    %451 = math.exp %450 : vector<2x128xf32>
    %cst_160 = arith.constant 1.000000e+00 : f32
    %452 = vector.broadcast %cst_160 : f32 to vector<2x128xf32>
    %453 = arith.addf %452, %451 : vector<2x128xf32>
    %454 = arith.divf %452, %453 : vector<2x128xf32>
    %455 = vector.extract_strided_slice %438 {offsets = [0, 256], sizes = [2, 128], strides = [1, 1]} : vector<2x512xf32> to vector<2x128xf32>
    %456 = math.tanh %455 : vector<2x128xf32>
    %457 = vector.extract_strided_slice %438 {offsets = [0, 384], sizes = [2, 128], strides = [1, 1]} : vector<2x512xf32> to vector<2x128xf32>
    %458 = arith.negf %457 : vector<2x128xf32>
    %459 = math.exp %458 : vector<2x128xf32>
    %cst_161 = arith.constant 1.000000e+00 : f32
    %460 = vector.broadcast %cst_161 : f32 to vector<2x128xf32>
    %461 = arith.addf %460, %459 : vector<2x128xf32>
    %462 = arith.divf %460, %461 : vector<2x128xf32>
    %463 = arith.mulf %454, %405 : vector<2x128xf32>
    %464 = arith.mulf %448, %456 : vector<2x128xf32>
    %465 = arith.addf %463, %464 : vector<2x128xf32>
    %466 = math.tanh %465 : vector<2x128xf32>
    %467 = arith.mulf %462, %466 : vector<2x128xf32>
    %468 = vector.extract_strided_slice %442 {offsets = [0, 0], sizes = [2, 128], strides = [1, 1]} : vector<2x512xf32> to vector<2x128xf32>
    %469 = arith.negf %468 : vector<2x128xf32>
    %470 = math.exp %469 : vector<2x128xf32>
    %cst_162 = arith.constant 1.000000e+00 : f32
    %471 = vector.broadcast %cst_162 : f32 to vector<2x128xf32>
    %472 = arith.addf %471, %470 : vector<2x128xf32>
    %473 = arith.divf %471, %472 : vector<2x128xf32>
    %474 = vector.extract_strided_slice %442 {offsets = [0, 128], sizes = [2, 128], strides = [1, 1]} : vector<2x512xf32> to vector<2x128xf32>
    %475 = arith.negf %474 : vector<2x128xf32>
    %476 = math.exp %475 : vector<2x128xf32>
    %cst_163 = arith.constant 1.000000e+00 : f32
    %477 = vector.broadcast %cst_163 : f32 to vector<2x128xf32>
    %478 = arith.addf %477, %476 : vector<2x128xf32>
    %479 = arith.divf %477, %478 : vector<2x128xf32>
    %480 = vector.extract_strided_slice %442 {offsets = [0, 256], sizes = [2, 128], strides = [1, 1]} : vector<2x512xf32> to vector<2x128xf32>
    %481 = math.tanh %480 : vector<2x128xf32>
    %482 = vector.extract_strided_slice %442 {offsets = [0, 384], sizes = [2, 128], strides = [1, 1]} : vector<2x512xf32> to vector<2x128xf32>
    %483 = arith.negf %482 : vector<2x128xf32>
    %484 = math.exp %483 : vector<2x128xf32>
    %cst_164 = arith.constant 1.000000e+00 : f32
    %485 = vector.broadcast %cst_164 : f32 to vector<2x128xf32>
    %486 = arith.addf %485, %484 : vector<2x128xf32>
    %487 = arith.divf %485, %486 : vector<2x128xf32>
    %488 = arith.mulf %479, %430 : vector<2x128xf32>
    %489 = arith.mulf %473, %481 : vector<2x128xf32>
    %490 = arith.addf %488, %489 : vector<2x128xf32>
    %491 = math.tanh %490 : vector<2x128xf32>
    %492 = arith.mulf %487, %491 : vector<2x128xf32>
    %c14_165 = arith.constant 14 : index
    %c0_166 = arith.constant 0 : index
    %493 = vector.load %arg15[%c14_165, %c0_166] : memref<16x256xf32, #tpu.memory_space<vmem>>, vector<2x128xf32>
    tpu.vector_store %arg15[%c14_165, %c0_166], %467 {strides = array<i32>} : memref<16x256xf32, #tpu.memory_space<vmem>>, vector<2x128xf32>,
    %c0_167 = arith.constant 0 : index
    %c128_168 = arith.constant 128 : index
    %494 = vector.load %arg15[%c0_167, %c128_168] : memref<16x256xf32, #tpu.memory_space<vmem>>, vector<2x128xf32>
    tpu.vector_store %arg15[%c0_167, %c128_168], %492 {strides = array<i32>} : memref<16x256xf32, #tpu.memory_space<vmem>>, vector<2x128xf32>,
    %495 = vector.extract_strided_slice %467 {offsets = [0, 0], sizes = [1, 128], strides = [1, 1]} : vector<2x128xf32> to vector<1x128xf32>
    %c0_169 = arith.constant 0 : index
    %c0_170 = arith.constant 0 : index
    %496 = vector.load %arg16[%c0_169, %c0_170] : memref<2x1024xf32, #tpu.memory_space<vmem>>, vector<1x128xf32>
    tpu.vector_store %arg16[%c0_169, %c0_170], %495 {strides = array<i32>} : memref<2x1024xf32, #tpu.memory_space<vmem>>, vector<1x128xf32>,
    %497 = vector.extract_strided_slice %465 {offsets = [0, 0], sizes = [1, 128], strides = [1, 1]} : vector<2x128xf32> to vector<1x128xf32>
    %c0_171 = arith.constant 0 : index
    %c512_172 = arith.constant 512 : index
    %498 = vector.load %arg16[%c0_171, %c512_172] : memref<2x1024xf32, #tpu.memory_space<vmem>>, vector<1x128xf32>
    tpu.vector_store %arg16[%c0_171, %c512_172], %497 {strides = array<i32>} : memref<2x1024xf32, #tpu.memory_space<vmem>>, vector<1x128xf32>,
    %499 = vector.extract_strided_slice %467 {offsets = [1, 0], sizes = [1, 128], strides = [1, 1]} : vector<2x128xf32> to vector<1x128xf32>
    %c0_173 = arith.constant 0 : index
    %c128_174 = arith.constant 128 : index
    %500 = vector.load %arg16[%c0_173, %c128_174] : memref<2x1024xf32, #tpu.memory_space<vmem>>, vector<1x128xf32>
    tpu.vector_store %arg16[%c0_173, %c128_174], %499 {strides = array<i32>} : memref<2x1024xf32, #tpu.memory_space<vmem>>, vector<1x128xf32>,
    %501 = vector.extract_strided_slice %465 {offsets = [1, 0], sizes = [1, 128], strides = [1, 1]} : vector<2x128xf32> to vector<1x128xf32>
    %c0_175 = arith.constant 0 : index
    %c640 = arith.constant 640 : index
    %502 = vector.load %arg16[%c0_175, %c640] : memref<2x1024xf32, #tpu.memory_space<vmem>>, vector<1x128xf32>
    tpu.vector_store %arg16[%c0_175, %c640], %501 {strides = array<i32>} : memref<2x1024xf32, #tpu.memory_space<vmem>>, vector<1x128xf32>,
    %503 = vector.extract_strided_slice %492 {offsets = [0, 0], sizes = [1, 128], strides = [1, 1]} : vector<2x128xf32> to vector<1x128xf32>
    %c0_176 = arith.constant 0 : index
    %c256 = arith.constant 256 : index
    %504 = vector.load %arg16[%c0_176, %c256] : memref<2x1024xf32, #tpu.memory_space<vmem>>, vector<1x128xf32>
    tpu.vector_store %arg16[%c0_176, %c256], %503 {strides = array<i32>} : memref<2x1024xf32, #tpu.memory_space<vmem>>, vector<1x128xf32>,
    %505 = vector.extract_strided_slice %490 {offsets = [0, 0], sizes = [1, 128], strides = [1, 1]} : vector<2x128xf32> to vector<1x128xf32>
    %c0_177 = arith.constant 0 : index
    %c768 = arith.constant 768 : index
    %506 = vector.load %arg16[%c0_177, %c768] : memref<2x1024xf32, #tpu.memory_space<vmem>>, vector<1x128xf32>
    tpu.vector_store %arg16[%c0_177, %c768], %505 {strides = array<i32>} : memref<2x1024xf32, #tpu.memory_space<vmem>>, vector<1x128xf32>,
    %507 = vector.extract_strided_slice %492 {offsets = [1, 0], sizes = [1, 128], strides = [1, 1]} : vector<2x128xf32> to vector<1x128xf32>
    %c0_178 = arith.constant 0 : index
    %c384 = arith.constant 384 : index
    %508 = vector.load %arg16[%c0_178, %c384] : memref<2x1024xf32, #tpu.memory_space<vmem>>, vector<1x128xf32>
    tpu.vector_store %arg16[%c0_178, %c384], %507 {strides = array<i32>} : memref<2x1024xf32, #tpu.memory_space<vmem>>, vector<1x128xf32>,
    %509 = vector.extract_strided_slice %490 {offsets = [1, 0], sizes = [1, 128], strides = [1, 1]} : vector<2x128xf32> to vector<1x128xf32>
    %c0_179 = arith.constant 0 : index
    %c896 = arith.constant 896 : index
    %510 = vector.load %arg16[%c0_179, %c896] : memref<2x1024xf32, #tpu.memory_space<vmem>>, vector<1x128xf32>
    tpu.vector_store %arg16[%c0_179, %c896], %509 {strides = array<i32>} : memref<2x1024xf32, #tpu.memory_space<vmem>>, vector<1x128xf32>,
    %c0_180 = arith.constant 0 : index
    %c0_181 = arith.constant 0 : index
    %511 = vector.load %arg15[%c0_180, %c0_181] : memref<16x256xf32, #tpu.memory_space<vmem>>, vector<16x256xf32>
    %c0_182 = arith.constant 0 : index
    %c0_183 = arith.constant 0 : index
    %512 = vector.load %arg5[%c0_182, %c0_183] : memref<256x1024xf32, #tpu.memory_space<vmem>>, vector<256x1024xf32>
    %cst_184 = arith.constant dense<0.000000e+00> : vector<16x1024xf32>
    %513 = tpu.matmul %511, %512, %cst_184 {dimension_numbers = #tpu.dot_dimension_numbers<[1], [0], [0], [1], [0, 0, 1, 1], [], []>} : vector<16x256xf32>, vector<256x1024xf32>, vector<16x1024xf32> -> vector<16x1024xf32>
    %c0_185 = arith.constant 0 : index
    %c0_186 = arith.constant 0 : index
    %514 = vector.load %arg8[%c0_185, %c0_186] : memref<1x1024xf32, #tpu.memory_space<vmem>>, vector<1x1024xf32>
    %515 = vector.broadcast %514 : vector<1x1024xf32> to vector<16x1024xf32>
    %516 = arith.addf %513, %515 : vector<16x1024xf32>
    %c0_187 = arith.constant 0 : index
    %c0_188 = arith.constant 0 : index
    %517 = vector.load %arg14[%c0_187, %c0_188] : memref<16x1024xf32, #tpu.memory_space<vmem>>, vector<16x1024xf32>
    tpu.vector_store %arg14[%c0_187, %c0_188], %516 {strides = array<i32>} : memref<16x1024xf32, #tpu.memory_space<vmem>>, vector<16x1024xf32>,
    %c2_189 = arith.constant 2 : index
    %c0_190 = arith.constant 0 : index
    %c0_191 = arith.constant 0 : index
    %518 = vector.load %arg9[%c2_189, %c0_190, %c0_191] : memref<4x2x128xf32, #tpu.memory_space<vmem>>, vector<1x2x128xf32>
    %519 = vector.shape_cast %518 : vector<1x2x128xf32> to vector<2x128xf32>
    %c2_192 = arith.constant 2 : index
    %c0_193 = arith.constant 0 : index
    %c0_194 = arith.constant 0 : index
    %520 = vector.load %arg10[%c2_192, %c0_193, %c0_194] : memref<4x2x128xf32, #tpu.memory_space<vmem>>, vector<1x2x128xf32>
    %521 = vector.shape_cast %520 : vector<1x2x128xf32> to vector<2x128xf32>
    %c3 = arith.constant 3 : index
    %c0_195 = arith.constant 0 : index
    %c0_196 = arith.constant 0 : index
    %522 = vector.load %arg9[%c3, %c0_195, %c0_196] : memref<4x2x128xf32, #tpu.memory_space<vmem>>, vector<1x2x128xf32>
    %523 = vector.shape_cast %522 : vector<1x2x128xf32> to vector<2x128xf32>
    %c3_197 = arith.constant 3 : index
    %c0_198 = arith.constant 0 : index
    %c0_199 = arith.constant 0 : index
    %524 = vector.load %arg10[%c3_197, %c0_198, %c0_199] : memref<4x2x128xf32, #tpu.memory_space<vmem>>, vector<1x2x128xf32>
    %525 = vector.shape_cast %524 : vector<1x2x128xf32> to vector<2x128xf32>
    %c0_200 = arith.constant 0 : index
    %c0_201 = arith.constant 0 : index
    %526 = vector.load %arg14[%c0_200, %c0_201] : memref<16x1024xf32, #tpu.memory_space<vmem>>, vector<2x512xf32>
    %c0_202 = arith.constant 0 : index
    %c0_203 = arith.constant 0 : index
    %527 = vector.load %arg6[%c0_202, %c0_203] : memref<128x512xf32, #tpu.memory_space<vmem>>, vector<128x512xf32>
    %cst_204 = arith.constant dense<0.000000e+00> : vector<2x512xf32>
    %528 = tpu.matmul %519, %527, %cst_204 {dimension_numbers = #tpu.dot_dimension_numbers<[1], [0], [0], [1], [0, 0, 1, 1], [], []>} : vector<2x128xf32>, vector<128x512xf32>, vector<2x512xf32> -> vector<2x512xf32>
    %529 = arith.addf %526, %528 : vector<2x512xf32>
    %c14_205 = arith.constant 14 : index
    %c512_206 = arith.constant 512 : index
    %530 = vector.load %arg14[%c14_205, %c512_206] : memref<16x1024xf32, #tpu.memory_space<vmem>>, vector<2x512xf32>
    %c0_207 = arith.constant 0 : index
    %c0_208 = arith.constant 0 : index
    %531 = vector.load %arg7[%c0_207, %c0_208] : memref<128x512xf32, #tpu.memory_space<vmem>>, vector<128x512xf32>
    %cst_209 = arith.constant dense<0.000000e+00> : vector<2x512xf32>
    %532 = tpu.matmul %523, %531, %cst_209 {dimension_numbers = #tpu.dot_dimension_numbers<[1], [0], [0], [1], [0, 0, 1, 1], [], []>} : vector<2x128xf32>, vector<128x512xf32>, vector<2x512xf32> -> vector<2x512xf32>
    %533 = arith.addf %530, %532 : vector<2x512xf32>
    %534 = vector.extract_strided_slice %529 {offsets = [0, 0], sizes = [2, 128], strides = [1, 1]} : vector<2x512xf32> to vector<2x128xf32>
    %535 = arith.negf %534 : vector<2x128xf32>
    %536 = math.exp %535 : vector<2x128xf32>
    %cst_210 = arith.constant 1.000000e+00 : f32
    %537 = vector.broadcast %cst_210 : f32 to vector<2x128xf32>
    %538 = arith.addf %537, %536 : vector<2x128xf32>
    %539 = arith.divf %537, %538 : vector<2x128xf32>
    %540 = vector.extract_strided_slice %529 {offsets = [0, 128], sizes = [2, 128], strides = [1, 1]} : vector<2x512xf32> to vector<2x128xf32>
    %541 = arith.negf %540 : vector<2x128xf32>
    %542 = math.exp %541 : vector<2x128xf32>
    %cst_211 = arith.constant 1.000000e+00 : f32
    %543 = vector.broadcast %cst_211 : f32 to vector<2x128xf32>
    %544 = arith.addf %543, %542 : vector<2x128xf32>
    %545 = arith.divf %543, %544 : vector<2x128xf32>
    %546 = vector.extract_strided_slice %529 {offsets = [0, 256], sizes = [2, 128], strides = [1, 1]} : vector<2x512xf32> to vector<2x128xf32>
    %547 = math.tanh %546 : vector<2x128xf32>
    %548 = vector.extract_strided_slice %529 {offsets = [0, 384], sizes = [2, 128], strides = [1, 1]} : vector<2x512xf32> to vector<2x128xf32>
    %549 = arith.negf %548 : vector<2x128xf32>
    %550 = math.exp %549 : vector<2x128xf32>
    %cst_212 = arith.constant 1.000000e+00 : f32
    %551 = vector.broadcast %cst_212 : f32 to vector<2x128xf32>
    %552 = arith.addf %551, %550 : vector<2x128xf32>
    %553 = arith.divf %551, %552 : vector<2x128xf32>
    %554 = arith.mulf %545, %521 : vector<2x128xf32>
    %555 = arith.mulf %539, %547 : vector<2x128xf32>
    %556 = arith.addf %554, %555 : vector<2x128xf32>
    %557 = math.tanh %556 : vector<2x128xf32>
    %558 = arith.mulf %553, %557 : vector<2x128xf32>
    %559 = vector.extract_strided_slice %533 {offsets = [0, 0], sizes = [2, 128], strides = [1, 1]} : vector<2x512xf32> to vector<2x128xf32>
    %560 = arith.negf %559 : vector<2x128xf32>
    %561 = math.exp %560 : vector<2x128xf32>
    %cst_213 = arith.constant 1.000000e+00 : f32
    %562 = vector.broadcast %cst_213 : f32 to vector<2x128xf32>
    %563 = arith.addf %562, %561 : vector<2x128xf32>
    %564 = arith.divf %562, %563 : vector<2x128xf32>
    %565 = vector.extract_strided_slice %533 {offsets = [0, 128], sizes = [2, 128], strides = [1, 1]} : vector<2x512xf32> to vector<2x128xf32>
    %566 = arith.negf %565 : vector<2x128xf32>
    %567 = math.exp %566 : vector<2x128xf32>
    %cst_214 = arith.constant 1.000000e+00 : f32
    %568 = vector.broadcast %cst_214 : f32 to vector<2x128xf32>
    %569 = arith.addf %568, %567 : vector<2x128xf32>
    %570 = arith.divf %568, %569 : vector<2x128xf32>
    %571 = vector.extract_strided_slice %533 {offsets = [0, 256], sizes = [2, 128], strides = [1, 1]} : vector<2x512xf32> to vector<2x128xf32>
    %572 = math.tanh %571 : vector<2x128xf32>
    %573 = vector.extract_strided_slice %533 {offsets = [0, 384], sizes = [2, 128], strides = [1, 1]} : vector<2x512xf32> to vector<2x128xf32>
    %574 = arith.negf %573 : vector<2x128xf32>
    %575 = math.exp %574 : vector<2x128xf32>
    %cst_215 = arith.constant 1.000000e+00 : f32
    %576 = vector.broadcast %cst_215 : f32 to vector<2x128xf32>
    %577 = arith.addf %576, %575 : vector<2x128xf32>
    %578 = arith.divf %576, %577 : vector<2x128xf32>
    %579 = arith.mulf %570, %525 : vector<2x128xf32>
    %580 = arith.mulf %564, %572 : vector<2x128xf32>
    %581 = arith.addf %579, %580 : vector<2x128xf32>
    %582 = math.tanh %581 : vector<2x128xf32>
    %583 = arith.mulf %578, %582 : vector<2x128xf32>
    %c2_216 = arith.constant 2 : index
    %c0_217 = arith.constant 0 : index
    %584 = vector.load %arg14[%c2_216, %c0_217] : memref<16x1024xf32, #tpu.memory_space<vmem>>, vector<2x512xf32>
    %c0_218 = arith.constant 0 : index
    %c0_219 = arith.constant 0 : index
    %585 = vector.load %arg6[%c0_218, %c0_219] : memref<128x512xf32, #tpu.memory_space<vmem>>, vector<128x512xf32>
    %cst_220 = arith.constant dense<0.000000e+00> : vector<2x512xf32>
    %586 = tpu.matmul %558, %585, %cst_220 {dimension_numbers = #tpu.dot_dimension_numbers<[1], [0], [0], [1], [0, 0, 1, 1], [], []>} : vector<2x128xf32>, vector<128x512xf32>, vector<2x512xf32> -> vector<2x512xf32>
    %587 = arith.addf %584, %586 : vector<2x512xf32>
    %c12_221 = arith.constant 12 : index
    %c512_222 = arith.constant 512 : index
    %588 = vector.load %arg14[%c12_221, %c512_222] : memref<16x1024xf32, #tpu.memory_space<vmem>>, vector<2x512xf32>
    %c0_223 = arith.constant 0 : index
    %c0_224 = arith.constant 0 : index
    %589 = vector.load %arg7[%c0_223, %c0_224] : memref<128x512xf32, #tpu.memory_space<vmem>>, vector<128x512xf32>
    %cst_225 = arith.constant dense<0.000000e+00> : vector<2x512xf32>
    %590 = tpu.matmul %583, %589, %cst_225 {dimension_numbers = #tpu.dot_dimension_numbers<[1], [0], [0], [1], [0, 0, 1, 1], [], []>} : vector<2x128xf32>, vector<128x512xf32>, vector<2x512xf32> -> vector<2x512xf32>
    %591 = arith.addf %588, %590 : vector<2x512xf32>
    %592 = vector.extract_strided_slice %587 {offsets = [0, 0], sizes = [2, 128], strides = [1, 1]} : vector<2x512xf32> to vector<2x128xf32>
    %593 = arith.negf %592 : vector<2x128xf32>
    %594 = math.exp %593 : vector<2x128xf32>
    %cst_226 = arith.constant 1.000000e+00 : f32
    %595 = vector.broadcast %cst_226 : f32 to vector<2x128xf32>
    %596 = arith.addf %595, %594 : vector<2x128xf32>
    %597 = arith.divf %595, %596 : vector<2x128xf32>
    %598 = vector.extract_strided_slice %587 {offsets = [0, 128], sizes = [2, 128], strides = [1, 1]} : vector<2x512xf32> to vector<2x128xf32>
    %599 = arith.negf %598 : vector<2x128xf32>
    %600 = math.exp %599 : vector<2x128xf32>
    %cst_227 = arith.constant 1.000000e+00 : f32
    %601 = vector.broadcast %cst_227 : f32 to vector<2x128xf32>
    %602 = arith.addf %601, %600 : vector<2x128xf32>
    %603 = arith.divf %601, %602 : vector<2x128xf32>
    %604 = vector.extract_strided_slice %587 {offsets = [0, 256], sizes = [2, 128], strides = [1, 1]} : vector<2x512xf32> to vector<2x128xf32>
    %605 = math.tanh %604 : vector<2x128xf32>
    %606 = vector.extract_strided_slice %587 {offsets = [0, 384], sizes = [2, 128], strides = [1, 1]} : vector<2x512xf32> to vector<2x128xf32>
    %607 = arith.negf %606 : vector<2x128xf32>
    %608 = math.exp %607 : vector<2x128xf32>
    %cst_228 = arith.constant 1.000000e+00 : f32
    %609 = vector.broadcast %cst_228 : f32 to vector<2x128xf32>
    %610 = arith.addf %609, %608 : vector<2x128xf32>
    %611 = arith.divf %609, %610 : vector<2x128xf32>
    %612 = arith.mulf %603, %556 : vector<2x128xf32>
    %613 = arith.mulf %597, %605 : vector<2x128xf32>
    %614 = arith.addf %612, %613 : vector<2x128xf32>
    %615 = math.tanh %614 : vector<2x128xf32>
    %616 = arith.mulf %611, %615 : vector<2x128xf32>
    %617 = vector.extract_strided_slice %591 {offsets = [0, 0], sizes = [2, 128], strides = [1, 1]} : vector<2x512xf32> to vector<2x128xf32>
    %618 = arith.negf %617 : vector<2x128xf32>
    %619 = math.exp %618 : vector<2x128xf32>
    %cst_229 = arith.constant 1.000000e+00 : f32
    %620 = vector.broadcast %cst_229 : f32 to vector<2x128xf32>
    %621 = arith.addf %620, %619 : vector<2x128xf32>
    %622 = arith.divf %620, %621 : vector<2x128xf32>
    %623 = vector.extract_strided_slice %591 {offsets = [0, 128], sizes = [2, 128], strides = [1, 1]} : vector<2x512xf32> to vector<2x128xf32>
    %624 = arith.negf %623 : vector<2x128xf32>
    %625 = math.exp %624 : vector<2x128xf32>
    %cst_230 = arith.constant 1.000000e+00 : f32
    %626 = vector.broadcast %cst_230 : f32 to vector<2x128xf32>
    %627 = arith.addf %626, %625 : vector<2x128xf32>
    %628 = arith.divf %626, %627 : vector<2x128xf32>
    %629 = vector.extract_strided_slice %591 {offsets = [0, 256], sizes = [2, 128], strides = [1, 1]} : vector<2x512xf32> to vector<2x128xf32>
    %630 = math.tanh %629 : vector<2x128xf32>
    %631 = vector.extract_strided_slice %591 {offsets = [0, 384], sizes = [2, 128], strides = [1, 1]} : vector<2x512xf32> to vector<2x128xf32>
    %632 = arith.negf %631 : vector<2x128xf32>
    %633 = math.exp %632 : vector<2x128xf32>
    %cst_231 = arith.constant 1.000000e+00 : f32
    %634 = vector.broadcast %cst_231 : f32 to vector<2x128xf32>
    %635 = arith.addf %634, %633 : vector<2x128xf32>
    %636 = arith.divf %634, %635 : vector<2x128xf32>
    %637 = arith.mulf %628, %581 : vector<2x128xf32>
    %638 = arith.mulf %622, %630 : vector<2x128xf32>
    %639 = arith.addf %637, %638 : vector<2x128xf32>
    %640 = math.tanh %639 : vector<2x128xf32>
    %641 = arith.mulf %636, %640 : vector<2x128xf32>
    %c4_232 = arith.constant 4 : index
    %c0_233 = arith.constant 0 : index
    %642 = vector.load %arg14[%c4_232, %c0_233] : memref<16x1024xf32, #tpu.memory_space<vmem>>, vector<2x512xf32>
    %c0_234 = arith.constant 0 : index
    %c0_235 = arith.constant 0 : index
    %643 = vector.load %arg6[%c0_234, %c0_235] : memref<128x512xf32, #tpu.memory_space<vmem>>, vector<128x512xf32>
    %cst_236 = arith.constant dense<0.000000e+00> : vector<2x512xf32>
    %644 = tpu.matmul %616, %643, %cst_236 {dimension_numbers = #tpu.dot_dimension_numbers<[1], [0], [0], [1], [0, 0, 1, 1], [], []>} : vector<2x128xf32>, vector<128x512xf32>, vector<2x512xf32> -> vector<2x512xf32>
    %645 = arith.addf %642, %644 : vector<2x512xf32>
    %c10_237 = arith.constant 10 : index
    %c512_238 = arith.constant 512 : index
    %646 = vector.load %arg14[%c10_237, %c512_238] : memref<16x1024xf32, #tpu.memory_space<vmem>>, vector<2x512xf32>
    %c0_239 = arith.constant 0 : index
    %c0_240 = arith.constant 0 : index
    %647 = vector.load %arg7[%c0_239, %c0_240] : memref<128x512xf32, #tpu.memory_space<vmem>>, vector<128x512xf32>
    %cst_241 = arith.constant dense<0.000000e+00> : vector<2x512xf32>
    %648 = tpu.matmul %641, %647, %cst_241 {dimension_numbers = #tpu.dot_dimension_numbers<[1], [0], [0], [1], [0, 0, 1, 1], [], []>} : vector<2x128xf32>, vector<128x512xf32>, vector<2x512xf32> -> vector<2x512xf32>
    %649 = arith.addf %646, %648 : vector<2x512xf32>
    %650 = vector.extract_strided_slice %645 {offsets = [0, 0], sizes = [2, 128], strides = [1, 1]} : vector<2x512xf32> to vector<2x128xf32>
    %651 = arith.negf %650 : vector<2x128xf32>
    %652 = math.exp %651 : vector<2x128xf32>
    %cst_242 = arith.constant 1.000000e+00 : f32
    %653 = vector.broadcast %cst_242 : f32 to vector<2x128xf32>
    %654 = arith.addf %653, %652 : vector<2x128xf32>
    %655 = arith.divf %653, %654 : vector<2x128xf32>
    %656 = vector.extract_strided_slice %645 {offsets = [0, 128], sizes = [2, 128], strides = [1, 1]} : vector<2x512xf32> to vector<2x128xf32>
    %657 = arith.negf %656 : vector<2x128xf32>
    %658 = math.exp %657 : vector<2x128xf32>
    %cst_243 = arith.constant 1.000000e+00 : f32
    %659 = vector.broadcast %cst_243 : f32 to vector<2x128xf32>
    %660 = arith.addf %659, %658 : vector<2x128xf32>
    %661 = arith.divf %659, %660 : vector<2x128xf32>
    %662 = vector.extract_strided_slice %645 {offsets = [0, 256], sizes = [2, 128], strides = [1, 1]} : vector<2x512xf32> to vector<2x128xf32>
    %663 = math.tanh %662 : vector<2x128xf32>
    %664 = vector.extract_strided_slice %645 {offsets = [0, 384], sizes = [2, 128], strides = [1, 1]} : vector<2x512xf32> to vector<2x128xf32>
    %665 = arith.negf %664 : vector<2x128xf32>
    %666 = math.exp %665 : vector<2x128xf32>
    %cst_244 = arith.constant 1.000000e+00 : f32
    %667 = vector.broadcast %cst_244 : f32 to vector<2x128xf32>
    %668 = arith.addf %667, %666 : vector<2x128xf32>
    %669 = arith.divf %667, %668 : vector<2x128xf32>
    %670 = arith.mulf %661, %614 : vector<2x128xf32>
    %671 = arith.mulf %655, %663 : vector<2x128xf32>
    %672 = arith.addf %670, %671 : vector<2x128xf32>
    %673 = math.tanh %672 : vector<2x128xf32>
    %674 = arith.mulf %669, %673 : vector<2x128xf32>
    %675 = vector.extract_strided_slice %649 {offsets = [0, 0], sizes = [2, 128], strides = [1, 1]} : vector<2x512xf32> to vector<2x128xf32>
    %676 = arith.negf %675 : vector<2x128xf32>
    %677 = math.exp %676 : vector<2x128xf32>
    %cst_245 = arith.constant 1.000000e+00 : f32
    %678 = vector.broadcast %cst_245 : f32 to vector<2x128xf32>
    %679 = arith.addf %678, %677 : vector<2x128xf32>
    %680 = arith.divf %678, %679 : vector<2x128xf32>
    %681 = vector.extract_strided_slice %649 {offsets = [0, 128], sizes = [2, 128], strides = [1, 1]} : vector<2x512xf32> to vector<2x128xf32>
    %682 = arith.negf %681 : vector<2x128xf32>
    %683 = math.exp %682 : vector<2x128xf32>
    %cst_246 = arith.constant 1.000000e+00 : f32
    %684 = vector.broadcast %cst_246 : f32 to vector<2x128xf32>
    %685 = arith.addf %684, %683 : vector<2x128xf32>
    %686 = arith.divf %684, %685 : vector<2x128xf32>
    %687 = vector.extract_strided_slice %649 {offsets = [0, 256], sizes = [2, 128], strides = [1, 1]} : vector<2x512xf32> to vector<2x128xf32>
    %688 = math.tanh %687 : vector<2x128xf32>
    %689 = vector.extract_strided_slice %649 {offsets = [0, 384], sizes = [2, 128], strides = [1, 1]} : vector<2x512xf32> to vector<2x128xf32>
    %690 = arith.negf %689 : vector<2x128xf32>
    %691 = math.exp %690 : vector<2x128xf32>
    %cst_247 = arith.constant 1.000000e+00 : f32
    %692 = vector.broadcast %cst_247 : f32 to vector<2x128xf32>
    %693 = arith.addf %692, %691 : vector<2x128xf32>
    %694 = arith.divf %692, %693 : vector<2x128xf32>
    %695 = arith.mulf %686, %639 : vector<2x128xf32>
    %696 = arith.mulf %680, %688 : vector<2x128xf32>
    %697 = arith.addf %695, %696 : vector<2x128xf32>
    %698 = math.tanh %697 : vector<2x128xf32>
    %699 = arith.mulf %694, %698 : vector<2x128xf32>
    %c6_248 = arith.constant 6 : index
    %c0_249 = arith.constant 0 : index
    %700 = vector.load %arg14[%c6_248, %c0_249] : memref<16x1024xf32, #tpu.memory_space<vmem>>, vector<2x512xf32>
    %c0_250 = arith.constant 0 : index
    %c0_251 = arith.constant 0 : index
    %701 = vector.load %arg6[%c0_250, %c0_251] : memref<128x512xf32, #tpu.memory_space<vmem>>, vector<128x512xf32>
    %cst_252 = arith.constant dense<0.000000e+00> : vector<2x512xf32>
    %702 = tpu.matmul %674, %701, %cst_252 {dimension_numbers = #tpu.dot_dimension_numbers<[1], [0], [0], [1], [0, 0, 1, 1], [], []>} : vector<2x128xf32>, vector<128x512xf32>, vector<2x512xf32> -> vector<2x512xf32>
    %703 = arith.addf %700, %702 : vector<2x512xf32>
    %c8_253 = arith.constant 8 : index
    %c512_254 = arith.constant 512 : index
    %704 = vector.load %arg14[%c8_253, %c512_254] : memref<16x1024xf32, #tpu.memory_space<vmem>>, vector<2x512xf32>
    %c0_255 = arith.constant 0 : index
    %c0_256 = arith.constant 0 : index
    %705 = vector.load %arg7[%c0_255, %c0_256] : memref<128x512xf32, #tpu.memory_space<vmem>>, vector<128x512xf32>
    %cst_257 = arith.constant dense<0.000000e+00> : vector<2x512xf32>
    %706 = tpu.matmul %699, %705, %cst_257 {dimension_numbers = #tpu.dot_dimension_numbers<[1], [0], [0], [1], [0, 0, 1, 1], [], []>} : vector<2x128xf32>, vector<128x512xf32>, vector<2x512xf32> -> vector<2x512xf32>
    %707 = arith.addf %704, %706 : vector<2x512xf32>
    %708 = vector.extract_strided_slice %703 {offsets = [0, 0], sizes = [2, 128], strides = [1, 1]} : vector<2x512xf32> to vector<2x128xf32>
    %709 = arith.negf %708 : vector<2x128xf32>
    %710 = math.exp %709 : vector<2x128xf32>
    %cst_258 = arith.constant 1.000000e+00 : f32
    %711 = vector.broadcast %cst_258 : f32 to vector<2x128xf32>
    %712 = arith.addf %711, %710 : vector<2x128xf32>
    %713 = arith.divf %711, %712 : vector<2x128xf32>
    %714 = vector.extract_strided_slice %703 {offsets = [0, 128], sizes = [2, 128], strides = [1, 1]} : vector<2x512xf32> to vector<2x128xf32>
    %715 = arith.negf %714 : vector<2x128xf32>
    %716 = math.exp %715 : vector<2x128xf32>
    %cst_259 = arith.constant 1.000000e+00 : f32
    %717 = vector.broadcast %cst_259 : f32 to vector<2x128xf32>
    %718 = arith.addf %717, %716 : vector<2x128xf32>
    %719 = arith.divf %717, %718 : vector<2x128xf32>
    %720 = vector.extract_strided_slice %703 {offsets = [0, 256], sizes = [2, 128], strides = [1, 1]} : vector<2x512xf32> to vector<2x128xf32>
    %721 = math.tanh %720 : vector<2x128xf32>
    %722 = vector.extract_strided_slice %703 {offsets = [0, 384], sizes = [2, 128], strides = [1, 1]} : vector<2x512xf32> to vector<2x128xf32>
    %723 = arith.negf %722 : vector<2x128xf32>
    %724 = math.exp %723 : vector<2x128xf32>
    %cst_260 = arith.constant 1.000000e+00 : f32
    %725 = vector.broadcast %cst_260 : f32 to vector<2x128xf32>
    %726 = arith.addf %725, %724 : vector<2x128xf32>
    %727 = arith.divf %725, %726 : vector<2x128xf32>
    %728 = arith.mulf %719, %672 : vector<2x128xf32>
    %729 = arith.mulf %713, %721 : vector<2x128xf32>
    %730 = arith.addf %728, %729 : vector<2x128xf32>
    %731 = math.tanh %730 : vector<2x128xf32>
    %732 = arith.mulf %727, %731 : vector<2x128xf32>
    %733 = vector.extract_strided_slice %707 {offsets = [0, 0], sizes = [2, 128], strides = [1, 1]} : vector<2x512xf32> to vector<2x128xf32>
    %734 = arith.negf %733 : vector<2x128xf32>
    %735 = math.exp %734 : vector<2x128xf32>
    %cst_261 = arith.constant 1.000000e+00 : f32
    %736 = vector.broadcast %cst_261 : f32 to vector<2x128xf32>
    %737 = arith.addf %736, %735 : vector<2x128xf32>
    %738 = arith.divf %736, %737 : vector<2x128xf32>
    %739 = vector.extract_strided_slice %707 {offsets = [0, 128], sizes = [2, 128], strides = [1, 1]} : vector<2x512xf32> to vector<2x128xf32>
    %740 = arith.negf %739 : vector<2x128xf32>
    %741 = math.exp %740 : vector<2x128xf32>
    %cst_262 = arith.constant 1.000000e+00 : f32
    %742 = vector.broadcast %cst_262 : f32 to vector<2x128xf32>
    %743 = arith.addf %742, %741 : vector<2x128xf32>
    %744 = arith.divf %742, %743 : vector<2x128xf32>
    %745 = vector.extract_strided_slice %707 {offsets = [0, 256], sizes = [2, 128], strides = [1, 1]} : vector<2x512xf32> to vector<2x128xf32>
    %746 = math.tanh %745 : vector<2x128xf32>
    %747 = vector.extract_strided_slice %707 {offsets = [0, 384], sizes = [2, 128], strides = [1, 1]} : vector<2x512xf32> to vector<2x128xf32>
    %748 = arith.negf %747 : vector<2x128xf32>
    %749 = math.exp %748 : vector<2x128xf32>
    %cst_263 = arith.constant 1.000000e+00 : f32
    %750 = vector.broadcast %cst_263 : f32 to vector<2x128xf32>
    %751 = arith.addf %750, %749 : vector<2x128xf32>
    %752 = arith.divf %750, %751 : vector<2x128xf32>
    %753 = arith.mulf %744, %697 : vector<2x128xf32>
    %754 = arith.mulf %738, %746 : vector<2x128xf32>
    %755 = arith.addf %753, %754 : vector<2x128xf32>
    %756 = math.tanh %755 : vector<2x128xf32>
    %757 = arith.mulf %752, %756 : vector<2x128xf32>
    %c8_264 = arith.constant 8 : index
    %c0_265 = arith.constant 0 : index
    %758 = vector.load %arg14[%c8_264, %c0_265] : memref<16x1024xf32, #tpu.memory_space<vmem>>, vector<2x512xf32>
    %c0_266 = arith.constant 0 : index
    %c0_267 = arith.constant 0 : index
    %759 = vector.load %arg6[%c0_266, %c0_267] : memref<128x512xf32, #tpu.memory_space<vmem>>, vector<128x512xf32>
    %cst_268 = arith.constant dense<0.000000e+00> : vector<2x512xf32>
    %760 = tpu.matmul %732, %759, %cst_268 {dimension_numbers = #tpu.dot_dimension_numbers<[1], [0], [0], [1], [0, 0, 1, 1], [], []>} : vector<2x128xf32>, vector<128x512xf32>, vector<2x512xf32> -> vector<2x512xf32>
    %761 = arith.addf %758, %760 : vector<2x512xf32>
    %c6_269 = arith.constant 6 : index
    %c512_270 = arith.constant 512 : index
    %762 = vector.load %arg14[%c6_269, %c512_270] : memref<16x1024xf32, #tpu.memory_space<vmem>>, vector<2x512xf32>
    %c0_271 = arith.constant 0 : index
    %c0_272 = arith.constant 0 : index
    %763 = vector.load %arg7[%c0_271, %c0_272] : memref<128x512xf32, #tpu.memory_space<vmem>>, vector<128x512xf32>
    %cst_273 = arith.constant dense<0.000000e+00> : vector<2x512xf32>
    %764 = tpu.matmul %757, %763, %cst_273 {dimension_numbers = #tpu.dot_dimension_numbers<[1], [0], [0], [1], [0, 0, 1, 1], [], []>} : vector<2x128xf32>, vector<128x512xf32>, vector<2x512xf32> -> vector<2x512xf32>
    %765 = arith.addf %762, %764 : vector<2x512xf32>
    %766 = vector.extract_strided_slice %761 {offsets = [0, 0], sizes = [2, 128], strides = [1, 1]} : vector<2x512xf32> to vector<2x128xf32>
    %767 = arith.negf %766 : vector<2x128xf32>
    %768 = math.exp %767 : vector<2x128xf32>
    %cst_274 = arith.constant 1.000000e+00 : f32
    %769 = vector.broadcast %cst_274 : f32 to vector<2x128xf32>
    %770 = arith.addf %769, %768 : vector<2x128xf32>
    %771 = arith.divf %769, %770 : vector<2x128xf32>
    %772 = vector.extract_strided_slice %761 {offsets = [0, 128], sizes = [2, 128], strides = [1, 1]} : vector<2x512xf32> to vector<2x128xf32>
    %773 = arith.negf %772 : vector<2x128xf32>
    %774 = math.exp %773 : vector<2x128xf32>
    %cst_275 = arith.constant 1.000000e+00 : f32
    %775 = vector.broadcast %cst_275 : f32 to vector<2x128xf32>
    %776 = arith.addf %775, %774 : vector<2x128xf32>
    %777 = arith.divf %775, %776 : vector<2x128xf32>
    %778 = vector.extract_strided_slice %761 {offsets = [0, 256], sizes = [2, 128], strides = [1, 1]} : vector<2x512xf32> to vector<2x128xf32>
    %779 = math.tanh %778 : vector<2x128xf32>
    %780 = vector.extract_strided_slice %761 {offsets = [0, 384], sizes = [2, 128], strides = [1, 1]} : vector<2x512xf32> to vector<2x128xf32>
    %781 = arith.negf %780 : vector<2x128xf32>
    %782 = math.exp %781 : vector<2x128xf32>
    %cst_276 = arith.constant 1.000000e+00 : f32
    %783 = vector.broadcast %cst_276 : f32 to vector<2x128xf32>
    %784 = arith.addf %783, %782 : vector<2x128xf32>
    %785 = arith.divf %783, %784 : vector<2x128xf32>
    %786 = arith.mulf %777, %730 : vector<2x128xf32>
    %787 = arith.mulf %771, %779 : vector<2x128xf32>
    %788 = arith.addf %786, %787 : vector<2x128xf32>
    %789 = math.tanh %788 : vector<2x128xf32>
    %790 = arith.mulf %785, %789 : vector<2x128xf32>
    %791 = vector.extract_strided_slice %765 {offsets = [0, 0], sizes = [2, 128], strides = [1, 1]} : vector<2x512xf32> to vector<2x128xf32>
    %792 = arith.negf %791 : vector<2x128xf32>
    %793 = math.exp %792 : vector<2x128xf32>
    %cst_277 = arith.constant 1.000000e+00 : f32
    %794 = vector.broadcast %cst_277 : f32 to vector<2x128xf32>
    %795 = arith.addf %794, %793 : vector<2x128xf32>
    %796 = arith.divf %794, %795 : vector<2x128xf32>
    %797 = vector.extract_strided_slice %765 {offsets = [0, 128], sizes = [2, 128], strides = [1, 1]} : vector<2x512xf32> to vector<2x128xf32>
    %798 = arith.negf %797 : vector<2x128xf32>
    %799 = math.exp %798 : vector<2x128xf32>
    %cst_278 = arith.constant 1.000000e+00 : f32
    %800 = vector.broadcast %cst_278 : f32 to vector<2x128xf32>
    %801 = arith.addf %800, %799 : vector<2x128xf32>
    %802 = arith.divf %800, %801 : vector<2x128xf32>
    %803 = vector.extract_strided_slice %765 {offsets = [0, 256], sizes = [2, 128], strides = [1, 1]} : vector<2x512xf32> to vector<2x128xf32>
    %804 = math.tanh %803 : vector<2x128xf32>
    %805 = vector.extract_strided_slice %765 {offsets = [0, 384], sizes = [2, 128], strides = [1, 1]} : vector<2x512xf32> to vector<2x128xf32>
    %806 = arith.negf %805 : vector<2x128xf32>
    %807 = math.exp %806 : vector<2x128xf32>
    %cst_279 = arith.constant 1.000000e+00 : f32
    %808 = vector.broadcast %cst_279 : f32 to vector<2x128xf32>
    %809 = arith.addf %808, %807 : vector<2x128xf32>
    %810 = arith.divf %808, %809 : vector<2x128xf32>
    %811 = arith.mulf %802, %755 : vector<2x128xf32>
    %812 = arith.mulf %796, %804 : vector<2x128xf32>
    %813 = arith.addf %811, %812 : vector<2x128xf32>
    %814 = math.tanh %813 : vector<2x128xf32>
    %815 = arith.mulf %810, %814 : vector<2x128xf32>
    %c10_280 = arith.constant 10 : index
    %c0_281 = arith.constant 0 : index
    %816 = vector.load %arg14[%c10_280, %c0_281] : memref<16x1024xf32, #tpu.memory_space<vmem>>, vector<2x512xf32>
    %c0_282 = arith.constant 0 : index
    %c0_283 = arith.constant 0 : index
    %817 = vector.load %arg6[%c0_282, %c0_283] : memref<128x512xf32, #tpu.memory_space<vmem>>, vector<128x512xf32>
    %cst_284 = arith.constant dense<0.000000e+00> : vector<2x512xf32>
    %818 = tpu.matmul %790, %817, %cst_284 {dimension_numbers = #tpu.dot_dimension_numbers<[1], [0], [0], [1], [0, 0, 1, 1], [], []>} : vector<2x128xf32>, vector<128x512xf32>, vector<2x512xf32> -> vector<2x512xf32>
    %819 = arith.addf %816, %818 : vector<2x512xf32>
    %c4_285 = arith.constant 4 : index
    %c512_286 = arith.constant 512 : index
    %820 = vector.load %arg14[%c4_285, %c512_286] : memref<16x1024xf32, #tpu.memory_space<vmem>>, vector<2x512xf32>
    %c0_287 = arith.constant 0 : index
    %c0_288 = arith.constant 0 : index
    %821 = vector.load %arg7[%c0_287, %c0_288] : memref<128x512xf32, #tpu.memory_space<vmem>>, vector<128x512xf32>
    %cst_289 = arith.constant dense<0.000000e+00> : vector<2x512xf32>
    %822 = tpu.matmul %815, %821, %cst_289 {dimension_numbers = #tpu.dot_dimension_numbers<[1], [0], [0], [1], [0, 0, 1, 1], [], []>} : vector<2x128xf32>, vector<128x512xf32>, vector<2x512xf32> -> vector<2x512xf32>
    %823 = arith.addf %820, %822 : vector<2x512xf32>
    %824 = vector.extract_strided_slice %819 {offsets = [0, 0], sizes = [2, 128], strides = [1, 1]} : vector<2x512xf32> to vector<2x128xf32>
    %825 = arith.negf %824 : vector<2x128xf32>
    %826 = math.exp %825 : vector<2x128xf32>
    %cst_290 = arith.constant 1.000000e+00 : f32
    %827 = vector.broadcast %cst_290 : f32 to vector<2x128xf32>
    %828 = arith.addf %827, %826 : vector<2x128xf32>
    %829 = arith.divf %827, %828 : vector<2x128xf32>
    %830 = vector.extract_strided_slice %819 {offsets = [0, 128], sizes = [2, 128], strides = [1, 1]} : vector<2x512xf32> to vector<2x128xf32>
    %831 = arith.negf %830 : vector<2x128xf32>
    %832 = math.exp %831 : vector<2x128xf32>
    %cst_291 = arith.constant 1.000000e+00 : f32
    %833 = vector.broadcast %cst_291 : f32 to vector<2x128xf32>
    %834 = arith.addf %833, %832 : vector<2x128xf32>
    %835 = arith.divf %833, %834 : vector<2x128xf32>
    %836 = vector.extract_strided_slice %819 {offsets = [0, 256], sizes = [2, 128], strides = [1, 1]} : vector<2x512xf32> to vector<2x128xf32>
    %837 = math.tanh %836 : vector<2x128xf32>
    %838 = vector.extract_strided_slice %819 {offsets = [0, 384], sizes = [2, 128], strides = [1, 1]} : vector<2x512xf32> to vector<2x128xf32>
    %839 = arith.negf %838 : vector<2x128xf32>
    %840 = math.exp %839 : vector<2x128xf32>
    %cst_292 = arith.constant 1.000000e+00 : f32
    %841 = vector.broadcast %cst_292 : f32 to vector<2x128xf32>
    %842 = arith.addf %841, %840 : vector<2x128xf32>
    %843 = arith.divf %841, %842 : vector<2x128xf32>
    %844 = arith.mulf %835, %788 : vector<2x128xf32>
    %845 = arith.mulf %829, %837 : vector<2x128xf32>
    %846 = arith.addf %844, %845 : vector<2x128xf32>
    %847 = math.tanh %846 : vector<2x128xf32>
    %848 = arith.mulf %843, %847 : vector<2x128xf32>
    %849 = vector.extract_strided_slice %823 {offsets = [0, 0], sizes = [2, 128], strides = [1, 1]} : vector<2x512xf32> to vector<2x128xf32>
    %850 = arith.negf %849 : vector<2x128xf32>
    %851 = math.exp %850 : vector<2x128xf32>
    %cst_293 = arith.constant 1.000000e+00 : f32
    %852 = vector.broadcast %cst_293 : f32 to vector<2x128xf32>
    %853 = arith.addf %852, %851 : vector<2x128xf32>
    %854 = arith.divf %852, %853 : vector<2x128xf32>
    %855 = vector.extract_strided_slice %823 {offsets = [0, 128], sizes = [2, 128], strides = [1, 1]} : vector<2x512xf32> to vector<2x128xf32>
    %856 = arith.negf %855 : vector<2x128xf32>
    %857 = math.exp %856 : vector<2x128xf32>
    %cst_294 = arith.constant 1.000000e+00 : f32
    %858 = vector.broadcast %cst_294 : f32 to vector<2x128xf32>
    %859 = arith.addf %858, %857 : vector<2x128xf32>
    %860 = arith.divf %858, %859 : vector<2x128xf32>
    %861 = vector.extract_strided_slice %823 {offsets = [0, 256], sizes = [2, 128], strides = [1, 1]} : vector<2x512xf32> to vector<2x128xf32>
    %862 = math.tanh %861 : vector<2x128xf32>
    %863 = vector.extract_strided_slice %823 {offsets = [0, 384], sizes = [2, 128], strides = [1, 1]} : vector<2x512xf32> to vector<2x128xf32>
    %864 = arith.negf %863 : vector<2x128xf32>
    %865 = math.exp %864 : vector<2x128xf32>
    %cst_295 = arith.constant 1.000000e+00 : f32
    %866 = vector.broadcast %cst_295 : f32 to vector<2x128xf32>
    %867 = arith.addf %866, %865 : vector<2x128xf32>
    %868 = arith.divf %866, %867 : vector<2x128xf32>
    %869 = arith.mulf %860, %813 : vector<2x128xf32>
    %870 = arith.mulf %854, %862 : vector<2x128xf32>
    %871 = arith.addf %869, %870 : vector<2x128xf32>
    %872 = math.tanh %871 : vector<2x128xf32>
    %873 = arith.mulf %868, %872 : vector<2x128xf32>
    %c12_296 = arith.constant 12 : index
    %c0_297 = arith.constant 0 : index
    %874 = vector.load %arg14[%c12_296, %c0_297] : memref<16x1024xf32, #tpu.memory_space<vmem>>, vector<2x512xf32>
    %c0_298 = arith.constant 0 : index
    %c0_299 = arith.constant 0 : index
    %875 = vector.load %arg6[%c0_298, %c0_299] : memref<128x512xf32, #tpu.memory_space<vmem>>, vector<128x512xf32>
    %cst_300 = arith.constant dense<0.000000e+00> : vector<2x512xf32>
    %876 = tpu.matmul %848, %875, %cst_300 {dimension_numbers = #tpu.dot_dimension_numbers<[1], [0], [0], [1], [0, 0, 1, 1], [], []>} : vector<2x128xf32>, vector<128x512xf32>, vector<2x512xf32> -> vector<2x512xf32>
    %877 = arith.addf %874, %876 : vector<2x512xf32>
    %c2_301 = arith.constant 2 : index
    %c512_302 = arith.constant 512 : index
    %878 = vector.load %arg14[%c2_301, %c512_302] : memref<16x1024xf32, #tpu.memory_space<vmem>>, vector<2x512xf32>
    %c0_303 = arith.constant 0 : index
    %c0_304 = arith.constant 0 : index
    %879 = vector.load %arg7[%c0_303, %c0_304] : memref<128x512xf32, #tpu.memory_space<vmem>>, vector<128x512xf32>
    %cst_305 = arith.constant dense<0.000000e+00> : vector<2x512xf32>
    %880 = tpu.matmul %873, %879, %cst_305 {dimension_numbers = #tpu.dot_dimension_numbers<[1], [0], [0], [1], [0, 0, 1, 1], [], []>} : vector<2x128xf32>, vector<128x512xf32>, vector<2x512xf32> -> vector<2x512xf32>
    %881 = arith.addf %878, %880 : vector<2x512xf32>
    %882 = vector.extract_strided_slice %877 {offsets = [0, 0], sizes = [2, 128], strides = [1, 1]} : vector<2x512xf32> to vector<2x128xf32>
    %883 = arith.negf %882 : vector<2x128xf32>
    %884 = math.exp %883 : vector<2x128xf32>
    %cst_306 = arith.constant 1.000000e+00 : f32
    %885 = vector.broadcast %cst_306 : f32 to vector<2x128xf32>
    %886 = arith.addf %885, %884 : vector<2x128xf32>
    %887 = arith.divf %885, %886 : vector<2x128xf32>
    %888 = vector.extract_strided_slice %877 {offsets = [0, 128], sizes = [2, 128], strides = [1, 1]} : vector<2x512xf32> to vector<2x128xf32>
    %889 = arith.negf %888 : vector<2x128xf32>
    %890 = math.exp %889 : vector<2x128xf32>
    %cst_307 = arith.constant 1.000000e+00 : f32
    %891 = vector.broadcast %cst_307 : f32 to vector<2x128xf32>
    %892 = arith.addf %891, %890 : vector<2x128xf32>
    %893 = arith.divf %891, %892 : vector<2x128xf32>
    %894 = vector.extract_strided_slice %877 {offsets = [0, 256], sizes = [2, 128], strides = [1, 1]} : vector<2x512xf32> to vector<2x128xf32>
    %895 = math.tanh %894 : vector<2x128xf32>
    %896 = vector.extract_strided_slice %877 {offsets = [0, 384], sizes = [2, 128], strides = [1, 1]} : vector<2x512xf32> to vector<2x128xf32>
    %897 = arith.negf %896 : vector<2x128xf32>
    %898 = math.exp %897 : vector<2x128xf32>
    %cst_308 = arith.constant 1.000000e+00 : f32
    %899 = vector.broadcast %cst_308 : f32 to vector<2x128xf32>
    %900 = arith.addf %899, %898 : vector<2x128xf32>
    %901 = arith.divf %899, %900 : vector<2x128xf32>
    %902 = arith.mulf %893, %846 : vector<2x128xf32>
    %903 = arith.mulf %887, %895 : vector<2x128xf32>
    %904 = arith.addf %902, %903 : vector<2x128xf32>
    %905 = math.tanh %904 : vector<2x128xf32>
    %906 = arith.mulf %901, %905 : vector<2x128xf32>
    %907 = vector.extract_strided_slice %881 {offsets = [0, 0], sizes = [2, 128], strides = [1, 1]} : vector<2x512xf32> to vector<2x128xf32>
    %908 = arith.negf %907 : vector<2x128xf32>
    %909 = math.exp %908 : vector<2x128xf32>
    %cst_309 = arith.constant 1.000000e+00 : f32
    %910 = vector.broadcast %cst_309 : f32 to vector<2x128xf32>
    %911 = arith.addf %910, %909 : vector<2x128xf32>
    %912 = arith.divf %910, %911 : vector<2x128xf32>
    %913 = vector.extract_strided_slice %881 {offsets = [0, 128], sizes = [2, 128], strides = [1, 1]} : vector<2x512xf32> to vector<2x128xf32>
    %914 = arith.negf %913 : vector<2x128xf32>
    %915 = math.exp %914 : vector<2x128xf32>
    %cst_310 = arith.constant 1.000000e+00 : f32
    %916 = vector.broadcast %cst_310 : f32 to vector<2x128xf32>
    %917 = arith.addf %916, %915 : vector<2x128xf32>
    %918 = arith.divf %916, %917 : vector<2x128xf32>
    %919 = vector.extract_strided_slice %881 {offsets = [0, 256], sizes = [2, 128], strides = [1, 1]} : vector<2x512xf32> to vector<2x128xf32>
    %920 = math.tanh %919 : vector<2x128xf32>
    %921 = vector.extract_strided_slice %881 {offsets = [0, 384], sizes = [2, 128], strides = [1, 1]} : vector<2x512xf32> to vector<2x128xf32>
    %922 = arith.negf %921 : vector<2x128xf32>
    %923 = math.exp %922 : vector<2x128xf32>
    %cst_311 = arith.constant 1.000000e+00 : f32
    %924 = vector.broadcast %cst_311 : f32 to vector<2x128xf32>
    %925 = arith.addf %924, %923 : vector<2x128xf32>
    %926 = arith.divf %924, %925 : vector<2x128xf32>
    %927 = arith.mulf %918, %871 : vector<2x128xf32>
    %928 = arith.mulf %912, %920 : vector<2x128xf32>
    %929 = arith.addf %927, %928 : vector<2x128xf32>
    %930 = math.tanh %929 : vector<2x128xf32>
    %931 = arith.mulf %926, %930 : vector<2x128xf32>
    %c14_312 = arith.constant 14 : index
    %c0_313 = arith.constant 0 : index
    %932 = vector.load %arg14[%c14_312, %c0_313] : memref<16x1024xf32, #tpu.memory_space<vmem>>, vector<2x512xf32>
    %c0_314 = arith.constant 0 : index
    %c0_315 = arith.constant 0 : index
    %933 = vector.load %arg6[%c0_314, %c0_315] : memref<128x512xf32, #tpu.memory_space<vmem>>, vector<128x512xf32>
    %cst_316 = arith.constant dense<0.000000e+00> : vector<2x512xf32>
    %934 = tpu.matmul %906, %933, %cst_316 {dimension_numbers = #tpu.dot_dimension_numbers<[1], [0], [0], [1], [0, 0, 1, 1], [], []>} : vector<2x128xf32>, vector<128x512xf32>, vector<2x512xf32> -> vector<2x512xf32>
    %935 = arith.addf %932, %934 : vector<2x512xf32>
    %c0_317 = arith.constant 0 : index
    %c512_318 = arith.constant 512 : index
    %936 = vector.load %arg14[%c0_317, %c512_318] : memref<16x1024xf32, #tpu.memory_space<vmem>>, vector<2x512xf32>
    %c0_319 = arith.constant 0 : index
    %c0_320 = arith.constant 0 : index
    %937 = vector.load %arg7[%c0_319, %c0_320] : memref<128x512xf32, #tpu.memory_space<vmem>>, vector<128x512xf32>
    %cst_321 = arith.constant dense<0.000000e+00> : vector<2x512xf32>
    %938 = tpu.matmul %931, %937, %cst_321 {dimension_numbers = #tpu.dot_dimension_numbers<[1], [0], [0], [1], [0, 0, 1, 1], [], []>} : vector<2x128xf32>, vector<128x512xf32>, vector<2x512xf32> -> vector<2x512xf32>
    %939 = arith.addf %936, %938 : vector<2x512xf32>
    %940 = vector.extract_strided_slice %935 {offsets = [0, 0], sizes = [2, 128], strides = [1, 1]} : vector<2x512xf32> to vector<2x128xf32>
    %941 = arith.negf %940 : vector<2x128xf32>
    %942 = math.exp %941 : vector<2x128xf32>
    %cst_322 = arith.constant 1.000000e+00 : f32
    %943 = vector.broadcast %cst_322 : f32 to vector<2x128xf32>
    %944 = arith.addf %943, %942 : vector<2x128xf32>
    %945 = arith.divf %943, %944 : vector<2x128xf32>
    %946 = vector.extract_strided_slice %935 {offsets = [0, 128], sizes = [2, 128], strides = [1, 1]} : vector<2x512xf32> to vector<2x128xf32>
    %947 = arith.negf %946 : vector<2x128xf32>
    %948 = math.exp %947 : vector<2x128xf32>
    %cst_323 = arith.constant 1.000000e+00 : f32
    %949 = vector.broadcast %cst_323 : f32 to vector<2x128xf32>
    %950 = arith.addf %949, %948 : vector<2x128xf32>
    %951 = arith.divf %949, %950 : vector<2x128xf32>
    %952 = vector.extract_strided_slice %935 {offsets = [0, 256], sizes = [2, 128], strides = [1, 1]} : vector<2x512xf32> to vector<2x128xf32>
    %953 = math.tanh %952 : vector<2x128xf32>
    %954 = vector.extract_strided_slice %935 {offsets = [0, 384], sizes = [2, 128], strides = [1, 1]} : vector<2x512xf32> to vector<2x128xf32>
    %955 = arith.negf %954 : vector<2x128xf32>
    %956 = math.exp %955 : vector<2x128xf32>
    %cst_324 = arith.constant 1.000000e+00 : f32
    %957 = vector.broadcast %cst_324 : f32 to vector<2x128xf32>
    %958 = arith.addf %957, %956 : vector<2x128xf32>
    %959 = arith.divf %957, %958 : vector<2x128xf32>
    %960 = arith.mulf %951, %904 : vector<2x128xf32>
    %961 = arith.mulf %945, %953 : vector<2x128xf32>
    %962 = arith.addf %960, %961 : vector<2x128xf32>
    %963 = math.tanh %962 : vector<2x128xf32>
    %964 = arith.mulf %959, %963 : vector<2x128xf32>
    %965 = vector.extract_strided_slice %939 {offsets = [0, 0], sizes = [2, 128], strides = [1, 1]} : vector<2x512xf32> to vector<2x128xf32>
    %966 = arith.negf %965 : vector<2x128xf32>
    %967 = math.exp %966 : vector<2x128xf32>
    %cst_325 = arith.constant 1.000000e+00 : f32
    %968 = vector.broadcast %cst_325 : f32 to vector<2x128xf32>
    %969 = arith.addf %968, %967 : vector<2x128xf32>
    %970 = arith.divf %968, %969 : vector<2x128xf32>
    %971 = vector.extract_strided_slice %939 {offsets = [0, 128], sizes = [2, 128], strides = [1, 1]} : vector<2x512xf32> to vector<2x128xf32>
    %972 = arith.negf %971 : vector<2x128xf32>
    %973 = math.exp %972 : vector<2x128xf32>
    %cst_326 = arith.constant 1.000000e+00 : f32
    %974 = vector.broadcast %cst_326 : f32 to vector<2x128xf32>
    %975 = arith.addf %974, %973 : vector<2x128xf32>
    %976 = arith.divf %974, %975 : vector<2x128xf32>
    %977 = vector.extract_strided_slice %939 {offsets = [0, 256], sizes = [2, 128], strides = [1, 1]} : vector<2x512xf32> to vector<2x128xf32>
    %978 = math.tanh %977 : vector<2x128xf32>
    %979 = vector.extract_strided_slice %939 {offsets = [0, 384], sizes = [2, 128], strides = [1, 1]} : vector<2x512xf32> to vector<2x128xf32>
    %980 = arith.negf %979 : vector<2x128xf32>
    %981 = math.exp %980 : vector<2x128xf32>
    %cst_327 = arith.constant 1.000000e+00 : f32
    %982 = vector.broadcast %cst_327 : f32 to vector<2x128xf32>
    %983 = arith.addf %982, %981 : vector<2x128xf32>
    %984 = arith.divf %982, %983 : vector<2x128xf32>
    %985 = arith.mulf %976, %929 : vector<2x128xf32>
    %986 = arith.mulf %970, %978 : vector<2x128xf32>
    %987 = arith.addf %985, %986 : vector<2x128xf32>
    %988 = math.tanh %987 : vector<2x128xf32>
    %989 = arith.mulf %984, %988 : vector<2x128xf32>
    %990 = vector.extract_strided_slice %964 {offsets = [0, 0], sizes = [1, 128], strides = [1, 1]} : vector<2x128xf32> to vector<1x128xf32>
    %c1_328 = arith.constant 1 : index
    %c0_329 = arith.constant 0 : index
    %991 = vector.load %arg16[%c1_328, %c0_329] : memref<2x1024xf32, #tpu.memory_space<vmem>>, vector<1x128xf32>
    tpu.vector_store %arg16[%c1_328, %c0_329], %990 {strides = array<i32>} : memref<2x1024xf32, #tpu.memory_space<vmem>>, vector<1x128xf32>,
    %992 = vector.extract_strided_slice %962 {offsets = [0, 0], sizes = [1, 128], strides = [1, 1]} : vector<2x128xf32> to vector<1x128xf32>
    %c1_330 = arith.constant 1 : index
    %c512_331 = arith.constant 512 : index
    %993 = vector.load %arg16[%c1_330, %c512_331] : memref<2x1024xf32, #tpu.memory_space<vmem>>, vector<1x128xf32>
    tpu.vector_store %arg16[%c1_330, %c512_331], %992 {strides = array<i32>} : memref<2x1024xf32, #tpu.memory_space<vmem>>, vector<1x128xf32>,
    %994 = vector.extract_strided_slice %964 {offsets = [1, 0], sizes = [1, 128], strides = [1, 1]} : vector<2x128xf32> to vector<1x128xf32>
    %c1_332 = arith.constant 1 : index
    %c128_333 = arith.constant 128 : index
    %995 = vector.load %arg16[%c1_332, %c128_333] : memref<2x1024xf32, #tpu.memory_space<vmem>>, vector<1x128xf32>
    tpu.vector_store %arg16[%c1_332, %c128_333], %994 {strides = array<i32>} : memref<2x1024xf32, #tpu.memory_space<vmem>>, vector<1x128xf32>,
    %996 = vector.extract_strided_slice %962 {offsets = [1, 0], sizes = [1, 128], strides = [1, 1]} : vector<2x128xf32> to vector<1x128xf32>
    %c1_334 = arith.constant 1 : index
    %c640_335 = arith.constant 640 : index
    %997 = vector.load %arg16[%c1_334, %c640_335] : memref<2x1024xf32, #tpu.memory_space<vmem>>, vector<1x128xf32>
    tpu.vector_store %arg16[%c1_334, %c640_335], %996 {strides = array<i32>} : memref<2x1024xf32, #tpu.memory_space<vmem>>, vector<1x128xf32>,
    %998 = vector.extract_strided_slice %989 {offsets = [0, 0], sizes = [1, 128], strides = [1, 1]} : vector<2x128xf32> to vector<1x128xf32>
    %c1_336 = arith.constant 1 : index
    %c256_337 = arith.constant 256 : index
    %999 = vector.load %arg16[%c1_336, %c256_337] : memref<2x1024xf32, #tpu.memory_space<vmem>>, vector<1x128xf32>
    tpu.vector_store %arg16[%c1_336, %c256_337], %998 {strides = array<i32>} : memref<2x1024xf32, #tpu.memory_space<vmem>>, vector<1x128xf32>,
    %1000 = vector.extract_strided_slice %987 {offsets = [0, 0], sizes = [1, 128], strides = [1, 1]} : vector<2x128xf32> to vector<1x128xf32>
    %c1_338 = arith.constant 1 : index
    %c768_339 = arith.constant 768 : index
    %1001 = vector.load %arg16[%c1_338, %c768_339] : memref<2x1024xf32, #tpu.memory_space<vmem>>, vector<1x128xf32>
    tpu.vector_store %arg16[%c1_338, %c768_339], %1000 {strides = array<i32>} : memref<2x1024xf32, #tpu.memory_space<vmem>>, vector<1x128xf32>,
    %1002 = vector.extract_strided_slice %989 {offsets = [1, 0], sizes = [1, 128], strides = [1, 1]} : vector<2x128xf32> to vector<1x128xf32>
    %c1_340 = arith.constant 1 : index
    %c384_341 = arith.constant 384 : index
    %1003 = vector.load %arg16[%c1_340, %c384_341] : memref<2x1024xf32, #tpu.memory_space<vmem>>, vector<1x128xf32>
    tpu.vector_store %arg16[%c1_340, %c384_341], %1002 {strides = array<i32>} : memref<2x1024xf32, #tpu.memory_space<vmem>>, vector<1x128xf32>,
    %1004 = vector.extract_strided_slice %987 {offsets = [1, 0], sizes = [1, 128], strides = [1, 1]} : vector<2x128xf32> to vector<1x128xf32>
    %c1_342 = arith.constant 1 : index
    %c896_343 = arith.constant 896 : index
    %1005 = vector.load %arg16[%c1_342, %c896_343] : memref<2x1024xf32, #tpu.memory_space<vmem>>, vector<1x128xf32>
    tpu.vector_store %arg16[%c1_342, %c896_343], %1004 {strides = array<i32>} : memref<2x1024xf32, #tpu.memory_space<vmem>>, vector<1x128xf32>,
    %c0_344 = arith.constant 0 : index
    %c0_345 = arith.constant 0 : index
    %1006 = vector.load %arg16[%c0_344, %c0_345] : memref<2x1024xf32, #tpu.memory_space<vmem>>, vector<2x1024xf32>
    %c0_346 = arith.constant 0 : index
    %c0_347 = arith.constant 0 : index
    %1007 = vector.load %arg11[%c0_346, %c0_347] : memref<1024x128xf32, #tpu.memory_space<vmem>>, vector<1024x128xf32>
    %cst_348 = arith.constant dense<0.000000e+00> : vector<2x128xf32>
    %1008 = tpu.matmul %1006, %1007, %cst_348 {dimension_numbers = #tpu.dot_dimension_numbers<[1], [0], [0], [1], [0, 0, 1, 1], [], []>} : vector<2x1024xf32>, vector<1024x128xf32>, vector<2x128xf32> -> vector<2x128xf32>
    %c0_349 = arith.constant 0 : index
    %c0_350 = arith.constant 0 : index
    %1009 = vector.load %arg12[%c0_349, %c0_350] : memref<1x128xf32, #tpu.memory_space<vmem>>, vector<1x128xf32>
    %1010 = vector.broadcast %1009 : vector<1x128xf32> to vector<2x128xf32>
    %1011 = arith.addf %1008, %1010 : vector<2x128xf32>
    %cst_351 = arith.constant dense<0xFF800000> : vector<2xf32>
    %1012 = vector.multi_reduction <maximumf>, %1011, %cst_351 [1] : vector<2x128xf32> to vector<2xf32>
    %1013 = vector.shape_cast %1012 : vector<2xf32> to vector<2x1xf32>
    %1014 = vector.broadcast %1013 : vector<2x1xf32> to vector<2x128xf32>
    %1015 = arith.subf %1011, %1014 : vector<2x128xf32>
    %1016 = math.exp %1015 : vector<2x128xf32>
    %cst_352 = arith.constant dense<0.000000e+00> : vector<2xf32>
    %1017 = vector.multi_reduction <add>, %1016, %cst_352 [1] : vector<2x128xf32> to vector<2xf32>
    %1018 = vector.shape_cast %1017 : vector<2xf32> to vector<2x1xf32>
    %1019 = math.log %1018 : vector<2x1xf32>
    %1020 = vector.broadcast %1019 : vector<2x1xf32> to vector<2x128xf32>
    %1021 = arith.subf %1015, %1020 : vector<2x128xf32>
    %c0_353 = arith.constant 0 : index
    %c0_354 = arith.constant 0 : index
    %1022 = vector.load %arg13[%c0_353, %c0_354] : memref<2x128xf32, #tpu.memory_space<vmem>>, vector<2x128xf32>
    tpu.vector_store %arg13[%c0_353, %c0_354], %1021 {strides = array<i32>} : memref<2x128xf32, #tpu.memory_space<vmem>>, vector<2x128xf32>,
    return
  }
}

</mosaic_0001>

<llo_original>
// kernel: bilstm_forward.1
$region0: #{bilstm_forward.1}
  #allocation0 [shape = 'u32[]', space=smem, size = 0x4, offset = 0x4, fixed_abs, tag = 'smem constant byte address 0x4 - core index']
  #allocation1 [shape = 'u32[144,128]{1,0:T(1,128)}', space=vmem, size = 0x12000, scoped, tag = 'internal scratch']
  #allocation2 [shape = 'f32[16,1024]{1,0:T(8,128)}', space=vmem, size = 0x10000, scoped, tag = 'scratch operand']
  #allocation3 [shape = 'f32[16,256]{1,0:T(8,128)}', space=vmem, size = 0x4000, scoped, tag = 'scratch operand']
  #allocation4 [shape = 'f32[2,1024]{1,0:T(2,128)}', space=vmem, size = 0x2000, scoped, tag = 'scratch operand']
  %s0 = inlined_call_operand.vmem [shape: f32[16,128], index: 0, kind: input, shape index: {}]
  %s1 = inlined_call_operand.hbm [shape: f32[128,1024], index: 1, kind: input, shape index: {}]
  %s2 = inlined_call_operand.hbm [shape: f32[128,512], index: 2, kind: input, shape index: {}]
  %s3 = inlined_call_operand.hbm [shape: f32[128,512], index: 3, kind: input, shape index: {}]
  %s4 = inlined_call_operand.vmem [shape: f32[1,1024], index: 4, kind: input, shape index: {}]
  %s5 = inlined_call_operand.hbm [shape: f32[256,1024], index: 5, kind: input, shape index: {}]
  %s6 = inlined_call_operand.hbm [shape: f32[128,512], index: 6, kind: input, shape index: {}]
  %s7 = inlined_call_operand.hbm [shape: f32[128,512], index: 7, kind: input, shape index: {}]
  %s8 = inlined_call_operand.vmem [shape: f32[1,1024], index: 8, kind: input, shape index: {}]
  %s9 = inlined_call_operand.vmem [shape: f32[4,2,128], index: 9, kind: input, shape index: {}]
  %s10 = inlined_call_operand.vmem [shape: f32[4,2,128], index: 10, kind: input, shape index: {}]
  %s11 = inlined_call_operand.hbm [shape: f32[1024,128], index: 11, kind: input, shape index: {}]
  %s12 = inlined_call_operand.vmem [shape: f32[1,128], index: 12, kind: input, shape index: {}]
  %s13 = inlined_call_operand.hbm [shape: f32[2,128], index: 13, kind: output, shape index: {}]
  %s14 = sld [smem:[#allocation0]]
  $region90: #{bilstm_forward.1} parent=0
    _
  %s16 = ssub.s32 1, %s14
  %s17 = scalar_select 0, %s16, %s14
  $region1: #{bilstm_forward.1} parent=0
    #allocation5 [shape = 'u8[524288]{0}', space=vmem, size = 0x80000, scoped, tag = 'input window, operand 1, single buffered']
    #allocation6 [shape = 's32[1]{0}', space=sflag, size = 0x4, scoped, tag = 'scoped memory for bilstm_forward.1']
    #allocation7 [shape = 's32[1]{0}', space=sflag, size = 0x4, scoped, tag = 'scoped memory for bilstm_forward.1']
    #allocation8 [shape = 'u8[262144]{0}', space=vmem, size = 0x40000, scoped, tag = 'input window, operand 2, single buffered']
    #allocation9 [shape = 's32[1]{0}', space=sflag, size = 0x4, scoped, tag = 'scoped memory for bilstm_forward.1']
    #allocation10 [shape = 'u8[262144]{0}', space=vmem, size = 0x40000, scoped, tag = 'input window, operand 3, single buffered']
    #allocation11 [shape = 'u8[1048576]{0}', space=vmem, size = 0x100000, scoped, tag = 'input window, operand 5, single buffered']
    #allocation12 [shape = 's32[1]{0}', space=sflag, size = 0x4, scoped, tag = 'scoped memory for bilstm_forward.1']
    #allocation13 [shape = 'u8[262144]{0}', space=vmem, size = 0x40000, scoped, tag = 'input window, operand 6, single buffered']
    #allocation14 [shape = 'u8[262144]{0}', space=vmem, size = 0x40000, scoped, tag = 'input window, operand 7, single buffered']
    #allocation15 [shape = 's32[1]{0}', space=sflag, size = 0x4, scoped, tag = 'scoped memory for bilstm_forward.1']
    #allocation16 [shape = 'u8[524288]{0}', space=vmem, size = 0x80000, scoped, tag = 'input window, operand 11, single buffered']
    #allocation17 [shape = 'u8[1024]{0}', space=vmem, size = 0x400, scoped, tag = 'output window, operand 0, single buffered']
    %18 = vsyncpa [#allocation6], 0
    %19 = vsyncpa [#allocation9], 0
    %20 = vsyncpa [#allocation12], 0
    %21 = vsyncpa [#allocation15], 0
    %22 = vsyncpa [#allocation7], 0
    // Predicated region
    $region2: #{bilstm_forward.1} parent=1 // pred_check
      _
    $region3: #{bilstm_forward.1} parent=1 // pred_check_branch
      %24 = sbr.rel (0) target = $region5
    $region4: #{bilstm_forward.1} parent=1 // pred_region
      _
    $region5: #{bilstm_forward.1} parent=1 // pred_fallthru
      _
    // Predicated region
    $region6: #{bilstm_forward.1} parent=1 // pred_check
      _
    $region7: #{bilstm_forward.1} parent=1 // pred_check_branch
      %26 = sbr.rel (0) target = $region9
    $region8: #{bilstm_forward.1} parent=1 // pred_region
      %s28 = ssub.s32 16384, 16384
      %29 = vsyncadd [#allocation6], %s28
      %s30 = sshll.u32 [#allocation5], 4
      %s31 = int_to_ptr.vmem [resolvable:$true] %s30
      %36 = dma.hbm_to_vmem [thread:$0]  %s1, 16384, %s31, [#allocation6], 1024, 1024, 64
    $region9: #{bilstm_forward.1} parent=1 // pred_fallthru
      _
    // Predicated region
    $region10: #{bilstm_forward.1} parent=1 // pred_check
      _
    $region11: #{bilstm_forward.1} parent=1 // pred_check_branch
      %38 = sbr.rel (0) target = $region13
    $region12: #{bilstm_forward.1} parent=1 // pred_region
      %s40 = ssub.s32 8192, 8192
      %41 = vsyncadd [#allocation9], %s40
      %s42 = sshll.u32 [#allocation8], 4
      %s43 = int_to_ptr.vmem [resolvable:$true] %s42
      %48 = dma.hbm_to_vmem [thread:$0]  %s2, 8192, %s43, [#allocation9], 512, 512, 32
    $region13: #{bilstm_forward.1} parent=1 // pred_fallthru
      _
    // Predicated region
    $region14: #{bilstm_forward.1} parent=1 // pred_check
      _
    $region15: #{bilstm_forward.1} parent=1 // pred_check_branch
      %50 = sbr.rel (0) target = $region17
    $region16: #{bilstm_forward.1} parent=1 // pred_region
      %s52 = ssub.s32 8192, 8192
      %53 = vsyncadd [#allocation9], %s52
      %s54 = sshll.u32 [#allocation10], 4
      %s55 = int_to_ptr.vmem [resolvable:$true] %s54
      %60 = dma.hbm_to_vmem [thread:$0]  %s3, 8192, %s55, [#allocation9], 512, 512, 32
    $region17: #{bilstm_forward.1} parent=1 // pred_fallthru
      _
    // Predicated region
    $region18: #{bilstm_forward.1} parent=1 // pred_check
      _
    $region19: #{bilstm_forward.1} parent=1 // pred_check_branch
      %62 = sbr.rel (0) target = $region21
    $region20: #{bilstm_forward.1} parent=1 // pred_region
      _
    $region21: #{bilstm_forward.1} parent=1 // pred_fallthru
      _
    // Predicated region
    $region22: #{bilstm_forward.1} parent=1 // pred_check
      _
    $region23: #{bilstm_forward.1} parent=1 // pred_check_branch
      %64 = sbr.rel (0) target = $region25
    $region24: #{bilstm_forward.1} parent=1 // pred_region
      %s66 = ssub.s32 32768, 32768
      %67 = vsyncadd [#allocation12], %s66
      %s68 = sshll.u32 [#allocation11], 4
      %s69 = int_to_ptr.vmem [resolvable:$true] %s68
      %74 = dma.hbm_to_vmem [thread:$0]  %s5, 32768, %s69, [#allocation12], 1024, 1024, 64
    $region25: #{bilstm_forward.1} parent=1 // pred_fallthru
      _
    // Predicated region
    $region26: #{bilstm_forward.1} parent=1 // pred_check
      _
    $region27: #{bilstm_forward.1} parent=1 // pred_check_branch
      %76 = sbr.rel (0) target = $region29
    $region28: #{bilstm_forward.1} parent=1 // pred_region
      %s78 = ssub.s32 8192, 8192
      %79 = vsyncadd [#allocation12], %s78
      %s80 = sshll.u32 [#allocation13], 4
      %s81 = int_to_ptr.vmem [resolvable:$true] %s80
      %86 = dma.hbm_to_vmem [thread:$0]  %s6, 8192, %s81, [#allocation12], 512, 512, 32
    $region29: #{bilstm_forward.1} parent=1 // pred_fallthru
      _
    // Predicated region
    $region30: #{bilstm_forward.1} parent=1 // pred_check
      _
    $region31: #{bilstm_forward.1} parent=1 // pred_check_branch
      %88 = sbr.rel (0) target = $region33
    $region32: #{bilstm_forward.1} parent=1 // pred_region
      %s90 = ssub.s32 8192, 8192
      %91 = vsyncadd [#allocation15], %s90
      %s92 = sshll.u32 [#allocation14], 4
      %s93 = int_to_ptr.vmem [resolvable:$true] %s92
      %98 = dma.hbm_to_vmem [thread:$0]  %s7, 8192, %s93, [#allocation15], 512, 512, 32
    $region33: #{bilstm_forward.1} parent=1 // pred_fallthru
      _
    // Predicated region
    $region34: #{bilstm_forward.1} parent=1 // pred_check
      _
    $region35: #{bilstm_forward.1} parent=1 // pred_check_branch
      %100 = sbr.rel (0) target = $region37
    $region36: #{bilstm_forward.1} parent=1 // pred_region
      _
    $region37: #{bilstm_forward.1} parent=1 // pred_fallthru
      _
    // Predicated region
    $region38: #{bilstm_forward.1} parent=1 // pred_check
      _
    $region39: #{bilstm_forward.1} parent=1 // pred_check_branch
      %102 = sbr.rel (0) target = $region41
    $region40: #{bilstm_forward.1} parent=1 // pred_region
      _
    $region41: #{bilstm_forward.1} parent=1 // pred_fallthru
      _
    // Predicated region
    $region42: #{bilstm_forward.1} parent=1 // pred_check
      _
    $region43: #{bilstm_forward.1} parent=1 // pred_check_branch
      %104 = sbr.rel (0) target = $region45
    $region44: #{bilstm_forward.1} parent=1 // pred_region
      _
    $region45: #{bilstm_forward.1} parent=1 // pred_fallthru
      _
    // Predicated region
    $region46: #{bilstm_forward.1} parent=1 // pred_check
      _
    $region47: #{bilstm_forward.1} parent=1 // pred_check_branch
      %106 = sbr.rel (0) target = $region49
    $region48: #{bilstm_forward.1} parent=1 // pred_region
      %s108 = ssub.s32 16384, 16384
      %109 = vsyncadd [#allocation15], %s108
      %s110 = sshll.u32 [#allocation16], 4
      %s111 = int_to_ptr.vmem [resolvable:$true] %s110
      %116 = dma.hbm_to_vmem [thread:$0]  %s11, 16384, %s111, [#allocation15], 128, 128, 8
    $region49: #{bilstm_forward.1} parent=1 // pred_fallthru
      _
    // Predicated region
    $region50: #{bilstm_forward.1} parent=1 // pred_check
      _
    $region51: #{bilstm_forward.1} parent=1 // pred_check_branch
      %118 = sbr.rel (0) target = $region53
    $region52: #{bilstm_forward.1} parent=1 // pred_region
      _
    $region53: #{bilstm_forward.1} parent=1 // pred_fallthru
      _
    // Predicated region
    $region54: #{bilstm_forward.1} parent=1 // pred_check
      _
    $region55: #{bilstm_forward.1} parent=1 // pred_check_branch
      %120 = sbr.rel (0) target = $region57
    $region56: #{bilstm_forward.1} parent=1 // pred_region
      %121 = dma.done [#allocation6], 16384
    $region57: #{bilstm_forward.1} parent=1 // pred_fallthru
      _
    // Predicated region
    $region58: #{bilstm_forward.1} parent=1 // pred_check
      _
    $region59: #{bilstm_forward.1} parent=1 // pred_check_branch
      %123 = sbr.rel (0) target = $region61
    $region60: #{bilstm_forward.1} parent=1 // pred_region
      %124 = dma.done [#allocation9], 8192
    $region61: #{bilstm_forward.1} parent=1 // pred_fallthru
      _
    // Predicated region
    $region62: #{bilstm_forward.1} parent=1 // pred_check
      _
    $region63: #{bilstm_forward.1} parent=1 // pred_check_branch
      %126 = sbr.rel (0) target = $region65
    $region64: #{bilstm_forward.1} parent=1 // pred_region
      %127 = dma.done [#allocation9], 8192
    $region65: #{bilstm_forward.1} parent=1 // pred_fallthru
      _
    // Predicated region
    $region66: #{bilstm_forward.1} parent=1 // pred_check
      _
    $region67: #{bilstm_forward.1} parent=1 // pred_check_branch
      %129 = sbr.rel (0) target = $region69
    $region68: #{bilstm_forward.1} parent=1 // pred_region
      %130 = dma.done [#allocation12], 32768
    $region69: #{bilstm_forward.1} parent=1 // pred_fallthru
      _
    // Predicated region
    $region70: #{bilstm_forward.1} parent=1 // pred_check
      _
    $region71: #{bilstm_forward.1} parent=1 // pred_check_branch
      %132 = sbr.rel (0) target = $region73
    $region72: #{bilstm_forward.1} parent=1 // pred_region
      %133 = dma.done [#allocation12], 8192
    $region73: #{bilstm_forward.1} parent=1 // pred_fallthru
      _
    // Predicated region
    $region74: #{bilstm_forward.1} parent=1 // pred_check
      _
    $region75: #{bilstm_forward.1} parent=1 // pred_check_branch
      %135 = sbr.rel (0) target = $region77
    $region76: #{bilstm_forward.1} parent=1 // pred_region
      %136 = dma.done [#allocation15], 8192
    $region77: #{bilstm_forward.1} parent=1 // pred_fallthru
      _
    // Predicated region
    $region78: #{bilstm_forward.1} parent=1 // pred_check
      _
    $region79: #{bilstm_forward.1} parent=1 // pred_check_branch
      %138 = sbr.rel (0) target = $region81
    $region80: #{bilstm_forward.1} parent=1 // pred_region
      %139 = dma.done [#allocation15], 16384
    $region81: #{bilstm_forward.1} parent=1 // pred_fallthru
      _
    %v140 = vld [vmem:[%s0] sm:$0xff]
    %v141 = vld [vmem:[%s0 + $0x8] sm:$0xff]
    %v142 = vld [vmem:[#allocation5] sm:$0xff]
    %v143 = vld [vmem:[#allocation5 + $0x8] sm:$0xff]
    %v144 = vld [vmem:[#allocation5 + $0x10] sm:$0xff]
    %v145 = vld [vmem:[#allocation5 + $0x18] sm:$0xff]
    %v146 = vld [vmem:[#allocation5 + $0x20] sm:$0xff]
    %v147 = vld [vmem:[#allocation5 + $0x28] sm:$0xff]
    %v148 = vld [vmem:[#allocation5 + $0x30] sm:$0xff]
    %v149 = vld [vmem:[#allocation5 + $0x38] sm:$0xff]
    %v150 = vld [vmem:[#allocation5 + $0x40] sm:$0xff]
    %v151 = vld [vmem:[#allocation5 + $0x48] sm:$0xff]
    %v152 = vld [vmem:[#allocation5 + $0x50] sm:$0xff]
    %v153 = vld [vmem:[#allocation5 + $0x58] sm:$0xff]
    %v154 = vld [vmem:[#allocation5 + $0x60] sm:$0xff]
    %v155 = vld [vmem:[#allocation5 + $0x68] sm:$0xff]
    %v156 = vld [vmem:[#allocation5 + $0x70] sm:$0xff]
    %v157 = vld [vmem:[#allocation5 + $0x78] sm:$0xff]
    %v158 = vld [vmem:[#allocation5 + $0x80] sm:$0xff]
    %v159 = vld [vmem:[#allocation5 + $0x88] sm:$0xff]
    %v160 = vld [vmem:[#allocation5 + $0x90] sm:$0xff]
    %v161 = vld [vmem:[#allocation5 + $0x98] sm:$0xff]
    %v162 = vld [vmem:[#allocation5 + $0xa0] sm:$0xff]
    %v163 = vld [vmem:[#allocation5 + $0xa8] sm:$0xff]
    %v164 = vld [vmem:[#allocation5 + $0xb0] sm:$0xff]
    %v165 = vld [vmem:[#allocation5 + $0xb8] sm:$0xff]
    %v166 = vld [vmem:[#allocation5 + $0xc0] sm:$0xff]
    %v167 = vld [vmem:[#allocation5 + $0xc8] sm:$0xff]
    %v168 = vld [vmem:[#allocation5 + $0xd0] sm:$0xff]
    %v169 = vld [vmem:[#allocation5 + $0xd8] sm:$0xff]
    %v170 = vld [vmem:[#allocation5 + $0xe0] sm:$0xff]
    %v171 = vld [vmem:[#allocation5 + $0xe8] sm:$0xff]
    %v172 = vld [vmem:[#allocation5 + $0xf0] sm:$0xff]
    %v173 = vld [vmem:[#allocation5 + $0xf8] sm:$0xff]
    %v174 = vld [vmem:[#allocation5 + $0x100] sm:$0xff]
    %v175 = vld [vmem:[#allocation5 + $0x108] sm:$0xff]
    %v176 = vld [vmem:[#allocation5 + $0x110] sm:$0xff]
    %v177 = vld [vmem:[#allocation5 + $0x118] sm:$0xff]
    %v178 = vld [vmem:[#allocation5 + $0x120] sm:$0xff]
    %v179 = vld [vmem:[#allocation5 + $0x128] sm:$0xff]
    %v180 = vld [vmem:[#allocation5 + $0x130] sm:$0xff]
    %v181 = vld [vmem:[#allocation5 + $0x138] sm:$0xff]
    %v182 = vld [vmem:[#allocation5 + $0x140] sm:$0xff]
    %v183 = vld [vmem:[#allocation5 + $0x148] sm:$0xff]
    %v184 = vld [vmem:[#allocation5 + $0x150] sm:$0xff]
    %v185 = vld [vmem:[#allocation5 + $0x158] sm:$0xff]
    %v186 = vld [vmem:[#allocation5 + $0x160] sm:$0xff]
    %v187 = vld [vmem:[#allocation5 + $0x168] sm:$0xff]
    %v188 = vld [vmem:[#allocation5 + $0x170] sm:$0xff]
    %v189 = vld [vmem:[#allocation5 + $0x178] sm:$0xff]
    %v190 = vld [vmem:[#allocation5 + $0x180] sm:$0xff]
    %v191 = vld [vmem:[#allocation5 + $0x188] sm:$0xff]
    %v192 = vld [vmem:[#allocation5 + $0x190] sm:$0xff]
    %v193 = vld [vmem:[#allocation5 + $0x198] sm:$0xff]
    %v194 = vld [vmem:[#allocation5 + $0x1a0] sm:$0xff]
    %v195 = vld [vmem:[#allocation5 + $0x1a8] sm:$0xff]
    %v196 = vld [vmem:[#allocation5 + $0x1b0] sm:$0xff]
    %v197 = vld [vmem:[#allocation5 + $0x1b8] sm:$0xff]
    %v198 = vld [vmem:[#allocation5 + $0x1c0] sm:$0xff]
    %v199 = vld [vmem:[#allocation5 + $0x1c8] sm:$0xff]
    %v200 = vld [vmem:[#allocation5 + $0x1d0] sm:$0xff]
    %v201 = vld [vmem:[#allocation5 + $0x1d8] sm:$0xff]
    %v202 = vld [vmem:[#allocation5 + $0x1e0] sm:$0xff]
    %v203 = vld [vmem:[#allocation5 + $0x1e8] sm:$0xff]
    %v204 = vld [vmem:[#allocation5 + $0x1f0] sm:$0xff]
    %v205 = vld [vmem:[#allocation5 + $0x1f8] sm:$0xff]
    %v206 = vld [vmem:[#allocation5 + $0x200] sm:$0xff]
    %v207 = vld [vmem:[#allocation5 + $0x208] sm:$0xff]
    %v208 = vld [vmem:[#allocation5 + $0x210] sm:$0xff]
    %v209 = vld [vmem:[#allocation5 + $0x218] sm:$0xff]
    %v210 = vld [vmem:[#allocation5 + $0x220] sm:$0xff]
    %v211 = vld [vmem:[#allocation5 + $0x228] sm:$0xff]
    %v212 = vld [vmem:[#allocation5 + $0x230] sm:$0xff]
    %v213 = vld [vmem:[#allocation5 + $0x238] sm:$0xff]
    %v214 = vld [vmem:[#allocation5 + $0x240] sm:$0xff]
    %v215 = vld [vmem:[#allocation5 + $0x248] sm:$0xff]
    %v216 = vld [vmem:[#allocation5 + $0x250] sm:$0xff]
    %v217 = vld [vmem:[#allocation5 + $0x258] sm:$0xff]
    %v218 = vld [vmem:[#allocation5 + $0x260] sm:$0xff]
    %v219 = vld [vmem:[#allocation5 + $0x268] sm:$0xff]
    %v220 = vld [vmem:[#allocation5 + $0x270] sm:$0xff]
    %v221 = vld [vmem:[#allocation5 + $0x278] sm:$0xff]
    %v222 = vld [vmem:[#allocation5 + $0x280] sm:$0xff]
    %v223 = vld [vmem:[#allocation5 + $0x288] sm:$0xff]
    %v224 = vld [vmem:[#allocation5 + $0x290] sm:$0xff]
    %v225 = vld [vmem:[#allocation5 + $0x298] sm:$0xff]
    %v226 = vld [vmem:[#allocation5 + $0x2a0] sm:$0xff]
    %v227 = vld [vmem:[#allocation5 + $0x2a8] sm:$0xff]
    %v228 = vld [vmem:[#allocation5 + $0x2b0] sm:$0xff]
    %v229 = vld [vmem:[#allocation5 + $0x2b8] sm:$0xff]
    %v230 = vld [vmem:[#allocation5 + $0x2c0] sm:$0xff]
    %v231 = vld [vmem:[#allocation5 + $0x2c8] sm:$0xff]
    %v232 = vld [vmem:[#allocation5 + $0x2d0] sm:$0xff]
    %v233 = vld [vmem:[#allocation5 + $0x2d8] sm:$0xff]
    %v234 = vld [vmem:[#allocation5 + $0x2e0] sm:$0xff]
    %v235 = vld [vmem:[#allocation5 + $0x2e8] sm:$0xff]
    %v236 = vld [vmem:[#allocation5 + $0x2f0] sm:$0xff]
    %v237 = vld [vmem:[#allocation5 + $0x2f8] sm:$0xff]
    %v238 = vld [vmem:[#allocation5 + $0x300] sm:$0xff]
    %v239 = vld [vmem:[#allocation5 + $0x308] sm:$0xff]
    %v240 = vld [vmem:[#allocation5 + $0x310] sm:$0xff]
    %v241 = vld [vmem:[#allocation5 + $0x318] sm:$0xff]
    %v242 = vld [vmem:[#allocation5 + $0x320] sm:$0xff]
    %v243 = vld [vmem:[#allocation5 + $0x328] sm:$0xff]
    %v244 = vld [vmem:[#allocation5 + $0x330] sm:$0xff]
    %v245 = vld [vmem:[#allocation5 + $0x338] sm:$0xff]
    %v246 = vld [vmem:[#allocation5 + $0x340] sm:$0xff]
    %v247 = vld [vmem:[#allocation5 + $0x348] sm:$0xff]
    %v248 = vld [vmem:[#allocation5 + $0x350] sm:$0xff]
    %v249 = vld [vmem:[#allocation5 + $0x358] sm:$0xff]
    %v250 = vld [vmem:[#allocation5 + $0x360] sm:$0xff]
    %v251 = vld [vmem:[#allocation5 + $0x368] sm:$0xff]
    %v252 = vld [vmem:[#allocation5 + $0x370] sm:$0xff]
    %v253 = vld [vmem:[#allocation5 + $0x378] sm:$0xff]
    %v254 = vld [vmem:[#allocation5 + $0x380] sm:$0xff]
    %v255 = vld [vmem:[#allocation5 + $0x388] sm:$0xff]
    %v256 = vld [vmem:[#allocation5 + $0x390] sm:$0xff]
    %v257 = vld [vmem:[#allocation5 + $0x398] sm:$0xff]
    %v258 = vld [vmem:[#allocation5 + $0x3a0] sm:$0xff]
    %v259 = vld [vmem:[#allocation5 + $0x3a8] sm:$0xff]
    %v260 = vld [vmem:[#allocation5 + $0x3b0] sm:$0xff]
    %v261 = vld [vmem:[#allocation5 + $0x3b8] sm:$0xff]
    %v262 = vld [vmem:[#allocation5 + $0x3c0] sm:$0xff]
    %v263 = vld [vmem:[#allocation5 + $0x3c8] sm:$0xff]
    %v264 = vld [vmem:[#allocation5 + $0x3d0] sm:$0xff]
    %v265 = vld [vmem:[#allocation5 + $0x3d8] sm:$0xff]
    %v266 = vld [vmem:[#allocation5 + $0x3e0] sm:$0xff]
    %v267 = vld [vmem:[#allocation5 + $0x3e8] sm:$0xff]
    %v268 = vld [vmem:[#allocation5 + $0x3f0] sm:$0xff]
    %v269 = vld [vmem:[#allocation5 + $0x3f8] sm:$0xff]
    %v270 = vld [vmem:[%s4] sm:$0xff]
    %v272 = vlaneseq
    %v273 = vshrl.u32 %v272, 7
    %v274 = vsub.s32 0, %v273
    %v275 = vrot.slane %v270, %v274
    %v276 = vlaneseq
    %v277 = vshrl.u32 %v276, 7
    %v278 = vsub.s32 1, %v277
    %v279 = vrot.slane %v270, %v278
    %v280 = vlaneseq
    %v281 = vshrl.u32 %v280, 7
    %v282 = vsub.s32 2, %v281
    %v283 = vrot.slane %v270, %v282
    %v284 = vlaneseq
    %v285 = vshrl.u32 %v284, 7
    %v286 = vsub.s32 3, %v285
    %v287 = vrot.slane %v270, %v286
    %v288 = vlaneseq
    %v289 = vshrl.u32 %v288, 7
    %v290 = vsub.s32 4, %v289
    %v291 = vrot.slane %v270, %v290
    %v292 = vlaneseq
    %v293 = vshrl.u32 %v292, 7
    %v294 = vsub.s32 5, %v293
    %v295 = vrot.slane %v270, %v294
    %v296 = vlaneseq
    %v297 = vshrl.u32 %v296, 7
    %v298 = vsub.s32 6, %v297
    %v299 = vrot.slane %v270, %v298
    %v300 = vlaneseq
    %v301 = vshrl.u32 %v300, 7
    %v302 = vsub.s32 7, %v301
    %v303 = vrot.slane %v270, %v302
    %312 = vmatprep.subr.mxu0 %v263
    %313 = vmatpush1.msra.mxu0 %v262
    %314 = vmatprep.subr.mxu0 %v255
    %315 = vmatpush1.msra.mxu0 %v254
    %316 = vmatprep.subr.mxu0 %v247
    %317 = vmatpush1.msra.mxu0 %v246
    %318 = vmatprep.subr.mxu0 %v239
    %319 = vmatpush1.msra.mxu0 %v238
    %320 = vmatprep.subr.mxu0 %v231
    %321 = vmatpush1.msra.mxu0 %v230
    %322 = vmatprep.subr.mxu0 %v223
    %323 = vmatpush1.msra.mxu0 %v222
    %324 = vmatprep.subr.mxu0 %v215
    %325 = vmatpush1.msra.mxu0 %v214
    %326 = vmatprep.subr.mxu0 %v207
    %327 = vmatpush1.msra.mxu0 %v206
    %328 = vmatprep.subr.mxu0 %v199
    %329 = vmatpush1.msra.mxu0 %v198
    %330 = vmatprep.subr.mxu0 %v191
    %331 = vmatpush1.msra.mxu0 %v190
    %332 = vmatprep.subr.mxu0 %v183
    %333 = vmatpush1.msra.mxu0 %v182
    %334 = vmatprep.subr.mxu0 %v175
    %335 = vmatpush1.msra.mxu0 %v174
    %336 = vmatprep.subr.mxu0 %v167
    %337 = vmatpush1.msra.mxu0 %v166
    %338 = vmatprep.subr.mxu0 %v159
    %339 = vmatpush1.msra.mxu0 %v158
    %340 = vmatprep.subr.mxu0 %v151
    %341 = vmatpush1.msra.mxu0 %v150
    %342 = vmatprep.subr.mxu0 %v143
    %343 = vmatpush1.msra.mxu0 %v142
    %344 = vmatprep.subr.mxu0 0.0
    %345 = vmatpush2.msra.mxu0 0.0
    %346 = vmatprep.subr.mxu0 0.0
    %347 = vmatpush2.msra.mxu0 0.0
    %348 = vmatprep.subr.mxu0 0.0
    %349 = vmatpush2.msra.mxu0 0.0
    %350 = vmatprep.subr.mxu0 0.0
    %351 = vmatpush2.msra.mxu0 0.0
    %352 = vmatprep.subr.mxu0 0.0
    %353 = vmatpush2.msra.mxu0 0.0
    %354 = vmatprep.subr.mxu0 0.0
    %355 = vmatpush2.msra.mxu0 0.0
    %356 = vmatprep.subr.mxu0 0.0
    %357 = vmatpush2.msra.mxu0 0.0
    %358 = vmatprep.subr.mxu0 0.0
    %359 = vmatpush2.msra.mxu0 0.0
    %360 = vmatprep.subr.mxu0 0.0
    %361 = vmatpush2.msra.mxu0 0.0
    %362 = vmatprep.subr.mxu0 0.0
    %363 = vmatpush2.msra.mxu0 0.0
    %364 = vmatprep.subr.mxu0 0.0
    %365 = vmatpush2.msra.mxu0 0.0
    %366 = vmatprep.subr.mxu0 0.0
    %367 = vmatpush2.msra.mxu0 0.0
    %368 = vmatprep.subr.mxu0 0.0
    %369 = vmatpush2.msra.mxu0 0.0
    %370 = vmatprep.subr.mxu0 0.0
    %371 = vmatpush2.msra.mxu0 0.0
    %372 = vmatprep.subr.mxu0 0.0
    %373 = vmatpush2.msra.mxu0 0.0
    %374 = vmatprep.subr.mxu0 0.0
    %375 = vmatpush2.msra.mxu0 0.0
    %376 = vmatprep.mubr.f32.mxu0 0.0
    %377 = vmatmul.mubr.f32.gmra.mxu0 %v140
    %v378 = vpop.f32.mrf.mxu0
    %v379 = vadd.f32 %v275, %v378
    %v380 = vpop.f32.mrf.mxu0
    %v381 = vadd.f32 %v279, %v380
    %382 = vmatprep.mubr.f32.mxu0 0.0
    %383 = vmatmul.mubr.f32.gmra.mxu0 %v141
    %v384 = vpop.f32.mrf.mxu0
    %v385 = vadd.f32 %v275, %v384
    %v386 = vpop.f32.mrf.mxu0
    %v387 = vadd.f32 %v279, %v386
    %388 = vdwg.mxu0
    %389 = vmatprep.subr.mxu0 %v265
    %390 = vmatpush1.msra.mxu0 %v264
    %391 = vmatprep.subr.mxu0 %v257
    %392 = vmatpush1.msra.mxu0 %v256
    %393 = vmatprep.subr.mxu0 %v249
    %394 = vmatpush1.msra.mxu0 %v248
    %395 = vmatprep.subr.mxu0 %v241
    %396 = vmatpush1.msra.mxu0 %v240
    %397 = vmatprep.subr.mxu0 %v233
    %398 = vmatpush1.msra.mxu0 %v232
    %399 = vmatprep.subr.mxu0 %v225
    %400 = vmatpush1.msra.mxu0 %v224
    %401 = vmatprep.subr.mxu0 %v217
    %402 = vmatpush1.msra.mxu0 %v216
    %403 = vmatprep.subr.mxu0 %v209
    %404 = vmatpush1.msra.mxu0 %v208
    %405 = vmatprep.subr.mxu0 %v201
    %406 = vmatpush1.msra.mxu0 %v200
    %407 = vmatprep.subr.mxu0 %v193
    %408 = vmatpush1.msra.mxu0 %v192
    %409 = vmatprep.subr.mxu0 %v185
    %410 = vmatpush1.msra.mxu0 %v184
    %411 = vmatprep.subr.mxu0 %v177
    %412 = vmatpush1.msra.mxu0 %v176
    %413 = vmatprep.subr.mxu0 %v169
    %414 = vmatpush1.msra.mxu0 %v168
    %415 = vmatprep.subr.mxu0 %v161
    %416 = vmatpush1.msra.mxu0 %v160
    %417 = vmatprep.subr.mxu0 %v153
    %418 = vmatpush1.msra.mxu0 %v152
    %419 = vmatprep.subr.mxu0 %v145
    %420 = vmatpush1.msra.mxu0 %v144
    %421 = vmatprep.subr.mxu0 0.0
    %422 = vmatpush2.msra.mxu0 0.0
    %423 = vmatprep.subr.mxu0 0.0
    %424 = vmatpush2.msra.mxu0 0.0
    %425 = vmatprep.subr.mxu0 0.0
    %426 = vmatpush2.msra.mxu0 0.0
    %427 = vmatprep.subr.mxu0 0.0
    %428 = vmatpush2.msra.mxu0 0.0
    %429 = vmatprep.subr.mxu0 0.0
    %430 = vmatpush2.msra.mxu0 0.0
    %431 = vmatprep.subr.mxu0 0.0
    %432 = vmatpush2.msra.mxu0 0.0
    %433 = vmatprep.subr.mxu0 0.0
    %434 = vmatpush2.msra.mxu0 0.0
    %435 = vmatprep.subr.mxu0 0.0
    %436 = vmatpush2.msra.mxu0 0.0
    %437 = vmatprep.subr.mxu0 0.0
    %438 = vmatpush2.msra.mxu0 0.0
    %439 = vmatprep.subr.mxu0 0.0
    %440 = vmatpush2.msra.mxu0 0.0
    %441 = vmatprep.subr.mxu0 0.0
    %442 = vmatpush2.msra.mxu0 0.0
    %443 = vmatprep.subr.mxu0 0.0
    %444 = vmatpush2.msra.mxu0 0.0
    %445 = vmatprep.subr.mxu0 0.0
    %446 = vmatpush2.msra.mxu0 0.0
    %447 = vmatprep.subr.mxu0 0.0
    %448 = vmatpush2.msra.mxu0 0.0
    %449 = vmatprep.subr.mxu0 0.0
    %450 = vmatpush2.msra.mxu0 0.0
    %451 = vmatprep.subr.mxu0 0.0
    %452 = vmatpush2.msra.mxu0 0.0
    %453 = vmatprep.mubr.f32.mxu0 0.0
    %454 = vmatmul.mubr.f32.gmra.mxu0 %v140
    %v455 = vpop.f32.mrf.mxu0
    %v456 = vadd.f32 %v283, %v455
    %v457 = vpop.f32.mrf.mxu0
    %v458 = vadd.f32 %v287, %v457
    %459 = vmatprep.mubr.f32.mxu0 0.0
    %460 = vmatmul.mubr.f32.gmra.mxu0 %v141
    %v461 = vpop.f32.mrf.mxu0
    %v462 = vadd.f32 %v283, %v461
    %v463 = vpop.f32.mrf.mxu0
    %v464 = vadd.f32 %v287, %v463
    %465 = vdwg.mxu0
    %466 = vmatprep.subr.mxu0 %v267
    %467 = vmatpush1.msra.mxu0 %v266
    %468 = vmatprep.subr.mxu0 %v259
    %469 = vmatpush1.msra.mxu0 %v258
    %470 = vmatprep.subr.mxu0 %v251
    %471 = vmatpush1.msra.mxu0 %v250
    %472 = vmatprep.subr.mxu0 %v243
    %473 = vmatpush1.msra.mxu0 %v242
    %474 = vmatprep.subr.mxu0 %v235
    %475 = vmatpush1.msra.mxu0 %v234
    %476 = vmatprep.subr.mxu0 %v227
    %477 = vmatpush1.msra.mxu0 %v226
    %478 = vmatprep.subr.mxu0 %v219
    %479 = vmatpush1.msra.mxu0 %v218
    %480 = vmatprep.subr.mxu0 %v211
    %481 = vmatpush1.msra.mxu0 %v210
    %482 = vmatprep.subr.mxu0 %v203
    %483 = vmatpush1.msra.mxu0 %v202
    %484 = vmatprep.subr.mxu0 %v195
    %485 = vmatpush1.msra.mxu0 %v194
    %486 = vmatprep.subr.mxu0 %v187
    %487 = vmatpush1.msra.mxu0 %v186
    %488 = vmatprep.subr.mxu0 %v179
    %489 = vmatpush1.msra.mxu0 %v178
    %490 = vmatprep.subr.mxu0 %v171
    %491 = vmatpush1.msra.mxu0 %v170
    %492 = vmatprep.subr.mxu0 %v163
    %493 = vmatpush1.msra.mxu0 %v162
    %494 = vmatprep.subr.mxu0 %v155
    %495 = vmatpush1.msra.mxu0 %v154
    %496 = vmatprep.subr.mxu0 %v147
    %497 = vmatpush1.msra.mxu0 %v146
    %498 = vmatprep.subr.mxu0 0.0
    %499 = vmatpush2.msra.mxu0 0.0
    %500 = vmatprep.subr.mxu0 0.0
    %501 = vmatpush2.msra.mxu0 0.0
    %502 = vmatprep.subr.mxu0 0.0
    %503 = vmatpush2.msra.mxu0 0.0
    %504 = vmatprep.subr.mxu0 0.0
    %505 = vmatpush2.msra.mxu0 0.0
    %506 = vmatprep.subr.mxu0 0.0
    %507 = vmatpush2.msra.mxu0 0.0
    %508 = vmatprep.subr.mxu0 0.0
    %509 = vmatpush2.msra.mxu0 0.0
    %510 = vmatprep.subr.mxu0 0.0
    %511 = vmatpush2.msra.mxu0 0.0
    %512 = vmatprep.subr.mxu0 0.0
    %513 = vmatpush2.msra.mxu0 0.0
    %514 = vmatprep.subr.mxu0 0.0
    %515 = vmatpush2.msra.mxu0 0.0
    %516 = vmatprep.subr.mxu0 0.0
    %517 = vmatpush2.msra.mxu0 0.0
    %518 = vmatprep.subr.mxu0 0.0
    %519 = vmatpush2.msra.mxu0 0.0
    %520 = vmatprep.subr.mxu0 0.0
    %521 = vmatpush2.msra.mxu0 0.0
    %522 = vmatprep.subr.mxu0 0.0
    %523 = vmatpush2.msra.mxu0 0.0
    %524 = vmatprep.subr.mxu0 0.0
    %525 = vmatpush2.msra.mxu0 0.0
    %526 = vmatprep.subr.mxu0 0.0
    %527 = vmatpush2.msra.mxu0 0.0
    %528 = vmatprep.subr.mxu0 0.0
    %529 = vmatpush2.msra.mxu0 0.0
    %530 = vmatprep.mubr.f32.mxu0 0.0
    %531 = vmatmul.mubr.f32.gmra.mxu0 %v140
    %v532 = vpop.f32.mrf.mxu0
    %v533 = vadd.f32 %v291, %v532
    %v534 = vpop.f32.mrf.mxu0
    %v535 = vadd.f32 %v295, %v534
    %536 = vmatprep.mubr.f32.mxu0 0.0
    %537 = vmatmul.mubr.f32.gmra.mxu0 %v141
    %v538 = vpop.f32.mrf.mxu0
    %v539 = vadd.f32 %v291, %v538
    %v540 = vpop.f32.mrf.mxu0
    %v541 = vadd.f32 %v295, %v540
    %542 = vdwg.mxu0
    %543 = vmatprep.subr.mxu0 %v269
    %544 = vmatpush1.msra.mxu0 %v268
    %545 = vmatprep.subr.mxu0 %v261
    %546 = vmatpush1.msra.mxu0 %v260
    %547 = vmatprep.subr.mxu0 %v253
    %548 = vmatpush1.msra.mxu0 %v252
    %549 = vmatprep.subr.mxu0 %v245
    %550 = vmatpush1.msra.mxu0 %v244
    %551 = vmatprep.subr.mxu0 %v237
    %552 = vmatpush1.msra.mxu0 %v236
    %553 = vmatprep.subr.mxu0 %v229
    %554 = vmatpush1.msra.mxu0 %v228
    %555 = vmatprep.subr.mxu0 %v221
    %556 = vmatpush1.msra.mxu0 %v220
    %557 = vmatprep.subr.mxu0 %v213
    %558 = vmatpush1.msra.mxu0 %v212
    %559 = vmatprep.subr.mxu0 %v205
    %560 = vmatpush1.msra.mxu0 %v204
    %561 = vmatprep.subr.mxu0 %v197
    %562 = vmatpush1.msra.mxu0 %v196
    %563 = vmatprep.subr.mxu0 %v189
    %564 = vmatpush1.msra.mxu0 %v188
    %565 = vmatprep.subr.mxu0 %v181
    %566 = vmatpush1.msra.mxu0 %v180
    %567 = vmatprep.subr.mxu0 %v173
    %568 = vmatpush1.msra.mxu0 %v172
    %569 = vmatprep.subr.mxu0 %v165
    %570 = vmatpush1.msra.mxu0 %v164
    %571 = vmatprep.subr.mxu0 %v157
    %572 = vmatpush1.msra.mxu0 %v156
    %573 = vmatprep.subr.mxu0 %v149
    %574 = vmatpush1.msra.mxu0 %v148
    %575 = vmatprep.subr.mxu0 0.0
    %576 = vmatpush2.msra.mxu0 0.0
    %577 = vmatprep.subr.mxu0 0.0
    %578 = vmatpush2.msra.mxu0 0.0
    %579 = vmatprep.subr.mxu0 0.0
    %580 = vmatpush2.msra.mxu0 0.0
    %581 = vmatprep.subr.mxu0 0.0
    %582 = vmatpush2.msra.mxu0 0.0
    %583 = vmatprep.subr.mxu0 0.0
    %584 = vmatpush2.msra.mxu0 0.0
    %585 = vmatprep.subr.mxu0 0.0
    %586 = vmatpush2.msra.mxu0 0.0
    %587 = vmatprep.subr.mxu0 0.0
    %588 = vmatpush2.msra.mxu0 0.0
    %589 = vmatprep.subr.mxu0 0.0
    %590 = vmatpush2.msra.mxu0 0.0
    %591 = vmatprep.subr.mxu0 0.0
    %592 = vmatpush2.msra.mxu0 0.0
    %593 = vmatprep.subr.mxu0 0.0
    %594 = vmatpush2.msra.mxu0 0.0
    %595 = vmatprep.subr.mxu0 0.0
    %596 = vmatpush2.msra.mxu0 0.0
    %597 = vmatprep.subr.mxu0 0.0
    %598 = vmatpush2.msra.mxu0 0.0
    %599 = vmatprep.subr.mxu0 0.0
    %600 = vmatpush2.msra.mxu0 0.0
    %601 = vmatprep.subr.mxu0 0.0
    %602 = vmatpush2.msra.mxu0 0.0
    %603 = vmatprep.subr.mxu0 0.0
    %604 = vmatpush2.msra.mxu0 0.0
    %605 = vmatprep.subr.mxu0 0.0
    %606 = vmatpush2.msra.mxu0 0.0
    %607 = vmatprep.mubr.f32.mxu0 0.0
    %608 = vmatmul.mubr.f32.gmra.mxu0 %v140
    %v609 = vpop.f32.mrf.mxu0
    %v610 = vadd.f32 %v299, %v609
    %v611 = vpop.f32.mrf.mxu0
    %v612 = vadd.f32 %v303, %v611
    %613 = vmatprep.mubr.f32.mxu0 0.0
    %614 = vmatmul.mubr.f32.gmra.mxu0 %v141
    %v615 = vpop.f32.mrf.mxu0
    %v616 = vadd.f32 %v299, %v615
    %v617 = vpop.f32.mrf.mxu0
    %v618 = vadd.f32 %v303, %v617
    %619 = vdwg.mxu0
    %620 = vst [vmem:[#allocation2] sm:$0xff] %v379
    %621 = vst [vmem:[#allocation2 + $0x8] sm:$0xff] %v381
    %622 = vst [vmem:[#allocation2 + $0x10] sm:$0xff] %v456
    %623 = vst [vmem:[#allocation2 + $0x18] sm:$0xff] %v458
    %624 = vst [vmem:[#allocation2 + $0x20] sm:$0xff] %v533
    %625 = vst [vmem:[#allocation2 + $0x28] sm:$0xff] %v535
    %626 = vst [vmem:[#allocation2 + $0x30] sm:$0xff] %v610
    %627 = vst [vmem:[#allocation2 + $0x38] sm:$0xff] %v612
    %628 = vst [vmem:[#allocation2 + $0x40] sm:$0xff] %v385
    %629 = vst [vmem:[#allocation2 + $0x48] sm:$0xff] %v387
    %630 = vst [vmem:[#allocation2 + $0x50] sm:$0xff] %v462
    %631 = vst [vmem:[#allocation2 + $0x58] sm:$0xff] %v464
    %632 = vst [vmem:[#allocation2 + $0x60] sm:$0xff] %v539
    %633 = vst [vmem:[#allocation2 + $0x68] sm:$0xff] %v541
    %634 = vst [vmem:[#allocation2 + $0x70] sm:$0xff] %v616
    %635 = vst [vmem:[#allocation2 + $0x78] sm:$0xff] %v618
    %v636 = vld [vmem:[%s9] sm:$0x3]
    %v637 = vld [vmem:[%s10] sm:$0x3]
    %s638 = scalar_lea.vmem %s9, 2
    %v639 = vld [vmem:[%s638] sm:$0x3]
    %s640 = scalar_lea.vmem %s10, 2
    %v641 = vld [vmem:[%s640] sm:$0x3]
    %v642 = vld [vmem:[#allocation2] sm:$0x3]
    %v643 = vld [vmem:[#allocation2 + $0x8] sm:$0x3]
    %v644 = vld [vmem:[#allocation2 + $0x10] sm:$0x3]
    %v645 = vld [vmem:[#allocation2 + $0x18] sm:$0x3]
    %v646 = vld [vmem:[#allocation8] sm:$0xff]
    %v647 = vld [vmem:[#allocation8 + $0x8] sm:$0xff]
    %v648 = vld [vmem:[#allocation8 + $0x10] sm:$0xff]
    %v649 = vld [vmem:[#allocation8 + $0x18] sm:$0xff]
    %v650 = vld [vmem:[#allocation8 + $0x20] sm:$0xff]
    %v651 = vld [vmem:[#allocation8 + $0x28] sm:$0xff]
    %v652 = vld [vmem:[#allocation8 + $0x30] sm:$0xff]
    %v653 = vld [vmem:[#allocation8 + $0x38] sm:$0xff]
    %v654 = vld [vmem:[#allocation8 + $0x40] sm:$0xff]
    %v655 = vld [vmem:[#allocation8 + $0x48] sm:$0xff]
    %v656 = vld [vmem:[#allocation8 + $0x50] sm:$0xff]
    %v657 = vld [vmem:[#allocation8 + $0x58] sm:$0xff]
    %v658 = vld [vmem:[#allocation8 + $0x60] sm:$0xff]
    %v659 = vld [vmem:[#allocation8 + $0x68] sm:$0xff]
    %v660 = vld [vmem:[#allocation8 + $0x70] sm:$0xff]
    %v661 = vld [vmem:[#allocation8 + $0x78] sm:$0xff]
    %v662 = vld [vmem:[#allocation8 + $0x80] sm:$0xff]
    %v663 = vld [vmem:[#allocation8 + $0x88] sm:$0xff]
    %v664 = vld [vmem:[#allocation8 + $0x90] sm:$0xff]
    %v665 = vld [vmem:[#allocation8 + $0x98] sm:$0xff]
    %v666 = vld [vmem:[#allocation8 + $0xa0] sm:$0xff]
    %v667 = vld [vmem:[#allocation8 + $0xa8] sm:$0xff]
    %v668 = vld [vmem:[#allocation8 + $0xb0] sm:$0xff]
    %v669 = vld [vmem:[#allocation8 + $0xb8] sm:$0xff]
    %v670 = vld [vmem:[#allocation8 + $0xc0] sm:$0xff]
    %v671 = vld [vmem:[#allocation8 + $0xc8] sm:$0xff]
    %v672 = vld [vmem:[#allocation8 + $0xd0] sm:$0xff]
    %v673 = vld [vmem:[#allocation8 + $0xd8] sm:$0xff]
    %v674 = vld [vmem:[#allocation8 + $0xe0] sm:$0xff]
    %v675 = vld [vmem:[#allocation8 + $0xe8] sm:$0xff]
    %v676 = vld [vmem:[#allocation8 + $0xf0] sm:$0xff]
    %v677 = vld [vmem:[#allocation8 + $0xf8] sm:$0xff]
    %v678 = vld [vmem:[#allocation8 + $0x100] sm:$0xff]
    %v679 = vld [vmem:[#allocation8 + $0x108] sm:$0xff]
    %v680 = vld [vmem:[#allocation8 + $0x110] sm:$0xff]
    %v681 = vld [vmem:[#allocation8 + $0x118] sm:$0xff]
    %v682 = vld [vmem:[#allocation8 + $0x120] sm:$0xff]
    %v683 = vld [vmem:[#allocation8 + $0x128] sm:$0xff]
    %v684 = vld [vmem:[#allocation8 + $0x130] sm:$0xff]
    %v685 = vld [vmem:[#allocation8 + $0x138] sm:$0xff]
    %v686 = vld [vmem:[#allocation8 + $0x140] sm:$0xff]
    %v687 = vld [vmem:[#allocation8 + $0x148] sm:$0xff]
    %v688 = vld [vmem:[#allocation8 + $0x150] sm:$0xff]
    %v689 = vld [vmem:[#allocation8 + $0x158] sm:$0xff]
    %v690 = vld [vmem:[#allocation8 + $0x160] sm:$0xff]
    %v691 = vld [vmem:[#allocation8 + $0x168] sm:$0xff]
    %v692 = vld [vmem:[#allocation8 + $0x170] sm:$0xff]
    %v693 = vld [vmem:[#allocation8 + $0x178] sm:$0xff]
    %v694 = vld [vmem:[#allocation8 + $0x180] sm:$0xff]
    %v695 = vld [vmem:[#allocation8 + $0x188] sm:$0xff]
    %v696 = vld [vmem:[#allocation8 + $0x190] sm:$0xff]
    %v697 = vld [vmem:[#allocation8 + $0x198] sm:$0xff]
    %v698 = vld [vmem:[#allocation8 + $0x1a0] sm:$0xff]
    %v699 = vld [vmem:[#allocation8 + $0x1a8] sm:$0xff]
    %v700 = vld [vmem:[#allocation8 + $0x1b0] sm:$0xff]
    %v701 = vld [vmem:[#allocation8 + $0x1b8] sm:$0xff]
    %v702 = vld [vmem:[#allocation8 + $0x1c0] sm:$0xff]
    %v703 = vld [vmem:[#allocation8 + $0x1c8] sm:$0xff]
    %v704 = vld [vmem:[#allocation8 + $0x1d0] sm:$0xff]
    %v705 = vld [vmem:[#allocation8 + $0x1d8] sm:$0xff]
    %v706 = vld [vmem:[#allocation8 + $0x1e0] sm:$0xff]
    %v707 = vld [vmem:[#allocation8 + $0x1e8] sm:$0xff]
    %v708 = vld [vmem:[#allocation8 + $0x1f0] sm:$0xff]
    %v709 = vld [vmem:[#allocation8 + $0x1f8] sm:$0xff]
    %710 = vmatprep.subr.mxu0 %v707
    %711 = vmatpush1.msra.mxu0 %v706
    %712 = vmatprep.subr.mxu0 %v703
    %713 = vmatpush1.msra.mxu0 %v702
    %714 = vmatprep.subr.mxu0 %v699
    %715 = vmatpush1.msra.mxu0 %v698
    %716 = vmatprep.subr.mxu0 %v695
    %717 = vmatpush1.msra.mxu0 %v694
    %718 = vmatprep.subr.mxu0 %v691
    %719 = vmatpush1.msra.mxu0 %v690
    %720 = vmatprep.subr.mxu0 %v687
    %721 = vmatpush1.msra.mxu0 %v686
    %722 = vmatprep.subr.mxu0 %v683
    %723 = vmatpush1.msra.mxu0 %v682
    %724 = vmatprep.subr.mxu0 %v679
    %725 = vmatpush1.msra.mxu0 %v678
    %726 = vmatprep.subr.mxu0 %v675
    %727 = vmatpush1.msra.mxu0 %v674
    %728 = vmatprep.subr.mxu0 %v671
    %729 = vmatpush1.msra.mxu0 %v670
    %730 = vmatprep.subr.mxu0 %v667
    %731 = vmatpush1.msra.mxu0 %v666
    %732 = vmatprep.subr.mxu0 %v663
    %733 = vmatpush1.msra.mxu0 %v662
    %734 = vmatprep.subr.mxu0 %v659
    %735 = vmatpush1.msra.mxu0 %v658
    %736 = vmatprep.subr.mxu0 %v655
    %737 = vmatpush1.msra.mxu0 %v654
    %738 = vmatprep.subr.mxu0 %v651
    %739 = vmatpush1.msra.mxu0 %v650
    %740 = vmatprep.subr.mxu0 %v647
    %741 = vmatpush1.msra.mxu0 %v646
    %742 = vmatprep.subr.mxu0 0.0
    %743 = vmatpush2.msra.mxu0 0.0
    %744 = vmatprep.subr.mxu0 0.0
    %745 = vmatpush2.msra.mxu0 0.0
    %746 = vmatprep.subr.mxu0 0.0
    %747 = vmatpush2.msra.mxu0 0.0
    %748 = vmatprep.subr.mxu0 0.0
    %749 = vmatpush2.msra.mxu0 0.0
    %750 = vmatprep.subr.mxu0 0.0
    %751 = vmatpush2.msra.mxu0 0.0
    %752 = vmatprep.subr.mxu0 0.0
    %753 = vmatpush2.msra.mxu0 0.0
    %754 = vmatprep.subr.mxu0 0.0
    %755 = vmatpush2.msra.mxu0 0.0
    %756 = vmatprep.subr.mxu0 0.0
    %757 = vmatpush2.msra.mxu0 0.0
    %758 = vmatprep.subr.mxu0 0.0
    %759 = vmatpush2.msra.mxu0 0.0
    %760 = vmatprep.subr.mxu0 0.0
    %761 = vmatpush2.msra.mxu0 0.0
    %762 = vmatprep.subr.mxu0 0.0
    %763 = vmatpush2.msra.mxu0 0.0
    %764 = vmatprep.subr.mxu0 0.0
    %765 = vmatpush2.msra.mxu0 0.0
    %766 = vmatprep.subr.mxu0 0.0
    %767 = vmatpush2.msra.mxu0 0.0
    %768 = vmatprep.subr.mxu0 0.0
    %769 = vmatpush2.msra.mxu0 0.0
    %770 = vmatprep.subr.mxu0 0.0
    %771 = vmatpush2.msra.mxu0 0.0
    %772 = vmatprep.subr.mxu0 0.0
    %773 = vmatpush2.msra.mxu0 0.0
    %774 = vmatprep.mubr.f32.mxu0 0.0
    %775 = vmatmul.mubr.f32.gmra.mxu0 %v636
    %v776 = vpop.f32.mrf.mxu0
    %v777 = vadd.f32 0.0, %v776
    %v778 = vpop.f32.mrf.mxu0
    %v779 = vadd.f32 0.0, %v778
    %780 = vdwg.mxu0
    %781 = vmatprep.subr.mxu0 %v709
    %782 = vmatpush1.msra.mxu0 %v708
    %783 = vmatprep.subr.mxu0 %v705
    %784 = vmatpush1.msra.mxu0 %v704
    %785 = vmatprep.subr.mxu0 %v701
    %786 = vmatpush1.msra.mxu0 %v700
    %787 = vmatprep.subr.mxu0 %v697
    %788 = vmatpush1.msra.mxu0 %v696
    %789 = vmatprep.subr.mxu0 %v693
    %790 = vmatpush1.msra.mxu0 %v692
    %791 = vmatprep.subr.mxu0 %v689
    %792 = vmatpush1.msra.mxu0 %v688
    %793 = vmatprep.subr.mxu0 %v685
    %794 = vmatpush1.msra.mxu0 %v684
    %795 = vmatprep.subr.mxu0 %v681
    %796 = vmatpush1.msra.mxu0 %v680
    %797 = vmatprep.subr.mxu0 %v677
    %798 = vmatpush1.msra.mxu0 %v676
    %799 = vmatprep.subr.mxu0 %v673
    %800 = vmatpush1.msra.mxu0 %v672
    %801 = vmatprep.subr.mxu0 %v669
    %802 = vmatpush1.msra.mxu0 %v668
    %803 = vmatprep.subr.mxu0 %v665
    %804 = vmatpush1.msra.mxu0 %v664
    %805 = vmatprep.subr.mxu0 %v661
    %806 = vmatpush1.msra.mxu0 %v660
    %807 = vmatprep.subr.mxu0 %v657
    %808 = vmatpush1.msra.mxu0 %v656
    %809 = vmatprep.subr.mxu0 %v653
    %810 = vmatpush1.msra.mxu0 %v652
    %811 = vmatprep.subr.mxu0 %v649
    %812 = vmatpush1.msra.mxu0 %v648
    %813 = vmatprep.subr.mxu0 0.0
    %814 = vmatpush2.msra.mxu0 0.0
    %815 = vmatprep.subr.mxu0 0.0
    %816 = vmatpush2.msra.mxu0 0.0
    %817 = vmatprep.subr.mxu0 0.0
    %818 = vmatpush2.msra.mxu0 0.0
    %819 = vmatprep.subr.mxu0 0.0
    %820 = vmatpush2.msra.mxu0 0.0
    %821 = vmatprep.subr.mxu0 0.0
    %822 = vmatpush2.msra.mxu0 0.0
    %823 = vmatprep.subr.mxu0 0.0
    %824 = vmatpush2.msra.mxu0 0.0
    %825 = vmatprep.subr.mxu0 0.0
    %826 = vmatpush2.msra.mxu0 0.0
    %827 = vmatprep.subr.mxu0 0.0
    %828 = vmatpush2.msra.mxu0 0.0
    %829 = vmatprep.subr.mxu0 0.0
    %830 = vmatpush2.msra.mxu0 0.0
    %831 = vmatprep.subr.mxu0 0.0
    %832 = vmatpush2.msra.mxu0 0.0
    %833 = vmatprep.subr.mxu0 0.0
    %834 = vmatpush2.msra.mxu0 0.0
    %835 = vmatprep.subr.mxu0 0.0
    %836 = vmatpush2.msra.mxu0 0.0
    %837 = vmatprep.subr.mxu0 0.0
    %838 = vmatpush2.msra.mxu0 0.0
    %839 = vmatprep.subr.mxu0 0.0
    %840 = vmatpush2.msra.mxu0 0.0
    %841 = vmatprep.subr.mxu0 0.0
    %842 = vmatpush2.msra.mxu0 0.0
    %843 = vmatprep.subr.mxu0 0.0
    %844 = vmatpush2.msra.mxu0 0.0
    %845 = vmatprep.mubr.f32.mxu0 0.0
    %846 = vmatmul.mubr.f32.gmra.mxu0 %v636
    %v847 = vpop.f32.mrf.mxu0
    %v848 = vadd.f32 0.0, %v847
    %v849 = vpop.f32.mrf.mxu0
    %v850 = vadd.f32 0.0, %v849
    %851 = vdwg.mxu0
    %v852 = vadd.f32 %v642, %v777
    %v853 = vadd.f32 %v643, %v779
    %v854 = vadd.f32 %v644, %v848
    %v855 = vadd.f32 %v645, %v850
    %v856 = vld [vmem:[#allocation2 + $0x60] sm:$0xc0]
    %v857 = vld [vmem:[#allocation2 + $0x68] sm:$0xc0]
    %v858 = vld [vmem:[#allocation2 + $0x70] sm:$0xc0]
    %v859 = vld [vmem:[#allocation2 + $0x78] sm:$0xc0]
    %v860 = vld [vmem:[#allocation10] sm:$0xff]
    %v861 = vld [vmem:[#allocation10 + $0x8] sm:$0xff]
    %v862 = vld [vmem:[#allocation10 + $0x10] sm:$0xff]
    %v863 = vld [vmem:[#allocation10 + $0x18] sm:$0xff]
    %v864 = vld [vmem:[#allocation10 + $0x20] sm:$0xff]
    %v865 = vld [vmem:[#allocation10 + $0x28] sm:$0xff]
    %v866 = vld [vmem:[#allocation10 + $0x30] sm:$0xff]
    %v867 = vld [vmem:[#allocation10 + $0x38] sm:$0xff]
    %v868 = vld [vmem:[#allocation10 + $0x40] sm:$0xff]
    %v869 = vld [vmem:[#allocation10 + $0x48] sm:$0xff]
    %v870 = vld [vmem:[#allocation10 + $0x50] sm:$0xff]
    %v871 = vld [vmem:[#allocation10 + $0x58] sm:$0xff]
    %v872 = vld [vmem:[#allocation10 + $0x60] sm:$0xff]
    %v873 = vld [vmem:[#allocation10 + $0x68] sm:$0xff]
    %v874 = vld [vmem:[#allocation10 + $0x70] sm:$0xff]
    %v875 = vld [vmem:[#allocation10 + $0x78] sm:$0xff]
    %v876 = vld [vmem:[#allocation10 + $0x80] sm:$0xff]
    %v877 = vld [vmem:[#allocation10 + $0x88] sm:$0xff]
    %v878 = vld [vmem:[#allocation10 + $0x90] sm:$0xff]
    %v879 = vld [vmem:[#allocation10 + $0x98] sm:$0xff]
    %v880 = vld [vmem:[#allocation10 + $0xa0] sm:$0xff]
    %v881 = vld [vmem:[#allocation10 + $0xa8] sm:$0xff]
    %v882 = vld [vmem:[#allocation10 + $0xb0] sm:$0xff]
    %v883 = vld [vmem:[#allocation10 + $0xb8] sm:$0xff]
    %v884 = vld [vmem:[#allocation10 + $0xc0] sm:$0xff]
    %v885 = vld [vmem:[#allocation10 + $0xc8] sm:$0xff]
    %v886 = vld [vmem:[#allocation10 + $0xd0] sm:$0xff]
    %v887 = vld [vmem:[#allocation10 + $0xd8] sm:$0xff]
    %v888 = vld [vmem:[#allocation10 + $0xe0] sm:$0xff]
    %v889 = vld [vmem:[#allocation10 + $0xe8] sm:$0xff]
    %v890 = vld [vmem:[#allocation10 + $0xf0] sm:$0xff]
    %v891 = vld [vmem:[#allocation10 + $0xf8] sm:$0xff]
    %v892 = vld [vmem:[#allocation10 + $0x100] sm:$0xff]
    %v893 = vld [vmem:[#allocation10 + $0x108] sm:$0xff]
    %v894 = vld [vmem:[#allocation10 + $0x110] sm:$0xff]
    %v895 = vld [vmem:[#allocation10 + $0x118] sm:$0xff]
    %v896 = vld [vmem:[#allocation10 + $0x120] sm:$0xff]
    %v897 = vld [vmem:[#allocation10 + $0x128] sm:$0xff]
    %v898 = vld [vmem:[#allocation10 + $0x130] sm:$0xff]
    %v899 = vld [vmem:[#allocation10 + $0x138] sm:$0xff]
    %v900 = vld [vmem:[#allocation10 + $0x140] sm:$0xff]
    %v901 = vld [vmem:[#allocation10 + $0x148] sm:$0xff]
    %v902 = vld [vmem:[#allocation10 + $0x150] sm:$0xff]
    %v903 = vld [vmem:[#allocation10 + $0x158] sm:$0xff]
    %v904 = vld [vmem:[#allocation10 + $0x160] sm:$0xff]
    %v905 = vld [vmem:[#allocation10 + $0x168] sm:$0xff]
    %v906 = vld [vmem:[#allocation10 + $0x170] sm:$0xff]
    %v907 = vld [vmem:[#allocation10 + $0x178] sm:$0xff]
    %v908 = vld [vmem:[#allocation10 + $0x180] sm:$0xff]
    %v909 = vld [vmem:[#allocation10 + $0x188] sm:$0xff]
    %v910 = vld [vmem:[#allocation10 + $0x190] sm:$0xff]
    %v911 = vld [vmem:[#allocation10 + $0x198] sm:$0xff]
    %v912 = vld [vmem:[#allocation10 + $0x1a0] sm:$0xff]
    %v913 = vld [vmem:[#allocation10 + $0x1a8] sm:$0xff]
    %v914 = vld [vmem:[#allocation10 + $0x1b0] sm:$0xff]
    %v915 = vld [vmem:[#allocation10 + $0x1b8] sm:$0xff]
    %v916 = vld [vmem:[#allocation10 + $0x1c0] sm:$0xff]
    %v917 = vld [vmem:[#allocation10 + $0x1c8] sm:$0xff]
    %v918 = vld [vmem:[#allocation10 + $0x1d0] sm:$0xff]
    %v919 = vld [vmem:[#allocation10 + $0x1d8] sm:$0xff]
    %v920 = vld [vmem:[#allocation10 + $0x1e0] sm:$0xff]
    %v921 = vld [vmem:[#allocation10 + $0x1e8] sm:$0xff]
    %v922 = vld [vmem:[#allocation10 + $0x1f0] sm:$0xff]
    %v923 = vld [vmem:[#allocation10 + $0x1f8] sm:$0xff]
    %924 = vmatprep.subr.mxu0 %v921
    %925 = vmatpush1.msra.mxu0 %v920
    %926 = vmatprep.subr.mxu0 %v917
    %927 = vmatpush1.msra.mxu0 %v916
    %928 = vmatprep.subr.mxu0 %v913
    %929 = vmatpush1.msra.mxu0 %v912
    %930 = vmatprep.subr.mxu0 %v909
    %931 = vmatpush1.msra.mxu0 %v908
    %932 = vmatprep.subr.mxu0 %v905
    %933 = vmatpush1.msra.mxu0 %v904
    %934 = vmatprep.subr.mxu0 %v901
    %935 = vmatpush1.msra.mxu0 %v900
    %936 = vmatprep.subr.mxu0 %v897
    %937 = vmatpush1.msra.mxu0 %v896
    %938 = vmatprep.subr.mxu0 %v893
    %939 = vmatpush1.msra.mxu0 %v892
    %940 = vmatprep.subr.mxu0 %v889
    %941 = vmatpush1.msra.mxu0 %v888
    %942 = vmatprep.subr.mxu0 %v885
    %943 = vmatpush1.msra.mxu0 %v884
    %944 = vmatprep.subr.mxu0 %v881
    %945 = vmatpush1.msra.mxu0 %v880
    %946 = vmatprep.subr.mxu0 %v877
    %947 = vmatpush1.msra.mxu0 %v876
    %948 = vmatprep.subr.mxu0 %v873
    %949 = vmatpush1.msra.mxu0 %v872
    %950 = vmatprep.subr.mxu0 %v869
    %951 = vmatpush1.msra.mxu0 %v868
    %952 = vmatprep.subr.mxu0 %v865
    %953 = vmatpush1.msra.mxu0 %v864
    %954 = vmatprep.subr.mxu0 %v861
    %955 = vmatpush1.msra.mxu0 %v860
    %956 = vmatprep.subr.mxu0 0.0
    %957 = vmatpush2.msra.mxu0 0.0
    %958 = vmatprep.subr.mxu0 0.0
    %959 = vmatpush2.msra.mxu0 0.0
    %960 = vmatprep.subr.mxu0 0.0
    %961 = vmatpush2.msra.mxu0 0.0
    %962 = vmatprep.subr.mxu0 0.0
    %963 = vmatpush2.msra.mxu0 0.0
    %964 = vmatprep.subr.mxu0 0.0
    %965 = vmatpush2.msra.mxu0 0.0
    %966 = vmatprep.subr.mxu0 0.0
    %967 = vmatpush2.msra.mxu0 0.0
    %968 = vmatprep.subr.mxu0 0.0
    %969 = vmatpush2.msra.mxu0 0.0
    %970 = vmatprep.subr.mxu0 0.0
    %971 = vmatpush2.msra.mxu0 0.0
    %972 = vmatprep.subr.mxu0 0.0
    %973 = vmatpush2.msra.mxu0 0.0
    %974 = vmatprep.subr.mxu0 0.0
    %975 = vmatpush2.msra.mxu0 0.0
    %976 = vmatprep.subr.mxu0 0.0
    %977 = vmatpush2.msra.mxu0 0.0
    %978 = vmatprep.subr.mxu0 0.0
    %979 = vmatpush2.msra.mxu0 0.0
    %980 = vmatprep.subr.mxu0 0.0
    %981 = vmatpush2.msra.mxu0 0.0
    %982 = vmatprep.subr.mxu0 0.0
    %983 = vmatpush2.msra.mxu0 0.0
    %984 = vmatprep.subr.mxu0 0.0
    %985 = vmatpush2.msra.mxu0 0.0
    %986 = vmatprep.subr.mxu0 0.0
    %987 = vmatpush2.msra.mxu0 0.0
    %988 = vmatprep.mubr.f32.mxu0 0.0
    %989 = vmatmul.mubr.f32.gmra.mxu0 %v639
    %v990 = vpop.f32.mrf.mxu0
    %v991 = vadd.f32 0.0, %v990
    %v992 = vpop.f32.mrf.mxu0
    %v993 = vadd.f32 0.0, %v992
    %994 = vdwg.mxu0
    %995 = vmatprep.subr.mxu0 %v923
    %996 = vmatpush1.msra.mxu0 %v922
    %997 = vmatprep.subr.mxu0 %v919
    %998 = vmatpush1.msra.mxu0 %v918
    %999 = vmatprep.subr.mxu0 %v915
    %1000 = vmatpush1.msra.mxu0 %v914
    %1001 = vmatprep.subr.mxu0 %v911
    %1002 = vmatpush1.msra.mxu0 %v910
    %1003 = vmatprep.subr.mxu0 %v907
    %1004 = vmatpush1.msra.mxu0 %v906
    %1005 = vmatprep.subr.mxu0 %v903
    %1006 = vmatpush1.msra.mxu0 %v902
    %1007 = vmatprep.subr.mxu0 %v899
    %1008 = vmatpush1.msra.mxu0 %v898
    %1009 = vmatprep.subr.mxu0 %v895
    %1010 = vmatpush1.msra.mxu0 %v894
    %1011 = vmatprep.subr.mxu0 %v891
    %1012 = vmatpush1.msra.mxu0 %v890
    %1013 = vmatprep.subr.mxu0 %v887
    %1014 = vmatpush1.msra.mxu0 %v886
    %1015 = vmatprep.subr.mxu0 %v883
    %1016 = vmatpush1.msra.mxu0 %v882
    %1017 = vmatprep.subr.mxu0 %v879
    %1018 = vmatpush1.msra.mxu0 %v878
    %1019 = vmatprep.subr.mxu0 %v875
    %1020 = vmatpush1.msra.mxu0 %v874
    %1021 = vmatprep.subr.mxu0 %v871
    %1022 = vmatpush1.msra.mxu0 %v870
    %1023 = vmatprep.subr.mxu0 %v867
    %1024 = vmatpush1.msra.mxu0 %v866
    %1025 = vmatprep.subr.mxu0 %v863
    %1026 = vmatpush1.msra.mxu0 %v862
    %1027 = vmatprep.subr.mxu0 0.0
    %1028 = vmatpush2.msra.mxu0 0.0
    %1029 = vmatprep.subr.mxu0 0.0
    %1030 = vmatpush2.msra.mxu0 0.0
    %1031 = vmatprep.subr.mxu0 0.0
    %1032 = vmatpush2.msra.mxu0 0.0
    %1033 = vmatprep.subr.mxu0 0.0
    %1034 = vmatpush2.msra.mxu0 0.0
    %1035 = vmatprep.subr.mxu0 0.0
    %1036 = vmatpush2.msra.mxu0 0.0
    %1037 = vmatprep.subr.mxu0 0.0
    %1038 = vmatpush2.msra.mxu0 0.0
    %1039 = vmatprep.subr.mxu0 0.0
    %1040 = vmatpush2.msra.mxu0 0.0
    %1041 = vmatprep.subr.mxu0 0.0
    %1042 = vmatpush2.msra.mxu0 0.0
    %1043 = vmatprep.subr.mxu0 0.0
    %1044 = vmatpush2.msra.mxu0 0.0
    %1045 = vmatprep.subr.mxu0 0.0
    %1046 = vmatpush2.msra.mxu0 0.0
    %1047 = vmatprep.subr.mxu0 0.0
    %1048 = vmatpush2.msra.mxu0 0.0
    %1049 = vmatprep.subr.mxu0 0.0
    %1050 = vmatpush2.msra.mxu0 0.0
    %1051 = vmatprep.subr.mxu0 0.0
    %1052 = vmatpush2.msra.mxu0 0.0
    %1053 = vmatprep.subr.mxu0 0.0
    %1054 = vmatpush2.msra.mxu0 0.0
    %1055 = vmatprep.subr.mxu0 0.0
    %1056 = vmatpush2.msra.mxu0 0.0
    %1057 = vmatprep.subr.mxu0 0.0
    %1058 = vmatpush2.msra.mxu0 0.0
    %1059 = vmatprep.mubr.f32.mxu0 0.0
    %1060 = vmatmul.mubr.f32.gmra.mxu0 %v639
    %v1061 = vpop.f32.mrf.mxu0
    %v1062 = vadd.f32 0.0, %v1061
    %v1063 = vpop.f32.mrf.mxu0
    %v1064 = vadd.f32 0.0, %v1063
    %1065 = vdwg.mxu0
    %v1070 = vrot.slane %v991, 2
    %v1071 = vrot.slane %v993, 2
    %v1072 = vrot.slane %v1062, 2
    %v1073 = vrot.slane %v1064, 2
    %v1078 = vadd.f32 %v856, %v1070
    %v1079 = vadd.f32 %v857, %v1071
    %v1080 = vadd.f32 %v858, %v1072
    %v1081 = vadd.f32 %v859, %v1073
    %v1082 = vxor.u32 %v852, 2147483648
    %v1083 = vmul.f32 %v1082, 1.442695
    %v1084 = vpow.pop %v1083
    %v1085 = vadd.f32 %v1084, 1.0
    %v1086 = vrcp.pop %v1085
    %v1087 = vmul.f32 1.0, %v1086
    %v1088 = vxor.u32 %v853, 2147483648
    %v1089 = vmul.f32 %v1088, 1.442695
    %v1090 = vpow.pop %v1089
    %v1091 = vadd.f32 %v1090, 1.0
    %v1092 = vrcp.pop %v1091
    %v1093 = vmul.f32 1.0, %v1092
    %v1094 = vtanh.pop %v854
    %v1095 = vxor.u32 %v855, 2147483648
    %v1096 = vmul.f32 %v1095, 1.442695
    %v1097 = vpow.pop %v1096
    %v1098 = vadd.f32 %v1097, 1.0
    %v1099 = vrcp.pop %v1098
    %v1100 = vmul.f32 1.0, %v1099
    %v1101 = vmul.f32 %v1093, %v637
    %v1102 = vmul.f32 %v1087, %v1094
    %v1103 = vadd.f32 %v1101, %v1102
    %v1104 = vtanh.pop %v1103
    %v1105 = vmul.f32 %v1100, %v1104
    %v1106 = vxor.u32 %v1078, 2147483648
    %v1107 = vmul.f32 %v1106, 1.442695
    %v1108 = vpow.pop %v1107
    %v1109 = vadd.f32 %v1108, 1.0
    %v1110 = vrcp.pop %v1109
    %v1111 = vmul.f32 1.0, %v1110
    %v1112 = vxor.u32 %v1079, 2147483648
    %v1113 = vmul.f32 %v1112, 1.442695
    %v1114 = vpow.pop %v1113
    %v1115 = vadd.f32 %v1114, 1.0
    %v1116 = vrcp.pop %v1115
    %v1117 = vmul.f32 1.0, %v1116
    %v1118 = vtanh.pop %v1080
    %v1119 = vxor.u32 %v1081, 2147483648
    %v1120 = vmul.f32 %v1119, 1.442695
    %v1121 = vpow.pop %v1120
    %v1122 = vadd.f32 %v1121, 1.0
    %v1123 = vrcp.pop %v1122
    %v1124 = vmul.f32 1.0, %v1123
    %v1126 = vrot.slane %v641, 2
    %v1128 = vmul.f32 %v1117, %v1126
    %v1129 = vmul.f32 %v1111, %v1118
    %v1130 = vadd.f32 %v1128, %v1129
    %v1131 = vtanh.pop %v1130
    %v1132 = vmul.f32 %v1124, %v1131
    %1133 = vst [vmem:[#allocation3] sm:$0x3] %v1105
    %1134 = vst [vmem:[#allocation3 + $0x18] sm:$0xc0] %v1132
    %v1135 = vld [vmem:[#allocation2] sm:$0xc]
    %v1136 = vld [vmem:[#allocation2 + $0x8] sm:$0xc]
    %v1137 = vld [vmem:[#allocation2 + $0x10] sm:$0xc]
    %v1138 = vld [vmem:[#allocation2 + $0x18] sm:$0xc]
    %v1139 = vld [vmem:[#allocation8] sm:$0xff]
    %v1140 = vld [vmem:[#allocation8 + $0x8] sm:$0xff]
    %v1141 = vld [vmem:[#allocation8 + $0x10] sm:$0xff]
    %v1142 = vld [vmem:[#allocation8 + $0x18] sm:$0xff]
    %v1143 = vld [vmem:[#allocation8 + $0x20] sm:$0xff]
    %v1144 = vld [vmem:[#allocation8 + $0x28] sm:$0xff]
    %v1145 = vld [vmem:[#allocation8 + $0x30] sm:$0xff]
    %v1146 = vld [vmem:[#allocation8 + $0x38] sm:$0xff]
    %v1147 = vld [vmem:[#allocation8 + $0x40] sm:$0xff]
    %v1148 = vld [vmem:[#allocation8 + $0x48] sm:$0xff]
    %v1149 = vld [vmem:[#allocation8 + $0x50] sm:$0xff]
    %v1150 = vld [vmem:[#allocation8 + $0x58] sm:$0xff]
    %v1151 = vld [vmem:[#allocation8 + $0x60] sm:$0xff]
    %v1152 = vld [vmem:[#allocation8 + $0x68] sm:$0xff]
    %v1153 = vld [vmem:[#allocation8 + $0x70] sm:$0xff]
    %v1154 = vld [vmem:[#allocation8 + $0x78] sm:$0xff]
    %v1155 = vld [vmem:[#allocation8 + $0x80] sm:$0xff]
    %v1156 = vld [vmem:[#allocation8 + $0x88] sm:$0xff]
    %v1157 = vld [vmem:[#allocation8 + $0x90] sm:$0xff]
    %v1158 = vld [vmem:[#allocation8 + $0x98] sm:$0xff]
    %v1159 = vld [vmem:[#allocation8 + $0xa0] sm:$0xff]
    %v1160 = vld [vmem:[#allocation8 + $0xa8] sm:$0xff]
    %v1161 = vld [vmem:[#allocation8 + $0xb0] sm:$0xff]
    %v1162 = vld [vmem:[#allocation8 + $0xb8] sm:$0xff]
    %v1163 = vld [vmem:[#allocation8 + $0xc0] sm:$0xff]
    %v1164 = vld [vmem:[#allocation8 + $0xc8] sm:$0xff]
    %v1165 = vld [vmem:[#allocation8 + $0xd0] sm:$0xff]
    %v1166 = vld [vmem:[#allocation8 + $0xd8] sm:$0xff]
    %v1167 = vld [vmem:[#allocation8 + $0xe0] sm:$0xff]
    %v1168 = vld [vmem:[#allocation8 + $0xe8] sm:$0xff]
    %v1169 = vld [vmem:[#allocation8 + $0xf0] sm:$0xff]
    %v1170 = vld [vmem:[#allocation8 + $0xf8] sm:$0xff]
    %v1171 = vld [vmem:[#allocation8 + $0x100] sm:$0xff]
    %v1172 = vld [vmem:[#allocation8 + $0x108] sm:$0xff]
    %v1173 = vld [vmem:[#allocation8 + $0x110] sm:$0xff]
    %v1174 = vld [vmem:[#allocation8 + $0x118] sm:$0xff]
    %v1175 = vld [vmem:[#allocation8 + $0x120] sm:$0xff]
    %v1176 = vld [vmem:[#allocation8 + $0x128] sm:$0xff]
    %v1177 = vld [vmem:[#allocation8 + $0x130] sm:$0xff]
    %v1178 = vld [vmem:[#allocation8 + $0x138] sm:$0xff]
    %v1179 = vld [vmem:[#allocation8 + $0x140] sm:$0xff]
    %v1180 = vld [vmem:[#allocation8 + $0x148] sm:$0xff]
    %v1181 = vld [vmem:[#allocation8 + $0x150] sm:$0xff]
    %v1182 = vld [vmem:[#allocation8 + $0x158] sm:$0xff]
    %v1183 = vld [vmem:[#allocation8 + $0x160] sm:$0xff]
    %v1184 = vld [vmem:[#allocation8 + $0x168] sm:$0xff]
    %v1185 = vld [vmem:[#allocation8 + $0x170] sm:$0xff]
    %v1186 = vld [vmem:[#allocation8 + $0x178] sm:$0xff]
    %v1187 = vld [vmem:[#allocation8 + $0x180] sm:$0xff]
    %v1188 = vld [vmem:[#allocation8 + $0x188] sm:$0xff]
    %v1189 = vld [vmem:[#allocation8 + $0x190] sm:$0xff]
    %v1190 = vld [vmem:[#allocation8 + $0x198] sm:$0xff]
    %v1191 = vld [vmem:[#allocation8 + $0x1a0] sm:$0xff]
    %v1192 = vld [vmem:[#allocation8 + $0x1a8] sm:$0xff]
    %v1193 = vld [vmem:[#allocation8 + $0x1b0] sm:$0xff]
    %v1194 = vld [vmem:[#allocation8 + $0x1b8] sm:$0xff]
    %v1195 = vld [vmem:[#allocation8 + $0x1c0] sm:$0xff]
    %v1196 = vld [vmem:[#allocation8 + $0x1c8] sm:$0xff]
    %v1197 = vld [vmem:[#allocation8 + $0x1d0] sm:$0xff]
    %v1198 = vld [vmem:[#allocation8 + $0x1d8] sm:$0xff]
    %v1199 = vld [vmem:[#allocation8 + $0x1e0] sm:$0xff]
    %v1200 = vld [vmem:[#allocation8 + $0x1e8] sm:$0xff]
    %v1201 = vld [vmem:[#allocation8 + $0x1f0] sm:$0xff]
    %v1202 = vld [vmem:[#allocation8 + $0x1f8] sm:$0xff]
    %1203 = vmatprep.subr.mxu0 %v1200
    %1204 = vmatpush1.msra.mxu0 %v1199
    %1205 = vmatprep.subr.mxu0 %v1196
    %1206 = vmatpush1.msra.mxu0 %v1195
    %1207 = vmatprep.subr.mxu0 %v1192
    %1208 = vmatpush1.msra.mxu0 %v1191
    %1209 = vmatprep.subr.mxu0 %v1188
    %1210 = vmatpush1.msra.mxu0 %v1187
    %1211 = vmatprep.subr.mxu0 %v1184
    %1212 = vmatpush1.msra.mxu0 %v1183
    %1213 = vmatprep.subr.mxu0 %v1180
    %1214 = vmatpush1.msra.mxu0 %v1179
    %1215 = vmatprep.subr.mxu0 %v1176
    %1216 = vmatpush1.msra.mxu0 %v1175
    %1217 = vmatprep.subr.mxu0 %v1172
    %1218 = vmatpush1.msra.mxu0 %v1171
    %1219 = vmatprep.subr.mxu0 %v1168
    %1220 = vmatpush1.msra.mxu0 %v1167
    %1221 = vmatprep.subr.mxu0 %v1164
    %1222 = vmatpush1.msra.mxu0 %v1163
    %1223 = vmatprep.subr.mxu0 %v1160
    %1224 = vmatpush1.msra.mxu0 %v1159
    %1225 = vmatprep.subr.mxu0 %v1156
    %1226 = vmatpush1.msra.mxu0 %v1155
    %1227 = vmatprep.subr.mxu0 %v1152
    %1228 = vmatpush1.msra.mxu0 %v1151
    %1229 = vmatprep.subr.mxu0 %v1148
    %1230 = vmatpush1.msra.mxu0 %v1147
    %1231 = vmatprep.subr.mxu0 %v1144
    %1232 = vmatpush1.msra.mxu0 %v1143
    %1233 = vmatprep.subr.mxu0 %v1140
    %1234 = vmatpush1.msra.mxu0 %v1139
    %1235 = vmatprep.subr.mxu0 0.0
    %1236 = vmatpush2.msra.mxu0 0.0
    %1237 = vmatprep.subr.mxu0 0.0
    %1238 = vmatpush2.msra.mxu0 0.0
    %1239 = vmatprep.subr.mxu0 0.0
    %1240 = vmatpush2.msra.mxu0 0.0
    %1241 = vmatprep.subr.mxu0 0.0
    %1242 = vmatpush2.msra.mxu0 0.0
    %1243 = vmatprep.subr.mxu0 0.0
    %1244 = vmatpush2.msra.mxu0 0.0
    %1245 = vmatprep.subr.mxu0 0.0
    %1246 = vmatpush2.msra.mxu0 0.0
    %1247 = vmatprep.subr.mxu0 0.0
    %1248 = vmatpush2.msra.mxu0 0.0
    %1249 = vmatprep.subr.mxu0 0.0
    %1250 = vmatpush2.msra.mxu0 0.0
    %1251 = vmatprep.subr.mxu0 0.0
    %1252 = vmatpush2.msra.mxu0 0.0
    %1253 = vmatprep.subr.mxu0 0.0
    %1254 = vmatpush2.msra.mxu0 0.0
    %1255 = vmatprep.subr.mxu0 0.0
    %1256 = vmatpush2.msra.mxu0 0.0
    %1257 = vmatprep.subr.mxu0 0.0
    %1258 = vmatpush2.msra.mxu0 0.0
    %1259 = vmatprep.subr.mxu0 0.0
    %1260 = vmatpush2.msra.mxu0 0.0
    %1261 = vmatprep.subr.mxu0 0.0
    %1262 = vmatpush2.msra.mxu0 0.0
    %1263 = vmatprep.subr.mxu0 0.0
    %1264 = vmatpush2.msra.mxu0 0.0
    %1265 = vmatprep.subr.mxu0 0.0
    %1266 = vmatpush2.msra.mxu0 0.0
    %1267 = vmatprep.mubr.f32.mxu0 0.0
    %1268 = vmatmul.mubr.f32.gmra.mxu0 %v1105
    %v1269 = vpop.f32.mrf.mxu0
    %v1270 = vadd.f32 0.0, %v1269
    %v1271 = vpop.f32.mrf.mxu0
    %v1272 = vadd.f32 0.0, %v1271
    %1273 = vdwg.mxu0
    %1274 = vmatprep.subr.mxu0 %v1202
    %1275 = vmatpush1.msra.mxu0 %v1201
    %1276 = vmatprep.subr.mxu0 %v1198
    %1277 = vmatpush1.msra.mxu0 %v1197
    %1278 = vmatprep.subr.mxu0 %v1194
    %1279 = vmatpush1.msra.mxu0 %v1193
    %1280 = vmatprep.subr.mxu0 %v1190
    %1281 = vmatpush1.msra.mxu0 %v1189
    %1282 = vmatprep.subr.mxu0 %v1186
    %1283 = vmatpush1.msra.mxu0 %v1185
    %1284 = vmatprep.subr.mxu0 %v1182
    %1285 = vmatpush1.msra.mxu0 %v1181
    %1286 = vmatprep.subr.mxu0 %v1178
    %1287 = vmatpush1.msra.mxu0 %v1177
    %1288 = vmatprep.subr.mxu0 %v1174
    %1289 = vmatpush1.msra.mxu0 %v1173
    %1290 = vmatprep.subr.mxu0 %v1170
    %1291 = vmatpush1.msra.mxu0 %v1169
    %1292 = vmatprep.subr.mxu0 %v1166
    %1293 = vmatpush1.msra.mxu0 %v1165
    %1294 = vmatprep.subr.mxu0 %v1162
    %1295 = vmatpush1.msra.mxu0 %v1161
    %1296 = vmatprep.subr.mxu0 %v1158
    %1297 = vmatpush1.msra.mxu0 %v1157
    %1298 = vmatprep.subr.mxu0 %v1154
    %1299 = vmatpush1.msra.mxu0 %v1153
    %1300 = vmatprep.subr.mxu0 %v1150
    %1301 = vmatpush1.msra.mxu0 %v1149
    %1302 = vmatprep.subr.mxu0 %v1146
    %1303 = vmatpush1.msra.mxu0 %v1145
    %1304 = vmatprep.subr.mxu0 %v1142
    %1305 = vmatpush1.msra.mxu0 %v1141
    %1306 = vmatprep.subr.mxu0 0.0
    %1307 = vmatpush2.msra.mxu0 0.0
    %1308 = vmatprep.subr.mxu0 0.0
    %1309 = vmatpush2.msra.mxu0 0.0
    %1310 = vmatprep.subr.mxu0 0.0
    %1311 = vmatpush2.msra.mxu0 0.0
    %1312 = vmatprep.subr.mxu0 0.0
    %1313 = vmatpush2.msra.mxu0 0.0
    %1314 = vmatprep.subr.mxu0 0.0
    %1315 = vmatpush2.msra.mxu0 0.0
    %1316 = vmatprep.subr.mxu0 0.0
    %1317 = vmatpush2.msra.mxu0 0.0
    %1318 = vmatprep.subr.mxu0 0.0
    %1319 = vmatpush2.msra.mxu0 0.0
    %1320 = vmatprep.subr.mxu0 0.0
    %1321 = vmatpush2.msra.mxu0 0.0
    %1322 = vmatprep.subr.mxu0 0.0
    %1323 = vmatpush2.msra.mxu0 0.0
    %1324 = vmatprep.subr.mxu0 0.0
    %1325 = vmatpush2.msra.mxu0 0.0
    %1326 = vmatprep.subr.mxu0 0.0
    %1327 = vmatpush2.msra.mxu0 0.0
    %1328 = vmatprep.subr.mxu0 0.0
    %1329 = vmatpush2.msra.mxu0 0.0
    %1330 = vmatprep.subr.mxu0 0.0
    %1331 = vmatpush2.msra.mxu0 0.0
    %1332 = vmatprep.subr.mxu0 0.0
    %1333 = vmatpush2.msra.mxu0 0.0
    %1334 = vmatprep.subr.mxu0 0.0
    %1335 = vmatpush2.msra.mxu0 0.0
    %1336 = vmatprep.subr.mxu0 0.0
    %1337 = vmatpush2.msra.mxu0 0.0
    %1338 = vmatprep.mubr.f32.mxu0 0.0
    %1339 = vmatmul.mubr.f32.gmra.mxu0 %v1105
    %v1340 = vpop.f32.mrf.mxu0
    %v1341 = vadd.f32 0.0, %v1340
    %v1342 = vpop.f32.mrf.mxu0
    %v1343 = vadd.f32 0.0, %v1342
    %1344 = vdwg.mxu0
    %v1349 = vrot.slane %v1270, 6
    %v1350 = vrot.slane %v1272, 6
    %v1351 = vrot.slane %v1341, 6
    %v1352 = vrot.slane %v1343, 6
    %v1357 = vadd.f32 %v1135, %v1349
    %v1358 = vadd.f32 %v1136, %v1350
    %v1359 = vadd.f32 %v1137, %v1351
    %v1360 = vadd.f32 %v1138, %v1352
    %v1361 = vld [vmem:[#allocation2 + $0x60] sm:$0x30]
    %v1362 = vld [vmem:[#allocation2 + $0x68] sm:$0x30]
    %v1363 = vld [vmem:[#allocation2 + $0x70] sm:$0x30]
    %v1364 = vld [vmem:[#allocation2 + $0x78] sm:$0x30]
    %v1365 = vld [vmem:[#allocation10] sm:$0xff]
    %v1366 = vld [vmem:[#allocation10 + $0x8] sm:$0xff]
    %v1367 = vld [vmem:[#allocation10 + $0x10] sm:$0xff]
    %v1368 = vld [vmem:[#allocation10 + $0x18] sm:$0xff]
    %v1369 = vld [vmem:[#allocation10 + $0x20] sm:$0xff]
    %v1370 = vld [vmem:[#allocation10 + $0x28] sm:$0xff]
    %v1371 = vld [vmem:[#allocation10 + $0x30] sm:$0xff]
    %v1372 = vld [vmem:[#allocation10 + $0x38] sm:$0xff]
    %v1373 = vld [vmem:[#allocation10 + $0x40] sm:$0xff]
    %v1374 = vld [vmem:[#allocation10 + $0x48] sm:$0xff]
    %v1375 = vld [vmem:[#allocation10 + $0x50] sm:$0xff]
    %v1376 = vld [vmem:[#allocation10 + $0x58] sm:$0xff]
    %v1377 = vld [vmem:[#allocation10 + $0x60] sm:$0xff]
    %v1378 = vld [vmem:[#allocation10 + $0x68] sm:$0xff]
    %v1379 = vld [vmem:[#allocation10 + $0x70] sm:$0xff]
    %v1380 = vld [vmem:[#allocation10 + $0x78] sm:$0xff]
    %v1381 = vld [vmem:[#allocation10 + $0x80] sm:$0xff]
    %v1382 = vld [vmem:[#allocation10 + $0x88] sm:$0xff]
    %v1383 = vld [vmem:[#allocation10 + $0x90] sm:$0xff]
    %v1384 = vld [vmem:[#allocation10 + $0x98] sm:$0xff]
    %v1385 = vld [vmem:[#allocation10 + $0xa0] sm:$0xff]
    %v1386 = vld [vmem:[#allocation10 + $0xa8] sm:$0xff]
    %v1387 = vld [vmem:[#allocation10 + $0xb0] sm:$0xff]
    %v1388 = vld [vmem:[#allocation10 + $0xb8] sm:$0xff]
    %v1389 = vld [vmem:[#allocation10 + $0xc0] sm:$0xff]
    %v1390 = vld [vmem:[#allocation10 + $0xc8] sm:$0xff]
    %v1391 = vld [vmem:[#allocation10 + $0xd0] sm:$0xff]
    %v1392 = vld [vmem:[#allocation10 + $0xd8] sm:$0xff]
    %v1393 = vld [vmem:[#allocation10 + $0xe0] sm:$0xff]
    %v1394 = vld [vmem:[#allocation10 + $0xe8] sm:$0xff]
    %v1395 = vld [vmem:[#allocation10 + $0xf0] sm:$0xff]
    %v1396 = vld [vmem:[#allocation10 + $0xf8] sm:$0xff]
    %v1397 = vld [vmem:[#allocation10 + $0x100] sm:$0xff]
    %v1398 = vld [vmem:[#allocation10 + $0x108] sm:$0xff]
    %v1399 = vld [vmem:[#allocation10 + $0x110] sm:$0xff]
    %v1400 = vld [vmem:[#allocation10 + $0x118] sm:$0xff]
    %v1401 = vld [vmem:[#allocation10 + $0x120] sm:$0xff]
    %v1402 = vld [vmem:[#allocation10 + $0x128] sm:$0xff]
    %v1403 = vld [vmem:[#allocation10 + $0x130] sm:$0xff]
    %v1404 = vld [vmem:[#allocation10 + $0x138] sm:$0xff]
    %v1405 = vld [vmem:[#allocation10 + $0x140] sm:$0xff]
    %v1406 = vld [vmem:[#allocation10 + $0x148] sm:$0xff]
    %v1407 = vld [vmem:[#allocation10 + $0x150] sm:$0xff]
    %v1408 = vld [vmem:[#allocation10 + $0x158] sm:$0xff]
    %v1409 = vld [vmem:[#allocation10 + $0x160] sm:$0xff]
    %v1410 = vld [vmem:[#allocation10 + $0x168] sm:$0xff]
    %v1411 = vld [vmem:[#allocation10 + $0x170] sm:$0xff]
    %v1412 = vld [vmem:[#allocation10 + $0x178] sm:$0xff]
    %v1413 = vld [vmem:[#allocation10 + $0x180] sm:$0xff]
    %v1414 = vld [vmem:[#allocation10 + $0x188] sm:$0xff]
    %v1415 = vld [vmem:[#allocation10 + $0x190] sm:$0xff]
    %v1416 = vld [vmem:[#allocation10 + $0x198] sm:$0xff]
    %v1417 = vld [vmem:[#allocation10 + $0x1a0] sm:$0xff]
    %v1418 = vld [vmem:[#allocation10 + $0x1a8] sm:$0xff]
    %v1419 = vld [vmem:[#allocation10 + $0x1b0] sm:$0xff]
    %v1420 = vld [vmem:[#allocation10 + $0x1b8] sm:$0xff]
    %v1421 = vld [vmem:[#allocation10 + $0x1c0] sm:$0xff]
    %v1422 = vld [vmem:[#allocation10 + $0x1c8] sm:$0xff]
    %v1423 = vld [vmem:[#allocation10 + $0x1d0] sm:$0xff]
    %v1424 = vld [vmem:[#allocation10 + $0x1d8] sm:$0xff]
    %v1425 = vld [vmem:[#allocation10 + $0x1e0] sm:$0xff]
    %v1426 = vld [vmem:[#allocation10 + $0x1e8] sm:$0xff]
    %v1427 = vld [vmem:[#allocation10 + $0x1f0] sm:$0xff]
    %v1428 = vld [vmem:[#allocation10 + $0x1f8] sm:$0xff]
    %v1430 = vrot.slane %v1132, 6
    %1432 = vmatprep.subr.mxu0 %v1426
    %1433 = vmatpush1.msra.mxu0 %v1425
    %1434 = vmatprep.subr.mxu0 %v1422
    %1435 = vmatpush1.msra.mxu0 %v1421
    %1436 = vmatprep.subr.mxu0 %v1418
    %1437 = vmatpush1.msra.mxu0 %v1417
    %1438 = vmatprep.subr.mxu0 %v1414
    %1439 = vmatpush1.msra.mxu0 %v1413
    %1440 = vmatprep.subr.mxu0 %v1410
    %1441 = vmatpush1.msra.mxu0 %v1409
    %1442 = vmatprep.subr.mxu0 %v1406
    %1443 = vmatpush1.msra.mxu0 %v1405
    %1444 = vmatprep.subr.mxu0 %v1402
    %1445 = vmatpush1.msra.mxu0 %v1401
    %1446 = vmatprep.subr.mxu0 %v1398
    %1447 = vmatpush1.msra.mxu0 %v1397
    %1448 = vmatprep.subr.mxu0 %v1394
    %1449 = vmatpush1.msra.mxu0 %v1393
    %1450 = vmatprep.subr.mxu0 %v1390
    %1451 = vmatpush1.msra.mxu0 %v1389
    %1452 = vmatprep.subr.mxu0 %v1386
    %1453 = vmatpush1.msra.mxu0 %v1385
    %1454 = vmatprep.subr.mxu0 %v1382
    %1455 = vmatpush1.msra.mxu0 %v1381
    %1456 = vmatprep.subr.mxu0 %v1378
    %1457 = vmatpush1.msra.mxu0 %v1377
    %1458 = vmatprep.subr.mxu0 %v1374
    %1459 = vmatpush1.msra.mxu0 %v1373
    %1460 = vmatprep.subr.mxu0 %v1370
    %1461 = vmatpush1.msra.mxu0 %v1369
    %1462 = vmatprep.subr.mxu0 %v1366
    %1463 = vmatpush1.msra.mxu0 %v1365
    %1464 = vmatprep.subr.mxu0 0.0
    %1465 = vmatpush2.msra.mxu0 0.0
    %1466 = vmatprep.subr.mxu0 0.0
    %1467 = vmatpush2.msra.mxu0 0.0
    %1468 = vmatprep.subr.mxu0 0.0
    %1469 = vmatpush2.msra.mxu0 0.0
    %1470 = vmatprep.subr.mxu0 0.0
    %1471 = vmatpush2.msra.mxu0 0.0
    %1472 = vmatprep.subr.mxu0 0.0
    %1473 = vmatpush2.msra.mxu0 0.0
    %1474 = vmatprep.subr.mxu0 0.0
    %1475 = vmatpush2.msra.mxu0 0.0
    %1476 = vmatprep.subr.mxu0 0.0
    %1477 = vmatpush2.msra.mxu0 0.0
    %1478 = vmatprep.subr.mxu0 0.0
    %1479 = vmatpush2.msra.mxu0 0.0
    %1480 = vmatprep.subr.mxu0 0.0
    %1481 = vmatpush2.msra.mxu0 0.0
    %1482 = vmatprep.subr.mxu0 0.0
    %1483 = vmatpush2.msra.mxu0 0.0
    %1484 = vmatprep.subr.mxu0 0.0
    %1485 = vmatpush2.msra.mxu0 0.0
    %1486 = vmatprep.subr.mxu0 0.0
    %1487 = vmatpush2.msra.mxu0 0.0
    %1488 = vmatprep.subr.mxu0 0.0
    %1489 = vmatpush2.msra.mxu0 0.0
    %1490 = vmatprep.subr.mxu0 0.0
    %1491 = vmatpush2.msra.mxu0 0.0
    %1492 = vmatprep.subr.mxu0 0.0
    %1493 = vmatpush2.msra.mxu0 0.0
    %1494 = vmatprep.subr.mxu0 0.0
    %1495 = vmatpush2.msra.mxu0 0.0
    %1496 = vmatprep.mubr.f32.mxu0 0.0
    %1497 = vmatmul.mubr.f32.gmra.mxu0 %v1430
    %v1498 = vpop.f32.mrf.mxu0
    %v1499 = vadd.f32 0.0, %v1498
    %v1500 = vpop.f32.mrf.mxu0
    %v1501 = vadd.f32 0.0, %v1500
    %1502 = vdwg.mxu0
    %1503 = vmatprep.subr.mxu0 %v1428
    %1504 = vmatpush1.msra.mxu0 %v1427
    %1505 = vmatprep.subr.mxu0 %v1424
    %1506 = vmatpush1.msra.mxu0 %v1423
    %1507 = vmatprep.subr.mxu0 %v1420
    %1508 = vmatpush1.msra.mxu0 %v1419
    %1509 = vmatprep.subr.mxu0 %v1416
    %1510 = vmatpush1.msra.mxu0 %v1415
    %1511 = vmatprep.subr.mxu0 %v1412
    %1512 = vmatpush1.msra.mxu0 %v1411
    %1513 = vmatprep.subr.mxu0 %v1408
    %1514 = vmatpush1.msra.mxu0 %v1407
    %1515 = vmatprep.subr.mxu0 %v1404
    %1516 = vmatpush1.msra.mxu0 %v1403
    %1517 = vmatprep.subr.mxu0 %v1400
    %1518 = vmatpush1.msra.mxu0 %v1399
    %1519 = vmatprep.subr.mxu0 %v1396
    %1520 = vmatpush1.msra.mxu0 %v1395
    %1521 = vmatprep.subr.mxu0 %v1392
    %1522 = vmatpush1.msra.mxu0 %v1391
    %1523 = vmatprep.subr.mxu0 %v1388
    %1524 = vmatpush1.msra.mxu0 %v1387
    %1525 = vmatprep.subr.mxu0 %v1384
    %1526 = vmatpush1.msra.mxu0 %v1383
    %1527 = vmatprep.subr.mxu0 %v1380
    %1528 = vmatpush1.msra.mxu0 %v1379
    %1529 = vmatprep.subr.mxu0 %v1376
    %1530 = vmatpush1.msra.mxu0 %v1375
    %1531 = vmatprep.subr.mxu0 %v1372
    %1532 = vmatpush1.msra.mxu0 %v1371
    %1533 = vmatprep.subr.mxu0 %v1368
    %1534 = vmatpush1.msra.mxu0 %v1367
    %1535 = vmatprep.subr.mxu0 0.0
    %1536 = vmatpush2.msra.mxu0 0.0
    %1537 = vmatprep.subr.mxu0 0.0
    %1538 = vmatpush2.msra.mxu0 0.0
    %1539 = vmatprep.subr.mxu0 0.0
    %1540 = vmatpush2.msra.mxu0 0.0
    %1541 = vmatprep.subr.mxu0 0.0
    %1542 = vmatpush2.msra.mxu0 0.0
    %1543 = vmatprep.subr.mxu0 0.0
    %1544 = vmatpush2.msra.mxu0 0.0
    %1545 = vmatprep.subr.mxu0 0.0
    %1546 = vmatpush2.msra.mxu0 0.0
    %1547 = vmatprep.subr.mxu0 0.0
    %1548 = vmatpush2.msra.mxu0 0.0
    %1549 = vmatprep.subr.mxu0 0.0
    %1550 = vmatpush2.msra.mxu0 0.0
    %1551 = vmatprep.subr.mxu0 0.0
    %1552 = vmatpush2.msra.mxu0 0.0
    %1553 = vmatprep.subr.mxu0 0.0
    %1554 = vmatpush2.msra.mxu0 0.0
    %1555 = vmatprep.subr.mxu0 0.0
    %1556 = vmatpush2.msra.mxu0 0.0
    %1557 = vmatprep.subr.mxu0 0.0
    %1558 = vmatpush2.msra.mxu0 0.0
    %1559 = vmatprep.subr.mxu0 0.0
    %1560 = vmatpush2.msra.mxu0 0.0
    %1561 = vmatprep.subr.mxu0 0.0
    %1562 = vmatpush2.msra.mxu0 0.0
    %1563 = vmatprep.subr.mxu0 0.0
    %1564 = vmatpush2.msra.mxu0 0.0
    %1565 = vmatprep.subr.mxu0 0.0
    %1566 = vmatpush2.msra.mxu0 0.0
    %1567 = vmatprep.mubr.f32.mxu0 0.0
    %1568 = vmatmul.mubr.f32.gmra.mxu0 %v1430
    %v1569 = vpop.f32.mrf.mxu0
    %v1570 = vadd.f32 0.0, %v1569
    %v1571 = vpop.f32.mrf.mxu0
    %v1572 = vadd.f32 0.0, %v1571
    %1573 = vdwg.mxu0
    %v1578 = vrot.slane %v1499, 4
    %v1579 = vrot.slane %v1501, 4
    %v1580 = vrot.slane %v1570, 4
    %v1581 = vrot.slane %v1572, 4
    %v1586 = vadd.f32 %v1361, %v1578
    %v1587 = vadd.f32 %v1362, %v1579
    %v1588 = vadd.f32 %v1363, %v1580
    %v1589 = vadd.f32 %v1364, %v1581
    %v1590 = vxor.u32 %v1357, 2147483648
    %v1591 = vmul.f32 %v1590, 1.442695
    %v1592 = vpow.pop %v1591
    %v1593 = vadd.f32 %v1592, 1.0
    %v1594 = vrcp.pop %v1593
    %v1595 = vmul.f32 1.0, %v1594
    %v1596 = vxor.u32 %v1358, 2147483648
    %v1597 = vmul.f32 %v1596, 1.442695
    %v1598 = vpow.pop %v1597
    %v1599 = vadd.f32 %v1598, 1.0
    %v1600 = vrcp.pop %v1599
    %v1601 = vmul.f32 1.0, %v1600
    %v1602 = vtanh.pop %v1359
    %v1603 = vxor.u32 %v1360, 2147483648
    %v1604 = vmul.f32 %v1603, 1.442695
    %v1605 = vpow.pop %v1604
    %v1606 = vadd.f32 %v1605, 1.0
    %v1607 = vrcp.pop %v1606
    %v1608 = vmul.f32 1.0, %v1607
    %v1610 = vrot.slane %v1103, 6
    %v1612 = vmul.f32 %v1601, %v1610
    %v1613 = vmul.f32 %v1595, %v1602
    %v1614 = vadd.f32 %v1612, %v1613
    %v1615 = vtanh.pop %v1614
    %v1616 = vmul.f32 %v1608, %v1615
    %v1617 = vxor.u32 %v1586, 2147483648
    %v1618 = vmul.f32 %v1617, 1.442695
    %v1619 = vpow.pop %v1618
    %v1620 = vadd.f32 %v1619, 1.0
    %v1621 = vrcp.pop %v1620
    %v1622 = vmul.f32 1.0, %v1621
    %v1623 = vxor.u32 %v1587, 2147483648
    %v1624 = vmul.f32 %v1623, 1.442695
    %v1625 = vpow.pop %v1624
    %v1626 = vadd.f32 %v1625, 1.0
    %v1627 = vrcp.pop %v1626
    %v1628 = vmul.f32 1.0, %v1627
    %v1629 = vtanh.pop %v1588
    %v1630 = vxor.u32 %v1589, 2147483648
    %v1631 = vmul.f32 %v1630, 1.442695
    %v1632 = vpow.pop %v1631
    %v1633 = vadd.f32 %v1632, 1.0
    %v1634 = vrcp.pop %v1633
    %v1635 = vmul.f32 1.0, %v1634
    %v1637 = vrot.slane %v1130, 2
    %v1639 = vmul.f32 %v1628, %v1637
    %v1640 = vmul.f32 %v1622, %v1629
    %v1641 = vadd.f32 %v1639, %v1640
    %v1642 = vtanh.pop %v1641
    %v1643 = vmul.f32 %v1635, %v1642
    %1644 = vst [vmem:[#allocation3] sm:$0xc] %v1616
    %1645 = vst [vmem:[#allocation3 + $0x18] sm:$0x30] %v1643
    %v1646 = vld [vmem:[#allocation2] sm:$0x30]
    %v1647 = vld [vmem:[#allocation2 + $0x8] sm:$0x30]
    %v1648 = vld [vmem:[#allocation2 + $0x10] sm:$0x30]
    %v1649 = vld [vmem:[#allocation2 + $0x18] sm:$0x30]
    %v1650 = vld [vmem:[#allocation8] sm:$0xff]
    %v1651 = vld [vmem:[#allocation8 + $0x8] sm:$0xff]
    %v1652 = vld [vmem:[#allocation8 + $0x10] sm:$0xff]
    %v1653 = vld [vmem:[#allocation8 + $0x18] sm:$0xff]
    %v1654 = vld [vmem:[#allocation8 + $0x20] sm:$0xff]
    %v1655 = vld [vmem:[#allocation8 + $0x28] sm:$0xff]
    %v1656 = vld [vmem:[#allocation8 + $0x30] sm:$0xff]
    %v1657 = vld [vmem:[#allocation8 + $0x38] sm:$0xff]
    %v1658 = vld [vmem:[#allocation8 + $0x40] sm:$0xff]
    %v1659 = vld [vmem:[#allocation8 + $0x48] sm:$0xff]
    %v1660 = vld [vmem:[#allocation8 + $0x50] sm:$0xff]
    %v1661 = vld [vmem:[#allocation8 + $0x58] sm:$0xff]
    %v1662 = vld [vmem:[#allocation8 + $0x60] sm:$0xff]
    %v1663 = vld [vmem:[#allocation8 + $0x68] sm:$0xff]
    %v1664 = vld [vmem:[#allocation8 + $0x70] sm:$0xff]
    %v1665 = vld [vmem:[#allocation8 + $0x78] sm:$0xff]
    %v1666 = vld [vmem:[#allocation8 + $0x80] sm:$0xff]
    %v1667 = vld [vmem:[#allocation8 + $0x88] sm:$0xff]
    %v1668 = vld [vmem:[#allocation8 + $0x90] sm:$0xff]
    %v1669 = vld [vmem:[#allocation8 + $0x98] sm:$0xff]
    %v1670 = vld [vmem:[#allocation8 + $0xa0] sm:$0xff]
    %v1671 = vld [vmem:[#allocation8 + $0xa8] sm:$0xff]
    %v1672 = vld [vmem:[#allocation8 + $0xb0] sm:$0xff]
    %v1673 = vld [vmem:[#allocation8 + $0xb8] sm:$0xff]
    %v1674 = vld [vmem:[#allocation8 + $0xc0] sm:$0xff]
    %v1675 = vld [vmem:[#allocation8 + $0xc8] sm:$0xff]
    %v1676 = vld [vmem:[#allocation8 + $0xd0] sm:$0xff]
    %v1677 = vld [vmem:[#allocation8 + $0xd8] sm:$0xff]
    %v1678 = vld [vmem:[#allocation8 + $0xe0] sm:$0xff]
    %v1679 = vld [vmem:[#allocation8 + $0xe8] sm:$0xff]
    %v1680 = vld [vmem:[#allocation8 + $0xf0] sm:$0xff]
    %v1681 = vld [vmem:[#allocation8 + $0xf8] sm:$0xff]
    %v1682 = vld [vmem:[#allocation8 + $0x100] sm:$0xff]
    %v1683 = vld [vmem:[#allocation8 + $0x108] sm:$0xff]
    %v1684 = vld [vmem:[#allocation8 + $0x110] sm:$0xff]
    %v1685 = vld [vmem:[#allocation8 + $0x118] sm:$0xff]
    %v1686 = vld [vmem:[#allocation8 + $0x120] sm:$0xff]
    %v1687 = vld [vmem:[#allocation8 + $0x128] sm:$0xff]
    %v1688 = vld [vmem:[#allocation8 + $0x130] sm:$0xff]
    %v1689 = vld [vmem:[#allocation8 + $0x138] sm:$0xff]
    %v1690 = vld [vmem:[#allocation8 + $0x140] sm:$0xff]
    %v1691 = vld [vmem:[#allocation8 + $0x148] sm:$0xff]
    %v1692 = vld [vmem:[#allocation8 + $0x150] sm:$0xff]
    %v1693 = vld [vmem:[#allocation8 + $0x158] sm:$0xff]
    %v1694 = vld [vmem:[#allocation8 + $0x160] sm:$0xff]
    %v1695 = vld [vmem:[#allocation8 + $0x168] sm:$0xff]
    %v1696 = vld [vmem:[#allocation8 + $0x170] sm:$0xff]
    %v1697 = vld [vmem:[#allocation8 + $0x178] sm:$0xff]
    %v1698 = vld [vmem:[#allocation8 + $0x180] sm:$0xff]
    %v1699 = vld [vmem:[#allocation8 + $0x188] sm:$0xff]
    %v1700 = vld [vmem:[#allocation8 + $0x190] sm:$0xff]
    %v1701 = vld [vmem:[#allocation8 + $0x198] sm:$0xff]
    %v1702 = vld [vmem:[#allocation8 + $0x1a0] sm:$0xff]
    %v1703 = vld [vmem:[#allocation8 + $0x1a8] sm:$0xff]
    %v1704 = vld [vmem:[#allocation8 + $0x1b0] sm:$0xff]
    %v1705 = vld [vmem:[#allocation8 + $0x1b8] sm:$0xff]
    %v1706 = vld [vmem:[#allocation8 + $0x1c0] sm:$0xff]
    %v1707 = vld [vmem:[#allocation8 + $0x1c8] sm:$0xff]
    %v1708 = vld [vmem:[#allocation8 + $0x1d0] sm:$0xff]
    %v1709 = vld [vmem:[#allocation8 + $0x1d8] sm:$0xff]
    %v1710 = vld [vmem:[#allocation8 + $0x1e0] sm:$0xff]
    %v1711 = vld [vmem:[#allocation8 + $0x1e8] sm:$0xff]
    %v1712 = vld [vmem:[#allocation8 + $0x1f0] sm:$0xff]
    %v1713 = vld [vmem:[#allocation8 + $0x1f8] sm:$0xff]
    %v1715 = vrot.slane %v1616, 2
    %1717 = vmatprep.subr.mxu0 %v1711
    %1718 = vmatpush1.msra.mxu0 %v1710
    %1719 = vmatprep.subr.mxu0 %v1707
    %1720 = vmatpush1.msra.mxu0 %v1706
    %1721 = vmatprep.subr.mxu0 %v1703
    %1722 = vmatpush1.msra.mxu0 %v1702
    %1723 = vmatprep.subr.mxu0 %v1699
    %1724 = vmatpush1.msra.mxu0 %v1698
    %1725 = vmatprep.subr.mxu0 %v1695
    %1726 = vmatpush1.msra.mxu0 %v1694
    %1727 = vmatprep.subr.mxu0 %v1691
    %1728 = vmatpush1.msra.mxu0 %v1690
    %1729 = vmatprep.subr.mxu0 %v1687
    %1730 = vmatpush1.msra.mxu0 %v1686
    %1731 = vmatprep.subr.mxu0 %v1683
    %1732 = vmatpush1.msra.mxu0 %v1682
    %1733 = vmatprep.subr.mxu0 %v1679
    %1734 = vmatpush1.msra.mxu0 %v1678
    %1735 = vmatprep.subr.mxu0 %v1675
    %1736 = vmatpush1.msra.mxu0 %v1674
    %1737 = vmatprep.subr.mxu0 %v1671
    %1738 = vmatpush1.msra.mxu0 %v1670
    %1739 = vmatprep.subr.mxu0 %v1667
    %1740 = vmatpush1.msra.mxu0 %v1666
    %1741 = vmatprep.subr.mxu0 %v1663
    %1742 = vmatpush1.msra.mxu0 %v1662
    %1743 = vmatprep.subr.mxu0 %v1659
    %1744 = vmatpush1.msra.mxu0 %v1658
    %1745 = vmatprep.subr.mxu0 %v1655
    %1746 = vmatpush1.msra.mxu0 %v1654
    %1747 = vmatprep.subr.mxu0 %v1651
    %1748 = vmatpush1.msra.mxu0 %v1650
    %1749 = vmatprep.subr.mxu0 0.0
    %1750 = vmatpush2.msra.mxu0 0.0
    %1751 = vmatprep.subr.mxu0 0.0
    %1752 = vmatpush2.msra.mxu0 0.0
    %1753 = vmatprep.subr.mxu0 0.0
    %1754 = vmatpush2.msra.mxu0 0.0
    %1755 = vmatprep.subr.mxu0 0.0
    %1756 = vmatpush2.msra.mxu0 0.0
    %1757 = vmatprep.subr.mxu0 0.0
    %1758 = vmatpush2.msra.mxu0 0.0
    %1759 = vmatprep.subr.mxu0 0.0
    %1760 = vmatpush2.msra.mxu0 0.0
    %1761 = vmatprep.subr.mxu0 0.0
    %1762 = vmatpush2.msra.mxu0 0.0
    %1763 = vmatprep.subr.mxu0 0.0
    %1764 = vmatpush2.msra.mxu0 0.0
    %1765 = vmatprep.subr.mxu0 0.0
    %1766 = vmatpush2.msra.mxu0 0.0
    %1767 = vmatprep.subr.mxu0 0.0
    %1768 = vmatpush2.msra.mxu0 0.0
    %1769 = vmatprep.subr.mxu0 0.0
    %1770 = vmatpush2.msra.mxu0 0.0
    %1771 = vmatprep.subr.mxu0 0.0
    %1772 = vmatpush2.msra.mxu0 0.0
    %1773 = vmatprep.subr.mxu0 0.0
    %1774 = vmatpush2.msra.mxu0 0.0
    %1775 = vmatprep.subr.mxu0 0.0
    %1776 = vmatpush2.msra.mxu0 0.0
    %1777 = vmatprep.subr.mxu0 0.0
    %1778 = vmatpush2.msra.mxu0 0.0
    %1779 = vmatprep.subr.mxu0 0.0
    %1780 = vmatpush2.msra.mxu0 0.0
    %1781 = vmatprep.mubr.f32.mxu0 0.0
    %1782 = vmatmul.mubr.f32.gmra.mxu0 %v1715
    %v1783 = vpop.f32.mrf.mxu0
    %v1784 = vadd.f32 0.0, %v1783
    %v1785 = vpop.f32.mrf.mxu0
    %v1786 = vadd.f32 0.0, %v1785
    %1787 = vdwg.mxu0
    %1788 = vmatprep.subr.mxu0 %v1713
    %1789 = vmatpush1.msra.mxu0 %v1712
    %1790 = vmatprep.subr.mxu0 %v1709
    %1791 = vmatpush1.msra.mxu0 %v1708
    %1792 = vmatprep.subr.mxu0 %v1705
    %1793 = vmatpush1.msra.mxu0 %v1704
    %1794 = vmatprep.subr.mxu0 %v1701
    %1795 = vmatpush1.msra.mxu0 %v1700
    %1796 = vmatprep.subr.mxu0 %v1697
    %1797 = vmatpush1.msra.mxu0 %v1696
    %1798 = vmatprep.subr.mxu0 %v1693
    %1799 = vmatpush1.msra.mxu0 %v1692
    %1800 = vmatprep.subr.mxu0 %v1689
    %1801 = vmatpush1.msra.mxu0 %v1688
    %1802 = vmatprep.subr.mxu0 %v1685
    %1803 = vmatpush1.msra.mxu0 %v1684
    %1804 = vmatprep.subr.mxu0 %v1681
    %1805 = vmatpush1.msra.mxu0 %v1680
    %1806 = vmatprep.subr.mxu0 %v1677
    %1807 = vmatpush1.msra.mxu0 %v1676
    %1808 = vmatprep.subr.mxu0 %v1673
    %1809 = vmatpush1.msra.mxu0 %v1672
    %1810 = vmatprep.subr.mxu0 %v1669
    %1811 = vmatpush1.msra.mxu0 %v1668
    %1812 = vmatprep.subr.mxu0 %v1665
    %1813 = vmatpush1.msra.mxu0 %v1664
    %1814 = vmatprep.subr.mxu0 %v1661
    %1815 = vmatpush1.msra.mxu0 %v1660
    %1816 = vmatprep.subr.mxu0 %v1657
    %1817 = vmatpush1.msra.mxu0 %v1656
    %1818 = vmatprep.subr.mxu0 %v1653
    %1819 = vmatpush1.msra.mxu0 %v1652
    %1820 = vmatprep.subr.mxu0 0.0
    %1821 = vmatpush2.msra.mxu0 0.0
    %1822 = vmatprep.subr.mxu0 0.0
    %1823 = vmatpush2.msra.mxu0 0.0
    %1824 = vmatprep.subr.mxu0 0.0
    %1825 = vmatpush2.msra.mxu0 0.0
    %1826 = vmatprep.subr.mxu0 0.0
    %1827 = vmatpush2.msra.mxu0 0.0
    %1828 = vmatprep.subr.mxu0 0.0
    %1829 = vmatpush2.msra.mxu0 0.0
    %1830 = vmatprep.subr.mxu0 0.0
    %1831 = vmatpush2.msra.mxu0 0.0
    %1832 = vmatprep.subr.mxu0 0.0
    %1833 = vmatpush2.msra.mxu0 0.0
    %1834 = vmatprep.subr.mxu0 0.0
    %1835 = vmatpush2.msra.mxu0 0.0
    %1836 = vmatprep.subr.mxu0 0.0
    %1837 = vmatpush2.msra.mxu0 0.0
    %1838 = vmatprep.subr.mxu0 0.0
    %1839 = vmatpush2.msra.mxu0 0.0
    %1840 = vmatprep.subr.mxu0 0.0
    %1841 = vmatpush2.msra.mxu0 0.0
    %1842 = vmatprep.subr.mxu0 0.0
    %1843 = vmatpush2.msra.mxu0 0.0
    %1844 = vmatprep.subr.mxu0 0.0
    %1845 = vmatpush2.msra.mxu0 0.0
    %1846 = vmatprep.subr.mxu0 0.0
    %1847 = vmatpush2.msra.mxu0 0.0
    %1848 = vmatprep.subr.mxu0 0.0
    %1849 = vmatpush2.msra.mxu0 0.0
    %1850 = vmatprep.subr.mxu0 0.0
    %1851 = vmatpush2.msra.mxu0 0.0
    %1852 = vmatprep.mubr.f32.mxu0 0.0
    %1853 = vmatmul.mubr.f32.gmra.mxu0 %v1715
    %v1854 = vpop.f32.mrf.mxu0
    %v1855 = vadd.f32 0.0, %v1854
    %v1856 = vpop.f32.mrf.mxu0
    %v1857 = vadd.f32 0.0, %v1856
    %1858 = vdwg.mxu0
    %v1863 = vrot.slane %v1784, 4
    %v1864 = vrot.slane %v1786, 4
    %v1865 = vrot.slane %v1855, 4
    %v1866 = vrot.slane %v1857, 4
    %v1871 = vadd.f32 %v1646, %v1863
    %v1872 = vadd.f32 %v1647, %v1864
    %v1873 = vadd.f32 %v1648, %v1865
    %v1874 = vadd.f32 %v1649, %v1866
    %v1875 = vld [vmem:[#allocation2 + $0x60] sm:$0xc]
    %v1876 = vld [vmem:[#allocation2 + $0x68] sm:$0xc]
    %v1877 = vld [vmem:[#allocation2 + $0x70] sm:$0xc]
    %v1878 = vld [vmem:[#allocation2 + $0x78] sm:$0xc]
    %v1879 = vld [vmem:[#allocation10] sm:$0xff]
    %v1880 = vld [vmem:[#allocation10 + $0x8] sm:$0xff]
    %v1881 = vld [vmem:[#allocation10 + $0x10] sm:$0xff]
    %v1882 = vld [vmem:[#allocation10 + $0x18] sm:$0xff]
    %v1883 = vld [vmem:[#allocation10 + $0x20] sm:$0xff]
    %v1884 = vld [vmem:[#allocation10 + $0x28] sm:$0xff]
    %v1885 = vld [vmem:[#allocation10 + $0x30] sm:$0xff]
    %v1886 = vld [vmem:[#allocation10 + $0x38] sm:$0xff]
    %v1887 = vld [vmem:[#allocation10 + $0x40] sm:$0xff]
    %v1888 = vld [vmem:[#allocation10 + $0x48] sm:$0xff]
    %v1889 = vld [vmem:[#allocation10 + $0x50] sm:$0xff]
    %v1890 = vld [vmem:[#allocation10 + $0x58] sm:$0xff]
    %v1891 = vld [vmem:[#allocation10 + $0x60] sm:$0xff]
    %v1892 = vld [vmem:[#allocation10 + $0x68] sm:$0xff]
    %v1893 = vld [vmem:[#allocation10 + $0x70] sm:$0xff]
    %v1894 = vld [vmem:[#allocation10 + $0x78] sm:$0xff]
    %v1895 = vld [vmem:[#allocation10 + $0x80] sm:$0xff]
    %v1896 = vld [vmem:[#allocation10 + $0x88] sm:$0xff]
    %v1897 = vld [vmem:[#allocation10 + $0x90] sm:$0xff]
    %v1898 = vld [vmem:[#allocation10 + $0x98] sm:$0xff]
    %v1899 = vld [vmem:[#allocation10 + $0xa0] sm:$0xff]
    %v1900 = vld [vmem:[#allocation10 + $0xa8] sm:$0xff]
    %v1901 = vld [vmem:[#allocation10 + $0xb0] sm:$0xff]
    %v1902 = vld [vmem:[#allocation10 + $0xb8] sm:$0xff]
    %v1903 = vld [vmem:[#allocation10 + $0xc0] sm:$0xff]
    %v1904 = vld [vmem:[#allocation10 + $0xc8] sm:$0xff]
    %v1905 = vld [vmem:[#allocation10 + $0xd0] sm:$0xff]
    %v1906 = vld [vmem:[#allocation10 + $0xd8] sm:$0xff]
    %v1907 = vld [vmem:[#allocation10 + $0xe0] sm:$0xff]
    %v1908 = vld [vmem:[#allocation10 + $0xe8] sm:$0xff]
    %v1909 = vld [vmem:[#allocation10 + $0xf0] sm:$0xff]
    %v1910 = vld [vmem:[#allocation10 + $0xf8] sm:$0xff]
    %v1911 = vld [vmem:[#allocation10 + $0x100] sm:$0xff]
    %v1912 = vld [vmem:[#allocation10 + $0x108] sm:$0xff]
    %v1913 = vld [vmem:[#allocation10 + $0x110] sm:$0xff]
    %v1914 = vld [vmem:[#allocation10 + $0x118] sm:$0xff]
    %v1915 = vld [vmem:[#allocation10 + $0x120] sm:$0xff]
    %v1916 = vld [vmem:[#allocation10 + $0x128] sm:$0xff]
    %v1917 = vld [vmem:[#allocation10 + $0x130] sm:$0xff]
    %v1918 = vld [vmem:[#allocation10 + $0x138] sm:$0xff]
    %v1919 = vld [vmem:[#allocation10 + $0x140] sm:$0xff]
    %v1920 = vld [vmem:[#allocation10 + $0x148] sm:$0xff]
    %v1921 = vld [vmem:[#allocation10 + $0x150] sm:$0xff]
    %v1922 = vld [vmem:[#allocation10 + $0x158] sm:$0xff]
    %v1923 = vld [vmem:[#allocation10 + $0x160] sm:$0xff]
    %v1924 = vld [vmem:[#allocation10 + $0x168] sm:$0xff]
    %v1925 = vld [vmem:[#allocation10 + $0x170] sm:$0xff]
    %v1926 = vld [vmem:[#allocation10 + $0x178] sm:$0xff]
    %v1927 = vld [vmem:[#allocation10 + $0x180] sm:$0xff]
    %v1928 = vld [vmem:[#allocation10 + $0x188] sm:$0xff]
    %v1929 = vld [vmem:[#allocation10 + $0x190] sm:$0xff]
    %v1930 = vld [vmem:[#allocation10 + $0x198] sm:$0xff]
    %v1931 = vld [vmem:[#allocation10 + $0x1a0] sm:$0xff]
    %v1932 = vld [vmem:[#allocation10 + $0x1a8] sm:$0xff]
    %v1933 = vld [vmem:[#allocation10 + $0x1b0] sm:$0xff]
    %v1934 = vld [vmem:[#allocation10 + $0x1b8] sm:$0xff]
    %v1935 = vld [vmem:[#allocation10 + $0x1c0] sm:$0xff]
    %v1936 = vld [vmem:[#allocation10 + $0x1c8] sm:$0xff]
    %v1937 = vld [vmem:[#allocation10 + $0x1d0] sm:$0xff]
    %v1938 = vld [vmem:[#allocation10 + $0x1d8] sm:$0xff]
    %v1939 = vld [vmem:[#allocation10 + $0x1e0] sm:$0xff]
    %v1940 = vld [vmem:[#allocation10 + $0x1e8] sm:$0xff]
    %v1941 = vld [vmem:[#allocation10 + $0x1f0] sm:$0xff]
    %v1942 = vld [vmem:[#allocation10 + $0x1f8] sm:$0xff]
    %v1944 = vrot.slane %v1643, 4
    %1946 = vmatprep.subr.mxu0 %v1940
    %1947 = vmatpush1.msra.mxu0 %v1939
    %1948 = vmatprep.subr.mxu0 %v1936
    %1949 = vmatpush1.msra.mxu0 %v1935
    %1950 = vmatprep.subr.mxu0 %v1932
    %1951 = vmatpush1.msra.mxu0 %v1931
    %1952 = vmatprep.subr.mxu0 %v1928
    %1953 = vmatpush1.msra.mxu0 %v1927
    %1954 = vmatprep.subr.mxu0 %v1924
    %1955 = vmatpush1.msra.mxu0 %v1923
    %1956 = vmatprep.subr.mxu0 %v1920
    %1957 = vmatpush1.msra.mxu0 %v1919
    %1958 = vmatprep.subr.mxu0 %v1916
    %1959 = vmatpush1.msra.mxu0 %v1915
    %1960 = vmatprep.subr.mxu0 %v1912
    %1961 = vmatpush1.msra.mxu0 %v1911
    %1962 = vmatprep.subr.mxu0 %v1908
    %1963 = vmatpush1.msra.mxu0 %v1907
    %1964 = vmatprep.subr.mxu0 %v1904
    %1965 = vmatpush1.msra.mxu0 %v1903
    %1966 = vmatprep.subr.mxu0 %v1900
    %1967 = vmatpush1.msra.mxu0 %v1899
    %1968 = vmatprep.subr.mxu0 %v1896
    %1969 = vmatpush1.msra.mxu0 %v1895
    %1970 = vmatprep.subr.mxu0 %v1892
    %1971 = vmatpush1.msra.mxu0 %v1891
    %1972 = vmatprep.subr.mxu0 %v1888
    %1973 = vmatpush1.msra.mxu0 %v1887
    %1974 = vmatprep.subr.mxu0 %v1884
    %1975 = vmatpush1.msra.mxu0 %v1883
    %1976 = vmatprep.subr.mxu0 %v1880
    %1977 = vmatpush1.msra.mxu0 %v1879
    %1978 = vmatprep.subr.mxu0 0.0
    %1979 = vmatpush2.msra.mxu0 0.0
    %1980 = vmatprep.subr.mxu0 0.0
    %1981 = vmatpush2.msra.mxu0 0.0
    %1982 = vmatprep.subr.mxu0 0.0
    %1983 = vmatpush2.msra.mxu0 0.0
    %1984 = vmatprep.subr.mxu0 0.0
    %1985 = vmatpush2.msra.mxu0 0.0
    %1986 = vmatprep.subr.mxu0 0.0
    %1987 = vmatpush2.msra.mxu0 0.0
    %1988 = vmatprep.subr.mxu0 0.0
    %1989 = vmatpush2.msra.mxu0 0.0
    %1990 = vmatprep.subr.mxu0 0.0
    %1991 = vmatpush2.msra.mxu0 0.0
    %1992 = vmatprep.subr.mxu0 0.0
    %1993 = vmatpush2.msra.mxu0 0.0
    %1994 = vmatprep.subr.mxu0 0.0
    %1995 = vmatpush2.msra.mxu0 0.0
    %1996 = vmatprep.subr.mxu0 0.0
    %1997 = vmatpush2.msra.mxu0 0.0
    %1998 = vmatprep.subr.mxu0 0.0
    %1999 = vmatpush2.msra.mxu0 0.0
    %2000 = vmatprep.subr.mxu0 0.0
    %2001 = vmatpush2.msra.mxu0 0.0
    %2002 = vmatprep.subr.mxu0 0.0
    %2003 = vmatpush2.msra.mxu0 0.0
    %2004 = vmatprep.subr.mxu0 0.0
    %2005 = vmatpush2.msra.mxu0 0.0
    %2006 = vmatprep.subr.mxu0 0.0
    %2007 = vmatpush2.msra.mxu0 0.0
    %2008 = vmatprep.subr.mxu0 0.0
    %2009 = vmatpush2.msra.mxu0 0.0
    %2010 = vmatprep.mubr.f32.mxu0 0.0
    %2011 = vmatmul.mubr.f32.gmra.mxu0 %v1944
    %v2012 = vpop.f32.mrf.mxu0
    %v2013 = vadd.f32 0.0, %v2012
    %v2014 = vpop.f32.mrf.mxu0
    %v2015 = vadd.f32 0.0, %v2014
    %2016 = vdwg.mxu0
    %2017 = vmatprep.subr.mxu0 %v1942
    %2018 = vmatpush1.msra.mxu0 %v1941
    %2019 = vmatprep.subr.mxu0 %v1938
    %2020 = vmatpush1.msra.mxu0 %v1937
    %2021 = vmatprep.subr.mxu0 %v1934
    %2022 = vmatpush1.msra.mxu0 %v1933
    %2023 = vmatprep.subr.mxu0 %v1930
    %2024 = vmatpush1.msra.mxu0 %v1929
    %2025 = vmatprep.subr.mxu0 %v1926
    %2026 = vmatpush1.msra.mxu0 %v1925
    %2027 = vmatprep.subr.mxu0 %v1922
    %2028 = vmatpush1.msra.mxu0 %v1921
    %2029 = vmatprep.subr.mxu0 %v1918
    %2030 = vmatpush1.msra.mxu0 %v1917
    %2031 = vmatprep.subr.mxu0 %v1914
    %2032 = vmatpush1.msra.mxu0 %v1913
    %2033 = vmatprep.subr.mxu0 %v1910
    %2034 = vmatpush1.msra.mxu0 %v1909
    %2035 = vmatprep.subr.mxu0 %v1906
    %2036 = vmatpush1.msra.mxu0 %v1905
    %2037 = vmatprep.subr.mxu0 %v1902
    %2038 = vmatpush1.msra.mxu0 %v1901
    %2039 = vmatprep.subr.mxu0 %v1898
    %2040 = vmatpush1.msra.mxu0 %v1897
    %2041 = vmatprep.subr.mxu0 %v1894
    %2042 = vmatpush1.msra.mxu0 %v1893
    %2043 = vmatprep.subr.mxu0 %v1890
    %2044 = vmatpush1.msra.mxu0 %v1889
    %2045 = vmatprep.subr.mxu0 %v1886
    %2046 = vmatpush1.msra.mxu0 %v1885
    %2047 = vmatprep.subr.mxu0 %v1882
    %2048 = vmatpush1.msra.mxu0 %v1881
    %2049 = vmatprep.subr.mxu0 0.0
    %2050 = vmatpush2.msra.mxu0 0.0
    %2051 = vmatprep.subr.mxu0 0.0
    %2052 = vmatpush2.msra.mxu0 0.0
    %2053 = vmatprep.subr.mxu0 0.0
    %2054 = vmatpush2.msra.mxu0 0.0
    %2055 = vmatprep.subr.mxu0 0.0
    %2056 = vmatpush2.msra.mxu0 0.0
    %2057 = vmatprep.subr.mxu0 0.0
    %2058 = vmatpush2.msra.mxu0 0.0
    %2059 = vmatprep.subr.mxu0 0.0
    %2060 = vmatpush2.msra.mxu0 0.0
    %2061 = vmatprep.subr.mxu0 0.0
    %2062 = vmatpush2.msra.mxu0 0.0
    %2063 = vmatprep.subr.mxu0 0.0
    %2064 = vmatpush2.msra.mxu0 0.0
    %2065 = vmatprep.subr.mxu0 0.0
    %2066 = vmatpush2.msra.mxu0 0.0
    %2067 = vmatprep.subr.mxu0 0.0
    %2068 = vmatpush2.msra.mxu0 0.0
    %2069 = vmatprep.subr.mxu0 0.0
    %2070 = vmatpush2.msra.mxu0 0.0
    %2071 = vmatprep.subr.mxu0 0.0
    %2072 = vmatpush2.msra.mxu0 0.0
    %2073 = vmatprep.subr.mxu0 0.0
    %2074 = vmatpush2.msra.mxu0 0.0
    %2075 = vmatprep.subr.mxu0 0.0
    %2076 = vmatpush2.msra.mxu0 0.0
    %2077 = vmatprep.subr.mxu0 0.0
    %2078 = vmatpush2.msra.mxu0 0.0
    %2079 = vmatprep.subr.mxu0 0.0
    %2080 = vmatpush2.msra.mxu0 0.0
    %2081 = vmatprep.mubr.f32.mxu0 0.0
    %2082 = vmatmul.mubr.f32.gmra.mxu0 %v1944
    %v2083 = vpop.f32.mrf.mxu0
    %v2084 = vadd.f32 0.0, %v2083
    %v2085 = vpop.f32.mrf.mxu0
    %v2086 = vadd.f32 0.0, %v2085
    %2087 = vdwg.mxu0
    %v2092 = vrot.slane %v2013, 6
    %v2093 = vrot.slane %v2015, 6
    %v2094 = vrot.slane %v2084, 6
    %v2095 = vrot.slane %v2086, 6
    %v2100 = vadd.f32 %v1875, %v2092
    %v2101 = vadd.f32 %v1876, %v2093
    %v2102 = vadd.f32 %v1877, %v2094
    %v2103 = vadd.f32 %v1878, %v2095
    %v2104 = vxor.u32 %v1871, 2147483648
    %v2105 = vmul.f32 %v2104, 1.442695
    %v2106 = vpow.pop %v2105
    %v2107 = vadd.f32 %v2106, 1.0
    %v2108 = vrcp.pop %v2107
    %v2109 = vmul.f32 1.0, %v2108
    %v2110 = vxor.u32 %v1872, 2147483648
    %v2111 = vmul.f32 %v2110, 1.442695
    %v2112 = vpow.pop %v2111
    %v2113 = vadd.f32 %v2112, 1.0
    %v2114 = vrcp.pop %v2113
    %v2115 = vmul.f32 1.0, %v2114
    %v2116 = vtanh.pop %v1873
    %v2117 = vxor.u32 %v1874, 2147483648
    %v2118 = vmul.f32 %v2117, 1.442695
    %v2119 = vpow.pop %v2118
    %v2120 = vadd.f32 %v2119, 1.0
    %v2121 = vrcp.pop %v2120
    %v2122 = vmul.f32 1.0, %v2121
    %v2124 = vrot.slane %v1614, 6
    %v2126 = vmul.f32 %v2115, %v2124
    %v2127 = vmul.f32 %v2109, %v2116
    %v2128 = vadd.f32 %v2126, %v2127
    %v2129 = vtanh.pop %v2128
    %v2130 = vmul.f32 %v2122, %v2129
    %v2131 = vxor.u32 %v2100, 2147483648
    %v2132 = vmul.f32 %v2131, 1.442695
    %v2133 = vpow.pop %v2132
    %v2134 = vadd.f32 %v2133, 1.0
    %v2135 = vrcp.pop %v2134
    %v2136 = vmul.f32 1.0, %v2135
    %v2137 = vxor.u32 %v2101, 2147483648
    %v2138 = vmul.f32 %v2137, 1.442695
    %v2139 = vpow.pop %v2138
    %v2140 = vadd.f32 %v2139, 1.0
    %v2141 = vrcp.pop %v2140
    %v2142 = vmul.f32 1.0, %v2141
    %v2143 = vtanh.pop %v2102
    %v2144 = vxor.u32 %v2103, 2147483648
    %v2145 = vmul.f32 %v2144, 1.442695
    %v2146 = vpow.pop %v2145
    %v2147 = vadd.f32 %v2146, 1.0
    %v2148 = vrcp.pop %v2147
    %v2149 = vmul.f32 1.0, %v2148
    %v2151 = vrot.slane %v1641, 2
    %v2153 = vmul.f32 %v2142, %v2151
    %v2154 = vmul.f32 %v2136, %v2143
    %v2155 = vadd.f32 %v2153, %v2154
    %v2156 = vtanh.pop %v2155
    %v2157 = vmul.f32 %v2149, %v2156
    %2158 = vst [vmem:[#allocation3] sm:$0x30] %v2130
    %2159 = vst [vmem:[#allocation3 + $0x18] sm:$0xc] %v2157
    %v2160 = vld [vmem:[#allocation2] sm:$0xc0]
    %v2161 = vld [vmem:[#allocation2 + $0x8] sm:$0xc0]
    %v2162 = vld [vmem:[#allocation2 + $0x10] sm:$0xc0]
    %v2163 = vld [vmem:[#allocation2 + $0x18] sm:$0xc0]
    %v2164 = vld [vmem:[#allocation8] sm:$0xff]
    %v2165 = vld [vmem:[#allocation8 + $0x8] sm:$0xff]
    %v2166 = vld [vmem:[#allocation8 + $0x10] sm:$0xff]
    %v2167 = vld [vmem:[#allocation8 + $0x18] sm:$0xff]
    %v2168 = vld [vmem:[#allocation8 + $0x20] sm:$0xff]
    %v2169 = vld [vmem:[#allocation8 + $0x28] sm:$0xff]
    %v2170 = vld [vmem:[#allocation8 + $0x30] sm:$0xff]
    %v2171 = vld [vmem:[#allocation8 + $0x38] sm:$0xff]
    %v2172 = vld [vmem:[#allocation8 + $0x40] sm:$0xff]
    %v2173 = vld [vmem:[#allocation8 + $0x48] sm:$0xff]
    %v2174 = vld [vmem:[#allocation8 + $0x50] sm:$0xff]
    %v2175 = vld [vmem:[#allocation8 + $0x58] sm:$0xff]
    %v2176 = vld [vmem:[#allocation8 + $0x60] sm:$0xff]
    %v2177 = vld [vmem:[#allocation8 + $0x68] sm:$0xff]
    %v2178 = vld [vmem:[#allocation8 + $0x70] sm:$0xff]
    %v2179 = vld [vmem:[#allocation8 + $0x78] sm:$0xff]
    %v2180 = vld [vmem:[#allocation8 + $0x80] sm:$0xff]
    %v2181 = vld [vmem:[#allocation8 + $0x88] sm:$0xff]
    %v2182 = vld [vmem:[#allocation8 + $0x90] sm:$0xff]
    %v2183 = vld [vmem:[#allocation8 + $0x98] sm:$0xff]
    %v2184 = vld [vmem:[#allocation8 + $0xa0] sm:$0xff]
    %v2185 = vld [vmem:[#allocation8 + $0xa8] sm:$0xff]
    %v2186 = vld [vmem:[#allocation8 + $0xb0] sm:$0xff]
    %v2187 = vld [vmem:[#allocation8 + $0xb8] sm:$0xff]
    %v2188 = vld [vmem:[#allocation8 + $0xc0] sm:$0xff]
    %v2189 = vld [vmem:[#allocation8 + $0xc8] sm:$0xff]
    %v2190 = vld [vmem:[#allocation8 + $0xd0] sm:$0xff]
    %v2191 = vld [vmem:[#allocation8 + $0xd8] sm:$0xff]
    %v2192 = vld [vmem:[#allocation8 + $0xe0] sm:$0xff]
    %v2193 = vld [vmem:[#allocation8 + $0xe8] sm:$0xff]
    %v2194 = vld [vmem:[#allocation8 + $0xf0] sm:$0xff]
    %v2195 = vld [vmem:[#allocation8 + $0xf8] sm:$0xff]
    %v2196 = vld [vmem:[#allocation8 + $0x100] sm:$0xff]
    %v2197 = vld [vmem:[#allocation8 + $0x108] sm:$0xff]
    %v2198 = vld [vmem:[#allocation8 + $0x110] sm:$0xff]
    %v2199 = vld [vmem:[#allocation8 + $0x118] sm:$0xff]
    %v2200 = vld [vmem:[#allocation8 + $0x120] sm:$0xff]
    %v2201 = vld [vmem:[#allocation8 + $0x128] sm:$0xff]
    %v2202 = vld [vmem:[#allocation8 + $0x130] sm:$0xff]
    %v2203 = vld [vmem:[#allocation8 + $0x138] sm:$0xff]
    %v2204 = vld [vmem:[#allocation8 + $0x140] sm:$0xff]
    %v2205 = vld [vmem:[#allocation8 + $0x148] sm:$0xff]
    %v2206 = vld [vmem:[#allocation8 + $0x150] sm:$0xff]
    %v2207 = vld [vmem:[#allocation8 + $0x158] sm:$0xff]
    %v2208 = vld [vmem:[#allocation8 + $0x160] sm:$0xff]
    %v2209 = vld [vmem:[#allocation8 + $0x168] sm:$0xff]
    %v2210 = vld [vmem:[#allocation8 + $0x170] sm:$0xff]
    %v2211 = vld [vmem:[#allocation8 + $0x178] sm:$0xff]
    %v2212 = vld [vmem:[#allocation8 + $0x180] sm:$0xff]
    %v2213 = vld [vmem:[#allocation8 + $0x188] sm:$0xff]
    %v2214 = vld [vmem:[#allocation8 + $0x190] sm:$0xff]
    %v2215 = vld [vmem:[#allocation8 + $0x198] sm:$0xff]
    %v2216 = vld [vmem:[#allocation8 + $0x1a0] sm:$0xff]
    %v2217 = vld [vmem:[#allocation8 + $0x1a8] sm:$0xff]
    %v2218 = vld [vmem:[#allocation8 + $0x1b0] sm:$0xff]
    %v2219 = vld [vmem:[#allocation8 + $0x1b8] sm:$0xff]
    %v2220 = vld [vmem:[#allocation8 + $0x1c0] sm:$0xff]
    %v2221 = vld [vmem:[#allocation8 + $0x1c8] sm:$0xff]
    %v2222 = vld [vmem:[#allocation8 + $0x1d0] sm:$0xff]
    %v2223 = vld [vmem:[#allocation8 + $0x1d8] sm:$0xff]
    %v2224 = vld [vmem:[#allocation8 + $0x1e0] sm:$0xff]
    %v2225 = vld [vmem:[#allocation8 + $0x1e8] sm:$0xff]
    %v2226 = vld [vmem:[#allocation8 + $0x1f0] sm:$0xff]
    %v2227 = vld [vmem:[#allocation8 + $0x1f8] sm:$0xff]
    %v2229 = vrot.slane %v2130, 4
    %2231 = vmatprep.subr.mxu0 %v2225
    %2232 = vmatpush1.msra.mxu0 %v2224
    %2233 = vmatprep.subr.mxu0 %v2221
    %2234 = vmatpush1.msra.mxu0 %v2220
    %2235 = vmatprep.subr.mxu0 %v2217
    %2236 = vmatpush1.msra.mxu0 %v2216
    %2237 = vmatprep.subr.mxu0 %v2213
    %2238 = vmatpush1.msra.mxu0 %v2212
    %2239 = vmatprep.subr.mxu0 %v2209
    %2240 = vmatpush1.msra.mxu0 %v2208
    %2241 = vmatprep.subr.mxu0 %v2205
    %2242 = vmatpush1.msra.mxu0 %v2204
    %2243 = vmatprep.subr.mxu0 %v2201
    %2244 = vmatpush1.msra.mxu0 %v2200
    %2245 = vmatprep.subr.mxu0 %v2197
    %2246 = vmatpush1.msra.mxu0 %v2196
    %2247 = vmatprep.subr.mxu0 %v2193
    %2248 = vmatpush1.msra.mxu0 %v2192
    %2249 = vmatprep.subr.mxu0 %v2189
    %2250 = vmatpush1.msra.mxu0 %v2188
    %2251 = vmatprep.subr.mxu0 %v2185
    %2252 = vmatpush1.msra.mxu0 %v2184
    %2253 = vmatprep.subr.mxu0 %v2181
    %2254 = vmatpush1.msra.mxu0 %v2180
    %2255 = vmatprep.subr.mxu0 %v2177
    %2256 = vmatpush1.msra.mxu0 %v2176
    %2257 = vmatprep.subr.mxu0 %v2173
    %2258 = vmatpush1.msra.mxu0 %v2172
    %2259 = vmatprep.subr.mxu0 %v2169
    %2260 = vmatpush1.msra.mxu0 %v2168
    %2261 = vmatprep.subr.mxu0 %v2165
    %2262 = vmatpush1.msra.mxu0 %v2164
    %2263 = vmatprep.subr.mxu0 0.0
    %2264 = vmatpush2.msra.mxu0 0.0
    %2265 = vmatprep.subr.mxu0 0.0
    %2266 = vmatpush2.msra.mxu0 0.0
    %2267 = vmatprep.subr.mxu0 0.0
    %2268 = vmatpush2.msra.mxu0 0.0
    %2269 = vmatprep.subr.mxu0 0.0
    %2270 = vmatpush2.msra.mxu0 0.0
    %2271 = vmatprep.subr.mxu0 0.0
    %2272 = vmatpush2.msra.mxu0 0.0
    %2273 = vmatprep.subr.mxu0 0.0
    %2274 = vmatpush2.msra.mxu0 0.0
    %2275 = vmatprep.subr.mxu0 0.0
    %2276 = vmatpush2.msra.mxu0 0.0
    %2277 = vmatprep.subr.mxu0 0.0
    %2278 = vmatpush2.msra.mxu0 0.0
    %2279 = vmatprep.subr.mxu0 0.0
    %2280 = vmatpush2.msra.mxu0 0.0
    %2281 = vmatprep.subr.mxu0 0.0
    %2282 = vmatpush2.msra.mxu0 0.0
    %2283 = vmatprep.subr.mxu0 0.0
    %2284 = vmatpush2.msra.mxu0 0.0
    %2285 = vmatprep.subr.mxu0 0.0
    %2286 = vmatpush2.msra.mxu0 0.0
    %2287 = vmatprep.subr.mxu0 0.0
    %2288 = vmatpush2.msra.mxu0 0.0
    %2289 = vmatprep.subr.mxu0 0.0
    %2290 = vmatpush2.msra.mxu0 0.0
    %2291 = vmatprep.subr.mxu0 0.0
    %2292 = vmatpush2.msra.mxu0 0.0
    %2293 = vmatprep.subr.mxu0 0.0
    %2294 = vmatpush2.msra.mxu0 0.0
    %2295 = vmatprep.mubr.f32.mxu0 0.0
    %2296 = vmatmul.mubr.f32.gmra.mxu0 %v2229
    %v2297 = vpop.f32.mrf.mxu0
    %v2298 = vadd.f32 0.0, %v2297
    %v2299 = vpop.f32.mrf.mxu0
    %v2300 = vadd.f32 0.0, %v2299
    %2301 = vdwg.mxu0
    %2302 = vmatprep.subr.mxu0 %v2227
    %2303 = vmatpush1.msra.mxu0 %v2226
    %2304 = vmatprep.subr.mxu0 %v2223
    %2305 = vmatpush1.msra.mxu0 %v2222
    %2306 = vmatprep.subr.mxu0 %v2219
    %2307 = vmatpush1.msra.mxu0 %v2218
    %2308 = vmatprep.subr.mxu0 %v2215
    %2309 = vmatpush1.msra.mxu0 %v2214
    %2310 = vmatprep.subr.mxu0 %v2211
    %2311 = vmatpush1.msra.mxu0 %v2210
    %2312 = vmatprep.subr.mxu0 %v2207
    %2313 = vmatpush1.msra.mxu0 %v2206
    %2314 = vmatprep.subr.mxu0 %v2203
    %2315 = vmatpush1.msra.mxu0 %v2202
    %2316 = vmatprep.subr.mxu0 %v2199
    %2317 = vmatpush1.msra.mxu0 %v2198
    %2318 = vmatprep.subr.mxu0 %v2195
    %2319 = vmatpush1.msra.mxu0 %v2194
    %2320 = vmatprep.subr.mxu0 %v2191
    %2321 = vmatpush1.msra.mxu0 %v2190
    %2322 = vmatprep.subr.mxu0 %v2187
    %2323 = vmatpush1.msra.mxu0 %v2186
    %2324 = vmatprep.subr.mxu0 %v2183
    %2325 = vmatpush1.msra.mxu0 %v2182
    %2326 = vmatprep.subr.mxu0 %v2179
    %2327 = vmatpush1.msra.mxu0 %v2178
    %2328 = vmatprep.subr.mxu0 %v2175
    %2329 = vmatpush1.msra.mxu0 %v2174
    %2330 = vmatprep.subr.mxu0 %v2171
    %2331 = vmatpush1.msra.mxu0 %v2170
    %2332 = vmatprep.subr.mxu0 %v2167
    %2333 = vmatpush1.msra.mxu0 %v2166
    %2334 = vmatprep.subr.mxu0 0.0
    %2335 = vmatpush2.msra.mxu0 0.0
    %2336 = vmatprep.subr.mxu0 0.0
    %2337 = vmatpush2.msra.mxu0 0.0
    %2338 = vmatprep.subr.mxu0 0.0
    %2339 = vmatpush2.msra.mxu0 0.0
    %2340 = vmatprep.subr.mxu0 0.0
    %2341 = vmatpush2.msra.mxu0 0.0
    %2342 = vmatprep.subr.mxu0 0.0
    %2343 = vmatpush2.msra.mxu0 0.0
    %2344 = vmatprep.subr.mxu0 0.0
    %2345 = vmatpush2.msra.mxu0 0.0
    %2346 = vmatprep.subr.mxu0 0.0
    %2347 = vmatpush2.msra.mxu0 0.0
    %2348 = vmatprep.subr.mxu0 0.0
    %2349 = vmatpush2.msra.mxu0 0.0
    %2350 = vmatprep.subr.mxu0 0.0
    %2351 = vmatpush2.msra.mxu0 0.0
    %2352 = vmatprep.subr.mxu0 0.0
    %2353 = vmatpush2.msra.mxu0 0.0
    %2354 = vmatprep.subr.mxu0 0.0
    %2355 = vmatpush2.msra.mxu0 0.0
    %2356 = vmatprep.subr.mxu0 0.0
    %2357 = vmatpush2.msra.mxu0 0.0
    %2358 = vmatprep.subr.mxu0 0.0
    %2359 = vmatpush2.msra.mxu0 0.0
    %2360 = vmatprep.subr.mxu0 0.0
    %2361 = vmatpush2.msra.mxu0 0.0
    %2362 = vmatprep.subr.mxu0 0.0
    %2363 = vmatpush2.msra.mxu0 0.0
    %2364 = vmatprep.subr.mxu0 0.0
    %2365 = vmatpush2.msra.mxu0 0.0
    %2366 = vmatprep.mubr.f32.mxu0 0.0
    %2367 = vmatmul.mubr.f32.gmra.mxu0 %v2229
    %v2368 = vpop.f32.mrf.mxu0
    %v2369 = vadd.f32 0.0, %v2368
    %v2370 = vpop.f32.mrf.mxu0
    %v2371 = vadd.f32 0.0, %v2370
    %2372 = vdwg.mxu0
    %v2377 = vrot.slane %v2298, 2
    %v2378 = vrot.slane %v2300, 2
    %v2379 = vrot.slane %v2369, 2
    %v2380 = vrot.slane %v2371, 2
    %v2385 = vadd.f32 %v2160, %v2377
    %v2386 = vadd.f32 %v2161, %v2378
    %v2387 = vadd.f32 %v2162, %v2379
    %v2388 = vadd.f32 %v2163, %v2380
    %v2389 = vld [vmem:[#allocation2 + $0x60] sm:$0x3]
    %v2390 = vld [vmem:[#allocation2 + $0x68] sm:$0x3]
    %v2391 = vld [vmem:[#allocation2 + $0x70] sm:$0x3]
    %v2392 = vld [vmem:[#allocation2 + $0x78] sm:$0x3]
    %v2393 = vld [vmem:[#allocation10] sm:$0xff]
    %v2394 = vld [vmem:[#allocation10 + $0x8] sm:$0xff]
    %v2395 = vld [vmem:[#allocation10 + $0x10] sm:$0xff]
    %v2396 = vld [vmem:[#allocation10 + $0x18] sm:$0xff]
    %v2397 = vld [vmem:[#allocation10 + $0x20] sm:$0xff]
    %v2398 = vld [vmem:[#allocation10 + $0x28] sm:$0xff]
    %v2399 = vld [vmem:[#allocation10 + $0x30] sm:$0xff]
    %v2400 = vld [vmem:[#allocation10 + $0x38] sm:$0xff]
    %v2401 = vld [vmem:[#allocation10 + $0x40] sm:$0xff]
    %v2402 = vld [vmem:[#allocation10 + $0x48] sm:$0xff]
    %v2403 = vld [vmem:[#allocation10 + $0x50] sm:$0xff]
    %v2404 = vld [vmem:[#allocation10 + $0x58] sm:$0xff]
    %v2405 = vld [vmem:[#allocation10 + $0x60] sm:$0xff]
    %v2406 = vld [vmem:[#allocation10 + $0x68] sm:$0xff]
    %v2407 = vld [vmem:[#allocation10 + $0x70] sm:$0xff]
    %v2408 = vld [vmem:[#allocation10 + $0x78] sm:$0xff]
    %v2409 = vld [vmem:[#allocation10 + $0x80] sm:$0xff]
    %v2410 = vld [vmem:[#allocation10 + $0x88] sm:$0xff]
    %v2411 = vld [vmem:[#allocation10 + $0x90] sm:$0xff]
    %v2412 = vld [vmem:[#allocation10 + $0x98] sm:$0xff]
    %v2413 = vld [vmem:[#allocation10 + $0xa0] sm:$0xff]
    %v2414 = vld [vmem:[#allocation10 + $0xa8] sm:$0xff]
    %v2415 = vld [vmem:[#allocation10 + $0xb0] sm:$0xff]
    %v2416 = vld [vmem:[#allocation10 + $0xb8] sm:$0xff]
    %v2417 = vld [vmem:[#allocation10 + $0xc0] sm:$0xff]
    %v2418 = vld [vmem:[#allocation10 + $0xc8] sm:$0xff]
    %v2419 = vld [vmem:[#allocation10 + $0xd0] sm:$0xff]
    %v2420 = vld [vmem:[#allocation10 + $0xd8] sm:$0xff]
    %v2421 = vld [vmem:[#allocation10 + $0xe0] sm:$0xff]
    %v2422 = vld [vmem:[#allocation10 + $0xe8] sm:$0xff]
    %v2423 = vld [vmem:[#allocation10 + $0xf0] sm:$0xff]
    %v2424 = vld [vmem:[#allocation10 + $0xf8] sm:$0xff]
    %v2425 = vld [vmem:[#allocation10 + $0x100] sm:$0xff]
    %v2426 = vld [vmem:[#allocation10 + $0x108] sm:$0xff]
    %v2427 = vld [vmem:[#allocation10 + $0x110] sm:$0xff]
    %v2428 = vld [vmem:[#allocation10 + $0x118] sm:$0xff]
    %v2429 = vld [vmem:[#allocation10 + $0x120] sm:$0xff]
    %v2430 = vld [vmem:[#allocation10 + $0x128] sm:$0xff]
    %v2431 = vld [vmem:[#allocation10 + $0x130] sm:$0xff]
    %v2432 = vld [vmem:[#allocation10 + $0x138] sm:$0xff]
    %v2433 = vld [vmem:[#allocation10 + $0x140] sm:$0xff]
    %v2434 = vld [vmem:[#allocation10 + $0x148] sm:$0xff]
    %v2435 = vld [vmem:[#allocation10 + $0x150] sm:$0xff]
    %v2436 = vld [vmem:[#allocation10 + $0x158] sm:$0xff]
    %v2437 = vld [vmem:[#allocation10 + $0x160] sm:$0xff]
    %v2438 = vld [vmem:[#allocation10 + $0x168] sm:$0xff]
    %v2439 = vld [vmem:[#allocation10 + $0x170] sm:$0xff]
    %v2440 = vld [vmem:[#allocation10 + $0x178] sm:$0xff]
    %v2441 = vld [vmem:[#allocation10 + $0x180] sm:$0xff]
    %v2442 = vld [vmem:[#allocation10 + $0x188] sm:$0xff]
    %v2443 = vld [vmem:[#allocation10 + $0x190] sm:$0xff]
    %v2444 = vld [vmem:[#allocation10 + $0x198] sm:$0xff]
    %v2445 = vld [vmem:[#allocation10 + $0x1a0] sm:$0xff]
    %v2446 = vld [vmem:[#allocation10 + $0x1a8] sm:$0xff]
    %v2447 = vld [vmem:[#allocation10 + $0x1b0] sm:$0xff]
    %v2448 = vld [vmem:[#allocation10 + $0x1b8] sm:$0xff]
    %v2449 = vld [vmem:[#allocation10 + $0x1c0] sm:$0xff]
    %v2450 = vld [vmem:[#allocation10 + $0x1c8] sm:$0xff]
    %v2451 = vld [vmem:[#allocation10 + $0x1d0] sm:$0xff]
    %v2452 = vld [vmem:[#allocation10 + $0x1d8] sm:$0xff]
    %v2453 = vld [vmem:[#allocation10 + $0x1e0] sm:$0xff]
    %v2454 = vld [vmem:[#allocation10 + $0x1e8] sm:$0xff]
    %v2455 = vld [vmem:[#allocation10 + $0x1f0] sm:$0xff]
    %v2456 = vld [vmem:[#allocation10 + $0x1f8] sm:$0xff]
    %v2458 = vrot.slane %v2157, 2
    %2460 = vmatprep.subr.mxu0 %v2454
    %2461 = vmatpush1.msra.mxu0 %v2453
    %2462 = vmatprep.subr.mxu0 %v2450
    %2463 = vmatpush1.msra.mxu0 %v2449
    %2464 = vmatprep.subr.mxu0 %v2446
    %2465 = vmatpush1.msra.mxu0 %v2445
    %2466 = vmatprep.subr.mxu0 %v2442
    %2467 = vmatpush1.msra.mxu0 %v2441
    %2468 = vmatprep.subr.mxu0 %v2438
    %2469 = vmatpush1.msra.mxu0 %v2437
    %2470 = vmatprep.subr.mxu0 %v2434
    %2471 = vmatpush1.msra.mxu0 %v2433
    %2472 = vmatprep.subr.mxu0 %v2430
    %2473 = vmatpush1.msra.mxu0 %v2429
    %2474 = vmatprep.subr.mxu0 %v2426
    %2475 = vmatpush1.msra.mxu0 %v2425
    %2476 = vmatprep.subr.mxu0 %v2422
    %2477 = vmatpush1.msra.mxu0 %v2421
    %2478 = vmatprep.subr.mxu0 %v2418
    %2479 = vmatpush1.msra.mxu0 %v2417
    %2480 = vmatprep.subr.mxu0 %v2414
    %2481 = vmatpush1.msra.mxu0 %v2413
    %2482 = vmatprep.subr.mxu0 %v2410
    %2483 = vmatpush1.msra.mxu0 %v2409
    %2484 = vmatprep.subr.mxu0 %v2406
    %2485 = vmatpush1.msra.mxu0 %v2405
    %2486 = vmatprep.subr.mxu0 %v2402
    %2487 = vmatpush1.msra.mxu0 %v2401
    %2488 = vmatprep.subr.mxu0 %v2398
    %2489 = vmatpush1.msra.mxu0 %v2397
    %2490 = vmatprep.subr.mxu0 %v2394
    %2491 = vmatpush1.msra.mxu0 %v2393
    %2492 = vmatprep.subr.mxu0 0.0
    %2493 = vmatpush2.msra.mxu0 0.0
    %2494 = vmatprep.subr.mxu0 0.0
    %2495 = vmatpush2.msra.mxu0 0.0
    %2496 = vmatprep.subr.mxu0 0.0
    %2497 = vmatpush2.msra.mxu0 0.0
    %2498 = vmatprep.subr.mxu0 0.0
    %2499 = vmatpush2.msra.mxu0 0.0
    %2500 = vmatprep.subr.mxu0 0.0
    %2501 = vmatpush2.msra.mxu0 0.0
    %2502 = vmatprep.subr.mxu0 0.0
    %2503 = vmatpush2.msra.mxu0 0.0
    %2504 = vmatprep.subr.mxu0 0.0
    %2505 = vmatpush2.msra.mxu0 0.0
    %2506 = vmatprep.subr.mxu0 0.0
    %2507 = vmatpush2.msra.mxu0 0.0
    %2508 = vmatprep.subr.mxu0 0.0
    %2509 = vmatpush2.msra.mxu0 0.0
    %2510 = vmatprep.subr.mxu0 0.0
    %2511 = vmatpush2.msra.mxu0 0.0
    %2512 = vmatprep.subr.mxu0 0.0
    %2513 = vmatpush2.msra.mxu0 0.0
    %2514 = vmatprep.subr.mxu0 0.0
    %2515 = vmatpush2.msra.mxu0 0.0
    %2516 = vmatprep.subr.mxu0 0.0
    %2517 = vmatpush2.msra.mxu0 0.0
    %2518 = vmatprep.subr.mxu0 0.0
    %2519 = vmatpush2.msra.mxu0 0.0
    %2520 = vmatprep.subr.mxu0 0.0
    %2521 = vmatpush2.msra.mxu0 0.0
    %2522 = vmatprep.subr.mxu0 0.0
    %2523 = vmatpush2.msra.mxu0 0.0
    %2524 = vmatprep.mubr.f32.mxu0 0.0
    %2525 = vmatmul.mubr.f32.gmra.mxu0 %v2458
    %v2526 = vpop.f32.mrf.mxu0
    %v2527 = vadd.f32 0.0, %v2526
    %v2528 = vpop.f32.mrf.mxu0
    %v2529 = vadd.f32 0.0, %v2528
    %2530 = vdwg.mxu0
    %2531 = vmatprep.subr.mxu0 %v2456
    %2532 = vmatpush1.msra.mxu0 %v2455
    %2533 = vmatprep.subr.mxu0 %v2452
    %2534 = vmatpush1.msra.mxu0 %v2451
    %2535 = vmatprep.subr.mxu0 %v2448
    %2536 = vmatpush1.msra.mxu0 %v2447
    %2537 = vmatprep.subr.mxu0 %v2444
    %2538 = vmatpush1.msra.mxu0 %v2443
    %2539 = vmatprep.subr.mxu0 %v2440
    %2540 = vmatpush1.msra.mxu0 %v2439
    %2541 = vmatprep.subr.mxu0 %v2436
    %2542 = vmatpush1.msra.mxu0 %v2435
    %2543 = vmatprep.subr.mxu0 %v2432
    %2544 = vmatpush1.msra.mxu0 %v2431
    %2545 = vmatprep.subr.mxu0 %v2428
    %2546 = vmatpush1.msra.mxu0 %v2427
    %2547 = vmatprep.subr.mxu0 %v2424
    %2548 = vmatpush1.msra.mxu0 %v2423
    %2549 = vmatprep.subr.mxu0 %v2420
    %2550 = vmatpush1.msra.mxu0 %v2419
    %2551 = vmatprep.subr.mxu0 %v2416
    %2552 = vmatpush1.msra.mxu0 %v2415
    %2553 = vmatprep.subr.mxu0 %v2412
    %2554 = vmatpush1.msra.mxu0 %v2411
    %2555 = vmatprep.subr.mxu0 %v2408
    %2556 = vmatpush1.msra.mxu0 %v2407
    %2557 = vmatprep.subr.mxu0 %v2404
    %2558 = vmatpush1.msra.mxu0 %v2403
    %2559 = vmatprep.subr.mxu0 %v2400
    %2560 = vmatpush1.msra.mxu0 %v2399
    %2561 = vmatprep.subr.mxu0 %v2396
    %2562 = vmatpush1.msra.mxu0 %v2395
    %2563 = vmatprep.subr.mxu0 0.0
    %2564 = vmatpush2.msra.mxu0 0.0
    %2565 = vmatprep.subr.mxu0 0.0
    %2566 = vmatpush2.msra.mxu0 0.0
    %2567 = vmatprep.subr.mxu0 0.0
    %2568 = vmatpush2.msra.mxu0 0.0
    %2569 = vmatprep.subr.mxu0 0.0
    %2570 = vmatpush2.msra.mxu0 0.0
    %2571 = vmatprep.subr.mxu0 0.0
    %2572 = vmatpush2.msra.mxu0 0.0
    %2573 = vmatprep.subr.mxu0 0.0
    %2574 = vmatpush2.msra.mxu0 0.0
    %2575 = vmatprep.subr.mxu0 0.0
    %2576 = vmatpush2.msra.mxu0 0.0
    %2577 = vmatprep.subr.mxu0 0.0
    %2578 = vmatpush2.msra.mxu0 0.0
    %2579 = vmatprep.subr.mxu0 0.0
    %2580 = vmatpush2.msra.mxu0 0.0
    %2581 = vmatprep.subr.mxu0 0.0
    %2582 = vmatpush2.msra.mxu0 0.0
    %2583 = vmatprep.subr.mxu0 0.0
    %2584 = vmatpush2.msra.mxu0 0.0
    %2585 = vmatprep.subr.mxu0 0.0
    %2586 = vmatpush2.msra.mxu0 0.0
    %2587 = vmatprep.subr.mxu0 0.0
    %2588 = vmatpush2.msra.mxu0 0.0
    %2589 = vmatprep.subr.mxu0 0.0
    %2590 = vmatpush2.msra.mxu0 0.0
    %2591 = vmatprep.subr.mxu0 0.0
    %2592 = vmatpush2.msra.mxu0 0.0
    %2593 = vmatprep.subr.mxu0 0.0
    %2594 = vmatpush2.msra.mxu0 0.0
    %2595 = vmatprep.mubr.f32.mxu0 0.0
    %2596 = vmatmul.mubr.f32.gmra.mxu0 %v2458
    %v2597 = vpop.f32.mrf.mxu0
    %v2598 = vadd.f32 0.0, %v2597
    %v2599 = vpop.f32.mrf.mxu0
    %v2600 = vadd.f32 0.0, %v2599
    %2601 = vdwg.mxu0
    %v2602 = vadd.f32 %v2389, %v2527
    %v2603 = vadd.f32 %v2390, %v2529
    %v2604 = vadd.f32 %v2391, %v2598
    %v2605 = vadd.f32 %v2392, %v2600
    %v2606 = vxor.u32 %v2385, 2147483648
    %v2607 = vmul.f32 %v2606, 1.442695
    %v2608 = vpow.pop %v2607
    %v2609 = vadd.f32 %v2608, 1.0
    %v2610 = vrcp.pop %v2609
    %v2611 = vmul.f32 1.0, %v2610
    %v2612 = vxor.u32 %v2386, 2147483648
    %v2613 = vmul.f32 %v2612, 1.442695
    %v2614 = vpow.pop %v2613
    %v2615 = vadd.f32 %v2614, 1.0
    %v2616 = vrcp.pop %v2615
    %v2617 = vmul.f32 1.0, %v2616
    %v2618 = vtanh.pop %v2387
    %v2619 = vxor.u32 %v2388, 2147483648
    %v2620 = vmul.f32 %v2619, 1.442695
    %v2621 = vpow.pop %v2620
    %v2622 = vadd.f32 %v2621, 1.0
    %v2623 = vrcp.pop %v2622
    %v2624 = vmul.f32 1.0, %v2623
    %v2626 = vrot.slane %v2128, 6
    %v2628 = vmul.f32 %v2617, %v2626
    %v2629 = vmul.f32 %v2611, %v2618
    %v2630 = vadd.f32 %v2628, %v2629
    %v2631 = vtanh.pop %v2630
    %v2632 = vmul.f32 %v2624, %v2631
    %v2633 = vxor.u32 %v2602, 2147483648
    %v2634 = vmul.f32 %v2633, 1.442695
    %v2635 = vpow.pop %v2634
    %v2636 = vadd.f32 %v2635, 1.0
    %v2637 = vrcp.pop %v2636
    %v2638 = vmul.f32 1.0, %v2637
    %v2639 = vxor.u32 %v2603, 2147483648
    %v2640 = vmul.f32 %v2639, 1.442695
    %v2641 = vpow.pop %v2640
    %v2642 = vadd.f32 %v2641, 1.0
    %v2643 = vrcp.pop %v2642
    %v2644 = vmul.f32 1.0, %v2643
    %v2645 = vtanh.pop %v2604
    %v2646 = vxor.u32 %v2605, 2147483648
    %v2647 = vmul.f32 %v2646, 1.442695
    %v2648 = vpow.pop %v2647
    %v2649 = vadd.f32 %v2648, 1.0
    %v2650 = vrcp.pop %v2649
    %v2651 = vmul.f32 1.0, %v2650
    %v2653 = vrot.slane %v2155, 2
    %v2655 = vmul.f32 %v2644, %v2653
    %v2656 = vmul.f32 %v2638, %v2645
    %v2657 = vadd.f32 %v2655, %v2656
    %v2658 = vtanh.pop %v2657
    %v2659 = vmul.f32 %v2651, %v2658
    %2660 = vst [vmem:[#allocation3] sm:$0xc0] %v2632
    %2661 = vst [vmem:[#allocation3 + $0x18] sm:$0x3] %v2659
    %v2662 = vld [vmem:[#allocation2 + $0x40] sm:$0x3]
    %v2663 = vld [vmem:[#allocation2 + $0x48] sm:$0x3]
    %v2664 = vld [vmem:[#allocation2 + $0x50] sm:$0x3]
    %v2665 = vld [vmem:[#allocation2 + $0x58] sm:$0x3]
    %v2666 = vld [vmem:[#allocation8] sm:$0xff]
    %v2667 = vld [vmem:[#allocation8 + $0x8] sm:$0xff]
    %v2668 = vld [vmem:[#allocation8 + $0x10] sm:$0xff]
    %v2669 = vld [vmem:[#allocation8 + $0x18] sm:$0xff]
    %v2670 = vld [vmem:[#allocation8 + $0x20] sm:$0xff]
    %v2671 = vld [vmem:[#allocation8 + $0x28] sm:$0xff]
    %v2672 = vld [vmem:[#allocation8 + $0x30] sm:$0xff]
    %v2673 = vld [vmem:[#allocation8 + $0x38] sm:$0xff]
    %v2674 = vld [vmem:[#allocation8 + $0x40] sm:$0xff]
    %v2675 = vld [vmem:[#allocation8 + $0x48] sm:$0xff]
    %v2676 = vld [vmem:[#allocation8 + $0x50] sm:$0xff]
    %v2677 = vld [vmem:[#allocation8 + $0x58] sm:$0xff]
    %v2678 = vld [vmem:[#allocation8 + $0x60] sm:$0xff]
    %v2679 = vld [vmem:[#allocation8 + $0x68] sm:$0xff]
    %v2680 = vld [vmem:[#allocation8 + $0x70] sm:$0xff]
    %v2681 = vld [vmem:[#allocation8 + $0x78] sm:$0xff]
    %v2682 = vld [vmem:[#allocation8 + $0x80] sm:$0xff]
    %v2683 = vld [vmem:[#allocation8 + $0x88] sm:$0xff]
    %v2684 = vld [vmem:[#allocation8 + $0x90] sm:$0xff]
    %v2685 = vld [vmem:[#allocation8 + $0x98] sm:$0xff]
    %v2686 = vld [vmem:[#allocation8 + $0xa0] sm:$0xff]
    %v2687 = vld [vmem:[#allocation8 + $0xa8] sm:$0xff]
    %v2688 = vld [vmem:[#allocation8 + $0xb0] sm:$0xff]
    %v2689 = vld [vmem:[#allocation8 + $0xb8] sm:$0xff]
    %v2690 = vld [vmem:[#allocation8 + $0xc0] sm:$0xff]
    %v2691 = vld [vmem:[#allocation8 + $0xc8] sm:$0xff]
    %v2692 = vld [vmem:[#allocation8 + $0xd0] sm:$0xff]
    %v2693 = vld [vmem:[#allocation8 + $0xd8] sm:$0xff]
    %v2694 = vld [vmem:[#allocation8 + $0xe0] sm:$0xff]
    %v2695 = vld [vmem:[#allocation8 + $0xe8] sm:$0xff]
    %v2696 = vld [vmem:[#allocation8 + $0xf0] sm:$0xff]
    %v2697 = vld [vmem:[#allocation8 + $0xf8] sm:$0xff]
    %v2698 = vld [vmem:[#allocation8 + $0x100] sm:$0xff]
    %v2699 = vld [vmem:[#allocation8 + $0x108] sm:$0xff]
    %v2700 = vld [vmem:[#allocation8 + $0x110] sm:$0xff]
    %v2701 = vld [vmem:[#allocation8 + $0x118] sm:$0xff]
    %v2702 = vld [vmem:[#allocation8 + $0x120] sm:$0xff]
    %v2703 = vld [vmem:[#allocation8 + $0x128] sm:$0xff]
    %v2704 = vld [vmem:[#allocation8 + $0x130] sm:$0xff]
    %v2705 = vld [vmem:[#allocation8 + $0x138] sm:$0xff]
    %v2706 = vld [vmem:[#allocation8 + $0x140] sm:$0xff]
    %v2707 = vld [vmem:[#allocation8 + $0x148] sm:$0xff]
    %v2708 = vld [vmem:[#allocation8 + $0x150] sm:$0xff]
    %v2709 = vld [vmem:[#allocation8 + $0x158] sm:$0xff]
    %v2710 = vld [vmem:[#allocation8 + $0x160] sm:$0xff]
    %v2711 = vld [vmem:[#allocation8 + $0x168] sm:$0xff]
    %v2712 = vld [vmem:[#allocation8 + $0x170] sm:$0xff]
    %v2713 = vld [vmem:[#allocation8 + $0x178] sm:$0xff]
    %v2714 = vld [vmem:[#allocation8 + $0x180] sm:$0xff]
    %v2715 = vld [vmem:[#allocation8 + $0x188] sm:$0xff]
    %v2716 = vld [vmem:[#allocation8 + $0x190] sm:$0xff]
    %v2717 = vld [vmem:[#allocation8 + $0x198] sm:$0xff]
    %v2718 = vld [vmem:[#allocation8 + $0x1a0] sm:$0xff]
    %v2719 = vld [vmem:[#allocation8 + $0x1a8] sm:$0xff]
    %v2720 = vld [vmem:[#allocation8 + $0x1b0] sm:$0xff]
    %v2721 = vld [vmem:[#allocation8 + $0x1b8] sm:$0xff]
    %v2722 = vld [vmem:[#allocation8 + $0x1c0] sm:$0xff]
    %v2723 = vld [vmem:[#allocation8 + $0x1c8] sm:$0xff]
    %v2724 = vld [vmem:[#allocation8 + $0x1d0] sm:$0xff]
    %v2725 = vld [vmem:[#allocation8 + $0x1d8] sm:$0xff]
    %v2726 = vld [vmem:[#allocation8 + $0x1e0] sm:$0xff]
    %v2727 = vld [vmem:[#allocation8 + $0x1e8] sm:$0xff]
    %v2728 = vld [vmem:[#allocation8 + $0x1f0] sm:$0xff]
    %v2729 = vld [vmem:[#allocation8 + $0x1f8] sm:$0xff]
    %v2731 = vrot.slane %v2632, 6
    %2733 = vmatprep.subr.mxu0 %v2727
    %2734 = vmatpush1.msra.mxu0 %v2726
    %2735 = vmatprep.subr.mxu0 %v2723
    %2736 = vmatpush1.msra.mxu0 %v2722
    %2737 = vmatprep.subr.mxu0 %v2719
    %2738 = vmatpush1.msra.mxu0 %v2718
    %2739 = vmatprep.subr.mxu0 %v2715
    %2740 = vmatpush1.msra.mxu0 %v2714
    %2741 = vmatprep.subr.mxu0 %v2711
    %2742 = vmatpush1.msra.mxu0 %v2710
    %2743 = vmatprep.subr.mxu0 %v2707
    %2744 = vmatpush1.msra.mxu0 %v2706
    %2745 = vmatprep.subr.mxu0 %v2703
    %2746 = vmatpush1.msra.mxu0 %v2702
    %2747 = vmatprep.subr.mxu0 %v2699
    %2748 = vmatpush1.msra.mxu0 %v2698
    %2749 = vmatprep.subr.mxu0 %v2695
    %2750 = vmatpush1.msra.mxu0 %v2694
    %2751 = vmatprep.subr.mxu0 %v2691
    %2752 = vmatpush1.msra.mxu0 %v2690
    %2753 = vmatprep.subr.mxu0 %v2687
    %2754 = vmatpush1.msra.mxu0 %v2686
    %2755 = vmatprep.subr.mxu0 %v2683
    %2756 = vmatpush1.msra.mxu0 %v2682
    %2757 = vmatprep.subr.mxu0 %v2679
    %2758 = vmatpush1.msra.mxu0 %v2678
    %2759 = vmatprep.subr.mxu0 %v2675
    %2760 = vmatpush1.msra.mxu0 %v2674
    %2761 = vmatprep.subr.mxu0 %v2671
    %2762 = vmatpush1.msra.mxu0 %v2670
    %2763 = vmatprep.subr.mxu0 %v2667
    %2764 = vmatpush1.msra.mxu0 %v2666
    %2765 = vmatprep.subr.mxu0 0.0
    %2766 = vmatpush2.msra.mxu0 0.0
    %2767 = vmatprep.subr.mxu0 0.0
    %2768 = vmatpush2.msra.mxu0 0.0
    %2769 = vmatprep.subr.mxu0 0.0
    %2770 = vmatpush2.msra.mxu0 0.0
    %2771 = vmatprep.subr.mxu0 0.0
    %2772 = vmatpush2.msra.mxu0 0.0
    %2773 = vmatprep.subr.mxu0 0.0
    %2774 = vmatpush2.msra.mxu0 0.0
    %2775 = vmatprep.subr.mxu0 0.0
    %2776 = vmatpush2.msra.mxu0 0.0
    %2777 = vmatprep.subr.mxu0 0.0
    %2778 = vmatpush2.msra.mxu0 0.0
    %2779 = vmatprep.subr.mxu0 0.0
    %2780 = vmatpush2.msra.mxu0 0.0
    %2781 = vmatprep.subr.mxu0 0.0
    %2782 = vmatpush2.msra.mxu0 0.0
    %2783 = vmatprep.subr.mxu0 0.0
    %2784 = vmatpush2.msra.mxu0 0.0
    %2785 = vmatprep.subr.mxu0 0.0
    %2786 = vmatpush2.msra.mxu0 0.0
    %2787 = vmatprep.subr.mxu0 0.0
    %2788 = vmatpush2.msra.mxu0 0.0
    %2789 = vmatprep.subr.mxu0 0.0
    %2790 = vmatpush2.msra.mxu0 0.0
    %2791 = vmatprep.subr.mxu0 0.0
    %2792 = vmatpush2.msra.mxu0 0.0
    %2793 = vmatprep.subr.mxu0 0.0
    %2794 = vmatpush2.msra.mxu0 0.0
    %2795 = vmatprep.subr.mxu0 0.0
    %2796 = vmatpush2.msra.mxu0 0.0
    %2797 = vmatprep.mubr.f32.mxu0 0.0
    %2798 = vmatmul.mubr.f32.gmra.mxu0 %v2731
    %v2799 = vpop.f32.mrf.mxu0
    %v2800 = vadd.f32 0.0, %v2799
    %v2801 = vpop.f32.mrf.mxu0
    %v2802 = vadd.f32 0.0, %v2801
    %2803 = vdwg.mxu0
    %2804 = vmatprep.subr.mxu0 %v2729
    %2805 = vmatpush1.msra.mxu0 %v2728
    %2806 = vmatprep.subr.mxu0 %v2725
    %2807 = vmatpush1.msra.mxu0 %v2724
    %2808 = vmatprep.subr.mxu0 %v2721
    %2809 = vmatpush1.msra.mxu0 %v2720
    %2810 = vmatprep.subr.mxu0 %v2717
    %2811 = vmatpush1.msra.mxu0 %v2716
    %2812 = vmatprep.subr.mxu0 %v2713
    %2813 = vmatpush1.msra.mxu0 %v2712
    %2814 = vmatprep.subr.mxu0 %v2709
    %2815 = vmatpush1.msra.mxu0 %v2708
    %2816 = vmatprep.subr.mxu0 %v2705
    %2817 = vmatpush1.msra.mxu0 %v2704
    %2818 = vmatprep.subr.mxu0 %v2701
    %2819 = vmatpush1.msra.mxu0 %v2700
    %2820 = vmatprep.subr.mxu0 %v2697
    %2821 = vmatpush1.msra.mxu0 %v2696
    %2822 = vmatprep.subr.mxu0 %v2693
    %2823 = vmatpush1.msra.mxu0 %v2692
    %2824 = vmatprep.subr.mxu0 %v2689
    %2825 = vmatpush1.msra.mxu0 %v2688
    %2826 = vmatprep.subr.mxu0 %v2685
    %2827 = vmatpush1.msra.mxu0 %v2684
    %2828 = vmatprep.subr.mxu0 %v2681
    %2829 = vmatpush1.msra.mxu0 %v2680
    %2830 = vmatprep.subr.mxu0 %v2677
    %2831 = vmatpush1.msra.mxu0 %v2676
    %2832 = vmatprep.subr.mxu0 %v2673
    %2833 = vmatpush1.msra.mxu0 %v2672
    %2834 = vmatprep.subr.mxu0 %v2669
    %2835 = vmatpush1.msra.mxu0 %v2668
    %2836 = vmatprep.subr.mxu0 0.0
    %2837 = vmatpush2.msra.mxu0 0.0
    %2838 = vmatprep.subr.mxu0 0.0
    %2839 = vmatpush2.msra.mxu0 0.0
    %2840 = vmatprep.subr.mxu0 0.0
    %2841 = vmatpush2.msra.mxu0 0.0
    %2842 = vmatprep.subr.mxu0 0.0
    %2843 = vmatpush2.msra.mxu0 0.0
    %2844 = vmatprep.subr.mxu0 0.0
    %2845 = vmatpush2.msra.mxu0 0.0
    %2846 = vmatprep.subr.mxu0 0.0
    %2847 = vmatpush2.msra.mxu0 0.0
    %2848 = vmatprep.subr.mxu0 0.0
    %2849 = vmatpush2.msra.mxu0 0.0
    %2850 = vmatprep.subr.mxu0 0.0
    %2851 = vmatpush2.msra.mxu0 0.0
    %2852 = vmatprep.subr.mxu0 0.0
    %2853 = vmatpush2.msra.mxu0 0.0
    %2854 = vmatprep.subr.mxu0 0.0
    %2855 = vmatpush2.msra.mxu0 0.0
    %2856 = vmatprep.subr.mxu0 0.0
    %2857 = vmatpush2.msra.mxu0 0.0
    %2858 = vmatprep.subr.mxu0 0.0
    %2859 = vmatpush2.msra.mxu0 0.0
    %2860 = vmatprep.subr.mxu0 0.0
    %2861 = vmatpush2.msra.mxu0 0.0
    %2862 = vmatprep.subr.mxu0 0.0
    %2863 = vmatpush2.msra.mxu0 0.0
    %2864 = vmatprep.subr.mxu0 0.0
    %2865 = vmatpush2.msra.mxu0 0.0
    %2866 = vmatprep.subr.mxu0 0.0
    %2867 = vmatpush2.msra.mxu0 0.0
    %2868 = vmatprep.mubr.f32.mxu0 0.0
    %2869 = vmatmul.mubr.f32.gmra.mxu0 %v2731
    %v2870 = vpop.f32.mrf.mxu0
    %v2871 = vadd.f32 0.0, %v2870
    %v2872 = vpop.f32.mrf.mxu0
    %v2873 = vadd.f32 0.0, %v2872
    %2874 = vdwg.mxu0
    %v2875 = vadd.f32 %v2662, %v2800
    %v2876 = vadd.f32 %v2663, %v2802
    %v2877 = vadd.f32 %v2664, %v2871
    %v2878 = vadd.f32 %v2665, %v2873
    %v2879 = vld [vmem:[#allocation2 + $0x20] sm:$0xc0]
    %v2880 = vld [vmem:[#allocation2 + $0x28] sm:$0xc0]
    %v2881 = vld [vmem:[#allocation2 + $0x30] sm:$0xc0]
    %v2882 = vld [vmem:[#allocation2 + $0x38] sm:$0xc0]
    %v2883 = vld [vmem:[#allocation10] sm:$0xff]
    %v2884 = vld [vmem:[#allocation10 + $0x8] sm:$0xff]
    %v2885 = vld [vmem:[#allocation10 + $0x10] sm:$0xff]
    %v2886 = vld [vmem:[#allocation10 + $0x18] sm:$0xff]
    %v2887 = vld [vmem:[#allocation10 + $0x20] sm:$0xff]
    %v2888 = vld [vmem:[#allocation10 + $0x28] sm:$0xff]
    %v2889 = vld [vmem:[#allocation10 + $0x30] sm:$0xff]
    %v2890 = vld [vmem:[#allocation10 + $0x38] sm:$0xff]
    %v2891 = vld [vmem:[#allocation10 + $0x40] sm:$0xff]
    %v2892 = vld [vmem:[#allocation10 + $0x48] sm:$0xff]
    %v2893 = vld [vmem:[#allocation10 + $0x50] sm:$0xff]
    %v2894 = vld [vmem:[#allocation10 + $0x58] sm:$0xff]
    %v2895 = vld [vmem:[#allocation10 + $0x60] sm:$0xff]
    %v2896 = vld [vmem:[#allocation10 + $0x68] sm:$0xff]
    %v2897 = vld [vmem:[#allocation10 + $0x70] sm:$0xff]
    %v2898 = vld [vmem:[#allocation10 + $0x78] sm:$0xff]
    %v2899 = vld [vmem:[#allocation10 + $0x80] sm:$0xff]
    %v2900 = vld [vmem:[#allocation10 + $0x88] sm:$0xff]
    %v2901 = vld [vmem:[#allocation10 + $0x90] sm:$0xff]
    %v2902 = vld [vmem:[#allocation10 + $0x98] sm:$0xff]
    %v2903 = vld [vmem:[#allocation10 + $0xa0] sm:$0xff]
    %v2904 = vld [vmem:[#allocation10 + $0xa8] sm:$0xff]
    %v2905 = vld [vmem:[#allocation10 + $0xb0] sm:$0xff]
    %v2906 = vld [vmem:[#allocation10 + $0xb8] sm:$0xff]
    %v2907 = vld [vmem:[#allocation10 + $0xc0] sm:$0xff]
    %v2908 = vld [vmem:[#allocation10 + $0xc8] sm:$0xff]
    %v2909 = vld [vmem:[#allocation10 + $0xd0] sm:$0xff]
    %v2910 = vld [vmem:[#allocation10 + $0xd8] sm:$0xff]
    %v2911 = vld [vmem:[#allocation10 + $0xe0] sm:$0xff]
    %v2912 = vld [vmem:[#allocation10 + $0xe8] sm:$0xff]
    %v2913 = vld [vmem:[#allocation10 + $0xf0] sm:$0xff]
    %v2914 = vld [vmem:[#allocation10 + $0xf8] sm:$0xff]
    %v2915 = vld [vmem:[#allocation10 + $0x100] sm:$0xff]
    %v2916 = vld [vmem:[#allocation10 + $0x108] sm:$0xff]
    %v2917 = vld [vmem:[#allocation10 + $0x110] sm:$0xff]
    %v2918 = vld [vmem:[#allocation10 + $0x118] sm:$0xff]
    %v2919 = vld [vmem:[#allocation10 + $0x120] sm:$0xff]
    %v2920 = vld [vmem:[#allocation10 + $0x128] sm:$0xff]
    %v2921 = vld [vmem:[#allocation10 + $0x130] sm:$0xff]
    %v2922 = vld [vmem:[#allocation10 + $0x138] sm:$0xff]
    %v2923 = vld [vmem:[#allocation10 + $0x140] sm:$0xff]
    %v2924 = vld [vmem:[#allocation10 + $0x148] sm:$0xff]
    %v2925 = vld [vmem:[#allocation10 + $0x150] sm:$0xff]
    %v2926 = vld [vmem:[#allocation10 + $0x158] sm:$0xff]
    %v2927 = vld [vmem:[#allocation10 + $0x160] sm:$0xff]
    %v2928 = vld [vmem:[#allocation10 + $0x168] sm:$0xff]
    %v2929 = vld [vmem:[#allocation10 + $0x170] sm:$0xff]
    %v2930 = vld [vmem:[#allocation10 + $0x178] sm:$0xff]
    %v2931 = vld [vmem:[#allocation10 + $0x180] sm:$0xff]
    %v2932 = vld [vmem:[#allocation10 + $0x188] sm:$0xff]
    %v2933 = vld [vmem:[#allocation10 + $0x190] sm:$0xff]
    %v2934 = vld [vmem:[#allocation10 + $0x198] sm:$0xff]
    %v2935 = vld [vmem:[#allocation10 + $0x1a0] sm:$0xff]
    %v2936 = vld [vmem:[#allocation10 + $0x1a8] sm:$0xff]
    %v2937 = vld [vmem:[#allocation10 + $0x1b0] sm:$0xff]
    %v2938 = vld [vmem:[#allocation10 + $0x1b8] sm:$0xff]
    %v2939 = vld [vmem:[#allocation10 + $0x1c0] sm:$0xff]
    %v2940 = vld [vmem:[#allocation10 + $0x1c8] sm:$0xff]
    %v2941 = vld [vmem:[#allocation10 + $0x1d0] sm:$0xff]
    %v2942 = vld [vmem:[#allocation10 + $0x1d8] sm:$0xff]
    %v2943 = vld [vmem:[#allocation10 + $0x1e0] sm:$0xff]
    %v2944 = vld [vmem:[#allocation10 + $0x1e8] sm:$0xff]
    %v2945 = vld [vmem:[#allocation10 + $0x1f0] sm:$0xff]
    %v2946 = vld [vmem:[#allocation10 + $0x1f8] sm:$0xff]
    %2947 = vmatprep.subr.mxu0 %v2944
    %2948 = vmatpush1.msra.mxu0 %v2943
    %2949 = vmatprep.subr.mxu0 %v2940
    %2950 = vmatpush1.msra.mxu0 %v2939
    %2951 = vmatprep.subr.mxu0 %v2936
    %2952 = vmatpush1.msra.mxu0 %v2935
    %2953 = vmatprep.subr.mxu0 %v2932
    %2954 = vmatpush1.msra.mxu0 %v2931
    %2955 = vmatprep.subr.mxu0 %v2928
    %2956 = vmatpush1.msra.mxu0 %v2927
    %2957 = vmatprep.subr.mxu0 %v2924
    %2958 = vmatpush1.msra.mxu0 %v2923
    %2959 = vmatprep.subr.mxu0 %v2920
    %2960 = vmatpush1.msra.mxu0 %v2919
    %2961 = vmatprep.subr.mxu0 %v2916
    %2962 = vmatpush1.msra.mxu0 %v2915
    %2963 = vmatprep.subr.mxu0 %v2912
    %2964 = vmatpush1.msra.mxu0 %v2911
    %2965 = vmatprep.subr.mxu0 %v2908
    %2966 = vmatpush1.msra.mxu0 %v2907
    %2967 = vmatprep.subr.mxu0 %v2904
    %2968 = vmatpush1.msra.mxu0 %v2903
    %2969 = vmatprep.subr.mxu0 %v2900
    %2970 = vmatpush1.msra.mxu0 %v2899
    %2971 = vmatprep.subr.mxu0 %v2896
    %2972 = vmatpush1.msra.mxu0 %v2895
    %2973 = vmatprep.subr.mxu0 %v2892
    %2974 = vmatpush1.msra.mxu0 %v2891
    %2975 = vmatprep.subr.mxu0 %v2888
    %2976 = vmatpush1.msra.mxu0 %v2887
    %2977 = vmatprep.subr.mxu0 %v2884
    %2978 = vmatpush1.msra.mxu0 %v2883
    %2979 = vmatprep.subr.mxu0 0.0
    %2980 = vmatpush2.msra.mxu0 0.0
    %2981 = vmatprep.subr.mxu0 0.0
    %2982 = vmatpush2.msra.mxu0 0.0
    %2983 = vmatprep.subr.mxu0 0.0
    %2984 = vmatpush2.msra.mxu0 0.0
    %2985 = vmatprep.subr.mxu0 0.0
    %2986 = vmatpush2.msra.mxu0 0.0
    %2987 = vmatprep.subr.mxu0 0.0
    %2988 = vmatpush2.msra.mxu0 0.0
    %2989 = vmatprep.subr.mxu0 0.0
    %2990 = vmatpush2.msra.mxu0 0.0
    %2991 = vmatprep.subr.mxu0 0.0
    %2992 = vmatpush2.msra.mxu0 0.0
    %2993 = vmatprep.subr.mxu0 0.0
    %2994 = vmatpush2.msra.mxu0 0.0
    %2995 = vmatprep.subr.mxu0 0.0
    %2996 = vmatpush2.msra.mxu0 0.0
    %2997 = vmatprep.subr.mxu0 0.0
    %2998 = vmatpush2.msra.mxu0 0.0
    %2999 = vmatprep.subr.mxu0 0.0
    %3000 = vmatpush2.msra.mxu0 0.0
    %3001 = vmatprep.subr.mxu0 0.0
    %3002 = vmatpush2.msra.mxu0 0.0
    %3003 = vmatprep.subr.mxu0 0.0
    %3004 = vmatpush2.msra.mxu0 0.0
    %3005 = vmatprep.subr.mxu0 0.0
    %3006 = vmatpush2.msra.mxu0 0.0
    %3007 = vmatprep.subr.mxu0 0.0
    %3008 = vmatpush2.msra.mxu0 0.0
    %3009 = vmatprep.subr.mxu0 0.0
    %3010 = vmatpush2.msra.mxu0 0.0
    %3011 = vmatprep.mubr.f32.mxu0 0.0
    %3012 = vmatmul.mubr.f32.gmra.mxu0 %v2659
    %v3013 = vpop.f32.mrf.mxu0
    %v3014 = vadd.f32 0.0, %v3013
    %v3015 = vpop.f32.mrf.mxu0
    %v3016 = vadd.f32 0.0, %v3015
    %3017 = vdwg.mxu0
    %3018 = vmatprep.subr.mxu0 %v2946
    %3019 = vmatpush1.msra.mxu0 %v2945
    %3020 = vmatprep.subr.mxu0 %v2942
    %3021 = vmatpush1.msra.mxu0 %v2941
    %3022 = vmatprep.subr.mxu0 %v2938
    %3023 = vmatpush1.msra.mxu0 %v2937
    %3024 = vmatprep.subr.mxu0 %v2934
    %3025 = vmatpush1.msra.mxu0 %v2933
    %3026 = vmatprep.subr.mxu0 %v2930
    %3027 = vmatpush1.msra.mxu0 %v2929
    %3028 = vmatprep.subr.mxu0 %v2926
    %3029 = vmatpush1.msra.mxu0 %v2925
    %3030 = vmatprep.subr.mxu0 %v2922
    %3031 = vmatpush1.msra.mxu0 %v2921
    %3032 = vmatprep.subr.mxu0 %v2918
    %3033 = vmatpush1.msra.mxu0 %v2917
    %3034 = vmatprep.subr.mxu0 %v2914
    %3035 = vmatpush1.msra.mxu0 %v2913
    %3036 = vmatprep.subr.mxu0 %v2910
    %3037 = vmatpush1.msra.mxu0 %v2909
    %3038 = vmatprep.subr.mxu0 %v2906
    %3039 = vmatpush1.msra.mxu0 %v2905
    %3040 = vmatprep.subr.mxu0 %v2902
    %3041 = vmatpush1.msra.mxu0 %v2901
    %3042 = vmatprep.subr.mxu0 %v2898
    %3043 = vmatpush1.msra.mxu0 %v2897
    %3044 = vmatprep.subr.mxu0 %v2894
    %3045 = vmatpush1.msra.mxu0 %v2893
    %3046 = vmatprep.subr.mxu0 %v2890
    %3047 = vmatpush1.msra.mxu0 %v2889
    %3048 = vmatprep.subr.mxu0 %v2886
    %3049 = vmatpush1.msra.mxu0 %v2885
    %3050 = vmatprep.subr.mxu0 0.0
    %3051 = vmatpush2.msra.mxu0 0.0
    %3052 = vmatprep.subr.mxu0 0.0
    %3053 = vmatpush2.msra.mxu0 0.0
    %3054 = vmatprep.subr.mxu0 0.0
    %3055 = vmatpush2.msra.mxu0 0.0
    %3056 = vmatprep.subr.mxu0 0.0
    %3057 = vmatpush2.msra.mxu0 0.0
    %3058 = vmatprep.subr.mxu0 0.0
    %3059 = vmatpush2.msra.mxu0 0.0
    %3060 = vmatprep.subr.mxu0 0.0
    %3061 = vmatpush2.msra.mxu0 0.0
    %3062 = vmatprep.subr.mxu0 0.0
    %3063 = vmatpush2.msra.mxu0 0.0
    %3064 = vmatprep.subr.mxu0 0.0
    %3065 = vmatpush2.msra.mxu0 0.0
    %3066 = vmatprep.subr.mxu0 0.0
    %3067 = vmatpush2.msra.mxu0 0.0
    %3068 = vmatprep.subr.mxu0 0.0
    %3069 = vmatpush2.msra.mxu0 0.0
    %3070 = vmatprep.subr.mxu0 0.0
    %3071 = vmatpush2.msra.mxu0 0.0
    %3072 = vmatprep.subr.mxu0 0.0
    %3073 = vmatpush2.msra.mxu0 0.0
    %3074 = vmatprep.subr.mxu0 0.0
    %3075 = vmatpush2.msra.mxu0 0.0
    %3076 = vmatprep.subr.mxu0 0.0
    %3077 = vmatpush2.msra.mxu0 0.0
    %3078 = vmatprep.subr.mxu0 0.0
    %3079 = vmatpush2.msra.mxu0 0.0
    %3080 = vmatprep.subr.mxu0 0.0
    %3081 = vmatpush2.msra.mxu0 0.0
    %3082 = vmatprep.mubr.f32.mxu0 0.0
    %3083 = vmatmul.mubr.f32.gmra.mxu0 %v2659
    %v3084 = vpop.f32.mrf.mxu0
    %v3085 = vadd.f32 0.0, %v3084
    %v3086 = vpop.f32.mrf.mxu0
    %v3087 = vadd.f32 0.0, %v3086
    %3088 = vdwg.mxu0
    %v3093 = vrot.slane %v3014, 2
    %v3094 = vrot.slane %v3016, 2
    %v3095 = vrot.slane %v3085, 2
    %v3096 = vrot.slane %v3087, 2
    %v3101 = vadd.f32 %v2879, %v3093
    %v3102 = vadd.f32 %v2880, %v3094
    %v3103 = vadd.f32 %v2881, %v3095
    %v3104 = vadd.f32 %v2882, %v3096
    %v3105 = vxor.u32 %v2875, 2147483648
    %v3106 = vmul.f32 %v3105, 1.442695
    %v3107 = vpow.pop %v3106
    %v3108 = vadd.f32 %v3107, 1.0
    %v3109 = vrcp.pop %v3108
    %v3110 = vmul.f32 1.0, %v3109
    %v3111 = vxor.u32 %v2876, 2147483648
    %v3112 = vmul.f32 %v3111, 1.442695
    %v3113 = vpow.pop %v3112
    %v3114 = vadd.f32 %v3113, 1.0
    %v3115 = vrcp.pop %v3114
    %v3116 = vmul.f32 1.0, %v3115
    %v3117 = vtanh.pop %v2877
    %v3118 = vxor.u32 %v2878, 2147483648
    %v3119 = vmul.f32 %v3118, 1.442695
    %v3120 = vpow.pop %v3119
    %v3121 = vadd.f32 %v3120, 1.0
    %v3122 = vrcp.pop %v3121
    %v3123 = vmul.f32 1.0, %v3122
    %v3125 = vrot.slane %v2630, 6
    %v3127 = vmul.f32 %v3116, %v3125
    %v3128 = vmul.f32 %v3110, %v3117
    %v3129 = vadd.f32 %v3127, %v3128
    %v3130 = vtanh.pop %v3129
    %v3131 = vmul.f32 %v3123, %v3130
    %v3132 = vxor.u32 %v3101, 2147483648
    %v3133 = vmul.f32 %v3132, 1.442695
    %v3134 = vpow.pop %v3133
    %v3135 = vadd.f32 %v3134, 1.0
    %v3136 = vrcp.pop %v3135
    %v3137 = vmul.f32 1.0, %v3136
    %v3138 = vxor.u32 %v3102, 2147483648
    %v3139 = vmul.f32 %v3138, 1.442695
    %v3140 = vpow.pop %v3139
    %v3141 = vadd.f32 %v3140, 1.0
    %v3142 = vrcp.pop %v3141
    %v3143 = vmul.f32 1.0, %v3142
    %v3144 = vtanh.pop %v3103
    %v3145 = vxor.u32 %v3104, 2147483648
    %v3146 = vmul.f32 %v3145, 1.442695
    %v3147 = vpow.pop %v3146
    %v3148 = vadd.f32 %v3147, 1.0
    %v3149 = vrcp.pop %v3148
    %v3150 = vmul.f32 1.0, %v3149
    %v3152 = vrot.slane %v2657, 2
    %v3154 = vmul.f32 %v3143, %v3152
    %v3155 = vmul.f32 %v3137, %v3144
    %v3156 = vadd.f32 %v3154, %v3155
    %v3157 = vtanh.pop %v3156
    %v3158 = vmul.f32 %v3150, %v3157
    %3159 = vst [vmem:[#allocation3 + $0x10] sm:$0x3] %v3131
    %3160 = vst [vmem:[#allocation3 + $0x8] sm:$0xc0] %v3158
    %v3161 = vld [vmem:[#allocation2 + $0x40] sm:$0xc]
    %v3162 = vld [vmem:[#allocation2 + $0x48] sm:$0xc]
    %v3163 = vld [vmem:[#allocation2 + $0x50] sm:$0xc]
    %v3164 = vld [vmem:[#allocation2 + $0x58] sm:$0xc]
    %v3165 = vld [vmem:[#allocation8] sm:$0xff]
    %v3166 = vld [vmem:[#allocation8 + $0x8] sm:$0xff]
    %v3167 = vld [vmem:[#allocation8 + $0x10] sm:$0xff]
    %v3168 = vld [vmem:[#allocation8 + $0x18] sm:$0xff]
    %v3169 = vld [vmem:[#allocation8 + $0x20] sm:$0xff]
    %v3170 = vld [vmem:[#allocation8 + $0x28] sm:$0xff]
    %v3171 = vld [vmem:[#allocation8 + $0x30] sm:$0xff]
    %v3172 = vld [vmem:[#allocation8 + $0x38] sm:$0xff]
    %v3173 = vld [vmem:[#allocation8 + $0x40] sm:$0xff]
    %v3174 = vld [vmem:[#allocation8 + $0x48] sm:$0xff]
    %v3175 = vld [vmem:[#allocation8 + $0x50] sm:$0xff]
    %v3176 = vld [vmem:[#allocation8 + $0x58] sm:$0xff]
    %v3177 = vld [vmem:[#allocation8 + $0x60] sm:$0xff]
    %v3178 = vld [vmem:[#allocation8 + $0x68] sm:$0xff]
    %v3179 = vld [vmem:[#allocation8 + $0x70] sm:$0xff]
    %v3180 = vld [vmem:[#allocation8 + $0x78] sm:$0xff]
    %v3181 = vld [vmem:[#allocation8 + $0x80] sm:$0xff]
    %v3182 = vld [vmem:[#allocation8 + $0x88] sm:$0xff]
    %v3183 = vld [vmem:[#allocation8 + $0x90] sm:$0xff]
    %v3184 = vld [vmem:[#allocation8 + $0x98] sm:$0xff]
    %v3185 = vld [vmem:[#allocation8 + $0xa0] sm:$0xff]
    %v3186 = vld [vmem:[#allocation8 + $0xa8] sm:$0xff]
    %v3187 = vld [vmem:[#allocation8 + $0xb0] sm:$0xff]
    %v3188 = vld [vmem:[#allocation8 + $0xb8] sm:$0xff]
    %v3189 = vld [vmem:[#allocation8 + $0xc0] sm:$0xff]
    %v3190 = vld [vmem:[#allocation8 + $0xc8] sm:$0xff]
    %v3191 = vld [vmem:[#allocation8 + $0xd0] sm:$0xff]
    %v3192 = vld [vmem:[#allocation8 + $0xd8] sm:$0xff]
    %v3193 = vld [vmem:[#allocation8 + $0xe0] sm:$0xff]
    %v3194 = vld [vmem:[#allocation8 + $0xe8] sm:$0xff]
    %v3195 = vld [vmem:[#allocation8 + $0xf0] sm:$0xff]
    %v3196 = vld [vmem:[#allocation8 + $0xf8] sm:$0xff]
    %v3197 = vld [vmem:[#allocation8 + $0x100] sm:$0xff]
    %v3198 = vld [vmem:[#allocation8 + $0x108] sm:$0xff]
    %v3199 = vld [vmem:[#allocation8 + $0x110] sm:$0xff]
    %v3200 = vld [vmem:[#allocation8 + $0x118] sm:$0xff]
    %v3201 = vld [vmem:[#allocation8 + $0x120] sm:$0xff]
    %v3202 = vld [vmem:[#allocation8 + $0x128] sm:$0xff]
    %v3203 = vld [vmem:[#allocation8 + $0x130] sm:$0xff]
    %v3204 = vld [vmem:[#allocation8 + $0x138] sm:$0xff]
    %v3205 = vld [vmem:[#allocation8 + $0x140] sm:$0xff]
    %v3206 = vld [vmem:[#allocation8 + $0x148] sm:$0xff]
    %v3207 = vld [vmem:[#allocation8 + $0x150] sm:$0xff]
    %v3208 = vld [vmem:[#allocation8 + $0x158] sm:$0xff]
    %v3209 = vld [vmem:[#allocation8 + $0x160] sm:$0xff]
    %v3210 = vld [vmem:[#allocation8 + $0x168] sm:$0xff]
    %v3211 = vld [vmem:[#allocation8 + $0x170] sm:$0xff]
    %v3212 = vld [vmem:[#allocation8 + $0x178] sm:$0xff]
    %v3213 = vld [vmem:[#allocation8 + $0x180] sm:$0xff]
    %v3214 = vld [vmem:[#allocation8 + $0x188] sm:$0xff]
    %v3215 = vld [vmem:[#allocation8 + $0x190] sm:$0xff]
    %v3216 = vld [vmem:[#allocation8 + $0x198] sm:$0xff]
    %v3217 = vld [vmem:[#allocation8 + $0x1a0] sm:$0xff]
    %v3218 = vld [vmem:[#allocation8 + $0x1a8] sm:$0xff]
    %v3219 = vld [vmem:[#allocation8 + $0x1b0] sm:$0xff]
    %v3220 = vld [vmem:[#allocation8 + $0x1b8] sm:$0xff]
    %v3221 = vld [vmem:[#allocation8 + $0x1c0] sm:$0xff]
    %v3222 = vld [vmem:[#allocation8 + $0x1c8] sm:$0xff]
    %v3223 = vld [vmem:[#allocation8 + $0x1d0] sm:$0xff]
    %v3224 = vld [vmem:[#allocation8 + $0x1d8] sm:$0xff]
    %v3225 = vld [vmem:[#allocation8 + $0x1e0] sm:$0xff]
    %v3226 = vld [vmem:[#allocation8 + $0x1e8] sm:$0xff]
    %v3227 = vld [vmem:[#allocation8 + $0x1f0] sm:$0xff]
    %v3228 = vld [vmem:[#allocation8 + $0x1f8] sm:$0xff]
    %3229 = vmatprep.subr.mxu0 %v3226
    %3230 = vmatpush1.msra.mxu0 %v3225
    %3231 = vmatprep.subr.mxu0 %v3222
    %3232 = vmatpush1.msra.mxu0 %v3221
    %3233 = vmatprep.subr.mxu0 %v3218
    %3234 = vmatpush1.msra.mxu0 %v3217
    %3235 = vmatprep.subr.mxu0 %v3214
    %3236 = vmatpush1.msra.mxu0 %v3213
    %3237 = vmatprep.subr.mxu0 %v3210
    %3238 = vmatpush1.msra.mxu0 %v3209
    %3239 = vmatprep.subr.mxu0 %v3206
    %3240 = vmatpush1.msra.mxu0 %v3205
    %3241 = vmatprep.subr.mxu0 %v3202
    %3242 = vmatpush1.msra.mxu0 %v3201
    %3243 = vmatprep.subr.mxu0 %v3198
    %3244 = vmatpush1.msra.mxu0 %v3197
    %3245 = vmatprep.subr.mxu0 %v3194
    %3246 = vmatpush1.msra.mxu0 %v3193
    %3247 = vmatprep.subr.mxu0 %v3190
    %3248 = vmatpush1.msra.mxu0 %v3189
    %3249 = vmatprep.subr.mxu0 %v3186
    %3250 = vmatpush1.msra.mxu0 %v3185
    %3251 = vmatprep.subr.mxu0 %v3182
    %3252 = vmatpush1.msra.mxu0 %v3181
    %3253 = vmatprep.subr.mxu0 %v3178
    %3254 = vmatpush1.msra.mxu0 %v3177
    %3255 = vmatprep.subr.mxu0 %v3174
    %3256 = vmatpush1.msra.mxu0 %v3173
    %3257 = vmatprep.subr.mxu0 %v3170
    %3258 = vmatpush1.msra.mxu0 %v3169
    %3259 = vmatprep.subr.mxu0 %v3166
    %3260 = vmatpush1.msra.mxu0 %v3165
    %3261 = vmatprep.subr.mxu0 0.0
    %3262 = vmatpush2.msra.mxu0 0.0
    %3263 = vmatprep.subr.mxu0 0.0
    %3264 = vmatpush2.msra.mxu0 0.0
    %3265 = vmatprep.subr.mxu0 0.0
    %3266 = vmatpush2.msra.mxu0 0.0
    %3267 = vmatprep.subr.mxu0 0.0
    %3268 = vmatpush2.msra.mxu0 0.0
    %3269 = vmatprep.subr.mxu0 0.0
    %3270 = vmatpush2.msra.mxu0 0.0
    %3271 = vmatprep.subr.mxu0 0.0
    %3272 = vmatpush2.msra.mxu0 0.0
    %3273 = vmatprep.subr.mxu0 0.0
    %3274 = vmatpush2.msra.mxu0 0.0
    %3275 = vmatprep.subr.mxu0 0.0
    %3276 = vmatpush2.msra.mxu0 0.0
    %3277 = vmatprep.subr.mxu0 0.0
    %3278 = vmatpush2.msra.mxu0 0.0
    %3279 = vmatprep.subr.mxu0 0.0
    %3280 = vmatpush2.msra.mxu0 0.0
    %3281 = vmatprep.subr.mxu0 0.0
    %3282 = vmatpush2.msra.mxu0 0.0
    %3283 = vmatprep.subr.mxu0 0.0
    %3284 = vmatpush2.msra.mxu0 0.0
    %3285 = vmatprep.subr.mxu0 0.0
    %3286 = vmatpush2.msra.mxu0 0.0
    %3287 = vmatprep.subr.mxu0 0.0
    %3288 = vmatpush2.msra.mxu0 0.0
    %3289 = vmatprep.subr.mxu0 0.0
    %3290 = vmatpush2.msra.mxu0 0.0
    %3291 = vmatprep.subr.mxu0 0.0
    %3292 = vmatpush2.msra.mxu0 0.0
    %3293 = vmatprep.mubr.f32.mxu0 0.0
    %3294 = vmatmul.mubr.f32.gmra.mxu0 %v3131
    %v3295 = vpop.f32.mrf.mxu0
    %v3296 = vadd.f32 0.0, %v3295
    %v3297 = vpop.f32.mrf.mxu0
    %v3298 = vadd.f32 0.0, %v3297
    %3299 = vdwg.mxu0
    %3300 = vmatprep.subr.mxu0 %v3228
    %3301 = vmatpush1.msra.mxu0 %v3227
    %3302 = vmatprep.subr.mxu0 %v3224
    %3303 = vmatpush1.msra.mxu0 %v3223
    %3304 = vmatprep.subr.mxu0 %v3220
    %3305 = vmatpush1.msra.mxu0 %v3219
    %3306 = vmatprep.subr.mxu0 %v3216
    %3307 = vmatpush1.msra.mxu0 %v3215
    %3308 = vmatprep.subr.mxu0 %v3212
    %3309 = vmatpush1.msra.mxu0 %v3211
    %3310 = vmatprep.subr.mxu0 %v3208
    %3311 = vmatpush1.msra.mxu0 %v3207
    %3312 = vmatprep.subr.mxu0 %v3204
    %3313 = vmatpush1.msra.mxu0 %v3203
    %3314 = vmatprep.subr.mxu0 %v3200
    %3315 = vmatpush1.msra.mxu0 %v3199
    %3316 = vmatprep.subr.mxu0 %v3196
    %3317 = vmatpush1.msra.mxu0 %v3195
    %3318 = vmatprep.subr.mxu0 %v3192
    %3319 = vmatpush1.msra.mxu0 %v3191
    %3320 = vmatprep.subr.mxu0 %v3188
    %3321 = vmatpush1.msra.mxu0 %v3187
    %3322 = vmatprep.subr.mxu0 %v3184
    %3323 = vmatpush1.msra.mxu0 %v3183
    %3324 = vmatprep.subr.mxu0 %v3180
    %3325 = vmatpush1.msra.mxu0 %v3179
    %3326 = vmatprep.subr.mxu0 %v3176
    %3327 = vmatpush1.msra.mxu0 %v3175
    %3328 = vmatprep.subr.mxu0 %v3172
    %3329 = vmatpush1.msra.mxu0 %v3171
    %3330 = vmatprep.subr.mxu0 %v3168
    %3331 = vmatpush1.msra.mxu0 %v3167
    %3332 = vmatprep.subr.mxu0 0.0
    %3333 = vmatpush2.msra.mxu0 0.0
    %3334 = vmatprep.subr.mxu0 0.0
    %3335 = vmatpush2.msra.mxu0 0.0
    %3336 = vmatprep.subr.mxu0 0.0
    %3337 = vmatpush2.msra.mxu0 0.0
    %3338 = vmatprep.subr.mxu0 0.0
    %3339 = vmatpush2.msra.mxu0 0.0
    %3340 = vmatprep.subr.mxu0 0.0
    %3341 = vmatpush2.msra.mxu0 0.0
    %3342 = vmatprep.subr.mxu0 0.0
    %3343 = vmatpush2.msra.mxu0 0.0
    %3344 = vmatprep.subr.mxu0 0.0
    %3345 = vmatpush2.msra.mxu0 0.0
    %3346 = vmatprep.subr.mxu0 0.0
    %3347 = vmatpush2.msra.mxu0 0.0
    %3348 = vmatprep.subr.mxu0 0.0
    %3349 = vmatpush2.msra.mxu0 0.0
    %3350 = vmatprep.subr.mxu0 0.0
    %3351 = vmatpush2.msra.mxu0 0.0
    %3352 = vmatprep.subr.mxu0 0.0
    %3353 = vmatpush2.msra.mxu0 0.0
    %3354 = vmatprep.subr.mxu0 0.0
    %3355 = vmatpush2.msra.mxu0 0.0
    %3356 = vmatprep.subr.mxu0 0.0
    %3357 = vmatpush2.msra.mxu0 0.0
    %3358 = vmatprep.subr.mxu0 0.0
    %3359 = vmatpush2.msra.mxu0 0.0
    %3360 = vmatprep.subr.mxu0 0.0
    %3361 = vmatpush2.msra.mxu0 0.0
    %3362 = vmatprep.subr.mxu0 0.0
    %3363 = vmatpush2.msra.mxu0 0.0
    %3364 = vmatprep.mubr.f32.mxu0 0.0
    %3365 = vmatmul.mubr.f32.gmra.mxu0 %v3131
    %v3366 = vpop.f32.mrf.mxu0
    %v3367 = vadd.f32 0.0, %v3366
    %v3368 = vpop.f32.mrf.mxu0
    %v3369 = vadd.f32 0.0, %v3368
    %3370 = vdwg.mxu0
    %v3375 = vrot.slane %v3296, 6
    %v3376 = vrot.slane %v3298, 6
    %v3377 = vrot.slane %v3367, 6
    %v3378 = vrot.slane %v3369, 6
    %v3383 = vadd.f32 %v3161, %v3375
    %v3384 = vadd.f32 %v3162, %v3376
    %v3385 = vadd.f32 %v3163, %v3377
    %v3386 = vadd.f32 %v3164, %v3378
    %v3387 = vld [vmem:[#allocation2 + $0x20] sm:$0x30]
    %v3388 = vld [vmem:[#allocation2 + $0x28] sm:$0x30]
    %v3389 = vld [vmem:[#allocation2 + $0x30] sm:$0x30]
    %v3390 = vld [vmem:[#allocation2 + $0x38] sm:$0x30]
    %v3391 = vld [vmem:[#allocation10] sm:$0xff]
    %v3392 = vld [vmem:[#allocation10 + $0x8] sm:$0xff]
    %v3393 = vld [vmem:[#allocation10 + $0x10] sm:$0xff]
    %v3394 = vld [vmem:[#allocation10 + $0x18] sm:$0xff]
    %v3395 = vld [vmem:[#allocation10 + $0x20] sm:$0xff]
    %v3396 = vld [vmem:[#allocation10 + $0x28] sm:$0xff]
    %v3397 = vld [vmem:[#allocation10 + $0x30] sm:$0xff]
    %v3398 = vld [vmem:[#allocation10 + $0x38] sm:$0xff]
    %v3399 = vld [vmem:[#allocation10 + $0x40] sm:$0xff]
    %v3400 = vld [vmem:[#allocation10 + $0x48] sm:$0xff]
    %v3401 = vld [vmem:[#allocation10 + $0x50] sm:$0xff]
    %v3402 = vld [vmem:[#allocation10 + $0x58] sm:$0xff]
    %v3403 = vld [vmem:[#allocation10 + $0x60] sm:$0xff]
    %v3404 = vld [vmem:[#allocation10 + $0x68] sm:$0xff]
    %v3405 = vld [vmem:[#allocation10 + $0x70] sm:$0xff]
    %v3406 = vld [vmem:[#allocation10 + $0x78] sm:$0xff]
    %v3407 = vld [vmem:[#allocation10 + $0x80] sm:$0xff]
    %v3408 = vld [vmem:[#allocation10 + $0x88] sm:$0xff]
    %v3409 = vld [vmem:[#allocation10 + $0x90] sm:$0xff]
    %v3410 = vld [vmem:[#allocation10 + $0x98] sm:$0xff]
    %v3411 = vld [vmem:[#allocation10 + $0xa0] sm:$0xff]
    %v3412 = vld [vmem:[#allocation10 + $0xa8] sm:$0xff]
    %v3413 = vld [vmem:[#allocation10 + $0xb0] sm:$0xff]
    %v3414 = vld [vmem:[#allocation10 + $0xb8] sm:$0xff]
    %v3415 = vld [vmem:[#allocation10 + $0xc0] sm:$0xff]
    %v3416 = vld [vmem:[#allocation10 + $0xc8] sm:$0xff]
    %v3417 = vld [vmem:[#allocation10 + $0xd0] sm:$0xff]
    %v3418 = vld [vmem:[#allocation10 + $0xd8] sm:$0xff]
    %v3419 = vld [vmem:[#allocation10 + $0xe0] sm:$0xff]
    %v3420 = vld [vmem:[#allocation10 + $0xe8] sm:$0xff]
    %v3421 = vld [vmem:[#allocation10 + $0xf0] sm:$0xff]
    %v3422 = vld [vmem:[#allocation10 + $0xf8] sm:$0xff]
    %v3423 = vld [vmem:[#allocation10 + $0x100] sm:$0xff]
    %v3424 = vld [vmem:[#allocation10 + $0x108] sm:$0xff]
    %v3425 = vld [vmem:[#allocation10 + $0x110] sm:$0xff]
    %v3426 = vld [vmem:[#allocation10 + $0x118] sm:$0xff]
    %v3427 = vld [vmem:[#allocation10 + $0x120] sm:$0xff]
    %v3428 = vld [vmem:[#allocation10 + $0x128] sm:$0xff]
    %v3429 = vld [vmem:[#allocation10 + $0x130] sm:$0xff]
    %v3430 = vld [vmem:[#allocation10 + $0x138] sm:$0xff]
    %v3431 = vld [vmem:[#allocation10 + $0x140] sm:$0xff]
    %v3432 = vld [vmem:[#allocation10 + $0x148] sm:$0xff]
    %v3433 = vld [vmem:[#allocation10 + $0x150] sm:$0xff]
    %v3434 = vld [vmem:[#allocation10 + $0x158] sm:$0xff]
    %v3435 = vld [vmem:[#allocation10 + $0x160] sm:$0xff]
    %v3436 = vld [vmem:[#allocation10 + $0x168] sm:$0xff]
    %v3437 = vld [vmem:[#allocation10 + $0x170] sm:$0xff]
    %v3438 = vld [vmem:[#allocation10 + $0x178] sm:$0xff]
    %v3439 = vld [vmem:[#allocation10 + $0x180] sm:$0xff]
    %v3440 = vld [vmem:[#allocation10 + $0x188] sm:$0xff]
    %v3441 = vld [vmem:[#allocation10 + $0x190] sm:$0xff]
    %v3442 = vld [vmem:[#allocation10 + $0x198] sm:$0xff]
    %v3443 = vld [vmem:[#allocation10 + $0x1a0] sm:$0xff]
    %v3444 = vld [vmem:[#allocation10 + $0x1a8] sm:$0xff]
    %v3445 = vld [vmem:[#allocation10 + $0x1b0] sm:$0xff]
    %v3446 = vld [vmem:[#allocation10 + $0x1b8] sm:$0xff]
    %v3447 = vld [vmem:[#allocation10 + $0x1c0] sm:$0xff]
    %v3448 = vld [vmem:[#allocation10 + $0x1c8] sm:$0xff]
    %v3449 = vld [vmem:[#allocation10 + $0x1d0] sm:$0xff]
    %v3450 = vld [vmem:[#allocation10 + $0x1d8] sm:$0xff]
    %v3451 = vld [vmem:[#allocation10 + $0x1e0] sm:$0xff]
    %v3452 = vld [vmem:[#allocation10 + $0x1e8] sm:$0xff]
    %v3453 = vld [vmem:[#allocation10 + $0x1f0] sm:$0xff]
    %v3454 = vld [vmem:[#allocation10 + $0x1f8] sm:$0xff]
    %v3456 = vrot.slane %v3158, 6
    %3458 = vmatprep.subr.mxu0 %v3452
    %3459 = vmatpush1.msra.mxu0 %v3451
    %3460 = vmatprep.subr.mxu0 %v3448
    %3461 = vmatpush1.msra.mxu0 %v3447
    %3462 = vmatprep.subr.mxu0 %v3444
    %3463 = vmatpush1.msra.mxu0 %v3443
    %3464 = vmatprep.subr.mxu0 %v3440
    %3465 = vmatpush1.msra.mxu0 %v3439
    %3466 = vmatprep.subr.mxu0 %v3436
    %3467 = vmatpush1.msra.mxu0 %v3435
    %3468 = vmatprep.subr.mxu0 %v3432
    %3469 = vmatpush1.msra.mxu0 %v3431
    %3470 = vmatprep.subr.mxu0 %v3428
    %3471 = vmatpush1.msra.mxu0 %v3427
    %3472 = vmatprep.subr.mxu0 %v3424
    %3473 = vmatpush1.msra.mxu0 %v3423
    %3474 = vmatprep.subr.mxu0 %v3420
    %3475 = vmatpush1.msra.mxu0 %v3419
    %3476 = vmatprep.subr.mxu0 %v3416
    %3477 = vmatpush1.msra.mxu0 %v3415
    %3478 = vmatprep.subr.mxu0 %v3412
    %3479 = vmatpush1.msra.mxu0 %v3411
    %3480 = vmatprep.subr.mxu0 %v3408
    %3481 = vmatpush1.msra.mxu0 %v3407
    %3482 = vmatprep.subr.mxu0 %v3404
    %3483 = vmatpush1.msra.mxu0 %v3403
    %3484 = vmatprep.subr.mxu0 %v3400
    %3485 = vmatpush1.msra.mxu0 %v3399
    %3486 = vmatprep.subr.mxu0 %v3396
    %3487 = vmatpush1.msra.mxu0 %v3395
    %3488 = vmatprep.subr.mxu0 %v3392
    %3489 = vmatpush1.msra.mxu0 %v3391
    %3490 = vmatprep.subr.mxu0 0.0
    %3491 = vmatpush2.msra.mxu0 0.0
    %3492 = vmatprep.subr.mxu0 0.0
    %3493 = vmatpush2.msra.mxu0 0.0
    %3494 = vmatprep.subr.mxu0 0.0
    %3495 = vmatpush2.msra.mxu0 0.0
    %3496 = vmatprep.subr.mxu0 0.0
    %3497 = vmatpush2.msra.mxu0 0.0
    %3498 = vmatprep.subr.mxu0 0.0
    %3499 = vmatpush2.msra.mxu0 0.0
    %3500 = vmatprep.subr.mxu0 0.0
    %3501 = vmatpush2.msra.mxu0 0.0
    %3502 = vmatprep.subr.mxu0 0.0
    %3503 = vmatpush2.msra.mxu0 0.0
    %3504 = vmatprep.subr.mxu0 0.0
    %3505 = vmatpush2.msra.mxu0 0.0
    %3506 = vmatprep.subr.mxu0 0.0
    %3507 = vmatpush2.msra.mxu0 0.0
    %3508 = vmatprep.subr.mxu0 0.0
    %3509 = vmatpush2.msra.mxu0 0.0
    %3510 = vmatprep.subr.mxu0 0.0
    %3511 = vmatpush2.msra.mxu0 0.0
    %3512 = vmatprep.subr.mxu0 0.0
    %3513 = vmatpush2.msra.mxu0 0.0
    %3514 = vmatprep.subr.mxu0 0.0
    %3515 = vmatpush2.msra.mxu0 0.0
    %3516 = vmatprep.subr.mxu0 0.0
    %3517 = vmatpush2.msra.mxu0 0.0
    %3518 = vmatprep.subr.mxu0 0.0
    %3519 = vmatpush2.msra.mxu0 0.0
    %3520 = vmatprep.subr.mxu0 0.0
    %3521 = vmatpush2.msra.mxu0 0.0
    %3522 = vmatprep.mubr.f32.mxu0 0.0
    %3523 = vmatmul.mubr.f32.gmra.mxu0 %v3456
    %v3524 = vpop.f32.mrf.mxu0
    %v3525 = vadd.f32 0.0, %v3524
    %v3526 = vpop.f32.mrf.mxu0
    %v3527 = vadd.f32 0.0, %v3526
    %3528 = vdwg.mxu0
    %3529 = vmatprep.subr.mxu0 %v3454
    %3530 = vmatpush1.msra.mxu0 %v3453
    %3531 = vmatprep.subr.mxu0 %v3450
    %3532 = vmatpush1.msra.mxu0 %v3449
    %3533 = vmatprep.subr.mxu0 %v3446
    %3534 = vmatpush1.msra.mxu0 %v3445
    %3535 = vmatprep.subr.mxu0 %v3442
    %3536 = vmatpush1.msra.mxu0 %v3441
    %3537 = vmatprep.subr.mxu0 %v3438
    %3538 = vmatpush1.msra.mxu0 %v3437
    %3539 = vmatprep.subr.mxu0 %v3434
    %3540 = vmatpush1.msra.mxu0 %v3433
    %3541 = vmatprep.subr.mxu0 %v3430
    %3542 = vmatpush1.msra.mxu0 %v3429
    %3543 = vmatprep.subr.mxu0 %v3426
    %3544 = vmatpush1.msra.mxu0 %v3425
    %3545 = vmatprep.subr.mxu0 %v3422
    %3546 = vmatpush1.msra.mxu0 %v3421
    %3547 = vmatprep.subr.mxu0 %v3418
    %3548 = vmatpush1.msra.mxu0 %v3417
    %3549 = vmatprep.subr.mxu0 %v3414
    %3550 = vmatpush1.msra.mxu0 %v3413
    %3551 = vmatprep.subr.mxu0 %v3410
    %3552 = vmatpush1.msra.mxu0 %v3409
    %3553 = vmatprep.subr.mxu0 %v3406
    %3554 = vmatpush1.msra.mxu0 %v3405
    %3555 = vmatprep.subr.mxu0 %v3402
    %3556 = vmatpush1.msra.mxu0 %v3401
    %3557 = vmatprep.subr.mxu0 %v3398
    %3558 = vmatpush1.msra.mxu0 %v3397
    %3559 = vmatprep.subr.mxu0 %v3394
    %3560 = vmatpush1.msra.mxu0 %v3393
    %3561 = vmatprep.subr.mxu0 0.0
    %3562 = vmatpush2.msra.mxu0 0.0
    %3563 = vmatprep.subr.mxu0 0.0
    %3564 = vmatpush2.msra.mxu0 0.0
    %3565 = vmatprep.subr.mxu0 0.0
    %3566 = vmatpush2.msra.mxu0 0.0
    %3567 = vmatprep.subr.mxu0 0.0
    %3568 = vmatpush2.msra.mxu0 0.0
    %3569 = vmatprep.subr.mxu0 0.0
    %3570 = vmatpush2.msra.mxu0 0.0
    %3571 = vmatprep.subr.mxu0 0.0
    %3572 = vmatpush2.msra.mxu0 0.0
    %3573 = vmatprep.subr.mxu0 0.0
    %3574 = vmatpush2.msra.mxu0 0.0
    %3575 = vmatprep.subr.mxu0 0.0
    %3576 = vmatpush2.msra.mxu0 0.0
    %3577 = vmatprep.subr.mxu0 0.0
    %3578 = vmatpush2.msra.mxu0 0.0
    %3579 = vmatprep.subr.mxu0 0.0
    %3580 = vmatpush2.msra.mxu0 0.0
    %3581 = vmatprep.subr.mxu0 0.0
    %3582 = vmatpush2.msra.mxu0 0.0
    %3583 = vmatprep.subr.mxu0 0.0
    %3584 = vmatpush2.msra.mxu0 0.0
    %3585 = vmatprep.subr.mxu0 0.0
    %3586 = vmatpush2.msra.mxu0 0.0
    %3587 = vmatprep.subr.mxu0 0.0
    %3588 = vmatpush2.msra.mxu0 0.0
    %3589 = vmatprep.subr.mxu0 0.0
    %3590 = vmatpush2.msra.mxu0 0.0
    %3591 = vmatprep.subr.mxu0 0.0
    %3592 = vmatpush2.msra.mxu0 0.0
    %3593 = vmatprep.mubr.f32.mxu0 0.0
    %3594 = vmatmul.mubr.f32.gmra.mxu0 %v3456
    %v3595 = vpop.f32.mrf.mxu0
    %v3596 = vadd.f32 0.0, %v3595
    %v3597 = vpop.f32.mrf.mxu0
    %v3598 = vadd.f32 0.0, %v3597
    %3599 = vdwg.mxu0
    %v3604 = vrot.slane %v3525, 4
    %v3605 = vrot.slane %v3527, 4
    %v3606 = vrot.slane %v3596, 4
    %v3607 = vrot.slane %v3598, 4
    %v3612 = vadd.f32 %v3387, %v3604
    %v3613 = vadd.f32 %v3388, %v3605
    %v3614 = vadd.f32 %v3389, %v3606
    %v3615 = vadd.f32 %v3390, %v3607
    %v3616 = vxor.u32 %v3383, 2147483648
    %v3617 = vmul.f32 %v3616, 1.442695
    %v3618 = vpow.pop %v3617
    %v3619 = vadd.f32 %v3618, 1.0
    %v3620 = vrcp.pop %v3619
    %v3621 = vmul.f32 1.0, %v3620
    %v3622 = vxor.u32 %v3384, 2147483648
    %v3623 = vmul.f32 %v3622, 1.442695
    %v3624 = vpow.pop %v3623
    %v3625 = vadd.f32 %v3624, 1.0
    %v3626 = vrcp.pop %v3625
    %v3627 = vmul.f32 1.0, %v3626
    %v3628 = vtanh.pop %v3385
    %v3629 = vxor.u32 %v3386, 2147483648
    %v3630 = vmul.f32 %v3629, 1.442695
    %v3631 = vpow.pop %v3630
    %v3632 = vadd.f32 %v3631, 1.0
    %v3633 = vrcp.pop %v3632
    %v3634 = vmul.f32 1.0, %v3633
    %v3636 = vrot.slane %v3129, 6
    %v3638 = vmul.f32 %v3627, %v3636
    %v3639 = vmul.f32 %v3621, %v3628
    %v3640 = vadd.f32 %v3638, %v3639
    %v3641 = vtanh.pop %v3640
    %v3642 = vmul.f32 %v3634, %v3641
    %v3643 = vxor.u32 %v3612, 2147483648
    %v3644 = vmul.f32 %v3643, 1.442695
    %v3645 = vpow.pop %v3644
    %v3646 = vadd.f32 %v3645, 1.0
    %v3647 = vrcp.pop %v3646
    %v3648 = vmul.f32 1.0, %v3647
    %v3649 = vxor.u32 %v3613, 2147483648
    %v3650 = vmul.f32 %v3649, 1.442695
    %v3651 = vpow.pop %v3650
    %v3652 = vadd.f32 %v3651, 1.0
    %v3653 = vrcp.pop %v3652
    %v3654 = vmul.f32 1.0, %v3653
    %v3655 = vtanh.pop %v3614
    %v3656 = vxor.u32 %v3615, 2147483648
    %v3657 = vmul.f32 %v3656, 1.442695
    %v3658 = vpow.pop %v3657
    %v3659 = vadd.f32 %v3658, 1.0
    %v3660 = vrcp.pop %v3659
    %v3661 = vmul.f32 1.0, %v3660
    %v3663 = vrot.slane %v3156, 2
    %v3665 = vmul.f32 %v3654, %v3663
    %v3666 = vmul.f32 %v3648, %v3655
    %v3667 = vadd.f32 %v3665, %v3666
    %v3668 = vtanh.pop %v3667
    %v3669 = vmul.f32 %v3661, %v3668
    %3670 = vst [vmem:[#allocation3 + $0x10] sm:$0xc] %v3642
    %3671 = vst [vmem:[#allocation3 + $0x8] sm:$0x30] %v3669
    %v3672 = vld [vmem:[#allocation2 + $0x40] sm:$0x30]
    %v3673 = vld [vmem:[#allocation2 + $0x48] sm:$0x30]
    %v3674 = vld [vmem:[#allocation2 + $0x50] sm:$0x30]
    %v3675 = vld [vmem:[#allocation2 + $0x58] sm:$0x30]
    %v3676 = vld [vmem:[#allocation8] sm:$0xff]
    %v3677 = vld [vmem:[#allocation8 + $0x8] sm:$0xff]
    %v3678 = vld [vmem:[#allocation8 + $0x10] sm:$0xff]
    %v3679 = vld [vmem:[#allocation8 + $0x18] sm:$0xff]
    %v3680 = vld [vmem:[#allocation8 + $0x20] sm:$0xff]
    %v3681 = vld [vmem:[#allocation8 + $0x28] sm:$0xff]
    %v3682 = vld [vmem:[#allocation8 + $0x30] sm:$0xff]
    %v3683 = vld [vmem:[#allocation8 + $0x38] sm:$0xff]
    %v3684 = vld [vmem:[#allocation8 + $0x40] sm:$0xff]
    %v3685 = vld [vmem:[#allocation8 + $0x48] sm:$0xff]
    %v3686 = vld [vmem:[#allocation8 + $0x50] sm:$0xff]
    %v3687 = vld [vmem:[#allocation8 + $0x58] sm:$0xff]
    %v3688 = vld [vmem:[#allocation8 + $0x60] sm:$0xff]
    %v3689 = vld [vmem:[#allocation8 + $0x68] sm:$0xff]
    %v3690 = vld [vmem:[#allocation8 + $0x70] sm:$0xff]
    %v3691 = vld [vmem:[#allocation8 + $0x78] sm:$0xff]
    %v3692 = vld [vmem:[#allocation8 + $0x80] sm:$0xff]
    %v3693 = vld [vmem:[#allocation8 + $0x88] sm:$0xff]
    %v3694 = vld [vmem:[#allocation8 + $0x90] sm:$0xff]
    %v3695 = vld [vmem:[#allocation8 + $0x98] sm:$0xff]
    %v3696 = vld [vmem:[#allocation8 + $0xa0] sm:$0xff]
    %v3697 = vld [vmem:[#allocation8 + $0xa8] sm:$0xff]
    %v3698 = vld [vmem:[#allocation8 + $0xb0] sm:$0xff]
    %v3699 = vld [vmem:[#allocation8 + $0xb8] sm:$0xff]
    %v3700 = vld [vmem:[#allocation8 + $0xc0] sm:$0xff]
    %v3701 = vld [vmem:[#allocation8 + $0xc8] sm:$0xff]
    %v3702 = vld [vmem:[#allocation8 + $0xd0] sm:$0xff]
    %v3703 = vld [vmem:[#allocation8 + $0xd8] sm:$0xff]
    %v3704 = vld [vmem:[#allocation8 + $0xe0] sm:$0xff]
    %v3705 = vld [vmem:[#allocation8 + $0xe8] sm:$0xff]
    %v3706 = vld [vmem:[#allocation8 + $0xf0] sm:$0xff]
    %v3707 = vld [vmem:[#allocation8 + $0xf8] sm:$0xff]
    %v3708 = vld [vmem:[#allocation8 + $0x100] sm:$0xff]
    %v3709 = vld [vmem:[#allocation8 + $0x108] sm:$0xff]
    %v3710 = vld [vmem:[#allocation8 + $0x110] sm:$0xff]
    %v3711 = vld [vmem:[#allocation8 + $0x118] sm:$0xff]
    %v3712 = vld [vmem:[#allocation8 + $0x120] sm:$0xff]
    %v3713 = vld [vmem:[#allocation8 + $0x128] sm:$0xff]
    %v3714 = vld [vmem:[#allocation8 + $0x130] sm:$0xff]
    %v3715 = vld [vmem:[#allocation8 + $0x138] sm:$0xff]
    %v3716 = vld [vmem:[#allocation8 + $0x140] sm:$0xff]
    %v3717 = vld [vmem:[#allocation8 + $0x148] sm:$0xff]
    %v3718 = vld [vmem:[#allocation8 + $0x150] sm:$0xff]
    %v3719 = vld [vmem:[#allocation8 + $0x158] sm:$0xff]
    %v3720 = vld [vmem:[#allocation8 + $0x160] sm:$0xff]
    %v3721 = vld [vmem:[#allocation8 + $0x168] sm:$0xff]
    %v3722 = vld [vmem:[#allocation8 + $0x170] sm:$0xff]
    %v3723 = vld [vmem:[#allocation8 + $0x178] sm:$0xff]
    %v3724 = vld [vmem:[#allocation8 + $0x180] sm:$0xff]
    %v3725 = vld [vmem:[#allocation8 + $0x188] sm:$0xff]
    %v3726 = vld [vmem:[#allocation8 + $0x190] sm:$0xff]
    %v3727 = vld [vmem:[#allocation8 + $0x198] sm:$0xff]
    %v3728 = vld [vmem:[#allocation8 + $0x1a0] sm:$0xff]
    %v3729 = vld [vmem:[#allocation8 + $0x1a8] sm:$0xff]
    %v3730 = vld [vmem:[#allocation8 + $0x1b0] sm:$0xff]
    %v3731 = vld [vmem:[#allocation8 + $0x1b8] sm:$0xff]
    %v3732 = vld [vmem:[#allocation8 + $0x1c0] sm:$0xff]
    %v3733 = vld [vmem:[#allocation8 + $0x1c8] sm:$0xff]
    %v3734 = vld [vmem:[#allocation8 + $0x1d0] sm:$0xff]
    %v3735 = vld [vmem:[#allocation8 + $0x1d8] sm:$0xff]
    %v3736 = vld [vmem:[#allocation8 + $0x1e0] sm:$0xff]
    %v3737 = vld [vmem:[#allocation8 + $0x1e8] sm:$0xff]
    %v3738 = vld [vmem:[#allocation8 + $0x1f0] sm:$0xff]
    %v3739 = vld [vmem:[#allocation8 + $0x1f8] sm:$0xff]
    %v3741 = vrot.slane %v3642, 2
    %3743 = vmatprep.subr.mxu0 %v3737
    %3744 = vmatpush1.msra.mxu0 %v3736
    %3745 = vmatprep.subr.mxu0 %v3733
    %3746 = vmatpush1.msra.mxu0 %v3732
    %3747 = vmatprep.subr.mxu0 %v3729
    %3748 = vmatpush1.msra.mxu0 %v3728
    %3749 = vmatprep.subr.mxu0 %v3725
    %3750 = vmatpush1.msra.mxu0 %v3724
    %3751 = vmatprep.subr.mxu0 %v3721
    %3752 = vmatpush1.msra.mxu0 %v3720
    %3753 = vmatprep.subr.mxu0 %v3717
    %3754 = vmatpush1.msra.mxu0 %v3716
    %3755 = vmatprep.subr.mxu0 %v3713
    %3756 = vmatpush1.msra.mxu0 %v3712
    %3757 = vmatprep.subr.mxu0 %v3709
    %3758 = vmatpush1.msra.mxu0 %v3708
    %3759 = vmatprep.subr.mxu0 %v3705
    %3760 = vmatpush1.msra.mxu0 %v3704
    %3761 = vmatprep.subr.mxu0 %v3701
    %3762 = vmatpush1.msra.mxu0 %v3700
    %3763 = vmatprep.subr.mxu0 %v3697
    %3764 = vmatpush1.msra.mxu0 %v3696
    %3765 = vmatprep.subr.mxu0 %v3693
    %3766 = vmatpush1.msra.mxu0 %v3692
    %3767 = vmatprep.subr.mxu0 %v3689
    %3768 = vmatpush1.msra.mxu0 %v3688
    %3769 = vmatprep.subr.mxu0 %v3685
    %3770 = vmatpush1.msra.mxu0 %v3684
    %3771 = vmatprep.subr.mxu0 %v3681
    %3772 = vmatpush1.msra.mxu0 %v3680
    %3773 = vmatprep.subr.mxu0 %v3677
    %3774 = vmatpush1.msra.mxu0 %v3676
    %3775 = vmatprep.subr.mxu0 0.0
    %3776 = vmatpush2.msra.mxu0 0.0
    %3777 = vmatprep.subr.mxu0 0.0
    %3778 = vmatpush2.msra.mxu0 0.0
    %3779 = vmatprep.subr.mxu0 0.0
    %3780 = vmatpush2.msra.mxu0 0.0
    %3781 = vmatprep.subr.mxu0 0.0
    %3782 = vmatpush2.msra.mxu0 0.0
    %3783 = vmatprep.subr.mxu0 0.0
    %3784 = vmatpush2.msra.mxu0 0.0
    %3785 = vmatprep.subr.mxu0 0.0
    %3786 = vmatpush2.msra.mxu0 0.0
    %3787 = vmatprep.subr.mxu0 0.0
    %3788 = vmatpush2.msra.mxu0 0.0
    %3789 = vmatprep.subr.mxu0 0.0
    %3790 = vmatpush2.msra.mxu0 0.0
    %3791 = vmatprep.subr.mxu0 0.0
    %3792 = vmatpush2.msra.mxu0 0.0
    %3793 = vmatprep.subr.mxu0 0.0
    %3794 = vmatpush2.msra.mxu0 0.0
    %3795 = vmatprep.subr.mxu0 0.0
    %3796 = vmatpush2.msra.mxu0 0.0
    %3797 = vmatprep.subr.mxu0 0.0
    %3798 = vmatpush2.msra.mxu0 0.0
    %3799 = vmatprep.subr.mxu0 0.0
    %3800 = vmatpush2.msra.mxu0 0.0
    %3801 = vmatprep.subr.mxu0 0.0
    %3802 = vmatpush2.msra.mxu0 0.0
    %3803 = vmatprep.subr.mxu0 0.0
    %3804 = vmatpush2.msra.mxu0 0.0
    %3805 = vmatprep.subr.mxu0 0.0
    %3806 = vmatpush2.msra.mxu0 0.0
    %3807 = vmatprep.mubr.f32.mxu0 0.0
    %3808 = vmatmul.mubr.f32.gmra.mxu0 %v3741
    %v3809 = vpop.f32.mrf.mxu0
    %v3810 = vadd.f32 0.0, %v3809
    %v3811 = vpop.f32.mrf.mxu0
    %v3812 = vadd.f32 0.0, %v3811
    %3813 = vdwg.mxu0
    %3814 = vmatprep.subr.mxu0 %v3739
    %3815 = vmatpush1.msra.mxu0 %v3738
    %3816 = vmatprep.subr.mxu0 %v3735
    %3817 = vmatpush1.msra.mxu0 %v3734
    %3818 = vmatprep.subr.mxu0 %v3731
    %3819 = vmatpush1.msra.mxu0 %v3730
    %3820 = vmatprep.subr.mxu0 %v3727
    %3821 = vmatpush1.msra.mxu0 %v3726
    %3822 = vmatprep.subr.mxu0 %v3723
    %3823 = vmatpush1.msra.mxu0 %v3722
    %3824 = vmatprep.subr.mxu0 %v3719
    %3825 = vmatpush1.msra.mxu0 %v3718
    %3826 = vmatprep.subr.mxu0 %v3715
    %3827 = vmatpush1.msra.mxu0 %v3714
    %3828 = vmatprep.subr.mxu0 %v3711
    %3829 = vmatpush1.msra.mxu0 %v3710
    %3830 = vmatprep.subr.mxu0 %v3707
    %3831 = vmatpush1.msra.mxu0 %v3706
    %3832 = vmatprep.subr.mxu0 %v3703
    %3833 = vmatpush1.msra.mxu0 %v3702
    %3834 = vmatprep.subr.mxu0 %v3699
    %3835 = vmatpush1.msra.mxu0 %v3698
    %3836 = vmatprep.subr.mxu0 %v3695
    %3837 = vmatpush1.msra.mxu0 %v3694
    %3838 = vmatprep.subr.mxu0 %v3691
    %3839 = vmatpush1.msra.mxu0 %v3690
    %3840 = vmatprep.subr.mxu0 %v3687
    %3841 = vmatpush1.msra.mxu0 %v3686
    %3842 = vmatprep.subr.mxu0 %v3683
    %3843 = vmatpush1.msra.mxu0 %v3682
    %3844 = vmatprep.subr.mxu0 %v3679
    %3845 = vmatpush1.msra.mxu0 %v3678
    %3846 = vmatprep.subr.mxu0 0.0
    %3847 = vmatpush2.msra.mxu0 0.0
    %3848 = vmatprep.subr.mxu0 0.0
    %3849 = vmatpush2.msra.mxu0 0.0
    %3850 = vmatprep.subr.mxu0 0.0
    %3851 = vmatpush2.msra.mxu0 0.0
    %3852 = vmatprep.subr.mxu0 0.0
    %3853 = vmatpush2.msra.mxu0 0.0
    %3854 = vmatprep.subr.mxu0 0.0
    %3855 = vmatpush2.msra.mxu0 0.0
    %3856 = vmatprep.subr.mxu0 0.0
    %3857 = vmatpush2.msra.mxu0 0.0
    %3858 = vmatprep.subr.mxu0 0.0
    %3859 = vmatpush2.msra.mxu0 0.0
    %3860 = vmatprep.subr.mxu0 0.0
    %3861 = vmatpush2.msra.mxu0 0.0
    %3862 = vmatprep.subr.mxu0 0.0
    %3863 = vmatpush2.msra.mxu0 0.0
    %3864 = vmatprep.subr.mxu0 0.0
    %3865 = vmatpush2.msra.mxu0 0.0
    %3866 = vmatprep.subr.mxu0 0.0
    %3867 = vmatpush2.msra.mxu0 0.0
    %3868 = vmatprep.subr.mxu0 0.0
    %3869 = vmatpush2.msra.mxu0 0.0
    %3870 = vmatprep.subr.mxu0 0.0
    %3871 = vmatpush2.msra.mxu0 0.0
    %3872 = vmatprep.subr.mxu0 0.0
    %3873 = vmatpush2.msra.mxu0 0.0
    %3874 = vmatprep.subr.mxu0 0.0
    %3875 = vmatpush2.msra.mxu0 0.0
    %3876 = vmatprep.subr.mxu0 0.0
    %3877 = vmatpush2.msra.mxu0 0.0
    %3878 = vmatprep.mubr.f32.mxu0 0.0
    %3879 = vmatmul.mubr.f32.gmra.mxu0 %v3741
    %v3880 = vpop.f32.mrf.mxu0
    %v3881 = vadd.f32 0.0, %v3880
    %v3882 = vpop.f32.mrf.mxu0
    %v3883 = vadd.f32 0.0, %v3882
    %3884 = vdwg.mxu0
    %v3889 = vrot.slane %v3810, 4
    %v3890 = vrot.slane %v3812, 4
    %v3891 = vrot.slane %v3881, 4
    %v3892 = vrot.slane %v3883, 4
    %v3897 = vadd.f32 %v3672, %v3889
    %v3898 = vadd.f32 %v3673, %v3890
    %v3899 = vadd.f32 %v3674, %v3891
    %v3900 = vadd.f32 %v3675, %v3892
    %v3901 = vld [vmem:[#allocation2 + $0x20] sm:$0xc]
    %v3902 = vld [vmem:[#allocation2 + $0x28] sm:$0xc]
    %v3903 = vld [vmem:[#allocation2 + $0x30] sm:$0xc]
    %v3904 = vld [vmem:[#allocation2 + $0x38] sm:$0xc]
    %v3905 = vld [vmem:[#allocation10] sm:$0xff]
    %v3906 = vld [vmem:[#allocation10 + $0x8] sm:$0xff]
    %v3907 = vld [vmem:[#allocation10 + $0x10] sm:$0xff]
    %v3908 = vld [vmem:[#allocation10 + $0x18] sm:$0xff]
    %v3909 = vld [vmem:[#allocation10 + $0x20] sm:$0xff]
    %v3910 = vld [vmem:[#allocation10 + $0x28] sm:$0xff]
    %v3911 = vld [vmem:[#allocation10 + $0x30] sm:$0xff]
    %v3912 = vld [vmem:[#allocation10 + $0x38] sm:$0xff]
    %v3913 = vld [vmem:[#allocation10 + $0x40] sm:$0xff]
    %v3914 = vld [vmem:[#allocation10 + $0x48] sm:$0xff]
    %v3915 = vld [vmem:[#allocation10 + $0x50] sm:$0xff]
    %v3916 = vld [vmem:[#allocation10 + $0x58] sm:$0xff]
    %v3917 = vld [vmem:[#allocation10 + $0x60] sm:$0xff]
    %v3918 = vld [vmem:[#allocation10 + $0x68] sm:$0xff]
    %v3919 = vld [vmem:[#allocation10 + $0x70] sm:$0xff]
    %v3920 = vld [vmem:[#allocation10 + $0x78] sm:$0xff]
    %v3921 = vld [vmem:[#allocation10 + $0x80] sm:$0xff]
    %v3922 = vld [vmem:[#allocation10 + $0x88] sm:$0xff]
    %v3923 = vld [vmem:[#allocation10 + $0x90] sm:$0xff]
    %v3924 = vld [vmem:[#allocation10 + $0x98] sm:$0xff]
    %v3925 = vld [vmem:[#allocation10 + $0xa0] sm:$0xff]
    %v3926 = vld [vmem:[#allocation10 + $0xa8] sm:$0xff]
    %v3927 = vld [vmem:[#allocation10 + $0xb0] sm:$0xff]
    %v3928 = vld [vmem:[#allocation10 + $0xb8] sm:$0xff]
    %v3929 = vld [vmem:[#allocation10 + $0xc0] sm:$0xff]
    %v3930 = vld [vmem:[#allocation10 + $0xc8] sm:$0xff]
    %v3931 = vld [vmem:[#allocation10 + $0xd0] sm:$0xff]
    %v3932 = vld [vmem:[#allocation10 + $0xd8] sm:$0xff]
    %v3933 = vld [vmem:[#allocation10 + $0xe0] sm:$0xff]
    %v3934 = vld [vmem:[#allocation10 + $0xe8] sm:$0xff]
    %v3935 = vld [vmem:[#allocation10 + $0xf0] sm:$0xff]
    %v3936 = vld [vmem:[#allocation10 + $0xf8] sm:$0xff]
    %v3937 = vld [vmem:[#allocation10 + $0x100] sm:$0xff]
    %v3938 = vld [vmem:[#allocation10 + $0x108] sm:$0xff]
    %v3939 = vld [vmem:[#allocation10 + $0x110] sm:$0xff]
    %v3940 = vld [vmem:[#allocation10 + $0x118] sm:$0xff]
    %v3941 = vld [vmem:[#allocation10 + $0x120] sm:$0xff]
    %v3942 = vld [vmem:[#allocation10 + $0x128] sm:$0xff]
    %v3943 = vld [vmem:[#allocation10 + $0x130] sm:$0xff]
    %v3944 = vld [vmem:[#allocation10 + $0x138] sm:$0xff]
    %v3945 = vld [vmem:[#allocation10 + $0x140] sm:$0xff]
    %v3946 = vld [vmem:[#allocation10 + $0x148] sm:$0xff]
    %v3947 = vld [vmem:[#allocation10 + $0x150] sm:$0xff]
    %v3948 = vld [vmem:[#allocation10 + $0x158] sm:$0xff]
    %v3949 = vld [vmem:[#allocation10 + $0x160] sm:$0xff]
    %v3950 = vld [vmem:[#allocation10 + $0x168] sm:$0xff]
    %v3951 = vld [vmem:[#allocation10 + $0x170] sm:$0xff]
    %v3952 = vld [vmem:[#allocation10 + $0x178] sm:$0xff]
    %v3953 = vld [vmem:[#allocation10 + $0x180] sm:$0xff]
    %v3954 = vld [vmem:[#allocation10 + $0x188] sm:$0xff]
    %v3955 = vld [vmem:[#allocation10 + $0x190] sm:$0xff]
    %v3956 = vld [vmem:[#allocation10 + $0x198] sm:$0xff]
    %v3957 = vld [vmem:[#allocation10 + $0x1a0] sm:$0xff]
    %v3958 = vld [vmem:[#allocation10 + $0x1a8] sm:$0xff]
    %v3959 = vld [vmem:[#allocation10 + $0x1b0] sm:$0xff]
    %v3960 = vld [vmem:[#allocation10 + $0x1b8] sm:$0xff]
    %v3961 = vld [vmem:[#allocation10 + $0x1c0] sm:$0xff]
    %v3962 = vld [vmem:[#allocation10 + $0x1c8] sm:$0xff]
    %v3963 = vld [vmem:[#allocation10 + $0x1d0] sm:$0xff]
    %v3964 = vld [vmem:[#allocation10 + $0x1d8] sm:$0xff]
    %v3965 = vld [vmem:[#allocation10 + $0x1e0] sm:$0xff]
    %v3966 = vld [vmem:[#allocation10 + $0x1e8] sm:$0xff]
    %v3967 = vld [vmem:[#allocation10 + $0x1f0] sm:$0xff]
    %v3968 = vld [vmem:[#allocation10 + $0x1f8] sm:$0xff]
    %v3970 = vrot.slane %v3669, 4
    %3972 = vmatprep.subr.mxu0 %v3966
    %3973 = vmatpush1.msra.mxu0 %v3965
    %3974 = vmatprep.subr.mxu0 %v3962
    %3975 = vmatpush1.msra.mxu0 %v3961
    %3976 = vmatprep.subr.mxu0 %v3958
    %3977 = vmatpush1.msra.mxu0 %v3957
    %3978 = vmatprep.subr.mxu0 %v3954
    %3979 = vmatpush1.msra.mxu0 %v3953
    %3980 = vmatprep.subr.mxu0 %v3950
    %3981 = vmatpush1.msra.mxu0 %v3949
    %3982 = vmatprep.subr.mxu0 %v3946
    %3983 = vmatpush1.msra.mxu0 %v3945
    %3984 = vmatprep.subr.mxu0 %v3942
    %3985 = vmatpush1.msra.mxu0 %v3941
    %3986 = vmatprep.subr.mxu0 %v3938
    %3987 = vmatpush1.msra.mxu0 %v3937
    %3988 = vmatprep.subr.mxu0 %v3934
    %3989 = vmatpush1.msra.mxu0 %v3933
    %3990 = vmatprep.subr.mxu0 %v3930
    %3991 = vmatpush1.msra.mxu0 %v3929
    %3992 = vmatprep.subr.mxu0 %v3926
    %3993 = vmatpush1.msra.mxu0 %v3925
    %3994 = vmatprep.subr.mxu0 %v3922
    %3995 = vmatpush1.msra.mxu0 %v3921
    %3996 = vmatprep.subr.mxu0 %v3918
    %3997 = vmatpush1.msra.mxu0 %v3917
    %3998 = vmatprep.subr.mxu0 %v3914
    %3999 = vmatpush1.msra.mxu0 %v3913
    %4000 = vmatprep.subr.mxu0 %v3910
    %4001 = vmatpush1.msra.mxu0 %v3909
    %4002 = vmatprep.subr.mxu0 %v3906
    %4003 = vmatpush1.msra.mxu0 %v3905
    %4004 = vmatprep.subr.mxu0 0.0
    %4005 = vmatpush2.msra.mxu0 0.0
    %4006 = vmatprep.subr.mxu0 0.0
    %4007 = vmatpush2.msra.mxu0 0.0
    %4008 = vmatprep.subr.mxu0 0.0
    %4009 = vmatpush2.msra.mxu0 0.0
    %4010 = vmatprep.subr.mxu0 0.0
    %4011 = vmatpush2.msra.mxu0 0.0
    %4012 = vmatprep.subr.mxu0 0.0
    %4013 = vmatpush2.msra.mxu0 0.0
    %4014 = vmatprep.subr.mxu0 0.0
    %4015 = vmatpush2.msra.mxu0 0.0
    %4016 = vmatprep.subr.mxu0 0.0
    %4017 = vmatpush2.msra.mxu0 0.0
    %4018 = vmatprep.subr.mxu0 0.0
    %4019 = vmatpush2.msra.mxu0 0.0
    %4020 = vmatprep.subr.mxu0 0.0
    %4021 = vmatpush2.msra.mxu0 0.0
    %4022 = vmatprep.subr.mxu0 0.0
    %4023 = vmatpush2.msra.mxu0 0.0
    %4024 = vmatprep.subr.mxu0 0.0
    %4025 = vmatpush2.msra.mxu0 0.0
    %4026 = vmatprep.subr.mxu0 0.0
    %4027 = vmatpush2.msra.mxu0 0.0
    %4028 = vmatprep.subr.mxu0 0.0
    %4029 = vmatpush2.msra.mxu0 0.0
    %4030 = vmatprep.subr.mxu0 0.0
    %4031 = vmatpush2.msra.mxu0 0.0
    %4032 = vmatprep.subr.mxu0 0.0
    %4033 = vmatpush2.msra.mxu0 0.0
    %4034 = vmatprep.subr.mxu0 0.0
    %4035 = vmatpush2.msra.mxu0 0.0
    %4036 = vmatprep.mubr.f32.mxu0 0.0
    %4037 = vmatmul.mubr.f32.gmra.mxu0 %v3970
    %v4038 = vpop.f32.mrf.mxu0
    %v4039 = vadd.f32 0.0, %v4038
    %v4040 = vpop.f32.mrf.mxu0
    %v4041 = vadd.f32 0.0, %v4040
    %4042 = vdwg.mxu0
    %4043 = vmatprep.subr.mxu0 %v3968
    %4044 = vmatpush1.msra.mxu0 %v3967
    %4045 = vmatprep.subr.mxu0 %v3964
    %4046 = vmatpush1.msra.mxu0 %v3963
    %4047 = vmatprep.subr.mxu0 %v3960
    %4048 = vmatpush1.msra.mxu0 %v3959
    %4049 = vmatprep.subr.mxu0 %v3956
    %4050 = vmatpush1.msra.mxu0 %v3955
    %4051 = vmatprep.subr.mxu0 %v3952
    %4052 = vmatpush1.msra.mxu0 %v3951
    %4053 = vmatprep.subr.mxu0 %v3948
    %4054 = vmatpush1.msra.mxu0 %v3947
    %4055 = vmatprep.subr.mxu0 %v3944
    %4056 = vmatpush1.msra.mxu0 %v3943
    %4057 = vmatprep.subr.mxu0 %v3940
    %4058 = vmatpush1.msra.mxu0 %v3939
    %4059 = vmatprep.subr.mxu0 %v3936
    %4060 = vmatpush1.msra.mxu0 %v3935
    %4061 = vmatprep.subr.mxu0 %v3932
    %4062 = vmatpush1.msra.mxu0 %v3931
    %4063 = vmatprep.subr.mxu0 %v3928
    %4064 = vmatpush1.msra.mxu0 %v3927
    %4065 = vmatprep.subr.mxu0 %v3924
    %4066 = vmatpush1.msra.mxu0 %v3923
    %4067 = vmatprep.subr.mxu0 %v3920
    %4068 = vmatpush1.msra.mxu0 %v3919
    %4069 = vmatprep.subr.mxu0 %v3916
    %4070 = vmatpush1.msra.mxu0 %v3915
    %4071 = vmatprep.subr.mxu0 %v3912
    %4072 = vmatpush1.msra.mxu0 %v3911
    %4073 = vmatprep.subr.mxu0 %v3908
    %4074 = vmatpush1.msra.mxu0 %v3907
    %4075 = vmatprep.subr.mxu0 0.0
    %4076 = vmatpush2.msra.mxu0 0.0
    %4077 = vmatprep.subr.mxu0 0.0
    %4078 = vmatpush2.msra.mxu0 0.0
    %4079 = vmatprep.subr.mxu0 0.0
    %4080 = vmatpush2.msra.mxu0 0.0
    %4081 = vmatprep.subr.mxu0 0.0
    %4082 = vmatpush2.msra.mxu0 0.0
    %4083 = vmatprep.subr.mxu0 0.0
    %4084 = vmatpush2.msra.mxu0 0.0
    %4085 = vmatprep.subr.mxu0 0.0
    %4086 = vmatpush2.msra.mxu0 0.0
    %4087 = vmatprep.subr.mxu0 0.0
    %4088 = vmatpush2.msra.mxu0 0.0
    %4089 = vmatprep.subr.mxu0 0.0
    %4090 = vmatpush2.msra.mxu0 0.0
    %4091 = vmatprep.subr.mxu0 0.0
    %4092 = vmatpush2.msra.mxu0 0.0
    %4093 = vmatprep.subr.mxu0 0.0
    %4094 = vmatpush2.msra.mxu0 0.0
    %4095 = vmatprep.subr.mxu0 0.0
    %4096 = vmatpush2.msra.mxu0 0.0
    %4097 = vmatprep.subr.mxu0 0.0
    %4098 = vmatpush2.msra.mxu0 0.0
    %4099 = vmatprep.subr.mxu0 0.0
    %4100 = vmatpush2.msra.mxu0 0.0
    %4101 = vmatprep.subr.mxu0 0.0
    %4102 = vmatpush2.msra.mxu0 0.0
    %4103 = vmatprep.subr.mxu0 0.0
    %4104 = vmatpush2.msra.mxu0 0.0
    %4105 = vmatprep.subr.mxu0 0.0
    %4106 = vmatpush2.msra.mxu0 0.0
    %4107 = vmatprep.mubr.f32.mxu0 0.0
    %4108 = vmatmul.mubr.f32.gmra.mxu0 %v3970
    %v4109 = vpop.f32.mrf.mxu0
    %v4110 = vadd.f32 0.0, %v4109
    %v4111 = vpop.f32.mrf.mxu0
    %v4112 = vadd.f32 0.0, %v4111
    %4113 = vdwg.mxu0
    %v4118 = vrot.slane %v4039, 6
    %v4119 = vrot.slane %v4041, 6
    %v4120 = vrot.slane %v4110, 6
    %v4121 = vrot.slane %v4112, 6
    %v4126 = vadd.f32 %v3901, %v4118
    %v4127 = vadd.f32 %v3902, %v4119
    %v4128 = vadd.f32 %v3903, %v4120
    %v4129 = vadd.f32 %v3904, %v4121
    %v4130 = vxor.u32 %v3897, 2147483648
    %v4131 = vmul.f32 %v4130, 1.442695
    %v4132 = vpow.pop %v4131
    %v4133 = vadd.f32 %v4132, 1.0
    %v4134 = vrcp.pop %v4133
    %v4135 = vmul.f32 1.0, %v4134
    %v4136 = vxor.u32 %v3898, 2147483648
    %v4137 = vmul.f32 %v4136, 1.442695
    %v4138 = vpow.pop %v4137
    %v4139 = vadd.f32 %v4138, 1.0
    %v4140 = vrcp.pop %v4139
    %v4141 = vmul.f32 1.0, %v4140
    %v4142 = vtanh.pop %v3899
    %v4143 = vxor.u32 %v3900, 2147483648
    %v4144 = vmul.f32 %v4143, 1.442695
    %v4145 = vpow.pop %v4144
    %v4146 = vadd.f32 %v4145, 1.0
    %v4147 = vrcp.pop %v4146
    %v4148 = vmul.f32 1.0, %v4147
    %v4150 = vrot.slane %v3640, 6
    %v4152 = vmul.f32 %v4141, %v4150
    %v4153 = vmul.f32 %v4135, %v4142
    %v4154 = vadd.f32 %v4152, %v4153
    %v4155 = vtanh.pop %v4154
    %v4156 = vmul.f32 %v4148, %v4155
    %v4157 = vxor.u32 %v4126, 2147483648
    %v4158 = vmul.f32 %v4157, 1.442695
    %v4159 = vpow.pop %v4158
    %v4160 = vadd.f32 %v4159, 1.0
    %v4161 = vrcp.pop %v4160
    %v4162 = vmul.f32 1.0, %v4161
    %v4163 = vxor.u32 %v4127, 2147483648
    %v4164 = vmul.f32 %v4163, 1.442695
    %v4165 = vpow.pop %v4164
    %v4166 = vadd.f32 %v4165, 1.0
    %v4167 = vrcp.pop %v4166
    %v4168 = vmul.f32 1.0, %v4167
    %v4169 = vtanh.pop %v4128
    %v4170 = vxor.u32 %v4129, 2147483648
    %v4171 = vmul.f32 %v4170, 1.442695
    %v4172 = vpow.pop %v4171
    %v4173 = vadd.f32 %v4172, 1.0
    %v4174 = vrcp.pop %v4173
    %v4175 = vmul.f32 1.0, %v4174
    %v4177 = vrot.slane %v3667, 2
    %v4179 = vmul.f32 %v4168, %v4177
    %v4180 = vmul.f32 %v4162, %v4169
    %v4181 = vadd.f32 %v4179, %v4180
    %v4182 = vtanh.pop %v4181
    %v4183 = vmul.f32 %v4175, %v4182
    %4184 = vst [vmem:[#allocation3 + $0x10] sm:$0x30] %v4156
    %4185 = vst [vmem:[#allocation3 + $0x8] sm:$0xc] %v4183
    %v4186 = vld [vmem:[#allocation2 + $0x40] sm:$0xc0]
    %v4187 = vld [vmem:[#allocation2 + $0x48] sm:$0xc0]
    %v4188 = vld [vmem:[#allocation2 + $0x50] sm:$0xc0]
    %v4189 = vld [vmem:[#allocation2 + $0x58] sm:$0xc0]
    %v4190 = vld [vmem:[#allocation8] sm:$0xff]
    %v4191 = vld [vmem:[#allocation8 + $0x8] sm:$0xff]
    %v4192 = vld [vmem:[#allocation8 + $0x10] sm:$0xff]
    %v4193 = vld [vmem:[#allocation8 + $0x18] sm:$0xff]
    %v4194 = vld [vmem:[#allocation8 + $0x20] sm:$0xff]
    %v4195 = vld [vmem:[#allocation8 + $0x28] sm:$0xff]
    %v4196 = vld [vmem:[#allocation8 + $0x30] sm:$0xff]
    %v4197 = vld [vmem:[#allocation8 + $0x38] sm:$0xff]
    %v4198 = vld [vmem:[#allocation8 + $0x40] sm:$0xff]
    %v4199 = vld [vmem:[#allocation8 + $0x48] sm:$0xff]
    %v4200 = vld [vmem:[#allocation8 + $0x50] sm:$0xff]
    %v4201 = vld [vmem:[#allocation8 + $0x58] sm:$0xff]
    %v4202 = vld [vmem:[#allocation8 + $0x60] sm:$0xff]
    %v4203 = vld [vmem:[#allocation8 + $0x68] sm:$0xff]
    %v4204 = vld [vmem:[#allocation8 + $0x70] sm:$0xff]
    %v4205 = vld [vmem:[#allocation8 + $0x78] sm:$0xff]
    %v4206 = vld [vmem:[#allocation8 + $0x80] sm:$0xff]
    %v4207 = vld [vmem:[#allocation8 + $0x88] sm:$0xff]
    %v4208 = vld [vmem:[#allocation8 + $0x90] sm:$0xff]
    %v4209 = vld [vmem:[#allocation8 + $0x98] sm:$0xff]
    %v4210 = vld [vmem:[#allocation8 + $0xa0] sm:$0xff]
    %v4211 = vld [vmem:[#allocation8 + $0xa8] sm:$0xff]
    %v4212 = vld [vmem:[#allocation8 + $0xb0] sm:$0xff]
    %v4213 = vld [vmem:[#allocation8 + $0xb8] sm:$0xff]
    %v4214 = vld [vmem:[#allocation8 + $0xc0] sm:$0xff]
    %v4215 = vld [vmem:[#allocation8 + $0xc8] sm:$0xff]
    %v4216 = vld [vmem:[#allocation8 + $0xd0] sm:$0xff]
    %v4217 = vld [vmem:[#allocation8 + $0xd8] sm:$0xff]
    %v4218 = vld [vmem:[#allocation8 + $0xe0] sm:$0xff]
    %v4219 = vld [vmem:[#allocation8 + $0xe8] sm:$0xff]
    %v4220 = vld [vmem:[#allocation8 + $0xf0] sm:$0xff]
    %v4221 = vld [vmem:[#allocation8 + $0xf8] sm:$0xff]
    %v4222 = vld [vmem:[#allocation8 + $0x100] sm:$0xff]
    %v4223 = vld [vmem:[#allocation8 + $0x108] sm:$0xff]
    %v4224 = vld [vmem:[#allocation8 + $0x110] sm:$0xff]
    %v4225 = vld [vmem:[#allocation8 + $0x118] sm:$0xff]
    %v4226 = vld [vmem:[#allocation8 + $0x120] sm:$0xff]
    %v4227 = vld [vmem:[#allocation8 + $0x128] sm:$0xff]
    %v4228 = vld [vmem:[#allocation8 + $0x130] sm:$0xff]
    %v4229 = vld [vmem:[#allocation8 + $0x138] sm:$0xff]
    %v4230 = vld [vmem:[#allocation8 + $0x140] sm:$0xff]
    %v4231 = vld [vmem:[#allocation8 + $0x148] sm:$0xff]
    %v4232 = vld [vmem:[#allocation8 + $0x150] sm:$0xff]
    %v4233 = vld [vmem:[#allocation8 + $0x158] sm:$0xff]
    %v4234 = vld [vmem:[#allocation8 + $0x160] sm:$0xff]
    %v4235 = vld [vmem:[#allocation8 + $0x168] sm:$0xff]
    %v4236 = vld [vmem:[#allocation8 + $0x170] sm:$0xff]
    %v4237 = vld [vmem:[#allocation8 + $0x178] sm:$0xff]
    %v4238 = vld [vmem:[#allocation8 + $0x180] sm:$0xff]
    %v4239 = vld [vmem:[#allocation8 + $0x188] sm:$0xff]
    %v4240 = vld [vmem:[#allocation8 + $0x190] sm:$0xff]
    %v4241 = vld [vmem:[#allocation8 + $0x198] sm:$0xff]
    %v4242 = vld [vmem:[#allocation8 + $0x1a0] sm:$0xff]
    %v4243 = vld [vmem:[#allocation8 + $0x1a8] sm:$0xff]
    %v4244 = vld [vmem:[#allocation8 + $0x1b0] sm:$0xff]
    %v4245 = vld [vmem:[#allocation8 + $0x1b8] sm:$0xff]
    %v4246 = vld [vmem:[#allocation8 + $0x1c0] sm:$0xff]
    %v4247 = vld [vmem:[#allocation8 + $0x1c8] sm:$0xff]
    %v4248 = vld [vmem:[#allocation8 + $0x1d0] sm:$0xff]
    %v4249 = vld [vmem:[#allocation8 + $0x1d8] sm:$0xff]
    %v4250 = vld [vmem:[#allocation8 + $0x1e0] sm:$0xff]
    %v4251 = vld [vmem:[#allocation8 + $0x1e8] sm:$0xff]
    %v4252 = vld [vmem:[#allocation8 + $0x1f0] sm:$0xff]
    %v4253 = vld [vmem:[#allocation8 + $0x1f8] sm:$0xff]
    %v4255 = vrot.slane %v4156, 4
    %4257 = vmatprep.subr.mxu0 %v4251
    %4258 = vmatpush1.msra.mxu0 %v4250
    %4259 = vmatprep.subr.mxu0 %v4247
    %4260 = vmatpush1.msra.mxu0 %v4246
    %4261 = vmatprep.subr.mxu0 %v4243
    %4262 = vmatpush1.msra.mxu0 %v4242
    %4263 = vmatprep.subr.mxu0 %v4239
    %4264 = vmatpush1.msra.mxu0 %v4238
    %4265 = vmatprep.subr.mxu0 %v4235
    %4266 = vmatpush1.msra.mxu0 %v4234
    %4267 = vmatprep.subr.mxu0 %v4231
    %4268 = vmatpush1.msra.mxu0 %v4230
    %4269 = vmatprep.subr.mxu0 %v4227
    %4270 = vmatpush1.msra.mxu0 %v4226
    %4271 = vmatprep.subr.mxu0 %v4223
    %4272 = vmatpush1.msra.mxu0 %v4222
    %4273 = vmatprep.subr.mxu0 %v4219
    %4274 = vmatpush1.msra.mxu0 %v4218
    %4275 = vmatprep.subr.mxu0 %v4215
    %4276 = vmatpush1.msra.mxu0 %v4214
    %4277 = vmatprep.subr.mxu0 %v4211
    %4278 = vmatpush1.msra.mxu0 %v4210
    %4279 = vmatprep.subr.mxu0 %v4207
    %4280 = vmatpush1.msra.mxu0 %v4206
    %4281 = vmatprep.subr.mxu0 %v4203
    %4282 = vmatpush1.msra.mxu0 %v4202
    %4283 = vmatprep.subr.mxu0 %v4199
    %4284 = vmatpush1.msra.mxu0 %v4198
    %4285 = vmatprep.subr.mxu0 %v4195
    %4286 = vmatpush1.msra.mxu0 %v4194
    %4287 = vmatprep.subr.mxu0 %v4191
    %4288 = vmatpush1.msra.mxu0 %v4190
    %4289 = vmatprep.subr.mxu0 0.0
    %4290 = vmatpush2.msra.mxu0 0.0
    %4291 = vmatprep.subr.mxu0 0.0
    %4292 = vmatpush2.msra.mxu0 0.0
    %4293 = vmatprep.subr.mxu0 0.0
    %4294 = vmatpush2.msra.mxu0 0.0
    %4295 = vmatprep.subr.mxu0 0.0
    %4296 = vmatpush2.msra.mxu0 0.0
    %4297 = vmatprep.subr.mxu0 0.0
    %4298 = vmatpush2.msra.mxu0 0.0
    %4299 = vmatprep.subr.mxu0 0.0
    %4300 = vmatpush2.msra.mxu0 0.0
    %4301 = vmatprep.subr.mxu0 0.0
    %4302 = vmatpush2.msra.mxu0 0.0
    %4303 = vmatprep.subr.mxu0 0.0
    %4304 = vmatpush2.msra.mxu0 0.0
    %4305 = vmatprep.subr.mxu0 0.0
    %4306 = vmatpush2.msra.mxu0 0.0
    %4307 = vmatprep.subr.mxu0 0.0
    %4308 = vmatpush2.msra.mxu0 0.0
    %4309 = vmatprep.subr.mxu0 0.0
    %4310 = vmatpush2.msra.mxu0 0.0
    %4311 = vmatprep.subr.mxu0 0.0
    %4312 = vmatpush2.msra.mxu0 0.0
    %4313 = vmatprep.subr.mxu0 0.0
    %4314 = vmatpush2.msra.mxu0 0.0
    %4315 = vmatprep.subr.mxu0 0.0
    %4316 = vmatpush2.msra.mxu0 0.0
    %4317 = vmatprep.subr.mxu0 0.0
    %4318 = vmatpush2.msra.mxu0 0.0
    %4319 = vmatprep.subr.mxu0 0.0
    %4320 = vmatpush2.msra.mxu0 0.0
    %4321 = vmatprep.mubr.f32.mxu0 0.0
    %4322 = vmatmul.mubr.f32.gmra.mxu0 %v4255
    %v4323 = vpop.f32.mrf.mxu0
    %v4324 = vadd.f32 0.0, %v4323
    %v4325 = vpop.f32.mrf.mxu0
    %v4326 = vadd.f32 0.0, %v4325
    %4327 = vdwg.mxu0
    %4328 = vmatprep.subr.mxu0 %v4253
    %4329 = vmatpush1.msra.mxu0 %v4252
    %4330 = vmatprep.subr.mxu0 %v4249
    %4331 = vmatpush1.msra.mxu0 %v4248
    %4332 = vmatprep.subr.mxu0 %v4245
    %4333 = vmatpush1.msra.mxu0 %v4244
    %4334 = vmatprep.subr.mxu0 %v4241
    %4335 = vmatpush1.msra.mxu0 %v4240
    %4336 = vmatprep.subr.mxu0 %v4237
    %4337 = vmatpush1.msra.mxu0 %v4236
    %4338 = vmatprep.subr.mxu0 %v4233
    %4339 = vmatpush1.msra.mxu0 %v4232
    %4340 = vmatprep.subr.mxu0 %v4229
    %4341 = vmatpush1.msra.mxu0 %v4228
    %4342 = vmatprep.subr.mxu0 %v4225
    %4343 = vmatpush1.msra.mxu0 %v4224
    %4344 = vmatprep.subr.mxu0 %v4221
    %4345 = vmatpush1.msra.mxu0 %v4220
    %4346 = vmatprep.subr.mxu0 %v4217
    %4347 = vmatpush1.msra.mxu0 %v4216
    %4348 = vmatprep.subr.mxu0 %v4213
    %4349 = vmatpush1.msra.mxu0 %v4212
    %4350 = vmatprep.subr.mxu0 %v4209
    %4351 = vmatpush1.msra.mxu0 %v4208
    %4352 = vmatprep.subr.mxu0 %v4205
    %4353 = vmatpush1.msra.mxu0 %v4204
    %4354 = vmatprep.subr.mxu0 %v4201
    %4355 = vmatpush1.msra.mxu0 %v4200
    %4356 = vmatprep.subr.mxu0 %v4197
    %4357 = vmatpush1.msra.mxu0 %v4196
    %4358 = vmatprep.subr.mxu0 %v4193
    %4359 = vmatpush1.msra.mxu0 %v4192
    %4360 = vmatprep.subr.mxu0 0.0
    %4361 = vmatpush2.msra.mxu0 0.0
    %4362 = vmatprep.subr.mxu0 0.0
    %4363 = vmatpush2.msra.mxu0 0.0
    %4364 = vmatprep.subr.mxu0 0.0
    %4365 = vmatpush2.msra.mxu0 0.0
    %4366 = vmatprep.subr.mxu0 0.0
    %4367 = vmatpush2.msra.mxu0 0.0
    %4368 = vmatprep.subr.mxu0 0.0
    %4369 = vmatpush2.msra.mxu0 0.0
    %4370 = vmatprep.subr.mxu0 0.0
    %4371 = vmatpush2.msra.mxu0 0.0
    %4372 = vmatprep.subr.mxu0 0.0
    %4373 = vmatpush2.msra.mxu0 0.0
    %4374 = vmatprep.subr.mxu0 0.0
    %4375 = vmatpush2.msra.mxu0 0.0
    %4376 = vmatprep.subr.mxu0 0.0
    %4377 = vmatpush2.msra.mxu0 0.0
    %4378 = vmatprep.subr.mxu0 0.0
    %4379 = vmatpush2.msra.mxu0 0.0
    %4380 = vmatprep.subr.mxu0 0.0
    %4381 = vmatpush2.msra.mxu0 0.0
    %4382 = vmatprep.subr.mxu0 0.0
    %4383 = vmatpush2.msra.mxu0 0.0
    %4384 = vmatprep.subr.mxu0 0.0
    %4385 = vmatpush2.msra.mxu0 0.0
    %4386 = vmatprep.subr.mxu0 0.0
    %4387 = vmatpush2.msra.mxu0 0.0
    %4388 = vmatprep.subr.mxu0 0.0
    %4389 = vmatpush2.msra.mxu0 0.0
    %4390 = vmatprep.subr.mxu0 0.0
    %4391 = vmatpush2.msra.mxu0 0.0
    %4392 = vmatprep.mubr.f32.mxu0 0.0
    %4393 = vmatmul.mubr.f32.gmra.mxu0 %v4255
    %v4394 = vpop.f32.mrf.mxu0
    %v4395 = vadd.f32 0.0, %v4394
    %v4396 = vpop.f32.mrf.mxu0
    %v4397 = vadd.f32 0.0, %v4396
    %4398 = vdwg.mxu0
    %v4403 = vrot.slane %v4324, 2
    %v4404 = vrot.slane %v4326, 2
    %v4405 = vrot.slane %v4395, 2
    %v4406 = vrot.slane %v4397, 2
    %v4411 = vadd.f32 %v4186, %v4403
    %v4412 = vadd.f32 %v4187, %v4404
    %v4413 = vadd.f32 %v4188, %v4405
    %v4414 = vadd.f32 %v4189, %v4406
    %v4415 = vld [vmem:[#allocation2 + $0x20] sm:$0x3]
    %v4416 = vld [vmem:[#allocation2 + $0x28] sm:$0x3]
    %v4417 = vld [vmem:[#allocation2 + $0x30] sm:$0x3]
    %v4418 = vld [vmem:[#allocation2 + $0x38] sm:$0x3]
    %v4419 = vld [vmem:[#allocation10] sm:$0xff]
    %v4420 = vld [vmem:[#allocation10 + $0x8] sm:$0xff]
    %v4421 = vld [vmem:[#allocation10 + $0x10] sm:$0xff]
    %v4422 = vld [vmem:[#allocation10 + $0x18] sm:$0xff]
    %v4423 = vld [vmem:[#allocation10 + $0x20] sm:$0xff]
    %v4424 = vld [vmem:[#allocation10 + $0x28] sm:$0xff]
    %v4425 = vld [vmem:[#allocation10 + $0x30] sm:$0xff]
    %v4426 = vld [vmem:[#allocation10 + $0x38] sm:$0xff]
    %v4427 = vld [vmem:[#allocation10 + $0x40] sm:$0xff]
    %v4428 = vld [vmem:[#allocation10 + $0x48] sm:$0xff]
    %v4429 = vld [vmem:[#allocation10 + $0x50] sm:$0xff]
    %v4430 = vld [vmem:[#allocation10 + $0x58] sm:$0xff]
    %v4431 = vld [vmem:[#allocation10 + $0x60] sm:$0xff]
    %v4432 = vld [vmem:[#allocation10 + $0x68] sm:$0xff]
    %v4433 = vld [vmem:[#allocation10 + $0x70] sm:$0xff]
    %v4434 = vld [vmem:[#allocation10 + $0x78] sm:$0xff]
    %v4435 = vld [vmem:[#allocation10 + $0x80] sm:$0xff]
    %v4436 = vld [vmem:[#allocation10 + $0x88] sm:$0xff]
    %v4437 = vld [vmem:[#allocation10 + $0x90] sm:$0xff]
    %v4438 = vld [vmem:[#allocation10 + $0x98] sm:$0xff]
    %v4439 = vld [vmem:[#allocation10 + $0xa0] sm:$0xff]
    %v4440 = vld [vmem:[#allocation10 + $0xa8] sm:$0xff]
    %v4441 = vld [vmem:[#allocation10 + $0xb0] sm:$0xff]
    %v4442 = vld [vmem:[#allocation10 + $0xb8] sm:$0xff]
    %v4443 = vld [vmem:[#allocation10 + $0xc0] sm:$0xff]
    %v4444 = vld [vmem:[#allocation10 + $0xc8] sm:$0xff]
    %v4445 = vld [vmem:[#allocation10 + $0xd0] sm:$0xff]
    %v4446 = vld [vmem:[#allocation10 + $0xd8] sm:$0xff]
    %v4447 = vld [vmem:[#allocation10 + $0xe0] sm:$0xff]
    %v4448 = vld [vmem:[#allocation10 + $0xe8] sm:$0xff]
    %v4449 = vld [vmem:[#allocation10 + $0xf0] sm:$0xff]
    %v4450 = vld [vmem:[#allocation10 + $0xf8] sm:$0xff]
    %v4451 = vld [vmem:[#allocation10 + $0x100] sm:$0xff]
    %v4452 = vld [vmem:[#allocation10 + $0x108] sm:$0xff]
    %v4453 = vld [vmem:[#allocation10 + $0x110] sm:$0xff]
    %v4454 = vld [vmem:[#allocation10 + $0x118] sm:$0xff]
    %v4455 = vld [vmem:[#allocation10 + $0x120] sm:$0xff]
    %v4456 = vld [vmem:[#allocation10 + $0x128] sm:$0xff]
    %v4457 = vld [vmem:[#allocation10 + $0x130] sm:$0xff]
    %v4458 = vld [vmem:[#allocation10 + $0x138] sm:$0xff]
    %v4459 = vld [vmem:[#allocation10 + $0x140] sm:$0xff]
    %v4460 = vld [vmem:[#allocation10 + $0x148] sm:$0xff]
    %v4461 = vld [vmem:[#allocation10 + $0x150] sm:$0xff]
    %v4462 = vld [vmem:[#allocation10 + $0x158] sm:$0xff]
    %v4463 = vld [vmem:[#allocation10 + $0x160] sm:$0xff]
    %v4464 = vld [vmem:[#allocation10 + $0x168] sm:$0xff]
    %v4465 = vld [vmem:[#allocation10 + $0x170] sm:$0xff]
    %v4466 = vld [vmem:[#allocation10 + $0x178] sm:$0xff]
    %v4467 = vld [vmem:[#allocation10 + $0x180] sm:$0xff]
    %v4468 = vld [vmem:[#allocation10 + $0x188] sm:$0xff]
    %v4469 = vld [vmem:[#allocation10 + $0x190] sm:$0xff]
    %v4470 = vld [vmem:[#allocation10 + $0x198] sm:$0xff]
    %v4471 = vld [vmem:[#allocation10 + $0x1a0] sm:$0xff]
    %v4472 = vld [vmem:[#allocation10 + $0x1a8] sm:$0xff]
    %v4473 = vld [vmem:[#allocation10 + $0x1b0] sm:$0xff]
    %v4474 = vld [vmem:[#allocation10 + $0x1b8] sm:$0xff]
    %v4475 = vld [vmem:[#allocation10 + $0x1c0] sm:$0xff]
    %v4476 = vld [vmem:[#allocation10 + $0x1c8] sm:$0xff]
    %v4477 = vld [vmem:[#allocation10 + $0x1d0] sm:$0xff]
    %v4478 = vld [vmem:[#allocation10 + $0x1d8] sm:$0xff]
    %v4479 = vld [vmem:[#allocation10 + $0x1e0] sm:$0xff]
    %v4480 = vld [vmem:[#allocation10 + $0x1e8] sm:$0xff]
    %v4481 = vld [vmem:[#allocation10 + $0x1f0] sm:$0xff]
    %v4482 = vld [vmem:[#allocation10 + $0x1f8] sm:$0xff]
    %v4484 = vrot.slane %v4183, 2
    %4486 = vmatprep.subr.mxu0 %v4480
    %4487 = vmatpush1.msra.mxu0 %v4479
    %4488 = vmatprep.subr.mxu0 %v4476
    %4489 = vmatpush1.msra.mxu0 %v4475
    %4490 = vmatprep.subr.mxu0 %v4472
    %4491 = vmatpush1.msra.mxu0 %v4471
    %4492 = vmatprep.subr.mxu0 %v4468
    %4493 = vmatpush1.msra.mxu0 %v4467
    %4494 = vmatprep.subr.mxu0 %v4464
    %4495 = vmatpush1.msra.mxu0 %v4463
    %4496 = vmatprep.subr.mxu0 %v4460
    %4497 = vmatpush1.msra.mxu0 %v4459
    %4498 = vmatprep.subr.mxu0 %v4456
    %4499 = vmatpush1.msra.mxu0 %v4455
    %4500 = vmatprep.subr.mxu0 %v4452
    %4501 = vmatpush1.msra.mxu0 %v4451
    %4502 = vmatprep.subr.mxu0 %v4448
    %4503 = vmatpush1.msra.mxu0 %v4447
    %4504 = vmatprep.subr.mxu0 %v4444
    %4505 = vmatpush1.msra.mxu0 %v4443
    %4506 = vmatprep.subr.mxu0 %v4440
    %4507 = vmatpush1.msra.mxu0 %v4439
    %4508 = vmatprep.subr.mxu0 %v4436
    %4509 = vmatpush1.msra.mxu0 %v4435
    %4510 = vmatprep.subr.mxu0 %v4432
    %4511 = vmatpush1.msra.mxu0 %v4431
    %4512 = vmatprep.subr.mxu0 %v4428
    %4513 = vmatpush1.msra.mxu0 %v4427
    %4514 = vmatprep.subr.mxu0 %v4424
    %4515 = vmatpush1.msra.mxu0 %v4423
    %4516 = vmatprep.subr.mxu0 %v4420
    %4517 = vmatpush1.msra.mxu0 %v4419
    %4518 = vmatprep.subr.mxu0 0.0
    %4519 = vmatpush2.msra.mxu0 0.0
    %4520 = vmatprep.subr.mxu0 0.0
    %4521 = vmatpush2.msra.mxu0 0.0
    %4522 = vmatprep.subr.mxu0 0.0
    %4523 = vmatpush2.msra.mxu0 0.0
    %4524 = vmatprep.subr.mxu0 0.0
    %4525 = vmatpush2.msra.mxu0 0.0
    %4526 = vmatprep.subr.mxu0 0.0
    %4527 = vmatpush2.msra.mxu0 0.0
    %4528 = vmatprep.subr.mxu0 0.0
    %4529 = vmatpush2.msra.mxu0 0.0
    %4530 = vmatprep.subr.mxu0 0.0
    %4531 = vmatpush2.msra.mxu0 0.0
    %4532 = vmatprep.subr.mxu0 0.0
    %4533 = vmatpush2.msra.mxu0 0.0
    %4534 = vmatprep.subr.mxu0 0.0
    %4535 = vmatpush2.msra.mxu0 0.0
    %4536 = vmatprep.subr.mxu0 0.0
    %4537 = vmatpush2.msra.mxu0 0.0
    %4538 = vmatprep.subr.mxu0 0.0
    %4539 = vmatpush2.msra.mxu0 0.0
    %4540 = vmatprep.subr.mxu0 0.0
    %4541 = vmatpush2.msra.mxu0 0.0
    %4542 = vmatprep.subr.mxu0 0.0
    %4543 = vmatpush2.msra.mxu0 0.0
    %4544 = vmatprep.subr.mxu0 0.0
    %4545 = vmatpush2.msra.mxu0 0.0
    %4546 = vmatprep.subr.mxu0 0.0
    %4547 = vmatpush2.msra.mxu0 0.0
    %4548 = vmatprep.subr.mxu0 0.0
    %4549 = vmatpush2.msra.mxu0 0.0
    %4550 = vmatprep.mubr.f32.mxu0 0.0
    %4551 = vmatmul.mubr.f32.gmra.mxu0 %v4484
    %v4552 = vpop.f32.mrf.mxu0
    %v4553 = vadd.f32 0.0, %v4552
    %v4554 = vpop.f32.mrf.mxu0
    %v4555 = vadd.f32 0.0, %v4554
    %4556 = vdwg.mxu0
    %4557 = vmatprep.subr.mxu0 %v4482
    %4558 = vmatpush1.msra.mxu0 %v4481
    %4559 = vmatprep.subr.mxu0 %v4478
    %4560 = vmatpush1.msra.mxu0 %v4477
    %4561 = vmatprep.subr.mxu0 %v4474
    %4562 = vmatpush1.msra.mxu0 %v4473
    %4563 = vmatprep.subr.mxu0 %v4470
    %4564 = vmatpush1.msra.mxu0 %v4469
    %4565 = vmatprep.subr.mxu0 %v4466
    %4566 = vmatpush1.msra.mxu0 %v4465
    %4567 = vmatprep.subr.mxu0 %v4462
    %4568 = vmatpush1.msra.mxu0 %v4461
    %4569 = vmatprep.subr.mxu0 %v4458
    %4570 = vmatpush1.msra.mxu0 %v4457
    %4571 = vmatprep.subr.mxu0 %v4454
    %4572 = vmatpush1.msra.mxu0 %v4453
    %4573 = vmatprep.subr.mxu0 %v4450
    %4574 = vmatpush1.msra.mxu0 %v4449
    %4575 = vmatprep.subr.mxu0 %v4446
    %4576 = vmatpush1.msra.mxu0 %v4445
    %4577 = vmatprep.subr.mxu0 %v4442
    %4578 = vmatpush1.msra.mxu0 %v4441
    %4579 = vmatprep.subr.mxu0 %v4438
    %4580 = vmatpush1.msra.mxu0 %v4437
    %4581 = vmatprep.subr.mxu0 %v4434
    %4582 = vmatpush1.msra.mxu0 %v4433
    %4583 = vmatprep.subr.mxu0 %v4430
    %4584 = vmatpush1.msra.mxu0 %v4429
    %4585 = vmatprep.subr.mxu0 %v4426
    %4586 = vmatpush1.msra.mxu0 %v4425
    %4587 = vmatprep.subr.mxu0 %v4422
    %4588 = vmatpush1.msra.mxu0 %v4421
    %4589 = vmatprep.subr.mxu0 0.0
    %4590 = vmatpush2.msra.mxu0 0.0
    %4591 = vmatprep.subr.mxu0 0.0
    %4592 = vmatpush2.msra.mxu0 0.0
    %4593 = vmatprep.subr.mxu0 0.0
    %4594 = vmatpush2.msra.mxu0 0.0
    %4595 = vmatprep.subr.mxu0 0.0
    %4596 = vmatpush2.msra.mxu0 0.0
    %4597 = vmatprep.subr.mxu0 0.0
    %4598 = vmatpush2.msra.mxu0 0.0
    %4599 = vmatprep.subr.mxu0 0.0
    %4600 = vmatpush2.msra.mxu0 0.0
    %4601 = vmatprep.subr.mxu0 0.0
    %4602 = vmatpush2.msra.mxu0 0.0
    %4603 = vmatprep.subr.mxu0 0.0
    %4604 = vmatpush2.msra.mxu0 0.0
    %4605 = vmatprep.subr.mxu0 0.0
    %4606 = vmatpush2.msra.mxu0 0.0
    %4607 = vmatprep.subr.mxu0 0.0
    %4608 = vmatpush2.msra.mxu0 0.0
    %4609 = vmatprep.subr.mxu0 0.0
    %4610 = vmatpush2.msra.mxu0 0.0
    %4611 = vmatprep.subr.mxu0 0.0
    %4612 = vmatpush2.msra.mxu0 0.0
    %4613 = vmatprep.subr.mxu0 0.0
    %4614 = vmatpush2.msra.mxu0 0.0
    %4615 = vmatprep.subr.mxu0 0.0
    %4616 = vmatpush2.msra.mxu0 0.0
    %4617 = vmatprep.subr.mxu0 0.0
    %4618 = vmatpush2.msra.mxu0 0.0
    %4619 = vmatprep.subr.mxu0 0.0
    %4620 = vmatpush2.msra.mxu0 0.0
    %4621 = vmatprep.mubr.f32.mxu0 0.0
    %4622 = vmatmul.mubr.f32.gmra.mxu0 %v4484
    %v4623 = vpop.f32.mrf.mxu0
    %v4624 = vadd.f32 0.0, %v4623
    %v4625 = vpop.f32.mrf.mxu0
    %v4626 = vadd.f32 0.0, %v4625
    %4627 = vdwg.mxu0
    %v4628 = vadd.f32 %v4415, %v4553
    %v4629 = vadd.f32 %v4416, %v4555
    %v4630 = vadd.f32 %v4417, %v4624
    %v4631 = vadd.f32 %v4418, %v4626
    %v4632 = vxor.u32 %v4411, 2147483648
    %v4633 = vmul.f32 %v4632, 1.442695
    %v4634 = vpow.pop %v4633
    %v4635 = vadd.f32 %v4634, 1.0
    %v4636 = vrcp.pop %v4635
    %v4637 = vmul.f32 1.0, %v4636
    %v4638 = vxor.u32 %v4412, 2147483648
    %v4639 = vmul.f32 %v4638, 1.442695
    %v4640 = vpow.pop %v4639
    %v4641 = vadd.f32 %v4640, 1.0
    %v4642 = vrcp.pop %v4641
    %v4643 = vmul.f32 1.0, %v4642
    %v4644 = vtanh.pop %v4413
    %v4645 = vxor.u32 %v4414, 2147483648
    %v4646 = vmul.f32 %v4645, 1.442695
    %v4647 = vpow.pop %v4646
    %v4648 = vadd.f32 %v4647, 1.0
    %v4649 = vrcp.pop %v4648
    %v4650 = vmul.f32 1.0, %v4649
    %v4652 = vrot.slane %v4154, 6
    %v4654 = vmul.f32 %v4643, %v4652
    %v4655 = vmul.f32 %v4637, %v4644
    %v4656 = vadd.f32 %v4654, %v4655
    %v4657 = vtanh.pop %v4656
    %v4658 = vmul.f32 %v4650, %v4657
    %v4659 = vxor.u32 %v4628, 2147483648
    %v4660 = vmul.f32 %v4659, 1.442695
    %v4661 = vpow.pop %v4660
    %v4662 = vadd.f32 %v4661, 1.0
    %v4663 = vrcp.pop %v4662
    %v4664 = vmul.f32 1.0, %v4663
    %v4665 = vxor.u32 %v4629, 2147483648
    %v4666 = vmul.f32 %v4665, 1.442695
    %v4667 = vpow.pop %v4666
    %v4668 = vadd.f32 %v4667, 1.0
    %v4669 = vrcp.pop %v4668
    %v4670 = vmul.f32 1.0, %v4669
    %v4671 = vtanh.pop %v4630
    %v4672 = vxor.u32 %v4631, 2147483648
    %v4673 = vmul.f32 %v4672, 1.442695
    %v4674 = vpow.pop %v4673
    %v4675 = vadd.f32 %v4674, 1.0
    %v4676 = vrcp.pop %v4675
    %v4677 = vmul.f32 1.0, %v4676
    %v4679 = vrot.slane %v4181, 2
    %v4681 = vmul.f32 %v4670, %v4679
    %v4682 = vmul.f32 %v4664, %v4671
    %v4683 = vadd.f32 %v4681, %v4682
    %v4684 = vtanh.pop %v4683
    %v4685 = vmul.f32 %v4677, %v4684
    %4686 = vst [vmem:[#allocation3 + $0x10] sm:$0xc0] %v4658
    %4687 = vst [vmem:[#allocation3 + $0x8] sm:$0x3] %v4685
    %v4689 = vcombine.high %v4658, %v4658
    %v4691 = vunpack.c.l.s4 1983009808
    %v4692 = vunpack.c.0.s8 %v4691
    %v4693 = vlaneseq
    %v4694 = vshrl.u32 %v4693, 7
    %v4695 = vsub.s32 %v4692, %v4694
    %v4696 = vrot.slane %v4689, %v4695
    %v4697 = vcombine.high %v4696, %v4696
    %4699 = vst [vmem:[#allocation4] sm:$0x1] %v4697
    %v4701 = vcombine.high %v4656, %v4656
    %v4703 = vunpack.c.l.s4 1983009808
    %v4704 = vunpack.c.0.s8 %v4703
    %v4705 = vlaneseq
    %v4706 = vshrl.u32 %v4705, 7
    %v4707 = vsub.s32 %v4704, %v4706
    %v4708 = vrot.slane %v4701, %v4707
    %v4709 = vcombine.high %v4708, %v4708
    %4711 = vst [vmem:[#allocation4 + $0x8] sm:$0x1] %v4709
    %v4712 = vrot.slane %v4697, 7
    %v4713 = vrot.slane %v4712, 2
    %4715 = vst [vmem:[#allocation4 + $0x2] sm:$0x1] %v4713
    %v4716 = vrot.slane %v4709, 7
    %v4717 = vrot.slane %v4716, 2
    %4719 = vst [vmem:[#allocation4 + $0xa] sm:$0x1] %v4717
    %4720 = vst [vmem:[#allocation4 + $0x4] sm:$0x1] %v4685
    %4721 = vst [vmem:[#allocation4 + $0xc] sm:$0x1] %v4683
    %v4724 = vunpack.c.l.s4 1983009808
    %v4725 = vunpack.c.0.s8 %v4724
    %v4726 = vlaneseq
    %v4727 = vshrl.u32 %v4726, 7
    %v4728 = vsub.s32 %v4725, %v4727
    %v4729 = vrot.slane %v4685, %v4728
    %v4730 = vrot.slane %v4729, 7
    %v4731 = vrot.slane %v4730, 2
    %4733 = vst [vmem:[#allocation4 + $0x6] sm:$0x1] %v4731
    %v4736 = vunpack.c.l.s4 1983009808
    %v4737 = vunpack.c.0.s8 %v4736
    %v4738 = vlaneseq
    %v4739 = vshrl.u32 %v4738, 7
    %v4740 = vsub.s32 %v4737, %v4739
    %v4741 = vrot.slane %v4683, %v4740
    %v4742 = vrot.slane %v4741, 7
    %v4743 = vrot.slane %v4742, 2
    %4745 = vst [vmem:[#allocation4 + $0xe] sm:$0x1] %v4743
    %v4746 = vld [vmem:[#allocation3] sm:$0xff]
    %v4747 = vld [vmem:[#allocation3 + $0x8] sm:$0xff]
    %v4748 = vld [vmem:[#allocation3 + $0x10] sm:$0xff]
    %v4749 = vld [vmem:[#allocation3 + $0x18] sm:$0xff]
    %v4750 = vld [vmem:[#allocation11] sm:$0xff]
    %v4751 = vld [vmem:[#allocation11 + $0x8] sm:$0xff]
    %v4752 = vld [vmem:[#allocation11 + $0x10] sm:$0xff]
    %v4753 = vld [vmem:[#allocation11 + $0x18] sm:$0xff]
    %v4754 = vld [vmem:[#allocation11 + $0x20] sm:$0xff]
    %v4755 = vld [vmem:[#allocation11 + $0x28] sm:$0xff]
    %v4756 = vld [vmem:[#allocation11 + $0x30] sm:$0xff]
    %v4757 = vld [vmem:[#allocation11 + $0x38] sm:$0xff]
    %v4758 = vld [vmem:[#allocation11 + $0x40] sm:$0xff]
    %v4759 = vld [vmem:[#allocation11 + $0x48] sm:$0xff]
    %v4760 = vld [vmem:[#allocation11 + $0x50] sm:$0xff]
    %v4761 = vld [vmem:[#allocation11 + $0x58] sm:$0xff]
    %v4762 = vld [vmem:[#allocation11 + $0x60] sm:$0xff]
    %v4763 = vld [vmem:[#allocation11 + $0x68] sm:$0xff]
    %v4764 = vld [vmem:[#allocation11 + $0x70] sm:$0xff]
    %v4765 = vld [vmem:[#allocation11 + $0x78] sm:$0xff]
    %v4766 = vld [vmem:[#allocation11 + $0x80] sm:$0xff]
    %v4767 = vld [vmem:[#allocation11 + $0x88] sm:$0xff]
    %v4768 = vld [vmem:[#allocation11 + $0x90] sm:$0xff]
    %v4769 = vld [vmem:[#allocation11 + $0x98] sm:$0xff]
    %v4770 = vld [vmem:[#allocation11 + $0xa0] sm:$0xff]
    %v4771 = vld [vmem:[#allocation11 + $0xa8] sm:$0xff]
    %v4772 = vld [vmem:[#allocation11 + $0xb0] sm:$0xff]
    %v4773 = vld [vmem:[#allocation11 + $0xb8] sm:$0xff]
    %v4774 = vld [vmem:[#allocation11 + $0xc0] sm:$0xff]
    %v4775 = vld [vmem:[#allocation11 + $0xc8] sm:$0xff]
    %v4776 = vld [vmem:[#allocation11 + $0xd0] sm:$0xff]
    %v4777 = vld [vmem:[#allocation11 + $0xd8] sm:$0xff]
    %v4778 = vld [vmem:[#allocation11 + $0xe0] sm:$0xff]
    %v4779 = vld [vmem:[#allocation11 + $0xe8] sm:$0xff]
    %v4780 = vld [vmem:[#allocation11 + $0xf0] sm:$0xff]
    %v4781 = vld [vmem:[#allocation11 + $0xf8] sm:$0xff]
    %v4782 = vld [vmem:[#allocation11 + $0x100] sm:$0xff]
    %v4783 = vld [vmem:[#allocation11 + $0x108] sm:$0xff]
    %v4784 = vld [vmem:[#allocation11 + $0x110] sm:$0xff]
    %v4785 = vld [vmem:[#allocation11 + $0x118] sm:$0xff]
    %v4786 = vld [vmem:[#allocation11 + $0x120] sm:$0xff]
    %v4787 = vld [vmem:[#allocation11 + $0x128] sm:$0xff]
    %v4788 = vld [vmem:[#allocation11 + $0x130] sm:$0xff]
    %v4789 = vld [vmem:[#allocation11 + $0x138] sm:$0xff]
    %v4790 = vld [vmem:[#allocation11 + $0x140] sm:$0xff]
    %v4791 = vld [vmem:[#allocation11 + $0x148] sm:$0xff]
    %v4792 = vld [vmem:[#allocation11 + $0x150] sm:$0xff]
    %v4793 = vld [vmem:[#allocation11 + $0x158] sm:$0xff]
    %v4794 = vld [vmem:[#allocation11 + $0x160] sm:$0xff]
    %v4795 = vld [vmem:[#allocation11 + $0x168] sm:$0xff]
    %v4796 = vld [vmem:[#allocation11 + $0x170] sm:$0xff]
    %v4797 = vld [vmem:[#allocation11 + $0x178] sm:$0xff]
    %v4798 = vld [vmem:[#allocation11 + $0x180] sm:$0xff]
    %v4799 = vld [vmem:[#allocation11 + $0x188] sm:$0xff]
    %v4800 = vld [vmem:[#allocation11 + $0x190] sm:$0xff]
    %v4801 = vld [vmem:[#allocation11 + $0x198] sm:$0xff]
    %v4802 = vld [vmem:[#allocation11 + $0x1a0] sm:$0xff]
    %v4803 = vld [vmem:[#allocation11 + $0x1a8] sm:$0xff]
    %v4804 = vld [vmem:[#allocation11 + $0x1b0] sm:$0xff]
    %v4805 = vld [vmem:[#allocation11 + $0x1b8] sm:$0xff]
    %v4806 = vld [vmem:[#allocation11 + $0x1c0] sm:$0xff]
    %v4807 = vld [vmem:[#allocation11 + $0x1c8] sm:$0xff]
    %v4808 = vld [vmem:[#allocation11 + $0x1d0] sm:$0xff]
    %v4809 = vld [vmem:[#allocation11 + $0x1d8] sm:$0xff]
    %v4810 = vld [vmem:[#allocation11 + $0x1e0] sm:$0xff]
    %v4811 = vld [vmem:[#allocation11 + $0x1e8] sm:$0xff]
    %v4812 = vld [vmem:[#allocation11 + $0x1f0] sm:$0xff]
    %v4813 = vld [vmem:[#allocation11 + $0x1f8] sm:$0xff]
    %v4814 = vld [vmem:[#allocation11 + $0x200] sm:$0xff]
    %v4815 = vld [vmem:[#allocation11 + $0x208] sm:$0xff]
    %v4816 = vld [vmem:[#allocation11 + $0x210] sm:$0xff]
    %v4817 = vld [vmem:[#allocation11 + $0x218] sm:$0xff]
    %v4818 = vld [vmem:[#allocation11 + $0x220] sm:$0xff]
    %v4819 = vld [vmem:[#allocation11 + $0x228] sm:$0xff]
    %v4820 = vld [vmem:[#allocation11 + $0x230] sm:$0xff]
    %v4821 = vld [vmem:[#allocation11 + $0x238] sm:$0xff]
    %v4822 = vld [vmem:[#allocation11 + $0x240] sm:$0xff]
    %v4823 = vld [vmem:[#allocation11 + $0x248] sm:$0xff]
    %v4824 = vld [vmem:[#allocation11 + $0x250] sm:$0xff]
    %v4825 = vld [vmem:[#allocation11 + $0x258] sm:$0xff]
    %v4826 = vld [vmem:[#allocation11 + $0x260] sm:$0xff]
    %v4827 = vld [vmem:[#allocation11 + $0x268] sm:$0xff]
    %v4828 = vld [vmem:[#allocation11 + $0x270] sm:$0xff]
    %v4829 = vld [vmem:[#allocation11 + $0x278] sm:$0xff]
    %v4830 = vld [vmem:[#allocation11 + $0x280] sm:$0xff]
    %v4831 = vld [vmem:[#allocation11 + $0x288] sm:$0xff]
    %v4832 = vld [vmem:[#allocation11 + $0x290] sm:$0xff]
    %v4833 = vld [vmem:[#allocation11 + $0x298] sm:$0xff]
    %v4834 = vld [vmem:[#allocation11 + $0x2a0] sm:$0xff]
    %v4835 = vld [vmem:[#allocation11 + $0x2a8] sm:$0xff]
    %v4836 = vld [vmem:[#allocation11 + $0x2b0] sm:$0xff]
    %v4837 = vld [vmem:[#allocation11 + $0x2b8] sm:$0xff]
    %v4838 = vld [vmem:[#allocation11 + $0x2c0] sm:$0xff]
    %v4839 = vld [vmem:[#allocation11 + $0x2c8] sm:$0xff]
    %v4840 = vld [vmem:[#allocation11 + $0x2d0] sm:$0xff]
    %v4841 = vld [vmem:[#allocation11 + $0x2d8] sm:$0xff]
    %v4842 = vld [vmem:[#allocation11 + $0x2e0] sm:$0xff]
    %v4843 = vld [vmem:[#allocation11 + $0x2e8] sm:$0xff]
    %v4844 = vld [vmem:[#allocation11 + $0x2f0] sm:$0xff]
    %v4845 = vld [vmem:[#allocation11 + $0x2f8] sm:$0xff]
    %v4846 = vld [vmem:[#allocation11 + $0x300] sm:$0xff]
    %v4847 = vld [vmem:[#allocation11 + $0x308] sm:$0xff]
    %v4848 = vld [vmem:[#allocation11 + $0x310] sm:$0xff]
    %v4849 = vld [vmem:[#allocation11 + $0x318] sm:$0xff]
    %v4850 = vld [vmem:[#allocation11 + $0x320] sm:$0xff]
    %v4851 = vld [vmem:[#allocation11 + $0x328] sm:$0xff]
    %v4852 = vld [vmem:[#allocation11 + $0x330] sm:$0xff]
    %v4853 = vld [vmem:[#allocation11 + $0x338] sm:$0xff]
    %v4854 = vld [vmem:[#allocation11 + $0x340] sm:$0xff]
    %v4855 = vld [vmem:[#allocation11 + $0x348] sm:$0xff]
    %v4856 = vld [vmem:[#allocation11 + $0x350] sm:$0xff]
    %v4857 = vld [vmem:[#allocation11 + $0x358] sm:$0xff]
    %v4858 = vld [vmem:[#allocation11 + $0x360] sm:$0xff]
    %v4859 = vld [vmem:[#allocation11 + $0x368] sm:$0xff]
    %v4860 = vld [vmem:[#allocation11 + $0x370] sm:$0xff]
    %v4861 = vld [vmem:[#allocation11 + $0x378] sm:$0xff]
    %v4862 = vld [vmem:[#allocation11 + $0x380] sm:$0xff]
    %v4863 = vld [vmem:[#allocation11 + $0x388] sm:$0xff]
    %v4864 = vld [vmem:[#allocation11 + $0x390] sm:$0xff]
    %v4865 = vld [vmem:[#allocation11 + $0x398] sm:$0xff]
    %v4866 = vld [vmem:[#allocation11 + $0x3a0] sm:$0xff]
    %v4867 = vld [vmem:[#allocation11 + $0x3a8] sm:$0xff]
    %v4868 = vld [vmem:[#allocation11 + $0x3b0] sm:$0xff]
    %v4869 = vld [vmem:[#allocation11 + $0x3b8] sm:$0xff]
    %v4870 = vld [vmem:[#allocation11 + $0x3c0] sm:$0xff]
    %v4871 = vld [vmem:[#allocation11 + $0x3c8] sm:$0xff]
    %v4872 = vld [vmem:[#allocation11 + $0x3d0] sm:$0xff]
    %v4873 = vld [vmem:[#allocation11 + $0x3d8] sm:$0xff]
    %v4874 = vld [vmem:[#allocation11 + $0x3e0] sm:$0xff]
    %v4875 = vld [vmem:[#allocation11 + $0x3e8] sm:$0xff]
    %v4876 = vld [vmem:[#allocation11 + $0x3f0] sm:$0xff]
    %v4877 = vld [vmem:[#allocation11 + $0x3f8] sm:$0xff]
    %v4878 = vld [vmem:[#allocation11 + $0x400] sm:$0xff]
    %v4879 = vld [vmem:[#allocation11 + $0x408] sm:$0xff]
    %v4880 = vld [vmem:[#allocation11 + $0x410] sm:$0xff]
    %v4881 = vld [vmem:[#allocation11 + $0x418] sm:$0xff]
    %v4882 = vld [vmem:[#allocation11 + $0x420] sm:$0xff]
    %v4883 = vld [vmem:[#allocation11 + $0x428] sm:$0xff]
    %v4884 = vld [vmem:[#allocation11 + $0x430] sm:$0xff]
    %v4885 = vld [vmem:[#allocation11 + $0x438] sm:$0xff]
    %v4886 = vld [vmem:[#allocation11 + $0x440] sm:$0xff]
    %v4887 = vld [vmem:[#allocation11 + $0x448] sm:$0xff]
    %v4888 = vld [vmem:[#allocation11 + $0x450] sm:$0xff]
    %v4889 = vld [vmem:[#allocation11 + $0x458] sm:$0xff]
    %v4890 = vld [vmem:[#allocation11 + $0x460] sm:$0xff]
    %v4891 = vld [vmem:[#allocation11 + $0x468] sm:$0xff]
    %v4892 = vld [vmem:[#allocation11 + $0x470] sm:$0xff]
    %v4893 = vld [vmem:[#allocation11 + $0x478] sm:$0xff]
    %v4894 = vld [vmem:[#allocation11 + $0x480] sm:$0xff]
    %v4895 = vld [vmem:[#allocation11 + $0x488] sm:$0xff]
    %v4896 = vld [vmem:[#allocation11 + $0x490] sm:$0xff]
    %v4897 = vld [vmem:[#allocation11 + $0x498] sm:$0xff]
    %v4898 = vld [vmem:[#allocation11 + $0x4a0] sm:$0xff]
    %v4899 = vld [vmem:[#allocation11 + $0x4a8] sm:$0xff]
    %v4900 = vld [vmem:[#allocation11 + $0x4b0] sm:$0xff]
    %v4901 = vld [vmem:[#allocation11 + $0x4b8] sm:$0xff]
    %v4902 = vld [vmem:[#allocation11 + $0x4c0] sm:$0xff]
    %v4903 = vld [vmem:[#allocation11 + $0x4c8] sm:$0xff]
    %v4904 = vld [vmem:[#allocation11 + $0x4d0] sm:$0xff]
    %v4905 = vld [vmem:[#allocation11 + $0x4d8] sm:$0xff]
    %v4906 = vld [vmem:[#allocation11 + $0x4e0] sm:$0xff]
    %v4907 = vld [vmem:[#allocation11 + $0x4e8] sm:$0xff]
    %v4908 = vld [vmem:[#allocation11 + $0x4f0] sm:$0xff]
    %v4909 = vld [vmem:[#allocation11 + $0x4f8] sm:$0xff]
    %v4910 = vld [vmem:[#allocation11 + $0x500] sm:$0xff]
    %v4911 = vld [vmem:[#allocation11 + $0x508] sm:$0xff]
    %v4912 = vld [vmem:[#allocation11 + $0x510] sm:$0xff]
    %v4913 = vld [vmem:[#allocation11 + $0x518] sm:$0xff]
    %v4914 = vld [vmem:[#allocation11 + $0x520] sm:$0xff]
    %v4915 = vld [vmem:[#allocation11 + $0x528] sm:$0xff]
    %v4916 = vld [vmem:[#allocation11 + $0x530] sm:$0xff]
    %v4917 = vld [vmem:[#allocation11 + $0x538] sm:$0xff]
    %v4918 = vld [vmem:[#allocation11 + $0x540] sm:$0xff]
    %v4919 = vld [vmem:[#allocation11 + $0x548] sm:$0xff]
    %v4920 = vld [vmem:[#allocation11 + $0x550] sm:$0xff]
    %v4921 = vld [vmem:[#allocation11 + $0x558] sm:$0xff]
    %v4922 = vld [vmem:[#allocation11 + $0x560] sm:$0xff]
    %v4923 = vld [vmem:[#allocation11 + $0x568] sm:$0xff]
    %v4924 = vld [vmem:[#allocation11 + $0x570] sm:$0xff]
    %v4925 = vld [vmem:[#allocation11 + $0x578] sm:$0xff]
    %v4926 = vld [vmem:[#allocation11 + $0x580] sm:$0xff]
    %v4927 = vld [vmem:[#allocation11 + $0x588] sm:$0xff]
    %v4928 = vld [vmem:[#allocation11 + $0x590] sm:$0xff]
    %v4929 = vld [vmem:[#allocation11 + $0x598] sm:$0xff]
    %v4930 = vld [vmem:[#allocation11 + $0x5a0] sm:$0xff]
    %v4931 = vld [vmem:[#allocation11 + $0x5a8] sm:$0xff]
    %v4932 = vld [vmem:[#allocation11 + $0x5b0] sm:$0xff]
    %v4933 = vld [vmem:[#allocation11 + $0x5b8] sm:$0xff]
    %v4934 = vld [vmem:[#allocation11 + $0x5c0] sm:$0xff]
    %v4935 = vld [vmem:[#allocation11 + $0x5c8] sm:$0xff]
    %v4936 = vld [vmem:[#allocation11 + $0x5d0] sm:$0xff]
    %v4937 = vld [vmem:[#allocation11 + $0x5d8] sm:$0xff]
    %v4938 = vld [vmem:[#allocation11 + $0x5e0] sm:$0xff]
    %v4939 = vld [vmem:[#allocation11 + $0x5e8] sm:$0xff]
    %v4940 = vld [vmem:[#allocation11 + $0x5f0] sm:$0xff]
    %v4941 = vld [vmem:[#allocation11 + $0x5f8] sm:$0xff]
    %v4942 = vld [vmem:[#allocation11 + $0x600] sm:$0xff]
    %v4943 = vld [vmem:[#allocation11 + $0x608] sm:$0xff]
    %v4944 = vld [vmem:[#allocation11 + $0x610] sm:$0xff]
    %v4945 = vld [vmem:[#allocation11 + $0x618] sm:$0xff]
    %v4946 = vld [vmem:[#allocation11 + $0x620] sm:$0xff]
    %v4947 = vld [vmem:[#allocation11 + $0x628] sm:$0xff]
    %v4948 = vld [vmem:[#allocation11 + $0x630] sm:$0xff]
    %v4949 = vld [vmem:[#allocation11 + $0x638] sm:$0xff]
    %v4950 = vld [vmem:[#allocation11 + $0x640] sm:$0xff]
    %v4951 = vld [vmem:[#allocation11 + $0x648] sm:$0xff]
    %v4952 = vld [vmem:[#allocation11 + $0x650] sm:$0xff]
    %v4953 = vld [vmem:[#allocation11 + $0x658] sm:$0xff]
    %v4954 = vld [vmem:[#allocation11 + $0x660] sm:$0xff]
    %v4955 = vld [vmem:[#allocation11 + $0x668] sm:$0xff]
    %v4956 = vld [vmem:[#allocation11 + $0x670] sm:$0xff]
    %v4957 = vld [vmem:[#allocation11 + $0x678] sm:$0xff]
    %v4958 = vld [vmem:[#allocation11 + $0x680] sm:$0xff]
    %v4959 = vld [vmem:[#allocation11 + $0x688] sm:$0xff]
    %v4960 = vld [vmem:[#allocation11 + $0x690] sm:$0xff]
    %v4961 = vld [vmem:[#allocation11 + $0x698] sm:$0xff]
    %v4962 = vld [vmem:[#allocation11 + $0x6a0] sm:$0xff]
    %v4963 = vld [vmem:[#allocation11 + $0x6a8] sm:$0xff]
    %v4964 = vld [vmem:[#allocation11 + $0x6b0] sm:$0xff]
    %v4965 = vld [vmem:[#allocation11 + $0x6b8] sm:$0xff]
    %v4966 = vld [vmem:[#allocation11 + $0x6c0] sm:$0xff]
    %v4967 = vld [vmem:[#allocation11 + $0x6c8] sm:$0xff]
    %v4968 = vld [vmem:[#allocation11 + $0x6d0] sm:$0xff]
    %v4969 = vld [vmem:[#allocation11 + $0x6d8] sm:$0xff]
    %v4970 = vld [vmem:[#allocation11 + $0x6e0] sm:$0xff]
    %v4971 = vld [vmem:[#allocation11 + $0x6e8] sm:$0xff]
    %v4972 = vld [vmem:[#allocation11 + $0x6f0] sm:$0xff]
    %v4973 = vld [vmem:[#allocation11 + $0x6f8] sm:$0xff]
    %v4974 = vld [vmem:[#allocation11 + $0x700] sm:$0xff]
    %v4975 = vld [vmem:[#allocation11 + $0x708] sm:$0xff]
    %v4976 = vld [vmem:[#allocation11 + $0x710] sm:$0xff]
    %v4977 = vld [vmem:[#allocation11 + $0x718] sm:$0xff]
    %v4978 = vld [vmem:[#allocation11 + $0x720] sm:$0xff]
    %v4979 = vld [vmem:[#allocation11 + $0x728] sm:$0xff]
    %v4980 = vld [vmem:[#allocation11 + $0x730] sm:$0xff]
    %v4981 = vld [vmem:[#allocation11 + $0x738] sm:$0xff]
    %v4982 = vld [vmem:[#allocation11 + $0x740] sm:$0xff]
    %v4983 = vld [vmem:[#allocation11 + $0x748] sm:$0xff]
    %v4984 = vld [vmem:[#allocation11 + $0x750] sm:$0xff]
    %v4985 = vld [vmem:[#allocation11 + $0x758] sm:$0xff]
    %v4986 = vld [vmem:[#allocation11 + $0x760] sm:$0xff]
    %v4987 = vld [vmem:[#allocation11 + $0x768] sm:$0xff]
    %v4988 = vld [vmem:[#allocation11 + $0x770] sm:$0xff]
    %v4989 = vld [vmem:[#allocation11 + $0x778] sm:$0xff]
    %v4990 = vld [vmem:[#allocation11 + $0x780] sm:$0xff]
    %v4991 = vld [vmem:[#allocation11 + $0x788] sm:$0xff]
    %v4992 = vld [vmem:[#allocation11 + $0x790] sm:$0xff]
    %v4993 = vld [vmem:[#allocation11 + $0x798] sm:$0xff]
    %v4994 = vld [vmem:[#allocation11 + $0x7a0] sm:$0xff]
    %v4995 = vld [vmem:[#allocation11 + $0x7a8] sm:$0xff]
    %v4996 = vld [vmem:[#allocation11 + $0x7b0] sm:$0xff]
    %v4997 = vld [vmem:[#allocation11 + $0x7b8] sm:$0xff]
    %v4998 = vld [vmem:[#allocation11 + $0x7c0] sm:$0xff]
    %v4999 = vld [vmem:[#allocation11 + $0x7c8] sm:$0xff]
    %v5000 = vld [vmem:[#allocation11 + $0x7d0] sm:$0xff]
    %v5001 = vld [vmem:[#allocation11 + $0x7d8] sm:$0xff]
    %v5002 = vld [vmem:[#allocation11 + $0x7e0] sm:$0xff]
    %v5003 = vld [vmem:[#allocation11 + $0x7e8] sm:$0xff]
    %v5004 = vld [vmem:[#allocation11 + $0x7f0] sm:$0xff]
    %v5005 = vld [vmem:[#allocation11 + $0x7f8] sm:$0xff]
    %v5006 = vld [vmem:[%s8] sm:$0xff]
    %v5008 = vlaneseq
    %v5009 = vshrl.u32 %v5008, 7
    %v5010 = vsub.s32 0, %v5009
    %v5011 = vrot.slane %v5006, %v5010
    %v5012 = vlaneseq
    %v5013 = vshrl.u32 %v5012, 7
    %v5014 = vsub.s32 1, %v5013
    %v5015 = vrot.slane %v5006, %v5014
    %v5016 = vlaneseq
    %v5017 = vshrl.u32 %v5016, 7
    %v5018 = vsub.s32 2, %v5017
    %v5019 = vrot.slane %v5006, %v5018
    %v5020 = vlaneseq
    %v5021 = vshrl.u32 %v5020, 7
    %v5022 = vsub.s32 3, %v5021
    %v5023 = vrot.slane %v5006, %v5022
    %v5024 = vlaneseq
    %v5025 = vshrl.u32 %v5024, 7
    %v5026 = vsub.s32 4, %v5025
    %v5027 = vrot.slane %v5006, %v5026
    %v5028 = vlaneseq
    %v5029 = vshrl.u32 %v5028, 7
    %v5030 = vsub.s32 5, %v5029
    %v5031 = vrot.slane %v5006, %v5030
    %v5032 = vlaneseq
    %v5033 = vshrl.u32 %v5032, 7
    %v5034 = vsub.s32 6, %v5033
    %v5035 = vrot.slane %v5006, %v5034
    %v5036 = vlaneseq
    %v5037 = vshrl.u32 %v5036, 7
    %v5038 = vsub.s32 7, %v5037
    %v5039 = vrot.slane %v5006, %v5038
    %5048 = vmatprep.subr.mxu0 %v4871
    %5049 = vmatpush1.msra.mxu0 %v4870
    %5050 = vmatprep.subr.mxu0 %v4863
    %5051 = vmatpush1.msra.mxu0 %v4862
    %5052 = vmatprep.subr.mxu0 %v4855
    %5053 = vmatpush1.msra.mxu0 %v4854
    %5054 = vmatprep.subr.mxu0 %v4847
    %5055 = vmatpush1.msra.mxu0 %v4846
    %5056 = vmatprep.subr.mxu0 %v4839
    %5057 = vmatpush1.msra.mxu0 %v4838
    %5058 = vmatprep.subr.mxu0 %v4831
    %5059 = vmatpush1.msra.mxu0 %v4830
    %5060 = vmatprep.subr.mxu0 %v4823
    %5061 = vmatpush1.msra.mxu0 %v4822
    %5062 = vmatprep.subr.mxu0 %v4815
    %5063 = vmatpush1.msra.mxu0 %v4814
    %5064 = vmatprep.subr.mxu0 %v4807
    %5065 = vmatpush1.msra.mxu0 %v4806
    %5066 = vmatprep.subr.mxu0 %v4799
    %5067 = vmatpush1.msra.mxu0 %v4798
    %5068 = vmatprep.subr.mxu0 %v4791
    %5069 = vmatpush1.msra.mxu0 %v4790
    %5070 = vmatprep.subr.mxu0 %v4783
    %5071 = vmatpush1.msra.mxu0 %v4782
    %5072 = vmatprep.subr.mxu0 %v4775
    %5073 = vmatpush1.msra.mxu0 %v4774
    %5074 = vmatprep.subr.mxu0 %v4767
    %5075 = vmatpush1.msra.mxu0 %v4766
    %5076 = vmatprep.subr.mxu0 %v4759
    %5077 = vmatpush1.msra.mxu0 %v4758
    %5078 = vmatprep.subr.mxu0 %v4751
    %5079 = vmatpush1.msra.mxu0 %v4750
    %5080 = vmatprep.subr.mxu0 %v4999
    %5081 = vmatpush2.msra.mxu0 %v4998
    %5082 = vmatprep.subr.mxu0 %v4991
    %5083 = vmatpush2.msra.mxu0 %v4990
    %5084 = vmatprep.subr.mxu0 %v4983
    %5085 = vmatpush2.msra.mxu0 %v4982
    %5086 = vmatprep.subr.mxu0 %v4975
    %5087 = vmatpush2.msra.mxu0 %v4974
    %5088 = vmatprep.subr.mxu0 %v4967
    %5089 = vmatpush2.msra.mxu0 %v4966
    %5090 = vmatprep.subr.mxu0 %v4959
    %5091 = vmatpush2.msra.mxu0 %v4958
    %5092 = vmatprep.subr.mxu0 %v4951
    %5093 = vmatpush2.msra.mxu0 %v4950
    %5094 = vmatprep.subr.mxu0 %v4943
    %5095 = vmatpush2.msra.mxu0 %v4942
    %5096 = vmatprep.subr.mxu0 %v4935
    %5097 = vmatpush2.msra.mxu0 %v4934
    %5098 = vmatprep.subr.mxu0 %v4927
    %5099 = vmatpush2.msra.mxu0 %v4926
    %5100 = vmatprep.subr.mxu0 %v4919
    %5101 = vmatpush2.msra.mxu0 %v4918
    %5102 = vmatprep.subr.mxu0 %v4911
    %5103 = vmatpush2.msra.mxu0 %v4910
    %5104 = vmatprep.subr.mxu0 %v4903
    %5105 = vmatpush2.msra.mxu0 %v4902
    %5106 = vmatprep.subr.mxu0 %v4895
    %5107 = vmatpush2.msra.mxu0 %v4894
    %5108 = vmatprep.subr.mxu0 %v4887
    %5109 = vmatpush2.msra.mxu0 %v4886
    %5110 = vmatprep.subr.mxu0 %v4879
    %5111 = vmatpush2.msra.mxu0 %v4878
    %5112 = vmatprep.mubr.f32.mxu0 %v4747
    %5113 = vmatmul.mubr.f32.gmra.mxu0 %v4746
    %v5114 = vpop.f32.mrf.mxu0
    %v5115 = vadd.f32 %v5011, %v5114
    %v5116 = vpop.f32.mrf.mxu0
    %v5117 = vadd.f32 %v5015, %v5116
    %5118 = vmatprep.mubr.f32.mxu0 %v4749
    %5119 = vmatmul.mubr.f32.gmra.mxu0 %v4748
    %v5120 = vpop.f32.mrf.mxu0
    %v5121 = vadd.f32 %v5011, %v5120
    %v5122 = vpop.f32.mrf.mxu0
    %v5123 = vadd.f32 %v5015, %v5122
    %5124 = vdwg.mxu0
    %5125 = vmatprep.subr.mxu0 %v4873
    %5126 = vmatpush1.msra.mxu0 %v4872
    %5127 = vmatprep.subr.mxu0 %v4865
    %5128 = vmatpush1.msra.mxu0 %v4864
    %5129 = vmatprep.subr.mxu0 %v4857
    %5130 = vmatpush1.msra.mxu0 %v4856
    %5131 = vmatprep.subr.mxu0 %v4849
    %5132 = vmatpush1.msra.mxu0 %v4848
    %5133 = vmatprep.subr.mxu0 %v4841
    %5134 = vmatpush1.msra.mxu0 %v4840
    %5135 = vmatprep.subr.mxu0 %v4833
    %5136 = vmatpush1.msra.mxu0 %v4832
    %5137 = vmatprep.subr.mxu0 %v4825
    %5138 = vmatpush1.msra.mxu0 %v4824
    %5139 = vmatprep.subr.mxu0 %v4817
    %5140 = vmatpush1.msra.mxu0 %v4816
    %5141 = vmatprep.subr.mxu0 %v4809
    %5142 = vmatpush1.msra.mxu0 %v4808
    %5143 = vmatprep.subr.mxu0 %v4801
    %5144 = vmatpush1.msra.mxu0 %v4800
    %5145 = vmatprep.subr.mxu0 %v4793
    %5146 = vmatpush1.msra.mxu0 %v4792
    %5147 = vmatprep.subr.mxu0 %v4785
    %5148 = vmatpush1.msra.mxu0 %v4784
    %5149 = vmatprep.subr.mxu0 %v4777
    %5150 = vmatpush1.msra.mxu0 %v4776
    %5151 = vmatprep.subr.mxu0 %v4769
    %5152 = vmatpush1.msra.mxu0 %v4768
    %5153 = vmatprep.subr.mxu0 %v4761
    %5154 = vmatpush1.msra.mxu0 %v4760
    %5155 = vmatprep.subr.mxu0 %v4753
    %5156 = vmatpush1.msra.mxu0 %v4752
    %5157 = vmatprep.subr.mxu0 %v5001
    %5158 = vmatpush2.msra.mxu0 %v5000
    %5159 = vmatprep.subr.mxu0 %v4993
    %5160 = vmatpush2.msra.mxu0 %v4992
    %5161 = vmatprep.subr.mxu0 %v4985
    %5162 = vmatpush2.msra.mxu0 %v4984
    %5163 = vmatprep.subr.mxu0 %v4977
    %5164 = vmatpush2.msra.mxu0 %v4976
    %5165 = vmatprep.subr.mxu0 %v4969
    %5166 = vmatpush2.msra.mxu0 %v4968
    %5167 = vmatprep.subr.mxu0 %v4961
    %5168 = vmatpush2.msra.mxu0 %v4960
    %5169 = vmatprep.subr.mxu0 %v4953
    %5170 = vmatpush2.msra.mxu0 %v4952
    %5171 = vmatprep.subr.mxu0 %v4945
    %5172 = vmatpush2.msra.mxu0 %v4944
    %5173 = vmatprep.subr.mxu0 %v4937
    %5174 = vmatpush2.msra.mxu0 %v4936
    %5175 = vmatprep.subr.mxu0 %v4929
    %5176 = vmatpush2.msra.mxu0 %v4928
    %5177 = vmatprep.subr.mxu0 %v4921
    %5178 = vmatpush2.msra.mxu0 %v4920
    %5179 = vmatprep.subr.mxu0 %v4913
    %5180 = vmatpush2.msra.mxu0 %v4912
    %5181 = vmatprep.subr.mxu0 %v4905
    %5182 = vmatpush2.msra.mxu0 %v4904
    %5183 = vmatprep.subr.mxu0 %v4897
    %5184 = vmatpush2.msra.mxu0 %v4896
    %5185 = vmatprep.subr.mxu0 %v4889
    %5186 = vmatpush2.msra.mxu0 %v4888
    %5187 = vmatprep.subr.mxu0 %v4881
    %5188 = vmatpush2.msra.mxu0 %v4880
    %5189 = vmatprep.mubr.f32.mxu0 %v4747
    %5190 = vmatmul.mubr.f32.gmra.mxu0 %v4746
    %v5191 = vpop.f32.mrf.mxu0
    %v5192 = vadd.f32 %v5019, %v5191
    %v5193 = vpop.f32.mrf.mxu0
    %v5194 = vadd.f32 %v5023, %v5193
    %5195 = vmatprep.mubr.f32.mxu0 %v4749
    %5196 = vmatmul.mubr.f32.gmra.mxu0 %v4748
    %v5197 = vpop.f32.mrf.mxu0
    %v5198 = vadd.f32 %v5019, %v5197
    %v5199 = vpop.f32.mrf.mxu0
    %v5200 = vadd.f32 %v5023, %v5199
    %5201 = vdwg.mxu0
    %5202 = vmatprep.subr.mxu0 %v4875
    %5203 = vmatpush1.msra.mxu0 %v4874
    %5204 = vmatprep.subr.mxu0 %v4867
    %5205 = vmatpush1.msra.mxu0 %v4866
    %5206 = vmatprep.subr.mxu0 %v4859
    %5207 = vmatpush1.msra.mxu0 %v4858
    %5208 = vmatprep.subr.mxu0 %v4851
    %5209 = vmatpush1.msra.mxu0 %v4850
    %5210 = vmatprep.subr.mxu0 %v4843
    %5211 = vmatpush1.msra.mxu0 %v4842
    %5212 = vmatprep.subr.mxu0 %v4835
    %5213 = vmatpush1.msra.mxu0 %v4834
    %5214 = vmatprep.subr.mxu0 %v4827
    %5215 = vmatpush1.msra.mxu0 %v4826
    %5216 = vmatprep.subr.mxu0 %v4819
    %5217 = vmatpush1.msra.mxu0 %v4818
    %5218 = vmatprep.subr.mxu0 %v4811
    %5219 = vmatpush1.msra.mxu0 %v4810
    %5220 = vmatprep.subr.mxu0 %v4803
    %5221 = vmatpush1.msra.mxu0 %v4802
    %5222 = vmatprep.subr.mxu0 %v4795
    %5223 = vmatpush1.msra.mxu0 %v4794
    %5224 = vmatprep.subr.mxu0 %v4787
    %5225 = vmatpush1.msra.mxu0 %v4786
    %5226 = vmatprep.subr.mxu0 %v4779
    %5227 = vmatpush1.msra.mxu0 %v4778
    %5228 = vmatprep.subr.mxu0 %v4771
    %5229 = vmatpush1.msra.mxu0 %v4770
    %5230 = vmatprep.subr.mxu0 %v4763
    %5231 = vmatpush1.msra.mxu0 %v4762
    %5232 = vmatprep.subr.mxu0 %v4755
    %5233 = vmatpush1.msra.mxu0 %v4754
    %5234 = vmatprep.subr.mxu0 %v5003
    %5235 = vmatpush2.msra.mxu0 %v5002
    %5236 = vmatprep.subr.mxu0 %v4995
    %5237 = vmatpush2.msra.mxu0 %v4994
    %5238 = vmatprep.subr.mxu0 %v4987
    %5239 = vmatpush2.msra.mxu0 %v4986
    %5240 = vmatprep.subr.mxu0 %v4979
    %5241 = vmatpush2.msra.mxu0 %v4978
    %5242 = vmatprep.subr.mxu0 %v4971
    %5243 = vmatpush2.msra.mxu0 %v4970
    %5244 = vmatprep.subr.mxu0 %v4963
    %5245 = vmatpush2.msra.mxu0 %v4962
    %5246 = vmatprep.subr.mxu0 %v4955
    %5247 = vmatpush2.msra.mxu0 %v4954
    %5248 = vmatprep.subr.mxu0 %v4947
    %5249 = vmatpush2.msra.mxu0 %v4946
    %5250 = vmatprep.subr.mxu0 %v4939
    %5251 = vmatpush2.msra.mxu0 %v4938
    %5252 = vmatprep.subr.mxu0 %v4931
    %5253 = vmatpush2.msra.mxu0 %v4930
    %5254 = vmatprep.subr.mxu0 %v4923
    %5255 = vmatpush2.msra.mxu0 %v4922
    %5256 = vmatprep.subr.mxu0 %v4915
    %5257 = vmatpush2.msra.mxu0 %v4914
    %5258 = vmatprep.subr.mxu0 %v4907
    %5259 = vmatpush2.msra.mxu0 %v4906
    %5260 = vmatprep.subr.mxu0 %v4899
    %5261 = vmatpush2.msra.mxu0 %v4898
    %5262 = vmatprep.subr.mxu0 %v4891
    %5263 = vmatpush2.msra.mxu0 %v4890
    %5264 = vmatprep.subr.mxu0 %v4883
    %5265 = vmatpush2.msra.mxu0 %v4882
    %5266 = vmatprep.mubr.f32.mxu0 %v4747
    %5267 = vmatmul.mubr.f32.gmra.mxu0 %v4746
    %v5268 = vpop.f32.mrf.mxu0
    %v5269 = vadd.f32 %v5027, %v5268
    %v5270 = vpop.f32.mrf.mxu0
    %v5271 = vadd.f32 %v5031, %v5270
    %5272 = vmatprep.mubr.f32.mxu0 %v4749
    %5273 = vmatmul.mubr.f32.gmra.mxu0 %v4748
    %v5274 = vpop.f32.mrf.mxu0
    %v5275 = vadd.f32 %v5027, %v5274
    %v5276 = vpop.f32.mrf.mxu0
    %v5277 = vadd.f32 %v5031, %v5276
    %5278 = vdwg.mxu0
    %5279 = vmatprep.subr.mxu0 %v4877
    %5280 = vmatpush1.msra.mxu0 %v4876
    %5281 = vmatprep.subr.mxu0 %v4869
    %5282 = vmatpush1.msra.mxu0 %v4868
    %5283 = vmatprep.subr.mxu0 %v4861
    %5284 = vmatpush1.msra.mxu0 %v4860
    %5285 = vmatprep.subr.mxu0 %v4853
    %5286 = vmatpush1.msra.mxu0 %v4852
    %5287 = vmatprep.subr.mxu0 %v4845
    %5288 = vmatpush1.msra.mxu0 %v4844
    %5289 = vmatprep.subr.mxu0 %v4837
    %5290 = vmatpush1.msra.mxu0 %v4836
    %5291 = vmatprep.subr.mxu0 %v4829
    %5292 = vmatpush1.msra.mxu0 %v4828
    %5293 = vmatprep.subr.mxu0 %v4821
    %5294 = vmatpush1.msra.mxu0 %v4820
    %5295 = vmatprep.subr.mxu0 %v4813
    %5296 = vmatpush1.msra.mxu0 %v4812
    %5297 = vmatprep.subr.mxu0 %v4805
    %5298 = vmatpush1.msra.mxu0 %v4804
    %5299 = vmatprep.subr.mxu0 %v4797
    %5300 = vmatpush1.msra.mxu0 %v4796
    %5301 = vmatprep.subr.mxu0 %v4789
    %5302 = vmatpush1.msra.mxu0 %v4788
    %5303 = vmatprep.subr.mxu0 %v4781
    %5304 = vmatpush1.msra.mxu0 %v4780
    %5305 = vmatprep.subr.mxu0 %v4773
    %5306 = vmatpush1.msra.mxu0 %v4772
    %5307 = vmatprep.subr.mxu0 %v4765
    %5308 = vmatpush1.msra.mxu0 %v4764
    %5309 = vmatprep.subr.mxu0 %v4757
    %5310 = vmatpush1.msra.mxu0 %v4756
    %5311 = vmatprep.subr.mxu0 %v5005
    %5312 = vmatpush2.msra.mxu0 %v5004
    %5313 = vmatprep.subr.mxu0 %v4997
    %5314 = vmatpush2.msra.mxu0 %v4996
    %5315 = vmatprep.subr.mxu0 %v4989
    %5316 = vmatpush2.msra.mxu0 %v4988
    %5317 = vmatprep.subr.mxu0 %v4981
    %5318 = vmatpush2.msra.mxu0 %v4980
    %5319 = vmatprep.subr.mxu0 %v4973
    %5320 = vmatpush2.msra.mxu0 %v4972
    %5321 = vmatprep.subr.mxu0 %v4965
    %5322 = vmatpush2.msra.mxu0 %v4964
    %5323 = vmatprep.subr.mxu0 %v4957
    %5324 = vmatpush2.msra.mxu0 %v4956
    %5325 = vmatprep.subr.mxu0 %v4949
    %5326 = vmatpush2.msra.mxu0 %v4948
    %5327 = vmatprep.subr.mxu0 %v4941
    %5328 = vmatpush2.msra.mxu0 %v4940
    %5329 = vmatprep.subr.mxu0 %v4933
    %5330 = vmatpush2.msra.mxu0 %v4932
    %5331 = vmatprep.subr.mxu0 %v4925
    %5332 = vmatpush2.msra.mxu0 %v4924
    %5333 = vmatprep.subr.mxu0 %v4917
    %5334 = vmatpush2.msra.mxu0 %v4916
    %5335 = vmatprep.subr.mxu0 %v4909
    %5336 = vmatpush2.msra.mxu0 %v4908
    %5337 = vmatprep.subr.mxu0 %v4901
    %5338 = vmatpush2.msra.mxu0 %v4900
    %5339 = vmatprep.subr.mxu0 %v4893
    %5340 = vmatpush2.msra.mxu0 %v4892
    %5341 = vmatprep.subr.mxu0 %v4885
    %5342 = vmatpush2.msra.mxu0 %v4884
    %5343 = vmatprep.mubr.f32.mxu0 %v4747
    %5344 = vmatmul.mubr.f32.gmra.mxu0 %v4746
    %v5345 = vpop.f32.mrf.mxu0
    %v5346 = vadd.f32 %v5035, %v5345
    %v5347 = vpop.f32.mrf.mxu0
    %v5348 = vadd.f32 %v5039, %v5347
    %5349 = vmatprep.mubr.f32.mxu0 %v4749
    %5350 = vmatmul.mubr.f32.gmra.mxu0 %v4748
    %v5351 = vpop.f32.mrf.mxu0
    %v5352 = vadd.f32 %v5035, %v5351
    %v5353 = vpop.f32.mrf.mxu0
    %v5354 = vadd.f32 %v5039, %v5353
    %5355 = vdwg.mxu0
    %5356 = vst [vmem:[#allocation2] sm:$0xff] %v5115
    %5357 = vst [vmem:[#allocation2 + $0x8] sm:$0xff] %v5117
    %5358 = vst [vmem:[#allocation2 + $0x10] sm:$0xff] %v5192
    %5359 = vst [vmem:[#allocation2 + $0x18] sm:$0xff] %v5194
    %5360 = vst [vmem:[#allocation2 + $0x20] sm:$0xff] %v5269
    %5361 = vst [vmem:[#allocation2 + $0x28] sm:$0xff] %v5271
    %5362 = vst [vmem:[#allocation2 + $0x30] sm:$0xff] %v5346
    %5363 = vst [vmem:[#allocation2 + $0x38] sm:$0xff] %v5348
    %5364 = vst [vmem:[#allocation2 + $0x40] sm:$0xff] %v5121
    %5365 = vst [vmem:[#allocation2 + $0x48] sm:$0xff] %v5123
    %5366 = vst [vmem:[#allocation2 + $0x50] sm:$0xff] %v5198
    %5367 = vst [vmem:[#allocation2 + $0x58] sm:$0xff] %v5200
    %5368 = vst [vmem:[#allocation2 + $0x60] sm:$0xff] %v5275
    %5369 = vst [vmem:[#allocation2 + $0x68] sm:$0xff] %v5277
    %5370 = vst [vmem:[#allocation2 + $0x70] sm:$0xff] %v5352
    %5371 = vst [vmem:[#allocation2 + $0x78] sm:$0xff] %v5354
    %s5372 = scalar_lea.vmem %s9, 4
    %v5373 = vld [vmem:[%s5372] sm:$0x3]
    %s5374 = scalar_lea.vmem %s10, 4
    %v5375 = vld [vmem:[%s5374] sm:$0x3]
    %s5376 = scalar_lea.vmem %s9, 6
    %v5377 = vld [vmem:[%s5376] sm:$0x3]
    %s5378 = scalar_lea.vmem %s10, 6
    %v5379 = vld [vmem:[%s5378] sm:$0x3]
    %v5380 = vld [vmem:[#allocation2] sm:$0x3]
    %v5381 = vld [vmem:[#allocation2 + $0x8] sm:$0x3]
    %v5382 = vld [vmem:[#allocation2 + $0x10] sm:$0x3]
    %v5383 = vld [vmem:[#allocation2 + $0x18] sm:$0x3]
    %v5384 = vld [vmem:[#allocation13] sm:$0xff]
    %v5385 = vld [vmem:[#allocation13 + $0x8] sm:$0xff]
    %v5386 = vld [vmem:[#allocation13 + $0x10] sm:$0xff]
    %v5387 = vld [vmem:[#allocation13 + $0x18] sm:$0xff]
    %v5388 = vld [vmem:[#allocation13 + $0x20] sm:$0xff]
    %v5389 = vld [vmem:[#allocation13 + $0x28] sm:$0xff]
    %v5390 = vld [vmem:[#allocation13 + $0x30] sm:$0xff]
    %v5391 = vld [vmem:[#allocation13 + $0x38] sm:$0xff]
    %v5392 = vld [vmem:[#allocation13 + $0x40] sm:$0xff]
    %v5393 = vld [vmem:[#allocation13 + $0x48] sm:$0xff]
    %v5394 = vld [vmem:[#allocation13 + $0x50] sm:$0xff]
    %v5395 = vld [vmem:[#allocation13 + $0x58] sm:$0xff]
    %v5396 = vld [vmem:[#allocation13 + $0x60] sm:$0xff]
    %v5397 = vld [vmem:[#allocation13 + $0x68] sm:$0xff]
    %v5398 = vld [vmem:[#allocation13 + $0x70] sm:$0xff]
    %v5399 = vld [vmem:[#allocation13 + $0x78] sm:$0xff]
    %v5400 = vld [vmem:[#allocation13 + $0x80] sm:$0xff]
    %v5401 = vld [vmem:[#allocation13 + $0x88] sm:$0xff]
    %v5402 = vld [vmem:[#allocation13 + $0x90] sm:$0xff]
    %v5403 = vld [vmem:[#allocation13 + $0x98] sm:$0xff]
    %v5404 = vld [vmem:[#allocation13 + $0xa0] sm:$0xff]
    %v5405 = vld [vmem:[#allocation13 + $0xa8] sm:$0xff]
    %v5406 = vld [vmem:[#allocation13 + $0xb0] sm:$0xff]
    %v5407 = vld [vmem:[#allocation13 + $0xb8] sm:$0xff]
    %v5408 = vld [vmem:[#allocation13 + $0xc0] sm:$0xff]
    %v5409 = vld [vmem:[#allocation13 + $0xc8] sm:$0xff]
    %v5410 = vld [vmem:[#allocation13 + $0xd0] sm:$0xff]
    %v5411 = vld [vmem:[#allocation13 + $0xd8] sm:$0xff]
    %v5412 = vld [vmem:[#allocation13 + $0xe0] sm:$0xff]
    %v5413 = vld [vmem:[#allocation13 + $0xe8] sm:$0xff]
    %v5414 = vld [vmem:[#allocation13 + $0xf0] sm:$0xff]
    %v5415 = vld [vmem:[#allocation13 + $0xf8] sm:$0xff]
    %v5416 = vld [vmem:[#allocation13 + $0x100] sm:$0xff]
    %v5417 = vld [vmem:[#allocation13 + $0x108] sm:$0xff]
    %v5418 = vld [vmem:[#allocation13 + $0x110] sm:$0xff]
    %v5419 = vld [vmem:[#allocation13 + $0x118] sm:$0xff]
    %v5420 = vld [vmem:[#allocation13 + $0x120] sm:$0xff]
    %v5421 = vld [vmem:[#allocation13 + $0x128] sm:$0xff]
    %v5422 = vld [vmem:[#allocation13 + $0x130] sm:$0xff]
    %v5423 = vld [vmem:[#allocation13 + $0x138] sm:$0xff]
    %v5424 = vld [vmem:[#allocation13 + $0x140] sm:$0xff]
    %v5425 = vld [vmem:[#allocation13 + $0x148] sm:$0xff]
    %v5426 = vld [vmem:[#allocation13 + $0x150] sm:$0xff]
    %v5427 = vld [vmem:[#allocation13 + $0x158] sm:$0xff]
    %v5428 = vld [vmem:[#allocation13 + $0x160] sm:$0xff]
    %v5429 = vld [vmem:[#allocation13 + $0x168] sm:$0xff]
    %v5430 = vld [vmem:[#allocation13 + $0x170] sm:$0xff]
    %v5431 = vld [vmem:[#allocation13 + $0x178] sm:$0xff]
    %v5432 = vld [vmem:[#allocation13 + $0x180] sm:$0xff]
    %v5433 = vld [vmem:[#allocation13 + $0x188] sm:$0xff]
    %v5434 = vld [vmem:[#allocation13 + $0x190] sm:$0xff]
    %v5435 = vld [vmem:[#allocation13 + $0x198] sm:$0xff]
    %v5436 = vld [vmem:[#allocation13 + $0x1a0] sm:$0xff]
    %v5437 = vld [vmem:[#allocation13 + $0x1a8] sm:$0xff]
    %v5438 = vld [vmem:[#allocation13 + $0x1b0] sm:$0xff]
    %v5439 = vld [vmem:[#allocation13 + $0x1b8] sm:$0xff]
    %v5440 = vld [vmem:[#allocation13 + $0x1c0] sm:$0xff]
    %v5441 = vld [vmem:[#allocation13 + $0x1c8] sm:$0xff]
    %v5442 = vld [vmem:[#allocation13 + $0x1d0] sm:$0xff]
    %v5443 = vld [vmem:[#allocation13 + $0x1d8] sm:$0xff]
    %v5444 = vld [vmem:[#allocation13 + $0x1e0] sm:$0xff]
    %v5445 = vld [vmem:[#allocation13 + $0x1e8] sm:$0xff]
    %v5446 = vld [vmem:[#allocation13 + $0x1f0] sm:$0xff]
    %v5447 = vld [vmem:[#allocation13 + $0x1f8] sm:$0xff]
    %5448 = vmatprep.subr.mxu0 %v5445
    %5449 = vmatpush1.msra.mxu0 %v5444
    %5450 = vmatprep.subr.mxu0 %v5441
    %5451 = vmatpush1.msra.mxu0 %v5440
    %5452 = vmatprep.subr.mxu0 %v5437
    %5453 = vmatpush1.msra.mxu0 %v5436
    %5454 = vmatprep.subr.mxu0 %v5433
    %5455 = vmatpush1.msra.mxu0 %v5432
    %5456 = vmatprep.subr.mxu0 %v5429
    %5457 = vmatpush1.msra.mxu0 %v5428
    %5458 = vmatprep.subr.mxu0 %v5425
    %5459 = vmatpush1.msra.mxu0 %v5424
    %5460 = vmatprep.subr.mxu0 %v5421
    %5461 = vmatpush1.msra.mxu0 %v5420
    %5462 = vmatprep.subr.mxu0 %v5417
    %5463 = vmatpush1.msra.mxu0 %v5416
    %5464 = vmatprep.subr.mxu0 %v5413
    %5465 = vmatpush1.msra.mxu0 %v5412
    %5466 = vmatprep.subr.mxu0 %v5409
    %5467 = vmatpush1.msra.mxu0 %v5408
    %5468 = vmatprep.subr.mxu0 %v5405
    %5469 = vmatpush1.msra.mxu0 %v5404
    %5470 = vmatprep.subr.mxu0 %v5401
    %5471 = vmatpush1.msra.mxu0 %v5400
    %5472 = vmatprep.subr.mxu0 %v5397
    %5473 = vmatpush1.msra.mxu0 %v5396
    %5474 = vmatprep.subr.mxu0 %v5393
    %5475 = vmatpush1.msra.mxu0 %v5392
    %5476 = vmatprep.subr.mxu0 %v5389
    %5477 = vmatpush1.msra.mxu0 %v5388
    %5478 = vmatprep.subr.mxu0 %v5385
    %5479 = vmatpush1.msra.mxu0 %v5384
    %5480 = vmatprep.subr.mxu0 0.0
    %5481 = vmatpush2.msra.mxu0 0.0
    %5482 = vmatprep.subr.mxu0 0.0
    %5483 = vmatpush2.msra.mxu0 0.0
    %5484 = vmatprep.subr.mxu0 0.0
    %5485 = vmatpush2.msra.mxu0 0.0
    %5486 = vmatprep.subr.mxu0 0.0
    %5487 = vmatpush2.msra.mxu0 0.0
    %5488 = vmatprep.subr.mxu0 0.0
    %5489 = vmatpush2.msra.mxu0 0.0
    %5490 = vmatprep.subr.mxu0 0.0
    %5491 = vmatpush2.msra.mxu0 0.0
    %5492 = vmatprep.subr.mxu0 0.0
    %5493 = vmatpush2.msra.mxu0 0.0
    %5494 = vmatprep.subr.mxu0 0.0
    %5495 = vmatpush2.msra.mxu0 0.0
    %5496 = vmatprep.subr.mxu0 0.0
    %5497 = vmatpush2.msra.mxu0 0.0
    %5498 = vmatprep.subr.mxu0 0.0
    %5499 = vmatpush2.msra.mxu0 0.0
    %5500 = vmatprep.subr.mxu0 0.0
    %5501 = vmatpush2.msra.mxu0 0.0
    %5502 = vmatprep.subr.mxu0 0.0
    %5503 = vmatpush2.msra.mxu0 0.0
    %5504 = vmatprep.subr.mxu0 0.0
    %5505 = vmatpush2.msra.mxu0 0.0
    %5506 = vmatprep.subr.mxu0 0.0
    %5507 = vmatpush2.msra.mxu0 0.0
    %5508 = vmatprep.subr.mxu0 0.0
    %5509 = vmatpush2.msra.mxu0 0.0
    %5510 = vmatprep.subr.mxu0 0.0
    %5511 = vmatpush2.msra.mxu0 0.0
    %5512 = vmatprep.mubr.f32.mxu0 0.0
    %5513 = vmatmul.mubr.f32.gmra.mxu0 %v5373
    %v5514 = vpop.f32.mrf.mxu0
    %v5515 = vadd.f32 0.0, %v5514
    %v5516 = vpop.f32.mrf.mxu0
    %v5517 = vadd.f32 0.0, %v5516
    %5518 = vdwg.mxu0
    %5519 = vmatprep.subr.mxu0 %v5447
    %5520 = vmatpush1.msra.mxu0 %v5446
    %5521 = vmatprep.subr.mxu0 %v5443
    %5522 = vmatpush1.msra.mxu0 %v5442
    %5523 = vmatprep.subr.mxu0 %v5439
    %5524 = vmatpush1.msra.mxu0 %v5438
    %5525 = vmatprep.subr.mxu0 %v5435
    %5526 = vmatpush1.msra.mxu0 %v5434
    %5527 = vmatprep.subr.mxu0 %v5431
    %5528 = vmatpush1.msra.mxu0 %v5430
    %5529 = vmatprep.subr.mxu0 %v5427
    %5530 = vmatpush1.msra.mxu0 %v5426
    %5531 = vmatprep.subr.mxu0 %v5423
    %5532 = vmatpush1.msra.mxu0 %v5422
    %5533 = vmatprep.subr.mxu0 %v5419
    %5534 = vmatpush1.msra.mxu0 %v5418
    %5535 = vmatprep.subr.mxu0 %v5415
    %5536 = vmatpush1.msra.mxu0 %v5414
    %5537 = vmatprep.subr.mxu0 %v5411
    %5538 = vmatpush1.msra.mxu0 %v5410
    %5539 = vmatprep.subr.mxu0 %v5407
    %5540 = vmatpush1.msra.mxu0 %v5406
    %5541 = vmatprep.subr.mxu0 %v5403
    %5542 = vmatpush1.msra.mxu0 %v5402
    %5543 = vmatprep.subr.mxu0 %v5399
    %5544 = vmatpush1.msra.mxu0 %v5398
    %5545 = vmatprep.subr.mxu0 %v5395
    %5546 = vmatpush1.msra.mxu0 %v5394
    %5547 = vmatprep.subr.mxu0 %v5391
    %5548 = vmatpush1.msra.mxu0 %v5390
    %5549 = vmatprep.subr.mxu0 %v5387
    %5550 = vmatpush1.msra.mxu0 %v5386
    %5551 = vmatprep.subr.mxu0 0.0
    %5552 = vmatpush2.msra.mxu0 0.0
    %5553 = vmatprep.subr.mxu0 0.0
    %5554 = vmatpush2.msra.mxu0 0.0
    %5555 = vmatprep.subr.mxu0 0.0
    %5556 = vmatpush2.msra.mxu0 0.0
    %5557 = vmatprep.subr.mxu0 0.0
    %5558 = vmatpush2.msra.mxu0 0.0
    %5559 = vmatprep.subr.mxu0 0.0
    %5560 = vmatpush2.msra.mxu0 0.0
    %5561 = vmatprep.subr.mxu0 0.0
    %5562 = vmatpush2.msra.mxu0 0.0
    %5563 = vmatprep.subr.mxu0 0.0
    %5564 = vmatpush2.msra.mxu0 0.0
    %5565 = vmatprep.subr.mxu0 0.0
    %5566 = vmatpush2.msra.mxu0 0.0
    %5567 = vmatprep.subr.mxu0 0.0
    %5568 = vmatpush2.msra.mxu0 0.0
    %5569 = vmatprep.subr.mxu0 0.0
    %5570 = vmatpush2.msra.mxu0 0.0
    %5571 = vmatprep.subr.mxu0 0.0
    %5572 = vmatpush2.msra.mxu0 0.0
    %5573 = vmatprep.subr.mxu0 0.0
    %5574 = vmatpush2.msra.mxu0 0.0
    %5575 = vmatprep.subr.mxu0 0.0
    %5576 = vmatpush2.msra.mxu0 0.0
    %5577 = vmatprep.subr.mxu0 0.0
    %5578 = vmatpush2.msra.mxu0 0.0
    %5579 = vmatprep.subr.mxu0 0.0
    %5580 = vmatpush2.msra.mxu0 0.0
    %5581 = vmatprep.subr.mxu0 0.0
    %5582 = vmatpush2.msra.mxu0 0.0
    %5583 = vmatprep.mubr.f32.mxu0 0.0
    %5584 = vmatmul.mubr.f32.gmra.mxu0 %v5373
    %v5585 = vpop.f32.mrf.mxu0
    %v5586 = vadd.f32 0.0, %v5585
    %v5587 = vpop.f32.mrf.mxu0
    %v5588 = vadd.f32 0.0, %v5587
    %5589 = vdwg.mxu0
    %v5590 = vadd.f32 %v5380, %v5515
    %v5591 = vadd.f32 %v5381, %v5517
    %v5592 = vadd.f32 %v5382, %v5586
    %v5593 = vadd.f32 %v5383, %v5588
    %v5594 = vld [vmem:[#allocation2 + $0x60] sm:$0xc0]
    %v5595 = vld [vmem:[#allocation2 + $0x68] sm:$0xc0]
    %v5596 = vld [vmem:[#allocation2 + $0x70] sm:$0xc0]
    %v5597 = vld [vmem:[#allocation2 + $0x78] sm:$0xc0]
    %v5598 = vld [vmem:[#allocation14] sm:$0xff]
    %v5599 = vld [vmem:[#allocation14 + $0x8] sm:$0xff]
    %v5600 = vld [vmem:[#allocation14 + $0x10] sm:$0xff]
    %v5601 = vld [vmem:[#allocation14 + $0x18] sm:$0xff]
    %v5602 = vld [vmem:[#allocation14 + $0x20] sm:$0xff]
    %v5603 = vld [vmem:[#allocation14 + $0x28] sm:$0xff]
    %v5604 = vld [vmem:[#allocation14 + $0x30] sm:$0xff]
    %v5605 = vld [vmem:[#allocation14 + $0x38] sm:$0xff]
    %v5606 = vld [vmem:[#allocation14 + $0x40] sm:$0xff]
    %v5607 = vld [vmem:[#allocation14 + $0x48] sm:$0xff]
    %v5608 = vld [vmem:[#allocation14 + $0x50] sm:$0xff]
    %v5609 = vld [vmem:[#allocation14 + $0x58] sm:$0xff]
    %v5610 = vld [vmem:[#allocation14 + $0x60] sm:$0xff]
    %v5611 = vld [vmem:[#allocation14 + $0x68] sm:$0xff]
    %v5612 = vld [vmem:[#allocation14 + $0x70] sm:$0xff]
    %v5613 = vld [vmem:[#allocation14 + $0x78] sm:$0xff]
    %v5614 = vld [vmem:[#allocation14 + $0x80] sm:$0xff]
    %v5615 = vld [vmem:[#allocation14 + $0x88] sm:$0xff]
    %v5616 = vld [vmem:[#allocation14 + $0x90] sm:$0xff]
    %v5617 = vld [vmem:[#allocation14 + $0x98] sm:$0xff]
    %v5618 = vld [vmem:[#allocation14 + $0xa0] sm:$0xff]
    %v5619 = vld [vmem:[#allocation14 + $0xa8] sm:$0xff]
    %v5620 = vld [vmem:[#allocation14 + $0xb0] sm:$0xff]
    %v5621 = vld [vmem:[#allocation14 + $0xb8] sm:$0xff]
    %v5622 = vld [vmem:[#allocation14 + $0xc0] sm:$0xff]
    %v5623 = vld [vmem:[#allocation14 + $0xc8] sm:$0xff]
    %v5624 = vld [vmem:[#allocation14 + $0xd0] sm:$0xff]
    %v5625 = vld [vmem:[#allocation14 + $0xd8] sm:$0xff]
    %v5626 = vld [vmem:[#allocation14 + $0xe0] sm:$0xff]
    %v5627 = vld [vmem:[#allocation14 + $0xe8] sm:$0xff]
    %v5628 = vld [vmem:[#allocation14 + $0xf0] sm:$0xff]
    %v5629 = vld [vmem:[#allocation14 + $0xf8] sm:$0xff]
    %v5630 = vld [vmem:[#allocation14 + $0x100] sm:$0xff]
    %v5631 = vld [vmem:[#allocation14 + $0x108] sm:$0xff]
    %v5632 = vld [vmem:[#allocation14 + $0x110] sm:$0xff]
    %v5633 = vld [vmem:[#allocation14 + $0x118] sm:$0xff]
    %v5634 = vld [vmem:[#allocation14 + $0x120] sm:$0xff]
    %v5635 = vld [vmem:[#allocation14 + $0x128] sm:$0xff]
    %v5636 = vld [vmem:[#allocation14 + $0x130] sm:$0xff]
    %v5637 = vld [vmem:[#allocation14 + $0x138] sm:$0xff]
    %v5638 = vld [vmem:[#allocation14 + $0x140] sm:$0xff]
    %v5639 = vld [vmem:[#allocation14 + $0x148] sm:$0xff]
    %v5640 = vld [vmem:[#allocation14 + $0x150] sm:$0xff]
    %v5641 = vld [vmem:[#allocation14 + $0x158] sm:$0xff]
    %v5642 = vld [vmem:[#allocation14 + $0x160] sm:$0xff]
    %v5643 = vld [vmem:[#allocation14 + $0x168] sm:$0xff]
    %v5644 = vld [vmem:[#allocation14 + $0x170] sm:$0xff]
    %v5645 = vld [vmem:[#allocation14 + $0x178] sm:$0xff]
    %v5646 = vld [vmem:[#allocation14 + $0x180] sm:$0xff]
    %v5647 = vld [vmem:[#allocation14 + $0x188] sm:$0xff]
    %v5648 = vld [vmem:[#allocation14 + $0x190] sm:$0xff]
    %v5649 = vld [vmem:[#allocation14 + $0x198] sm:$0xff]
    %v5650 = vld [vmem:[#allocation14 + $0x1a0] sm:$0xff]
    %v5651 = vld [vmem:[#allocation14 + $0x1a8] sm:$0xff]
    %v5652 = vld [vmem:[#allocation14 + $0x1b0] sm:$0xff]
    %v5653 = vld [vmem:[#allocation14 + $0x1b8] sm:$0xff]
    %v5654 = vld [vmem:[#allocation14 + $0x1c0] sm:$0xff]
    %v5655 = vld [vmem:[#allocation14 + $0x1c8] sm:$0xff]
    %v5656 = vld [vmem:[#allocation14 + $0x1d0] sm:$0xff]
    %v5657 = vld [vmem:[#allocation14 + $0x1d8] sm:$0xff]
    %v5658 = vld [vmem:[#allocation14 + $0x1e0] sm:$0xff]
    %v5659 = vld [vmem:[#allocation14 + $0x1e8] sm:$0xff]
    %v5660 = vld [vmem:[#allocation14 + $0x1f0] sm:$0xff]
    %v5661 = vld [vmem:[#allocation14 + $0x1f8] sm:$0xff]
    %5662 = vmatprep.subr.mxu0 %v5659
    %5663 = vmatpush1.msra.mxu0 %v5658
    %5664 = vmatprep.subr.mxu0 %v5655
    %5665 = vmatpush1.msra.mxu0 %v5654
    %5666 = vmatprep.subr.mxu0 %v5651
    %5667 = vmatpush1.msra.mxu0 %v5650
    %5668 = vmatprep.subr.mxu0 %v5647
    %5669 = vmatpush1.msra.mxu0 %v5646
    %5670 = vmatprep.subr.mxu0 %v5643
    %5671 = vmatpush1.msra.mxu0 %v5642
    %5672 = vmatprep.subr.mxu0 %v5639
    %5673 = vmatpush1.msra.mxu0 %v5638
    %5674 = vmatprep.subr.mxu0 %v5635
    %5675 = vmatpush1.msra.mxu0 %v5634
    %5676 = vmatprep.subr.mxu0 %v5631
    %5677 = vmatpush1.msra.mxu0 %v5630
    %5678 = vmatprep.subr.mxu0 %v5627
    %5679 = vmatpush1.msra.mxu0 %v5626
    %5680 = vmatprep.subr.mxu0 %v5623
    %5681 = vmatpush1.msra.mxu0 %v5622
    %5682 = vmatprep.subr.mxu0 %v5619
    %5683 = vmatpush1.msra.mxu0 %v5618
    %5684 = vmatprep.subr.mxu0 %v5615
    %5685 = vmatpush1.msra.mxu0 %v5614
    %5686 = vmatprep.subr.mxu0 %v5611
    %5687 = vmatpush1.msra.mxu0 %v5610
    %5688 = vmatprep.subr.mxu0 %v5607
    %5689 = vmatpush1.msra.mxu0 %v5606
    %5690 = vmatprep.subr.mxu0 %v5603
    %5691 = vmatpush1.msra.mxu0 %v5602
    %5692 = vmatprep.subr.mxu0 %v5599
    %5693 = vmatpush1.msra.mxu0 %v5598
    %5694 = vmatprep.subr.mxu0 0.0
    %5695 = vmatpush2.msra.mxu0 0.0
    %5696 = vmatprep.subr.mxu0 0.0
    %5697 = vmatpush2.msra.mxu0 0.0
    %5698 = vmatprep.subr.mxu0 0.0
    %5699 = vmatpush2.msra.mxu0 0.0
    %5700 = vmatprep.subr.mxu0 0.0
    %5701 = vmatpush2.msra.mxu0 0.0
    %5702 = vmatprep.subr.mxu0 0.0
    %5703 = vmatpush2.msra.mxu0 0.0
    %5704 = vmatprep.subr.mxu0 0.0
    %5705 = vmatpush2.msra.mxu0 0.0
    %5706 = vmatprep.subr.mxu0 0.0
    %5707 = vmatpush2.msra.mxu0 0.0
    %5708 = vmatprep.subr.mxu0 0.0
    %5709 = vmatpush2.msra.mxu0 0.0
    %5710 = vmatprep.subr.mxu0 0.0
    %5711 = vmatpush2.msra.mxu0 0.0
    %5712 = vmatprep.subr.mxu0 0.0
    %5713 = vmatpush2.msra.mxu0 0.0
    %5714 = vmatprep.subr.mxu0 0.0
    %5715 = vmatpush2.msra.mxu0 0.0
    %5716 = vmatprep.subr.mxu0 0.0
    %5717 = vmatpush2.msra.mxu0 0.0
    %5718 = vmatprep.subr.mxu0 0.0
    %5719 = vmatpush2.msra.mxu0 0.0
    %5720 = vmatprep.subr.mxu0 0.0
    %5721 = vmatpush2.msra.mxu0 0.0
    %5722 = vmatprep.subr.mxu0 0.0
    %5723 = vmatpush2.msra.mxu0 0.0
    %5724 = vmatprep.subr.mxu0 0.0
    %5725 = vmatpush2.msra.mxu0 0.0
    %5726 = vmatprep.mubr.f32.mxu0 0.0
    %5727 = vmatmul.mubr.f32.gmra.mxu0 %v5377
    %v5728 = vpop.f32.mrf.mxu0
    %v5729 = vadd.f32 0.0, %v5728
    %v5730 = vpop.f32.mrf.mxu0
    %v5731 = vadd.f32 0.0, %v5730
    %5732 = vdwg.mxu0
    %5733 = vmatprep.subr.mxu0 %v5661
    %5734 = vmatpush1.msra.mxu0 %v5660
    %5735 = vmatprep.subr.mxu0 %v5657
    %5736 = vmatpush1.msra.mxu0 %v5656
    %5737 = vmatprep.subr.mxu0 %v5653
    %5738 = vmatpush1.msra.mxu0 %v5652
    %5739 = vmatprep.subr.mxu0 %v5649
    %5740 = vmatpush1.msra.mxu0 %v5648
    %5741 = vmatprep.subr.mxu0 %v5645
    %5742 = vmatpush1.msra.mxu0 %v5644
    %5743 = vmatprep.subr.mxu0 %v5641
    %5744 = vmatpush1.msra.mxu0 %v5640
    %5745 = vmatprep.subr.mxu0 %v5637
    %5746 = vmatpush1.msra.mxu0 %v5636
    %5747 = vmatprep.subr.mxu0 %v5633
    %5748 = vmatpush1.msra.mxu0 %v5632
    %5749 = vmatprep.subr.mxu0 %v5629
    %5750 = vmatpush1.msra.mxu0 %v5628
    %5751 = vmatprep.subr.mxu0 %v5625
    %5752 = vmatpush1.msra.mxu0 %v5624
    %5753 = vmatprep.subr.mxu0 %v5621
    %5754 = vmatpush1.msra.mxu0 %v5620
    %5755 = vmatprep.subr.mxu0 %v5617
    %5756 = vmatpush1.msra.mxu0 %v5616
    %5757 = vmatprep.subr.mxu0 %v5613
    %5758 = vmatpush1.msra.mxu0 %v5612
    %5759 = vmatprep.subr.mxu0 %v5609
    %5760 = vmatpush1.msra.mxu0 %v5608
    %5761 = vmatprep.subr.mxu0 %v5605
    %5762 = vmatpush1.msra.mxu0 %v5604
    %5763 = vmatprep.subr.mxu0 %v5601
    %5764 = vmatpush1.msra.mxu0 %v5600
    %5765 = vmatprep.subr.mxu0 0.0
    %5766 = vmatpush2.msra.mxu0 0.0
    %5767 = vmatprep.subr.mxu0 0.0
    %5768 = vmatpush2.msra.mxu0 0.0
    %5769 = vmatprep.subr.mxu0 0.0
    %5770 = vmatpush2.msra.mxu0 0.0
    %5771 = vmatprep.subr.mxu0 0.0
    %5772 = vmatpush2.msra.mxu0 0.0
    %5773 = vmatprep.subr.mxu0 0.0
    %5774 = vmatpush2.msra.mxu0 0.0
    %5775 = vmatprep.subr.mxu0 0.0
    %5776 = vmatpush2.msra.mxu0 0.0
    %5777 = vmatprep.subr.mxu0 0.0
    %5778 = vmatpush2.msra.mxu0 0.0
    %5779 = vmatprep.subr.mxu0 0.0
    %5780 = vmatpush2.msra.mxu0 0.0
    %5781 = vmatprep.subr.mxu0 0.0
    %5782 = vmatpush2.msra.mxu0 0.0
    %5783 = vmatprep.subr.mxu0 0.0
    %5784 = vmatpush2.msra.mxu0 0.0
    %5785 = vmatprep.subr.mxu0 0.0
    %5786 = vmatpush2.msra.mxu0 0.0
    %5787 = vmatprep.subr.mxu0 0.0
    %5788 = vmatpush2.msra.mxu0 0.0
    %5789 = vmatprep.subr.mxu0 0.0
    %5790 = vmatpush2.msra.mxu0 0.0
    %5791 = vmatprep.subr.mxu0 0.0
    %5792 = vmatpush2.msra.mxu0 0.0
    %5793 = vmatprep.subr.mxu0 0.0
    %5794 = vmatpush2.msra.mxu0 0.0
    %5795 = vmatprep.subr.mxu0 0.0
    %5796 = vmatpush2.msra.mxu0 0.0
    %5797 = vmatprep.mubr.f32.mxu0 0.0
    %5798 = vmatmul.mubr.f32.gmra.mxu0 %v5377
    %v5799 = vpop.f32.mrf.mxu0
    %v5800 = vadd.f32 0.0, %v5799
    %v5801 = vpop.f32.mrf.mxu0
    %v5802 = vadd.f32 0.0, %v5801
    %5803 = vdwg.mxu0
    %v5808 = vrot.slane %v5729, 2
    %v5809 = vrot.slane %v5731, 2
    %v5810 = vrot.slane %v5800, 2
    %v5811 = vrot.slane %v5802, 2
    %v5816 = vadd.f32 %v5594, %v5808
    %v5817 = vadd.f32 %v5595, %v5809
    %v5818 = vadd.f32 %v5596, %v5810
    %v5819 = vadd.f32 %v5597, %v5811
    %v5820 = vxor.u32 %v5590, 2147483648
    %v5821 = vmul.f32 %v5820, 1.442695
    %v5822 = vpow.pop %v5821
    %v5823 = vadd.f32 %v5822, 1.0
    %v5824 = vrcp.pop %v5823
    %v5825 = vmul.f32 1.0, %v5824
    %v5826 = vxor.u32 %v5591, 2147483648
    %v5827 = vmul.f32 %v5826, 1.442695
    %v5828 = vpow.pop %v5827
    %v5829 = vadd.f32 %v5828, 1.0
    %v5830 = vrcp.pop %v5829
    %v5831 = vmul.f32 1.0, %v5830
    %v5832 = vtanh.pop %v5592
    %v5833 = vxor.u32 %v5593, 2147483648
    %v5834 = vmul.f32 %v5833, 1.442695
    %v5835 = vpow.pop %v5834
    %v5836 = vadd.f32 %v5835, 1.0
    %v5837 = vrcp.pop %v5836
    %v5838 = vmul.f32 1.0, %v5837
    %v5839 = vmul.f32 %v5831, %v5375
    %v5840 = vmul.f32 %v5825, %v5832
    %v5841 = vadd.f32 %v5839, %v5840
    %v5842 = vtanh.pop %v5841
    %v5843 = vmul.f32 %v5838, %v5842
    %v5844 = vxor.u32 %v5816, 2147483648
    %v5845 = vmul.f32 %v5844, 1.442695
    %v5846 = vpow.pop %v5845
    %v5847 = vadd.f32 %v5846, 1.0
    %v5848 = vrcp.pop %v5847
    %v5849 = vmul.f32 1.0, %v5848
    %v5850 = vxor.u32 %v5817, 2147483648
    %v5851 = vmul.f32 %v5850, 1.442695
    %v5852 = vpow.pop %v5851
    %v5853 = vadd.f32 %v5852, 1.0
    %v5854 = vrcp.pop %v5853
    %v5855 = vmul.f32 1.0, %v5854
    %v5856 = vtanh.pop %v5818
    %v5857 = vxor.u32 %v5819, 2147483648
    %v5858 = vmul.f32 %v5857, 1.442695
    %v5859 = vpow.pop %v5858
    %v5860 = vadd.f32 %v5859, 1.0
    %v5861 = vrcp.pop %v5860
    %v5862 = vmul.f32 1.0, %v5861
    %v5864 = vrot.slane %v5379, 2
    %v5866 = vmul.f32 %v5855, %v5864
    %v5867 = vmul.f32 %v5849, %v5856
    %v5868 = vadd.f32 %v5866, %v5867
    %v5869 = vtanh.pop %v5868
    %v5870 = vmul.f32 %v5862, %v5869
    %v5871 = vld [vmem:[#allocation2] sm:$0xc]
    %v5872 = vld [vmem:[#allocation2 + $0x8] sm:$0xc]
    %v5873 = vld [vmem:[#allocation2 + $0x10] sm:$0xc]
    %v5874 = vld [vmem:[#allocation2 + $0x18] sm:$0xc]
    %5875 = vmatprep.subr.mxu0 %v5445
    %5876 = vmatpush1.msra.mxu0 %v5444
    %5877 = vmatprep.subr.mxu0 %v5441
    %5878 = vmatpush1.msra.mxu0 %v5440
    %5879 = vmatprep.subr.mxu0 %v5437
    %5880 = vmatpush1.msra.mxu0 %v5436
    %5881 = vmatprep.subr.mxu0 %v5433
    %5882 = vmatpush1.msra.mxu0 %v5432
    %5883 = vmatprep.subr.mxu0 %v5429
    %5884 = vmatpush1.msra.mxu0 %v5428
    %5885 = vmatprep.subr.mxu0 %v5425
    %5886 = vmatpush1.msra.mxu0 %v5424
    %5887 = vmatprep.subr.mxu0 %v5421
    %5888 = vmatpush1.msra.mxu0 %v5420
    %5889 = vmatprep.subr.mxu0 %v5417
    %5890 = vmatpush1.msra.mxu0 %v5416
    %5891 = vmatprep.subr.mxu0 %v5413
    %5892 = vmatpush1.msra.mxu0 %v5412
    %5893 = vmatprep.subr.mxu0 %v5409
    %5894 = vmatpush1.msra.mxu0 %v5408
    %5895 = vmatprep.subr.mxu0 %v5405
    %5896 = vmatpush1.msra.mxu0 %v5404
    %5897 = vmatprep.subr.mxu0 %v5401
    %5898 = vmatpush1.msra.mxu0 %v5400
    %5899 = vmatprep.subr.mxu0 %v5397
    %5900 = vmatpush1.msra.mxu0 %v5396
    %5901 = vmatprep.subr.mxu0 %v5393
    %5902 = vmatpush1.msra.mxu0 %v5392
    %5903 = vmatprep.subr.mxu0 %v5389
    %5904 = vmatpush1.msra.mxu0 %v5388
    %5905 = vmatprep.subr.mxu0 %v5385
    %5906 = vmatpush1.msra.mxu0 %v5384
    %5907 = vmatprep.subr.mxu0 0.0
    %5908 = vmatpush2.msra.mxu0 0.0
    %5909 = vmatprep.subr.mxu0 0.0
    %5910 = vmatpush2.msra.mxu0 0.0
    %5911 = vmatprep.subr.mxu0 0.0
    %5912 = vmatpush2.msra.mxu0 0.0
    %5913 = vmatprep.subr.mxu0 0.0
    %5914 = vmatpush2.msra.mxu0 0.0
    %5915 = vmatprep.subr.mxu0 0.0
    %5916 = vmatpush2.msra.mxu0 0.0
    %5917 = vmatprep.subr.mxu0 0.0
    %5918 = vmatpush2.msra.mxu0 0.0
    %5919 = vmatprep.subr.mxu0 0.0
    %5920 = vmatpush2.msra.mxu0 0.0
    %5921 = vmatprep.subr.mxu0 0.0
    %5922 = vmatpush2.msra.mxu0 0.0
    %5923 = vmatprep.subr.mxu0 0.0
    %5924 = vmatpush2.msra.mxu0 0.0
    %5925 = vmatprep.subr.mxu0 0.0
    %5926 = vmatpush2.msra.mxu0 0.0
    %5927 = vmatprep.subr.mxu0 0.0
    %5928 = vmatpush2.msra.mxu0 0.0
    %5929 = vmatprep.subr.mxu0 0.0
    %5930 = vmatpush2.msra.mxu0 0.0
    %5931 = vmatprep.subr.mxu0 0.0
    %5932 = vmatpush2.msra.mxu0 0.0
    %5933 = vmatprep.subr.mxu0 0.0
    %5934 = vmatpush2.msra.mxu0 0.0
    %5935 = vmatprep.subr.mxu0 0.0
    %5936 = vmatpush2.msra.mxu0 0.0
    %5937 = vmatprep.subr.mxu0 0.0
    %5938 = vmatpush2.msra.mxu0 0.0
    %5939 = vmatprep.mubr.f32.mxu0 0.0
    %5940 = vmatmul.mubr.f32.gmra.mxu0 %v5843
    %v5941 = vpop.f32.mrf.mxu0
    %v5942 = vadd.f32 0.0, %v5941
    %v5943 = vpop.f32.mrf.mxu0
    %v5944 = vadd.f32 0.0, %v5943
    %5945 = vdwg.mxu0
    %5946 = vmatprep.subr.mxu0 %v5447
    %5947 = vmatpush1.msra.mxu0 %v5446
    %5948 = vmatprep.subr.mxu0 %v5443
    %5949 = vmatpush1.msra.mxu0 %v5442
    %5950 = vmatprep.subr.mxu0 %v5439
    %5951 = vmatpush1.msra.mxu0 %v5438
    %5952 = vmatprep.subr.mxu0 %v5435
    %5953 = vmatpush1.msra.mxu0 %v5434
    %5954 = vmatprep.subr.mxu0 %v5431
    %5955 = vmatpush1.msra.mxu0 %v5430
    %5956 = vmatprep.subr.mxu0 %v5427
    %5957 = vmatpush1.msra.mxu0 %v5426
    %5958 = vmatprep.subr.mxu0 %v5423
    %5959 = vmatpush1.msra.mxu0 %v5422
    %5960 = vmatprep.subr.mxu0 %v5419
    %5961 = vmatpush1.msra.mxu0 %v5418
    %5962 = vmatprep.subr.mxu0 %v5415
    %5963 = vmatpush1.msra.mxu0 %v5414
    %5964 = vmatprep.subr.mxu0 %v5411
    %5965 = vmatpush1.msra.mxu0 %v5410
    %5966 = vmatprep.subr.mxu0 %v5407
    %5967 = vmatpush1.msra.mxu0 %v5406
    %5968 = vmatprep.subr.mxu0 %v5403
    %5969 = vmatpush1.msra.mxu0 %v5402
    %5970 = vmatprep.subr.mxu0 %v5399
    %5971 = vmatpush1.msra.mxu0 %v5398
    %5972 = vmatprep.subr.mxu0 %v5395
    %5973 = vmatpush1.msra.mxu0 %v5394
    %5974 = vmatprep.subr.mxu0 %v5391
    %5975 = vmatpush1.msra.mxu0 %v5390
    %5976 = vmatprep.subr.mxu0 %v5387
    %5977 = vmatpush1.msra.mxu0 %v5386
    %5978 = vmatprep.subr.mxu0 0.0
    %5979 = vmatpush2.msra.mxu0 0.0
    %5980 = vmatprep.subr.mxu0 0.0
    %5981 = vmatpush2.msra.mxu0 0.0
    %5982 = vmatprep.subr.mxu0 0.0
    %5983 = vmatpush2.msra.mxu0 0.0
    %5984 = vmatprep.subr.mxu0 0.0
    %5985 = vmatpush2.msra.mxu0 0.0
    %5986 = vmatprep.subr.mxu0 0.0
    %5987 = vmatpush2.msra.mxu0 0.0
    %5988 = vmatprep.subr.mxu0 0.0
    %5989 = vmatpush2.msra.mxu0 0.0
    %5990 = vmatprep.subr.mxu0 0.0
    %5991 = vmatpush2.msra.mxu0 0.0
    %5992 = vmatprep.subr.mxu0 0.0
    %5993 = vmatpush2.msra.mxu0 0.0
    %5994 = vmatprep.subr.mxu0 0.0
    %5995 = vmatpush2.msra.mxu0 0.0
    %5996 = vmatprep.subr.mxu0 0.0
    %5997 = vmatpush2.msra.mxu0 0.0
    %5998 = vmatprep.subr.mxu0 0.0
    %5999 = vmatpush2.msra.mxu0 0.0
    %6000 = vmatprep.subr.mxu0 0.0
    %6001 = vmatpush2.msra.mxu0 0.0
    %6002 = vmatprep.subr.mxu0 0.0
    %6003 = vmatpush2.msra.mxu0 0.0
    %6004 = vmatprep.subr.mxu0 0.0
    %6005 = vmatpush2.msra.mxu0 0.0
    %6006 = vmatprep.subr.mxu0 0.0
    %6007 = vmatpush2.msra.mxu0 0.0
    %6008 = vmatprep.subr.mxu0 0.0
    %6009 = vmatpush2.msra.mxu0 0.0
    %6010 = vmatprep.mubr.f32.mxu0 0.0
    %6011 = vmatmul.mubr.f32.gmra.mxu0 %v5843
    %v6012 = vpop.f32.mrf.mxu0
    %v6013 = vadd.f32 0.0, %v6012
    %v6014 = vpop.f32.mrf.mxu0
    %v6015 = vadd.f32 0.0, %v6014
    %6016 = vdwg.mxu0
    %v6021 = vrot.slane %v5942, 6
    %v6022 = vrot.slane %v5944, 6
    %v6023 = vrot.slane %v6013, 6
    %v6024 = vrot.slane %v6015, 6
    %v6029 = vadd.f32 %v5871, %v6021
    %v6030 = vadd.f32 %v5872, %v6022
    %v6031 = vadd.f32 %v5873, %v6023
    %v6032 = vadd.f32 %v5874, %v6024
    %v6033 = vld [vmem:[#allocation2 + $0x60] sm:$0x30]
    %v6034 = vld [vmem:[#allocation2 + $0x68] sm:$0x30]
    %v6035 = vld [vmem:[#allocation2 + $0x70] sm:$0x30]
    %v6036 = vld [vmem:[#allocation2 + $0x78] sm:$0x30]
    %v6038 = vrot.slane %v5870, 6
    %6040 = vmatprep.subr.mxu0 %v5659
    %6041 = vmatpush1.msra.mxu0 %v5658
    %6042 = vmatprep.subr.mxu0 %v5655
    %6043 = vmatpush1.msra.mxu0 %v5654
    %6044 = vmatprep.subr.mxu0 %v5651
    %6045 = vmatpush1.msra.mxu0 %v5650
    %6046 = vmatprep.subr.mxu0 %v5647
    %6047 = vmatpush1.msra.mxu0 %v5646
    %6048 = vmatprep.subr.mxu0 %v5643
    %6049 = vmatpush1.msra.mxu0 %v5642
    %6050 = vmatprep.subr.mxu0 %v5639
    %6051 = vmatpush1.msra.mxu0 %v5638
    %6052 = vmatprep.subr.mxu0 %v5635
    %6053 = vmatpush1.msra.mxu0 %v5634
    %6054 = vmatprep.subr.mxu0 %v5631
    %6055 = vmatpush1.msra.mxu0 %v5630
    %6056 = vmatprep.subr.mxu0 %v5627
    %6057 = vmatpush1.msra.mxu0 %v5626
    %6058 = vmatprep.subr.mxu0 %v5623
    %6059 = vmatpush1.msra.mxu0 %v5622
    %6060 = vmatprep.subr.mxu0 %v5619
    %6061 = vmatpush1.msra.mxu0 %v5618
    %6062 = vmatprep.subr.mxu0 %v5615
    %6063 = vmatpush1.msra.mxu0 %v5614
    %6064 = vmatprep.subr.mxu0 %v5611
    %6065 = vmatpush1.msra.mxu0 %v5610
    %6066 = vmatprep.subr.mxu0 %v5607
    %6067 = vmatpush1.msra.mxu0 %v5606
    %6068 = vmatprep.subr.mxu0 %v5603
    %6069 = vmatpush1.msra.mxu0 %v5602
    %6070 = vmatprep.subr.mxu0 %v5599
    %6071 = vmatpush1.msra.mxu0 %v5598
    %6072 = vmatprep.subr.mxu0 0.0
    %6073 = vmatpush2.msra.mxu0 0.0
    %6074 = vmatprep.subr.mxu0 0.0
    %6075 = vmatpush2.msra.mxu0 0.0
    %6076 = vmatprep.subr.mxu0 0.0
    %6077 = vmatpush2.msra.mxu0 0.0
    %6078 = vmatprep.subr.mxu0 0.0
    %6079 = vmatpush2.msra.mxu0 0.0
    %6080 = vmatprep.subr.mxu0 0.0
    %6081 = vmatpush2.msra.mxu0 0.0
    %6082 = vmatprep.subr.mxu0 0.0
    %6083 = vmatpush2.msra.mxu0 0.0
    %6084 = vmatprep.subr.mxu0 0.0
    %6085 = vmatpush2.msra.mxu0 0.0
    %6086 = vmatprep.subr.mxu0 0.0
    %6087 = vmatpush2.msra.mxu0 0.0
    %6088 = vmatprep.subr.mxu0 0.0
    %6089 = vmatpush2.msra.mxu0 0.0
    %6090 = vmatprep.subr.mxu0 0.0
    %6091 = vmatpush2.msra.mxu0 0.0
    %6092 = vmatprep.subr.mxu0 0.0
    %6093 = vmatpush2.msra.mxu0 0.0
    %6094 = vmatprep.subr.mxu0 0.0
    %6095 = vmatpush2.msra.mxu0 0.0
    %6096 = vmatprep.subr.mxu0 0.0
    %6097 = vmatpush2.msra.mxu0 0.0
    %6098 = vmatprep.subr.mxu0 0.0
    %6099 = vmatpush2.msra.mxu0 0.0
    %6100 = vmatprep.subr.mxu0 0.0
    %6101 = vmatpush2.msra.mxu0 0.0
    %6102 = vmatprep.subr.mxu0 0.0
    %6103 = vmatpush2.msra.mxu0 0.0
    %6104 = vmatprep.mubr.f32.mxu0 0.0
    %6105 = vmatmul.mubr.f32.gmra.mxu0 %v6038
    %v6106 = vpop.f32.mrf.mxu0
    %v6107 = vadd.f32 0.0, %v6106
    %v6108 = vpop.f32.mrf.mxu0
    %v6109 = vadd.f32 0.0, %v6108
    %6110 = vdwg.mxu0
    %6111 = vmatprep.subr.mxu0 %v5661
    %6112 = vmatpush1.msra.mxu0 %v5660
    %6113 = vmatprep.subr.mxu0 %v5657
    %6114 = vmatpush1.msra.mxu0 %v5656
    %6115 = vmatprep.subr.mxu0 %v5653
    %6116 = vmatpush1.msra.mxu0 %v5652
    %6117 = vmatprep.subr.mxu0 %v5649
    %6118 = vmatpush1.msra.mxu0 %v5648
    %6119 = vmatprep.subr.mxu0 %v5645
    %6120 = vmatpush1.msra.mxu0 %v5644
    %6121 = vmatprep.subr.mxu0 %v5641
    %6122 = vmatpush1.msra.mxu0 %v5640
    %6123 = vmatprep.subr.mxu0 %v5637
    %6124 = vmatpush1.msra.mxu0 %v5636
    %6125 = vmatprep.subr.mxu0 %v5633
    %6126 = vmatpush1.msra.mxu0 %v5632
    %6127 = vmatprep.subr.mxu0 %v5629
    %6128 = vmatpush1.msra.mxu0 %v5628
    %6129 = vmatprep.subr.mxu0 %v5625
    %6130 = vmatpush1.msra.mxu0 %v5624
    %6131 = vmatprep.subr.mxu0 %v5621
    %6132 = vmatpush1.msra.mxu0 %v5620
    %6133 = vmatprep.subr.mxu0 %v5617
    %6134 = vmatpush1.msra.mxu0 %v5616
    %6135 = vmatprep.subr.mxu0 %v5613
    %6136 = vmatpush1.msra.mxu0 %v5612
    %6137 = vmatprep.subr.mxu0 %v5609
    %6138 = vmatpush1.msra.mxu0 %v5608
    %6139 = vmatprep.subr.mxu0 %v5605
    %6140 = vmatpush1.msra.mxu0 %v5604
    %6141 = vmatprep.subr.mxu0 %v5601
    %6142 = vmatpush1.msra.mxu0 %v5600
    %6143 = vmatprep.subr.mxu0 0.0
    %6144 = vmatpush2.msra.mxu0 0.0
    %6145 = vmatprep.subr.mxu0 0.0
    %6146 = vmatpush2.msra.mxu0 0.0
    %6147 = vmatprep.subr.mxu0 0.0
    %6148 = vmatpush2.msra.mxu0 0.0
    %6149 = vmatprep.subr.mxu0 0.0
    %6150 = vmatpush2.msra.mxu0 0.0
    %6151 = vmatprep.subr.mxu0 0.0
    %6152 = vmatpush2.msra.mxu0 0.0
    %6153 = vmatprep.subr.mxu0 0.0
    %6154 = vmatpush2.msra.mxu0 0.0
    %6155 = vmatprep.subr.mxu0 0.0
    %6156 = vmatpush2.msra.mxu0 0.0
    %6157 = vmatprep.subr.mxu0 0.0
    %6158 = vmatpush2.msra.mxu0 0.0
    %6159 = vmatprep.subr.mxu0 0.0
    %6160 = vmatpush2.msra.mxu0 0.0
    %6161 = vmatprep.subr.mxu0 0.0
    %6162 = vmatpush2.msra.mxu0 0.0
    %6163 = vmatprep.subr.mxu0 0.0
    %6164 = vmatpush2.msra.mxu0 0.0
    %6165 = vmatprep.subr.mxu0 0.0
    %6166 = vmatpush2.msra.mxu0 0.0
    %6167 = vmatprep.subr.mxu0 0.0
    %6168 = vmatpush2.msra.mxu0 0.0
    %6169 = vmatprep.subr.mxu0 0.0
    %6170 = vmatpush2.msra.mxu0 0.0
    %6171 = vmatprep.subr.mxu0 0.0
    %6172 = vmatpush2.msra.mxu0 0.0
    %6173 = vmatprep.subr.mxu0 0.0
    %6174 = vmatpush2.msra.mxu0 0.0
    %6175 = vmatprep.mubr.f32.mxu0 0.0
    %6176 = vmatmul.mubr.f32.gmra.mxu0 %v6038
    %v6177 = vpop.f32.mrf.mxu0
    %v6178 = vadd.f32 0.0, %v6177
    %v6179 = vpop.f32.mrf.mxu0
    %v6180 = vadd.f32 0.0, %v6179
    %6181 = vdwg.mxu0
    %v6186 = vrot.slane %v6107, 4
    %v6187 = vrot.slane %v6109, 4
    %v6188 = vrot.slane %v6178, 4
    %v6189 = vrot.slane %v6180, 4
    %v6194 = vadd.f32 %v6033, %v6186
    %v6195 = vadd.f32 %v6034, %v6187
    %v6196 = vadd.f32 %v6035, %v6188
    %v6197 = vadd.f32 %v6036, %v6189
    %v6198 = vxor.u32 %v6029, 2147483648
    %v6199 = vmul.f32 %v6198, 1.442695
    %v6200 = vpow.pop %v6199
    %v6201 = vadd.f32 %v6200, 1.0
    %v6202 = vrcp.pop %v6201
    %v6203 = vmul.f32 1.0, %v6202
    %v6204 = vxor.u32 %v6030, 2147483648
    %v6205 = vmul.f32 %v6204, 1.442695
    %v6206 = vpow.pop %v6205
    %v6207 = vadd.f32 %v6206, 1.0
    %v6208 = vrcp.pop %v6207
    %v6209 = vmul.f32 1.0, %v6208
    %v6210 = vtanh.pop %v6031
    %v6211 = vxor.u32 %v6032, 2147483648
    %v6212 = vmul.f32 %v6211, 1.442695
    %v6213 = vpow.pop %v6212
    %v6214 = vadd.f32 %v6213, 1.0
    %v6215 = vrcp.pop %v6214
    %v6216 = vmul.f32 1.0, %v6215
    %v6218 = vrot.slane %v5841, 6
    %v6220 = vmul.f32 %v6209, %v6218
    %v6221 = vmul.f32 %v6203, %v6210
    %v6222 = vadd.f32 %v6220, %v6221
    %v6223 = vtanh.pop %v6222
    %v6224 = vmul.f32 %v6216, %v6223
    %v6225 = vxor.u32 %v6194, 2147483648
    %v6226 = vmul.f32 %v6225, 1.442695
    %v6227 = vpow.pop %v6226
    %v6228 = vadd.f32 %v6227, 1.0
    %v6229 = vrcp.pop %v6228
    %v6230 = vmul.f32 1.0, %v6229
    %v6231 = vxor.u32 %v6195, 2147483648
    %v6232 = vmul.f32 %v6231, 1.442695
    %v6233 = vpow.pop %v6232
    %v6234 = vadd.f32 %v6233, 1.0
    %v6235 = vrcp.pop %v6234
    %v6236 = vmul.f32 1.0, %v6235
    %v6237 = vtanh.pop %v6196
    %v6238 = vxor.u32 %v6197, 2147483648
    %v6239 = vmul.f32 %v6238, 1.442695
    %v6240 = vpow.pop %v6239
    %v6241 = vadd.f32 %v6240, 1.0
    %v6242 = vrcp.pop %v6241
    %v6243 = vmul.f32 1.0, %v6242
    %v6245 = vrot.slane %v5868, 2
    %v6247 = vmul.f32 %v6236, %v6245
    %v6248 = vmul.f32 %v6230, %v6237
    %v6249 = vadd.f32 %v6247, %v6248
    %v6250 = vtanh.pop %v6249
    %v6251 = vmul.f32 %v6243, %v6250
    %v6252 = vld [vmem:[#allocation2] sm:$0x30]
    %v6253 = vld [vmem:[#allocation2 + $0x8] sm:$0x30]
    %v6254 = vld [vmem:[#allocation2 + $0x10] sm:$0x30]
    %v6255 = vld [vmem:[#allocation2 + $0x18] sm:$0x30]
    %v6257 = vrot.slane %v6224, 2
    %6259 = vmatprep.subr.mxu0 %v5445
    %6260 = vmatpush1.msra.mxu0 %v5444
    %6261 = vmatprep.subr.mxu0 %v5441
    %6262 = vmatpush1.msra.mxu0 %v5440
    %6263 = vmatprep.subr.mxu0 %v5437
    %6264 = vmatpush1.msra.mxu0 %v5436
    %6265 = vmatprep.subr.mxu0 %v5433
    %6266 = vmatpush1.msra.mxu0 %v5432
    %6267 = vmatprep.subr.mxu0 %v5429
    %6268 = vmatpush1.msra.mxu0 %v5428
    %6269 = vmatprep.subr.mxu0 %v5425
    %6270 = vmatpush1.msra.mxu0 %v5424
    %6271 = vmatprep.subr.mxu0 %v5421
    %6272 = vmatpush1.msra.mxu0 %v5420
    %6273 = vmatprep.subr.mxu0 %v5417
    %6274 = vmatpush1.msra.mxu0 %v5416
    %6275 = vmatprep.subr.mxu0 %v5413
    %6276 = vmatpush1.msra.mxu0 %v5412
    %6277 = vmatprep.subr.mxu0 %v5409
    %6278 = vmatpush1.msra.mxu0 %v5408
    %6279 = vmatprep.subr.mxu0 %v5405
    %6280 = vmatpush1.msra.mxu0 %v5404
    %6281 = vmatprep.subr.mxu0 %v5401
    %6282 = vmatpush1.msra.mxu0 %v5400
    %6283 = vmatprep.subr.mxu0 %v5397
    %6284 = vmatpush1.msra.mxu0 %v5396
    %6285 = vmatprep.subr.mxu0 %v5393
    %6286 = vmatpush1.msra.mxu0 %v5392
    %6287 = vmatprep.subr.mxu0 %v5389
    %6288 = vmatpush1.msra.mxu0 %v5388
    %6289 = vmatprep.subr.mxu0 %v5385
    %6290 = vmatpush1.msra.mxu0 %v5384
    %6291 = vmatprep.subr.mxu0 0.0
    %6292 = vmatpush2.msra.mxu0 0.0
    %6293 = vmatprep.subr.mxu0 0.0
    %6294 = vmatpush2.msra.mxu0 0.0
    %6295 = vmatprep.subr.mxu0 0.0
    %6296 = vmatpush2.msra.mxu0 0.0
    %6297 = vmatprep.subr.mxu0 0.0
    %6298 = vmatpush2.msra.mxu0 0.0
    %6299 = vmatprep.subr.mxu0 0.0
    %6300 = vmatpush2.msra.mxu0 0.0
    %6301 = vmatprep.subr.mxu0 0.0
    %6302 = vmatpush2.msra.mxu0 0.0
    %6303 = vmatprep.subr.mxu0 0.0
    %6304 = vmatpush2.msra.mxu0 0.0
    %6305 = vmatprep.subr.mxu0 0.0
    %6306 = vmatpush2.msra.mxu0 0.0
    %6307 = vmatprep.subr.mxu0 0.0
    %6308 = vmatpush2.msra.mxu0 0.0
    %6309 = vmatprep.subr.mxu0 0.0
    %6310 = vmatpush2.msra.mxu0 0.0
    %6311 = vmatprep.subr.mxu0 0.0
    %6312 = vmatpush2.msra.mxu0 0.0
    %6313 = vmatprep.subr.mxu0 0.0
    %6314 = vmatpush2.msra.mxu0 0.0
    %6315 = vmatprep.subr.mxu0 0.0
    %6316 = vmatpush2.msra.mxu0 0.0
    %6317 = vmatprep.subr.mxu0 0.0
    %6318 = vmatpush2.msra.mxu0 0.0
    %6319 = vmatprep.subr.mxu0 0.0
    %6320 = vmatpush2.msra.mxu0 0.0
    %6321 = vmatprep.subr.mxu0 0.0
    %6322 = vmatpush2.msra.mxu0 0.0
    %6323 = vmatprep.mubr.f32.mxu0 0.0
    %6324 = vmatmul.mubr.f32.gmra.mxu0 %v6257
    %v6325 = vpop.f32.mrf.mxu0
    %v6326 = vadd.f32 0.0, %v6325
    %v6327 = vpop.f32.mrf.mxu0
    %v6328 = vadd.f32 0.0, %v6327
    %6329 = vdwg.mxu0
    %6330 = vmatprep.subr.mxu0 %v5447
    %6331 = vmatpush1.msra.mxu0 %v5446
    %6332 = vmatprep.subr.mxu0 %v5443
    %6333 = vmatpush1.msra.mxu0 %v5442
    %6334 = vmatprep.subr.mxu0 %v5439
    %6335 = vmatpush1.msra.mxu0 %v5438
    %6336 = vmatprep.subr.mxu0 %v5435
    %6337 = vmatpush1.msra.mxu0 %v5434
    %6338 = vmatprep.subr.mxu0 %v5431
    %6339 = vmatpush1.msra.mxu0 %v5430
    %6340 = vmatprep.subr.mxu0 %v5427
    %6341 = vmatpush1.msra.mxu0 %v5426
    %6342 = vmatprep.subr.mxu0 %v5423
    %6343 = vmatpush1.msra.mxu0 %v5422
    %6344 = vmatprep.subr.mxu0 %v5419
    %6345 = vmatpush1.msra.mxu0 %v5418
    %6346 = vmatprep.subr.mxu0 %v5415
    %6347 = vmatpush1.msra.mxu0 %v5414
    %6348 = vmatprep.subr.mxu0 %v5411
    %6349 = vmatpush1.msra.mxu0 %v5410
    %6350 = vmatprep.subr.mxu0 %v5407
    %6351 = vmatpush1.msra.mxu0 %v5406
    %6352 = vmatprep.subr.mxu0 %v5403
    %6353 = vmatpush1.msra.mxu0 %v5402
    %6354 = vmatprep.subr.mxu0 %v5399
    %6355 = vmatpush1.msra.mxu0 %v5398
    %6356 = vmatprep.subr.mxu0 %v5395
    %6357 = vmatpush1.msra.mxu0 %v5394
    %6358 = vmatprep.subr.mxu0 %v5391
    %6359 = vmatpush1.msra.mxu0 %v5390
    %6360 = vmatprep.subr.mxu0 %v5387
    %6361 = vmatpush1.msra.mxu0 %v5386
    %6362 = vmatprep.subr.mxu0 0.0
    %6363 = vmatpush2.msra.mxu0 0.0
    %6364 = vmatprep.subr.mxu0 0.0
    %6365 = vmatpush2.msra.mxu0 0.0
    %6366 = vmatprep.subr.mxu0 0.0
    %6367 = vmatpush2.msra.mxu0 0.0
    %6368 = vmatprep.subr.mxu0 0.0
    %6369 = vmatpush2.msra.mxu0 0.0
    %6370 = vmatprep.subr.mxu0 0.0
    %6371 = vmatpush2.msra.mxu0 0.0
    %6372 = vmatprep.subr.mxu0 0.0
    %6373 = vmatpush2.msra.mxu0 0.0
    %6374 = vmatprep.subr.mxu0 0.0
    %6375 = vmatpush2.msra.mxu0 0.0
    %6376 = vmatprep.subr.mxu0 0.0
    %6377 = vmatpush2.msra.mxu0 0.0
    %6378 = vmatprep.subr.mxu0 0.0
    %6379 = vmatpush2.msra.mxu0 0.0
    %6380 = vmatprep.subr.mxu0 0.0
    %6381 = vmatpush2.msra.mxu0 0.0
    %6382 = vmatprep.subr.mxu0 0.0
    %6383 = vmatpush2.msra.mxu0 0.0
    %6384 = vmatprep.subr.mxu0 0.0
    %6385 = vmatpush2.msra.mxu0 0.0
    %6386 = vmatprep.subr.mxu0 0.0
    %6387 = vmatpush2.msra.mxu0 0.0
    %6388 = vmatprep.subr.mxu0 0.0
    %6389 = vmatpush2.msra.mxu0 0.0
    %6390 = vmatprep.subr.mxu0 0.0
    %6391 = vmatpush2.msra.mxu0 0.0
    %6392 = vmatprep.subr.mxu0 0.0
    %6393 = vmatpush2.msra.mxu0 0.0
    %6394 = vmatprep.mubr.f32.mxu0 0.0
    %6395 = vmatmul.mubr.f32.gmra.mxu0 %v6257
    %v6396 = vpop.f32.mrf.mxu0
    %v6397 = vadd.f32 0.0, %v6396
    %v6398 = vpop.f32.mrf.mxu0
    %v6399 = vadd.f32 0.0, %v6398
    %6400 = vdwg.mxu0
    %v6405 = vrot.slane %v6326, 4
    %v6406 = vrot.slane %v6328, 4
    %v6407 = vrot.slane %v6397, 4
    %v6408 = vrot.slane %v6399, 4
    %v6413 = vadd.f32 %v6252, %v6405
    %v6414 = vadd.f32 %v6253, %v6406
    %v6415 = vadd.f32 %v6254, %v6407
    %v6416 = vadd.f32 %v6255, %v6408
    %v6417 = vld [vmem:[#allocation2 + $0x60] sm:$0xc]
    %v6418 = vld [vmem:[#allocation2 + $0x68] sm:$0xc]
    %v6419 = vld [vmem:[#allocation2 + $0x70] sm:$0xc]
    %v6420 = vld [vmem:[#allocation2 + $0x78] sm:$0xc]
    %v6422 = vrot.slane %v6251, 4
    %6424 = vmatprep.subr.mxu0 %v5659
    %6425 = vmatpush1.msra.mxu0 %v5658
    %6426 = vmatprep.subr.mxu0 %v5655
    %6427 = vmatpush1.msra.mxu0 %v5654
    %6428 = vmatprep.subr.mxu0 %v5651
    %6429 = vmatpush1.msra.mxu0 %v5650
    %6430 = vmatprep.subr.mxu0 %v5647
    %6431 = vmatpush1.msra.mxu0 %v5646
    %6432 = vmatprep.subr.mxu0 %v5643
    %6433 = vmatpush1.msra.mxu0 %v5642
    %6434 = vmatprep.subr.mxu0 %v5639
    %6435 = vmatpush1.msra.mxu0 %v5638
    %6436 = vmatprep.subr.mxu0 %v5635
    %6437 = vmatpush1.msra.mxu0 %v5634
    %6438 = vmatprep.subr.mxu0 %v5631
    %6439 = vmatpush1.msra.mxu0 %v5630
    %6440 = vmatprep.subr.mxu0 %v5627
    %6441 = vmatpush1.msra.mxu0 %v5626
    %6442 = vmatprep.subr.mxu0 %v5623
    %6443 = vmatpush1.msra.mxu0 %v5622
    %6444 = vmatprep.subr.mxu0 %v5619
    %6445 = vmatpush1.msra.mxu0 %v5618
    %6446 = vmatprep.subr.mxu0 %v5615
    %6447 = vmatpush1.msra.mxu0 %v5614
    %6448 = vmatprep.subr.mxu0 %v5611
    %6449 = vmatpush1.msra.mxu0 %v5610
    %6450 = vmatprep.subr.mxu0 %v5607
    %6451 = vmatpush1.msra.mxu0 %v5606
    %6452 = vmatprep.subr.mxu0 %v5603
    %6453 = vmatpush1.msra.mxu0 %v5602
    %6454 = vmatprep.subr.mxu0 %v5599
    %6455 = vmatpush1.msra.mxu0 %v5598
    %6456 = vmatprep.subr.mxu0 0.0
    %6457 = vmatpush2.msra.mxu0 0.0
    %6458 = vmatprep.subr.mxu0 0.0
    %6459 = vmatpush2.msra.mxu0 0.0
    %6460 = vmatprep.subr.mxu0 0.0
    %6461 = vmatpush2.msra.mxu0 0.0
    %6462 = vmatprep.subr.mxu0 0.0
    %6463 = vmatpush2.msra.mxu0 0.0
    %6464 = vmatprep.subr.mxu0 0.0
    %6465 = vmatpush2.msra.mxu0 0.0
    %6466 = vmatprep.subr.mxu0 0.0
    %6467 = vmatpush2.msra.mxu0 0.0
    %6468 = vmatprep.subr.mxu0 0.0
    %6469 = vmatpush2.msra.mxu0 0.0
    %6470 = vmatprep.subr.mxu0 0.0
    %6471 = vmatpush2.msra.mxu0 0.0
    %6472 = vmatprep.subr.mxu0 0.0
    %6473 = vmatpush2.msra.mxu0 0.0
    %6474 = vmatprep.subr.mxu0 0.0
    %6475 = vmatpush2.msra.mxu0 0.0
    %6476 = vmatprep.subr.mxu0 0.0
    %6477 = vmatpush2.msra.mxu0 0.0
    %6478 = vmatprep.subr.mxu0 0.0
    %6479 = vmatpush2.msra.mxu0 0.0
    %6480 = vmatprep.subr.mxu0 0.0
    %6481 = vmatpush2.msra.mxu0 0.0
    %6482 = vmatprep.subr.mxu0 0.0
    %6483 = vmatpush2.msra.mxu0 0.0
    %6484 = vmatprep.subr.mxu0 0.0
    %6485 = vmatpush2.msra.mxu0 0.0
    %6486 = vmatprep.subr.mxu0 0.0
    %6487 = vmatpush2.msra.mxu0 0.0
    %6488 = vmatprep.mubr.f32.mxu0 0.0
    %6489 = vmatmul.mubr.f32.gmra.mxu0 %v6422
    %v6490 = vpop.f32.mrf.mxu0
    %v6491 = vadd.f32 0.0, %v6490
    %v6492 = vpop.f32.mrf.mxu0
    %v6493 = vadd.f32 0.0, %v6492
    %6494 = vdwg.mxu0
    %6495 = vmatprep.subr.mxu0 %v5661
    %6496 = vmatpush1.msra.mxu0 %v5660
    %6497 = vmatprep.subr.mxu0 %v5657
    %6498 = vmatpush1.msra.mxu0 %v5656
    %6499 = vmatprep.subr.mxu0 %v5653
    %6500 = vmatpush1.msra.mxu0 %v5652
    %6501 = vmatprep.subr.mxu0 %v5649
    %6502 = vmatpush1.msra.mxu0 %v5648
    %6503 = vmatprep.subr.mxu0 %v5645
    %6504 = vmatpush1.msra.mxu0 %v5644
    %6505 = vmatprep.subr.mxu0 %v5641
    %6506 = vmatpush1.msra.mxu0 %v5640
    %6507 = vmatprep.subr.mxu0 %v5637
    %6508 = vmatpush1.msra.mxu0 %v5636
    %6509 = vmatprep.subr.mxu0 %v5633
    %6510 = vmatpush1.msra.mxu0 %v5632
    %6511 = vmatprep.subr.mxu0 %v5629
    %6512 = vmatpush1.msra.mxu0 %v5628
    %6513 = vmatprep.subr.mxu0 %v5625
    %6514 = vmatpush1.msra.mxu0 %v5624
    %6515 = vmatprep.subr.mxu0 %v5621
    %6516 = vmatpush1.msra.mxu0 %v5620
    %6517 = vmatprep.subr.mxu0 %v5617
    %6518 = vmatpush1.msra.mxu0 %v5616
    %6519 = vmatprep.subr.mxu0 %v5613
    %6520 = vmatpush1.msra.mxu0 %v5612
    %6521 = vmatprep.subr.mxu0 %v5609
    %6522 = vmatpush1.msra.mxu0 %v5608
    %6523 = vmatprep.subr.mxu0 %v5605
    %6524 = vmatpush1.msra.mxu0 %v5604
    %6525 = vmatprep.subr.mxu0 %v5601
    %6526 = vmatpush1.msra.mxu0 %v5600
    %6527 = vmatprep.subr.mxu0 0.0
    %6528 = vmatpush2.msra.mxu0 0.0
    %6529 = vmatprep.subr.mxu0 0.0
    %6530 = vmatpush2.msra.mxu0 0.0
    %6531 = vmatprep.subr.mxu0 0.0
    %6532 = vmatpush2.msra.mxu0 0.0
    %6533 = vmatprep.subr.mxu0 0.0
    %6534 = vmatpush2.msra.mxu0 0.0
    %6535 = vmatprep.subr.mxu0 0.0
    %6536 = vmatpush2.msra.mxu0 0.0
    %6537 = vmatprep.subr.mxu0 0.0
    %6538 = vmatpush2.msra.mxu0 0.0
    %6539 = vmatprep.subr.mxu0 0.0
    %6540 = vmatpush2.msra.mxu0 0.0
    %6541 = vmatprep.subr.mxu0 0.0
    %6542 = vmatpush2.msra.mxu0 0.0
    %6543 = vmatprep.subr.mxu0 0.0
    %6544 = vmatpush2.msra.mxu0 0.0
    %6545 = vmatprep.subr.mxu0 0.0
    %6546 = vmatpush2.msra.mxu0 0.0
    %6547 = vmatprep.subr.mxu0 0.0
    %6548 = vmatpush2.msra.mxu0 0.0
    %6549 = vmatprep.subr.mxu0 0.0
    %6550 = vmatpush2.msra.mxu0 0.0
    %6551 = vmatprep.subr.mxu0 0.0
    %6552 = vmatpush2.msra.mxu0 0.0
    %6553 = vmatprep.subr.mxu0 0.0
    %6554 = vmatpush2.msra.mxu0 0.0
    %6555 = vmatprep.subr.mxu0 0.0
    %6556 = vmatpush2.msra.mxu0 0.0
    %6557 = vmatprep.subr.mxu0 0.0
    %6558 = vmatpush2.msra.mxu0 0.0
    %6559 = vmatprep.mubr.f32.mxu0 0.0
    %6560 = vmatmul.mubr.f32.gmra.mxu0 %v6422
    %v6561 = vpop.f32.mrf.mxu0
    %v6562 = vadd.f32 0.0, %v6561
    %v6563 = vpop.f32.mrf.mxu0
    %v6564 = vadd.f32 0.0, %v6563
    %6565 = vdwg.mxu0
    %v6570 = vrot.slane %v6491, 6
    %v6571 = vrot.slane %v6493, 6
    %v6572 = vrot.slane %v6562, 6
    %v6573 = vrot.slane %v6564, 6
    %v6578 = vadd.f32 %v6417, %v6570
    %v6579 = vadd.f32 %v6418, %v6571
    %v6580 = vadd.f32 %v6419, %v6572
    %v6581 = vadd.f32 %v6420, %v6573
    %v6582 = vxor.u32 %v6413, 2147483648
    %v6583 = vmul.f32 %v6582, 1.442695
    %v6584 = vpow.pop %v6583
    %v6585 = vadd.f32 %v6584, 1.0
    %v6586 = vrcp.pop %v6585
    %v6587 = vmul.f32 1.0, %v6586
    %v6588 = vxor.u32 %v6414, 2147483648
    %v6589 = vmul.f32 %v6588, 1.442695
    %v6590 = vpow.pop %v6589
    %v6591 = vadd.f32 %v6590, 1.0
    %v6592 = vrcp.pop %v6591
    %v6593 = vmul.f32 1.0, %v6592
    %v6594 = vtanh.pop %v6415
    %v6595 = vxor.u32 %v6416, 2147483648
    %v6596 = vmul.f32 %v6595, 1.442695
    %v6597 = vpow.pop %v6596
    %v6598 = vadd.f32 %v6597, 1.0
    %v6599 = vrcp.pop %v6598
    %v6600 = vmul.f32 1.0, %v6599
    %v6602 = vrot.slane %v6222, 6
    %v6604 = vmul.f32 %v6593, %v6602
    %v6605 = vmul.f32 %v6587, %v6594
    %v6606 = vadd.f32 %v6604, %v6605
    %v6607 = vtanh.pop %v6606
    %v6608 = vmul.f32 %v6600, %v6607
    %v6609 = vxor.u32 %v6578, 2147483648
    %v6610 = vmul.f32 %v6609, 1.442695
    %v6611 = vpow.pop %v6610
    %v6612 = vadd.f32 %v6611, 1.0
    %v6613 = vrcp.pop %v6612
    %v6614 = vmul.f32 1.0, %v6613
    %v6615 = vxor.u32 %v6579, 2147483648
    %v6616 = vmul.f32 %v6615, 1.442695
    %v6617 = vpow.pop %v6616
    %v6618 = vadd.f32 %v6617, 1.0
    %v6619 = vrcp.pop %v6618
    %v6620 = vmul.f32 1.0, %v6619
    %v6621 = vtanh.pop %v6580
    %v6622 = vxor.u32 %v6581, 2147483648
    %v6623 = vmul.f32 %v6622, 1.442695
    %v6624 = vpow.pop %v6623
    %v6625 = vadd.f32 %v6624, 1.0
    %v6626 = vrcp.pop %v6625
    %v6627 = vmul.f32 1.0, %v6626
    %v6629 = vrot.slane %v6249, 2
    %v6631 = vmul.f32 %v6620, %v6629
    %v6632 = vmul.f32 %v6614, %v6621
    %v6633 = vadd.f32 %v6631, %v6632
    %v6634 = vtanh.pop %v6633
    %v6635 = vmul.f32 %v6627, %v6634
    %v6636 = vld [vmem:[#allocation2] sm:$0xc0]
    %v6637 = vld [vmem:[#allocation2 + $0x8] sm:$0xc0]
    %v6638 = vld [vmem:[#allocation2 + $0x10] sm:$0xc0]
    %v6639 = vld [vmem:[#allocation2 + $0x18] sm:$0xc0]
    %v6641 = vrot.slane %v6608, 4
    %6643 = vmatprep.subr.mxu0 %v5445
    %6644 = vmatpush1.msra.mxu0 %v5444
    %6645 = vmatprep.subr.mxu0 %v5441
    %6646 = vmatpush1.msra.mxu0 %v5440
    %6647 = vmatprep.subr.mxu0 %v5437
    %6648 = vmatpush1.msra.mxu0 %v5436
    %6649 = vmatprep.subr.mxu0 %v5433
    %6650 = vmatpush1.msra.mxu0 %v5432
    %6651 = vmatprep.subr.mxu0 %v5429
    %6652 = vmatpush1.msra.mxu0 %v5428
    %6653 = vmatprep.subr.mxu0 %v5425
    %6654 = vmatpush1.msra.mxu0 %v5424
    %6655 = vmatprep.subr.mxu0 %v5421
    %6656 = vmatpush1.msra.mxu0 %v5420
    %6657 = vmatprep.subr.mxu0 %v5417
    %6658 = vmatpush1.msra.mxu0 %v5416
    %6659 = vmatprep.subr.mxu0 %v5413
    %6660 = vmatpush1.msra.mxu0 %v5412
    %6661 = vmatprep.subr.mxu0 %v5409
    %6662 = vmatpush1.msra.mxu0 %v5408
    %6663 = vmatprep.subr.mxu0 %v5405
    %6664 = vmatpush1.msra.mxu0 %v5404
    %6665 = vmatprep.subr.mxu0 %v5401
    %6666 = vmatpush1.msra.mxu0 %v5400
    %6667 = vmatprep.subr.mxu0 %v5397
    %6668 = vmatpush1.msra.mxu0 %v5396
    %6669 = vmatprep.subr.mxu0 %v5393
    %6670 = vmatpush1.msra.mxu0 %v5392
    %6671 = vmatprep.subr.mxu0 %v5389
    %6672 = vmatpush1.msra.mxu0 %v5388
    %6673 = vmatprep.subr.mxu0 %v5385
    %6674 = vmatpush1.msra.mxu0 %v5384
    %6675 = vmatprep.subr.mxu0 0.0
    %6676 = vmatpush2.msra.mxu0 0.0
    %6677 = vmatprep.subr.mxu0 0.0
    %6678 = vmatpush2.msra.mxu0 0.0
    %6679 = vmatprep.subr.mxu0 0.0
    %6680 = vmatpush2.msra.mxu0 0.0
    %6681 = vmatprep.subr.mxu0 0.0
    %6682 = vmatpush2.msra.mxu0 0.0
    %6683 = vmatprep.subr.mxu0 0.0
    %6684 = vmatpush2.msra.mxu0 0.0
    %6685 = vmatprep.subr.mxu0 0.0
    %6686 = vmatpush2.msra.mxu0 0.0
    %6687 = vmatprep.subr.mxu0 0.0
    %6688 = vmatpush2.msra.mxu0 0.0
    %6689 = vmatprep.subr.mxu0 0.0
    %6690 = vmatpush2.msra.mxu0 0.0
    %6691 = vmatprep.subr.mxu0 0.0
    %6692 = vmatpush2.msra.mxu0 0.0
    %6693 = vmatprep.subr.mxu0 0.0
    %6694 = vmatpush2.msra.mxu0 0.0
    %6695 = vmatprep.subr.mxu0 0.0
    %6696 = vmatpush2.msra.mxu0 0.0
    %6697 = vmatprep.subr.mxu0 0.0
    %6698 = vmatpush2.msra.mxu0 0.0
    %6699 = vmatprep.subr.mxu0 0.0
    %6700 = vmatpush2.msra.mxu0 0.0
    %6701 = vmatprep.subr.mxu0 0.0
    %6702 = vmatpush2.msra.mxu0 0.0
    %6703 = vmatprep.subr.mxu0 0.0
    %6704 = vmatpush2.msra.mxu0 0.0
    %6705 = vmatprep.subr.mxu0 0.0
    %6706 = vmatpush2.msra.mxu0 0.0
    %6707 = vmatprep.mubr.f32.mxu0 0.0
    %6708 = vmatmul.mubr.f32.gmra.mxu0 %v6641
    %v6709 = vpop.f32.mrf.mxu0
    %v6710 = vadd.f32 0.0, %v6709
    %v6711 = vpop.f32.mrf.mxu0
    %v6712 = vadd.f32 0.0, %v6711
    %6713 = vdwg.mxu0
    %6714 = vmatprep.subr.mxu0 %v5447
    %6715 = vmatpush1.msra.mxu0 %v5446
    %6716 = vmatprep.subr.mxu0 %v5443
    %6717 = vmatpush1.msra.mxu0 %v5442
    %6718 = vmatprep.subr.mxu0 %v5439
    %6719 = vmatpush1.msra.mxu0 %v5438
    %6720 = vmatprep.subr.mxu0 %v5435
    %6721 = vmatpush1.msra.mxu0 %v5434
    %6722 = vmatprep.subr.mxu0 %v5431
    %6723 = vmatpush1.msra.mxu0 %v5430
    %6724 = vmatprep.subr.mxu0 %v5427
    %6725 = vmatpush1.msra.mxu0 %v5426
    %6726 = vmatprep.subr.mxu0 %v5423
    %6727 = vmatpush1.msra.mxu0 %v5422
    %6728 = vmatprep.subr.mxu0 %v5419
    %6729 = vmatpush1.msra.mxu0 %v5418
    %6730 = vmatprep.subr.mxu0 %v5415
    %6731 = vmatpush1.msra.mxu0 %v5414
    %6732 = vmatprep.subr.mxu0 %v5411
    %6733 = vmatpush1.msra.mxu0 %v5410
    %6734 = vmatprep.subr.mxu0 %v5407
    %6735 = vmatpush1.msra.mxu0 %v5406
    %6736 = vmatprep.subr.mxu0 %v5403
    %6737 = vmatpush1.msra.mxu0 %v5402
    %6738 = vmatprep.subr.mxu0 %v5399
    %6739 = vmatpush1.msra.mxu0 %v5398
    %6740 = vmatprep.subr.mxu0 %v5395
    %6741 = vmatpush1.msra.mxu0 %v5394
    %6742 = vmatprep.subr.mxu0 %v5391
    %6743 = vmatpush1.msra.mxu0 %v5390
    %6744 = vmatprep.subr.mxu0 %v5387
    %6745 = vmatpush1.msra.mxu0 %v5386
    %6746 = vmatprep.subr.mxu0 0.0
    %6747 = vmatpush2.msra.mxu0 0.0
    %6748 = vmatprep.subr.mxu0 0.0
    %6749 = vmatpush2.msra.mxu0 0.0
    %6750 = vmatprep.subr.mxu0 0.0
    %6751 = vmatpush2.msra.mxu0 0.0
    %6752 = vmatprep.subr.mxu0 0.0
    %6753 = vmatpush2.msra.mxu0 0.0
    %6754 = vmatprep.subr.mxu0 0.0
    %6755 = vmatpush2.msra.mxu0 0.0
    %6756 = vmatprep.subr.mxu0 0.0
    %6757 = vmatpush2.msra.mxu0 0.0
    %6758 = vmatprep.subr.mxu0 0.0
    %6759 = vmatpush2.msra.mxu0 0.0
    %6760 = vmatprep.subr.mxu0 0.0
    %6761 = vmatpush2.msra.mxu0 0.0
    %6762 = vmatprep.subr.mxu0 0.0
    %6763 = vmatpush2.msra.mxu0 0.0
    %6764 = vmatprep.subr.mxu0 0.0
    %6765 = vmatpush2.msra.mxu0 0.0
    %6766 = vmatprep.subr.mxu0 0.0
    %6767 = vmatpush2.msra.mxu0 0.0
    %6768 = vmatprep.subr.mxu0 0.0
    %6769 = vmatpush2.msra.mxu0 0.0
    %6770 = vmatprep.subr.mxu0 0.0
    %6771 = vmatpush2.msra.mxu0 0.0
    %6772 = vmatprep.subr.mxu0 0.0
    %6773 = vmatpush2.msra.mxu0 0.0
    %6774 = vmatprep.subr.mxu0 0.0
    %6775 = vmatpush2.msra.mxu0 0.0
    %6776 = vmatprep.subr.mxu0 0.0
    %6777 = vmatpush2.msra.mxu0 0.0
    %6778 = vmatprep.mubr.f32.mxu0 0.0
    %6779 = vmatmul.mubr.f32.gmra.mxu0 %v6641
    %v6780 = vpop.f32.mrf.mxu0
    %v6781 = vadd.f32 0.0, %v6780
    %v6782 = vpop.f32.mrf.mxu0
    %v6783 = vadd.f32 0.0, %v6782
    %6784 = vdwg.mxu0
    %v6789 = vrot.slane %v6710, 2
    %v6790 = vrot.slane %v6712, 2
    %v6791 = vrot.slane %v6781, 2
    %v6792 = vrot.slane %v6783, 2
    %v6797 = vadd.f32 %v6636, %v6789
    %v6798 = vadd.f32 %v6637, %v6790
    %v6799 = vadd.f32 %v6638, %v6791
    %v6800 = vadd.f32 %v6639, %v6792
    %v6801 = vld [vmem:[#allocation2 + $0x60] sm:$0x3]
    %v6802 = vld [vmem:[#allocation2 + $0x68] sm:$0x3]
    %v6803 = vld [vmem:[#allocation2 + $0x70] sm:$0x3]
    %v6804 = vld [vmem:[#allocation2 + $0x78] sm:$0x3]
    %v6806 = vrot.slane %v6635, 2
    %6808 = vmatprep.subr.mxu0 %v5659
    %6809 = vmatpush1.msra.mxu0 %v5658
    %6810 = vmatprep.subr.mxu0 %v5655
    %6811 = vmatpush1.msra.mxu0 %v5654
    %6812 = vmatprep.subr.mxu0 %v5651
    %6813 = vmatpush1.msra.mxu0 %v5650
    %6814 = vmatprep.subr.mxu0 %v5647
    %6815 = vmatpush1.msra.mxu0 %v5646
    %6816 = vmatprep.subr.mxu0 %v5643
    %6817 = vmatpush1.msra.mxu0 %v5642
    %6818 = vmatprep.subr.mxu0 %v5639
    %6819 = vmatpush1.msra.mxu0 %v5638
    %6820 = vmatprep.subr.mxu0 %v5635
    %6821 = vmatpush1.msra.mxu0 %v5634
    %6822 = vmatprep.subr.mxu0 %v5631
    %6823 = vmatpush1.msra.mxu0 %v5630
    %6824 = vmatprep.subr.mxu0 %v5627
    %6825 = vmatpush1.msra.mxu0 %v5626
    %6826 = vmatprep.subr.mxu0 %v5623
    %6827 = vmatpush1.msra.mxu0 %v5622
    %6828 = vmatprep.subr.mxu0 %v5619
    %6829 = vmatpush1.msra.mxu0 %v5618
    %6830 = vmatprep.subr.mxu0 %v5615
    %6831 = vmatpush1.msra.mxu0 %v5614
    %6832 = vmatprep.subr.mxu0 %v5611
    %6833 = vmatpush1.msra.mxu0 %v5610
    %6834 = vmatprep.subr.mxu0 %v5607
    %6835 = vmatpush1.msra.mxu0 %v5606
    %6836 = vmatprep.subr.mxu0 %v5603
    %6837 = vmatpush1.msra.mxu0 %v5602
    %6838 = vmatprep.subr.mxu0 %v5599
    %6839 = vmatpush1.msra.mxu0 %v5598
    %6840 = vmatprep.subr.mxu0 0.0
    %6841 = vmatpush2.msra.mxu0 0.0
    %6842 = vmatprep.subr.mxu0 0.0
    %6843 = vmatpush2.msra.mxu0 0.0
    %6844 = vmatprep.subr.mxu0 0.0
    %6845 = vmatpush2.msra.mxu0 0.0
    %6846 = vmatprep.subr.mxu0 0.0
    %6847 = vmatpush2.msra.mxu0 0.0
    %6848 = vmatprep.subr.mxu0 0.0
    %6849 = vmatpush2.msra.mxu0 0.0
    %6850 = vmatprep.subr.mxu0 0.0
    %6851 = vmatpush2.msra.mxu0 0.0
    %6852 = vmatprep.subr.mxu0 0.0
    %6853 = vmatpush2.msra.mxu0 0.0
    %6854 = vmatprep.subr.mxu0 0.0
    %6855 = vmatpush2.msra.mxu0 0.0
    %6856 = vmatprep.subr.mxu0 0.0
    %6857 = vmatpush2.msra.mxu0 0.0
    %6858 = vmatprep.subr.mxu0 0.0
    %6859 = vmatpush2.msra.mxu0 0.0
    %6860 = vmatprep.subr.mxu0 0.0
    %6861 = vmatpush2.msra.mxu0 0.0
    %6862 = vmatprep.subr.mxu0 0.0
    %6863 = vmatpush2.msra.mxu0 0.0
    %6864 = vmatprep.subr.mxu0 0.0
    %6865 = vmatpush2.msra.mxu0 0.0
    %6866 = vmatprep.subr.mxu0 0.0
    %6867 = vmatpush2.msra.mxu0 0.0
    %6868 = vmatprep.subr.mxu0 0.0
    %6869 = vmatpush2.msra.mxu0 0.0
    %6870 = vmatprep.subr.mxu0 0.0
    %6871 = vmatpush2.msra.mxu0 0.0
    %6872 = vmatprep.mubr.f32.mxu0 0.0
    %6873 = vmatmul.mubr.f32.gmra.mxu0 %v6806
    %v6874 = vpop.f32.mrf.mxu0
    %v6875 = vadd.f32 0.0, %v6874
    %v6876 = vpop.f32.mrf.mxu0
    %v6877 = vadd.f32 0.0, %v6876
    %6878 = vdwg.mxu0
    %6879 = vmatprep.subr.mxu0 %v5661
    %6880 = vmatpush1.msra.mxu0 %v5660
    %6881 = vmatprep.subr.mxu0 %v5657
    %6882 = vmatpush1.msra.mxu0 %v5656
    %6883 = vmatprep.subr.mxu0 %v5653
    %6884 = vmatpush1.msra.mxu0 %v5652
    %6885 = vmatprep.subr.mxu0 %v5649
    %6886 = vmatpush1.msra.mxu0 %v5648
    %6887 = vmatprep.subr.mxu0 %v5645
    %6888 = vmatpush1.msra.mxu0 %v5644
    %6889 = vmatprep.subr.mxu0 %v5641
    %6890 = vmatpush1.msra.mxu0 %v5640
    %6891 = vmatprep.subr.mxu0 %v5637
    %6892 = vmatpush1.msra.mxu0 %v5636
    %6893 = vmatprep.subr.mxu0 %v5633
    %6894 = vmatpush1.msra.mxu0 %v5632
    %6895 = vmatprep.subr.mxu0 %v5629
    %6896 = vmatpush1.msra.mxu0 %v5628
    %6897 = vmatprep.subr.mxu0 %v5625
    %6898 = vmatpush1.msra.mxu0 %v5624
    %6899 = vmatprep.subr.mxu0 %v5621
    %6900 = vmatpush1.msra.mxu0 %v5620
    %6901 = vmatprep.subr.mxu0 %v5617
    %6902 = vmatpush1.msra.mxu0 %v5616
    %6903 = vmatprep.subr.mxu0 %v5613
    %6904 = vmatpush1.msra.mxu0 %v5612
    %6905 = vmatprep.subr.mxu0 %v5609
    %6906 = vmatpush1.msra.mxu0 %v5608
    %6907 = vmatprep.subr.mxu0 %v5605
    %6908 = vmatpush1.msra.mxu0 %v5604
    %6909 = vmatprep.subr.mxu0 %v5601
    %6910 = vmatpush1.msra.mxu0 %v5600
    %6911 = vmatprep.subr.mxu0 0.0
    %6912 = vmatpush2.msra.mxu0 0.0
    %6913 = vmatprep.subr.mxu0 0.0
    %6914 = vmatpush2.msra.mxu0 0.0
    %6915 = vmatprep.subr.mxu0 0.0
    %6916 = vmatpush2.msra.mxu0 0.0
    %6917 = vmatprep.subr.mxu0 0.0
    %6918 = vmatpush2.msra.mxu0 0.0
    %6919 = vmatprep.subr.mxu0 0.0
    %6920 = vmatpush2.msra.mxu0 0.0
    %6921 = vmatprep.subr.mxu0 0.0
    %6922 = vmatpush2.msra.mxu0 0.0
    %6923 = vmatprep.subr.mxu0 0.0
    %6924 = vmatpush2.msra.mxu0 0.0
    %6925 = vmatprep.subr.mxu0 0.0
    %6926 = vmatpush2.msra.mxu0 0.0
    %6927 = vmatprep.subr.mxu0 0.0
    %6928 = vmatpush2.msra.mxu0 0.0
    %6929 = vmatprep.subr.mxu0 0.0
    %6930 = vmatpush2.msra.mxu0 0.0
    %6931 = vmatprep.subr.mxu0 0.0
    %6932 = vmatpush2.msra.mxu0 0.0
    %6933 = vmatprep.subr.mxu0 0.0
    %6934 = vmatpush2.msra.mxu0 0.0
    %6935 = vmatprep.subr.mxu0 0.0
    %6936 = vmatpush2.msra.mxu0 0.0
    %6937 = vmatprep.subr.mxu0 0.0
    %6938 = vmatpush2.msra.mxu0 0.0
    %6939 = vmatprep.subr.mxu0 0.0
    %6940 = vmatpush2.msra.mxu0 0.0
    %6941 = vmatprep.subr.mxu0 0.0
    %6942 = vmatpush2.msra.mxu0 0.0
    %6943 = vmatprep.mubr.f32.mxu0 0.0
    %6944 = vmatmul.mubr.f32.gmra.mxu0 %v6806
    %v6945 = vpop.f32.mrf.mxu0
    %v6946 = vadd.f32 0.0, %v6945
    %v6947 = vpop.f32.mrf.mxu0
    %v6948 = vadd.f32 0.0, %v6947
    %6949 = vdwg.mxu0
    %v6950 = vadd.f32 %v6801, %v6875
    %v6951 = vadd.f32 %v6802, %v6877
    %v6952 = vadd.f32 %v6803, %v6946
    %v6953 = vadd.f32 %v6804, %v6948
    %v6954 = vxor.u32 %v6797, 2147483648
    %v6955 = vmul.f32 %v6954, 1.442695
    %v6956 = vpow.pop %v6955
    %v6957 = vadd.f32 %v6956, 1.0
    %v6958 = vrcp.pop %v6957
    %v6959 = vmul.f32 1.0, %v6958
    %v6960 = vxor.u32 %v6798, 2147483648
    %v6961 = vmul.f32 %v6960, 1.442695
    %v6962 = vpow.pop %v6961
    %v6963 = vadd.f32 %v6962, 1.0
    %v6964 = vrcp.pop %v6963
    %v6965 = vmul.f32 1.0, %v6964
    %v6966 = vtanh.pop %v6799
    %v6967 = vxor.u32 %v6800, 2147483648
    %v6968 = vmul.f32 %v6967, 1.442695
    %v6969 = vpow.pop %v6968
    %v6970 = vadd.f32 %v6969, 1.0
    %v6971 = vrcp.pop %v6970
    %v6972 = vmul.f32 1.0, %v6971
    %v6974 = vrot.slane %v6606, 6
    %v6976 = vmul.f32 %v6965, %v6974
    %v6977 = vmul.f32 %v6959, %v6966
    %v6978 = vadd.f32 %v6976, %v6977
    %v6979 = vtanh.pop %v6978
    %v6980 = vmul.f32 %v6972, %v6979
    %v6981 = vxor.u32 %v6950, 2147483648
    %v6982 = vmul.f32 %v6981, 1.442695
    %v6983 = vpow.pop %v6982
    %v6984 = vadd.f32 %v6983, 1.0
    %v6985 = vrcp.pop %v6984
    %v6986 = vmul.f32 1.0, %v6985
    %v6987 = vxor.u32 %v6951, 2147483648
    %v6988 = vmul.f32 %v6987, 1.442695
    %v6989 = vpow.pop %v6988
    %v6990 = vadd.f32 %v6989, 1.0
    %v6991 = vrcp.pop %v6990
    %v6992 = vmul.f32 1.0, %v6991
    %v6993 = vtanh.pop %v6952
    %v6994 = vxor.u32 %v6953, 2147483648
    %v6995 = vmul.f32 %v6994, 1.442695
    %v6996 = vpow.pop %v6995
    %v6997 = vadd.f32 %v6996, 1.0
    %v6998 = vrcp.pop %v6997
    %v6999 = vmul.f32 1.0, %v6998
    %v7001 = vrot.slane %v6633, 2
    %v7003 = vmul.f32 %v6992, %v7001
    %v7004 = vmul.f32 %v6986, %v6993
    %v7005 = vadd.f32 %v7003, %v7004
    %v7006 = vtanh.pop %v7005
    %v7007 = vmul.f32 %v6999, %v7006
    %v7008 = vld [vmem:[#allocation2 + $0x40] sm:$0x3]
    %v7009 = vld [vmem:[#allocation2 + $0x48] sm:$0x3]
    %v7010 = vld [vmem:[#allocation2 + $0x50] sm:$0x3]
    %v7011 = vld [vmem:[#allocation2 + $0x58] sm:$0x3]
    %v7013 = vrot.slane %v6980, 6
    %7015 = vmatprep.subr.mxu0 %v5445
    %7016 = vmatpush1.msra.mxu0 %v5444
    %7017 = vmatprep.subr.mxu0 %v5441
    %7018 = vmatpush1.msra.mxu0 %v5440
    %7019 = vmatprep.subr.mxu0 %v5437
    %7020 = vmatpush1.msra.mxu0 %v5436
    %7021 = vmatprep.subr.mxu0 %v5433
    %7022 = vmatpush1.msra.mxu0 %v5432
    %7023 = vmatprep.subr.mxu0 %v5429
    %7024 = vmatpush1.msra.mxu0 %v5428
    %7025 = vmatprep.subr.mxu0 %v5425
    %7026 = vmatpush1.msra.mxu0 %v5424
    %7027 = vmatprep.subr.mxu0 %v5421
    %7028 = vmatpush1.msra.mxu0 %v5420
    %7029 = vmatprep.subr.mxu0 %v5417
    %7030 = vmatpush1.msra.mxu0 %v5416
    %7031 = vmatprep.subr.mxu0 %v5413
    %7032 = vmatpush1.msra.mxu0 %v5412
    %7033 = vmatprep.subr.mxu0 %v5409
    %7034 = vmatpush1.msra.mxu0 %v5408
    %7035 = vmatprep.subr.mxu0 %v5405
    %7036 = vmatpush1.msra.mxu0 %v5404
    %7037 = vmatprep.subr.mxu0 %v5401
    %7038 = vmatpush1.msra.mxu0 %v5400
    %7039 = vmatprep.subr.mxu0 %v5397
    %7040 = vmatpush1.msra.mxu0 %v5396
    %7041 = vmatprep.subr.mxu0 %v5393
    %7042 = vmatpush1.msra.mxu0 %v5392
    %7043 = vmatprep.subr.mxu0 %v5389
    %7044 = vmatpush1.msra.mxu0 %v5388
    %7045 = vmatprep.subr.mxu0 %v5385
    %7046 = vmatpush1.msra.mxu0 %v5384
    %7047 = vmatprep.subr.mxu0 0.0
    %7048 = vmatpush2.msra.mxu0 0.0
    %7049 = vmatprep.subr.mxu0 0.0
    %7050 = vmatpush2.msra.mxu0 0.0
    %7051 = vmatprep.subr.mxu0 0.0
    %7052 = vmatpush2.msra.mxu0 0.0
    %7053 = vmatprep.subr.mxu0 0.0
    %7054 = vmatpush2.msra.mxu0 0.0
    %7055 = vmatprep.subr.mxu0 0.0
    %7056 = vmatpush2.msra.mxu0 0.0
    %7057 = vmatprep.subr.mxu0 0.0
    %7058 = vmatpush2.msra.mxu0 0.0
    %7059 = vmatprep.subr.mxu0 0.0
    %7060 = vmatpush2.msra.mxu0 0.0
    %7061 = vmatprep.subr.mxu0 0.0
    %7062 = vmatpush2.msra.mxu0 0.0
    %7063 = vmatprep.subr.mxu0 0.0
    %7064 = vmatpush2.msra.mxu0 0.0
    %7065 = vmatprep.subr.mxu0 0.0
    %7066 = vmatpush2.msra.mxu0 0.0
    %7067 = vmatprep.subr.mxu0 0.0
    %7068 = vmatpush2.msra.mxu0 0.0
    %7069 = vmatprep.subr.mxu0 0.0
    %7070 = vmatpush2.msra.mxu0 0.0
    %7071 = vmatprep.subr.mxu0 0.0
    %7072 = vmatpush2.msra.mxu0 0.0
    %7073 = vmatprep.subr.mxu0 0.0
    %7074 = vmatpush2.msra.mxu0 0.0
    %7075 = vmatprep.subr.mxu0 0.0
    %7076 = vmatpush2.msra.mxu0 0.0
    %7077 = vmatprep.subr.mxu0 0.0
    %7078 = vmatpush2.msra.mxu0 0.0
    %7079 = vmatprep.mubr.f32.mxu0 0.0
    %7080 = vmatmul.mubr.f32.gmra.mxu0 %v7013
    %v7081 = vpop.f32.mrf.mxu0
    %v7082 = vadd.f32 0.0, %v7081
    %v7083 = vpop.f32.mrf.mxu0
    %v7084 = vadd.f32 0.0, %v7083
    %7085 = vdwg.mxu0
    %7086 = vmatprep.subr.mxu0 %v5447
    %7087 = vmatpush1.msra.mxu0 %v5446
    %7088 = vmatprep.subr.mxu0 %v5443
    %7089 = vmatpush1.msra.mxu0 %v5442
    %7090 = vmatprep.subr.mxu0 %v5439
    %7091 = vmatpush1.msra.mxu0 %v5438
    %7092 = vmatprep.subr.mxu0 %v5435
    %7093 = vmatpush1.msra.mxu0 %v5434
    %7094 = vmatprep.subr.mxu0 %v5431
    %7095 = vmatpush1.msra.mxu0 %v5430
    %7096 = vmatprep.subr.mxu0 %v5427
    %7097 = vmatpush1.msra.mxu0 %v5426
    %7098 = vmatprep.subr.mxu0 %v5423
    %7099 = vmatpush1.msra.mxu0 %v5422
    %7100 = vmatprep.subr.mxu0 %v5419
    %7101 = vmatpush1.msra.mxu0 %v5418
    %7102 = vmatprep.subr.mxu0 %v5415
    %7103 = vmatpush1.msra.mxu0 %v5414
    %7104 = vmatprep.subr.mxu0 %v5411
    %7105 = vmatpush1.msra.mxu0 %v5410
    %7106 = vmatprep.subr.mxu0 %v5407
    %7107 = vmatpush1.msra.mxu0 %v5406
    %7108 = vmatprep.subr.mxu0 %v5403
    %7109 = vmatpush1.msra.mxu0 %v5402
    %7110 = vmatprep.subr.mxu0 %v5399
    %7111 = vmatpush1.msra.mxu0 %v5398
    %7112 = vmatprep.subr.mxu0 %v5395
    %7113 = vmatpush1.msra.mxu0 %v5394
    %7114 = vmatprep.subr.mxu0 %v5391
    %7115 = vmatpush1.msra.mxu0 %v5390
    %7116 = vmatprep.subr.mxu0 %v5387
    %7117 = vmatpush1.msra.mxu0 %v5386
    %7118 = vmatprep.subr.mxu0 0.0
    %7119 = vmatpush2.msra.mxu0 0.0
    %7120 = vmatprep.subr.mxu0 0.0
    %7121 = vmatpush2.msra.mxu0 0.0
    %7122 = vmatprep.subr.mxu0 0.0
    %7123 = vmatpush2.msra.mxu0 0.0
    %7124 = vmatprep.subr.mxu0 0.0
    %7125 = vmatpush2.msra.mxu0 0.0
    %7126 = vmatprep.subr.mxu0 0.0
    %7127 = vmatpush2.msra.mxu0 0.0
    %7128 = vmatprep.subr.mxu0 0.0
    %7129 = vmatpush2.msra.mxu0 0.0
    %7130 = vmatprep.subr.mxu0 0.0
    %7131 = vmatpush2.msra.mxu0 0.0
    %7132 = vmatprep.subr.mxu0 0.0
    %7133 = vmatpush2.msra.mxu0 0.0
    %7134 = vmatprep.subr.mxu0 0.0
    %7135 = vmatpush2.msra.mxu0 0.0
    %7136 = vmatprep.subr.mxu0 0.0
    %7137 = vmatpush2.msra.mxu0 0.0
    %7138 = vmatprep.subr.mxu0 0.0
    %7139 = vmatpush2.msra.mxu0 0.0
    %7140 = vmatprep.subr.mxu0 0.0
    %7141 = vmatpush2.msra.mxu0 0.0
    %7142 = vmatprep.subr.mxu0 0.0
    %7143 = vmatpush2.msra.mxu0 0.0
    %7144 = vmatprep.subr.mxu0 0.0
    %7145 = vmatpush2.msra.mxu0 0.0
    %7146 = vmatprep.subr.mxu0 0.0
    %7147 = vmatpush2.msra.mxu0 0.0
    %7148 = vmatprep.subr.mxu0 0.0
    %7149 = vmatpush2.msra.mxu0 0.0
    %7150 = vmatprep.mubr.f32.mxu0 0.0
    %7151 = vmatmul.mubr.f32.gmra.mxu0 %v7013
    %v7152 = vpop.f32.mrf.mxu0
    %v7153 = vadd.f32 0.0, %v7152
    %v7154 = vpop.f32.mrf.mxu0
    %v7155 = vadd.f32 0.0, %v7154
    %7156 = vdwg.mxu0
    %v7157 = vadd.f32 %v7008, %v7082
    %v7158 = vadd.f32 %v7009, %v7084
    %v7159 = vadd.f32 %v7010, %v7153
    %v7160 = vadd.f32 %v7011, %v7155
    %v7161 = vld [vmem:[#allocation2 + $0x20] sm:$0xc0]
    %v7162 = vld [vmem:[#allocation2 + $0x28] sm:$0xc0]
    %v7163 = vld [vmem:[#allocation2 + $0x30] sm:$0xc0]
    %v7164 = vld [vmem:[#allocation2 + $0x38] sm:$0xc0]
    %7165 = vmatprep.subr.mxu0 %v5659
    %7166 = vmatpush1.msra.mxu0 %v5658
    %7167 = vmatprep.subr.mxu0 %v5655
    %7168 = vmatpush1.msra.mxu0 %v5654
    %7169 = vmatprep.subr.mxu0 %v5651
    %7170 = vmatpush1.msra.mxu0 %v5650
    %7171 = vmatprep.subr.mxu0 %v5647
    %7172 = vmatpush1.msra.mxu0 %v5646
    %7173 = vmatprep.subr.mxu0 %v5643
    %7174 = vmatpush1.msra.mxu0 %v5642
    %7175 = vmatprep.subr.mxu0 %v5639
    %7176 = vmatpush1.msra.mxu0 %v5638
    %7177 = vmatprep.subr.mxu0 %v5635
    %7178 = vmatpush1.msra.mxu0 %v5634
    %7179 = vmatprep.subr.mxu0 %v5631
    %7180 = vmatpush1.msra.mxu0 %v5630
    %7181 = vmatprep.subr.mxu0 %v5627
    %7182 = vmatpush1.msra.mxu0 %v5626
    %7183 = vmatprep.subr.mxu0 %v5623
    %7184 = vmatpush1.msra.mxu0 %v5622
    %7185 = vmatprep.subr.mxu0 %v5619
    %7186 = vmatpush1.msra.mxu0 %v5618
    %7187 = vmatprep.subr.mxu0 %v5615
    %7188 = vmatpush1.msra.mxu0 %v5614
    %7189 = vmatprep.subr.mxu0 %v5611
    %7190 = vmatpush1.msra.mxu0 %v5610
    %7191 = vmatprep.subr.mxu0 %v5607
    %7192 = vmatpush1.msra.mxu0 %v5606
    %7193 = vmatprep.subr.mxu0 %v5603
    %7194 = vmatpush1.msra.mxu0 %v5602
    %7195 = vmatprep.subr.mxu0 %v5599
    %7196 = vmatpush1.msra.mxu0 %v5598
    %7197 = vmatprep.subr.mxu0 0.0
    %7198 = vmatpush2.msra.mxu0 0.0
    %7199 = vmatprep.subr.mxu0 0.0
    %7200 = vmatpush2.msra.mxu0 0.0
    %7201 = vmatprep.subr.mxu0 0.0
    %7202 = vmatpush2.msra.mxu0 0.0
    %7203 = vmatprep.subr.mxu0 0.0
    %7204 = vmatpush2.msra.mxu0 0.0
    %7205 = vmatprep.subr.mxu0 0.0
    %7206 = vmatpush2.msra.mxu0 0.0
    %7207 = vmatprep.subr.mxu0 0.0
    %7208 = vmatpush2.msra.mxu0 0.0
    %7209 = vmatprep.subr.mxu0 0.0
    %7210 = vmatpush2.msra.mxu0 0.0
    %7211 = vmatprep.subr.mxu0 0.0
    %7212 = vmatpush2.msra.mxu0 0.0
    %7213 = vmatprep.subr.mxu0 0.0
    %7214 = vmatpush2.msra.mxu0 0.0
    %7215 = vmatprep.subr.mxu0 0.0
    %7216 = vmatpush2.msra.mxu0 0.0
    %7217 = vmatprep.subr.mxu0 0.0
    %7218 = vmatpush2.msra.mxu0 0.0
    %7219 = vmatprep.subr.mxu0 0.0
    %7220 = vmatpush2.msra.mxu0 0.0
    %7221 = vmatprep.subr.mxu0 0.0
    %7222 = vmatpush2.msra.mxu0 0.0
    %7223 = vmatprep.subr.mxu0 0.0
    %7224 = vmatpush2.msra.mxu0 0.0
    %7225 = vmatprep.subr.mxu0 0.0
    %7226 = vmatpush2.msra.mxu0 0.0
    %7227 = vmatprep.subr.mxu0 0.0
    %7228 = vmatpush2.msra.mxu0 0.0
    %7229 = vmatprep.mubr.f32.mxu0 0.0
    %7230 = vmatmul.mubr.f32.gmra.mxu0 %v7007
    %v7231 = vpop.f32.mrf.mxu0
    %v7232 = vadd.f32 0.0, %v7231
    %v7233 = vpop.f32.mrf.mxu0
    %v7234 = vadd.f32 0.0, %v7233
    %7235 = vdwg.mxu0
    %7236 = vmatprep.subr.mxu0 %v5661
    %7237 = vmatpush1.msra.mxu0 %v5660
    %7238 = vmatprep.subr.mxu0 %v5657
    %7239 = vmatpush1.msra.mxu0 %v5656
    %7240 = vmatprep.subr.mxu0 %v5653
    %7241 = vmatpush1.msra.mxu0 %v5652
    %7242 = vmatprep.subr.mxu0 %v5649
    %7243 = vmatpush1.msra.mxu0 %v5648
    %7244 = vmatprep.subr.mxu0 %v5645
    %7245 = vmatpush1.msra.mxu0 %v5644
    %7246 = vmatprep.subr.mxu0 %v5641
    %7247 = vmatpush1.msra.mxu0 %v5640
    %7248 = vmatprep.subr.mxu0 %v5637
    %7249 = vmatpush1.msra.mxu0 %v5636
    %7250 = vmatprep.subr.mxu0 %v5633
    %7251 = vmatpush1.msra.mxu0 %v5632
    %7252 = vmatprep.subr.mxu0 %v5629
    %7253 = vmatpush1.msra.mxu0 %v5628
    %7254 = vmatprep.subr.mxu0 %v5625
    %7255 = vmatpush1.msra.mxu0 %v5624
    %7256 = vmatprep.subr.mxu0 %v5621
    %7257 = vmatpush1.msra.mxu0 %v5620
    %7258 = vmatprep.subr.mxu0 %v5617
    %7259 = vmatpush1.msra.mxu0 %v5616
    %7260 = vmatprep.subr.mxu0 %v5613
    %7261 = vmatpush1.msra.mxu0 %v5612
    %7262 = vmatprep.subr.mxu0 %v5609
    %7263 = vmatpush1.msra.mxu0 %v5608
    %7264 = vmatprep.subr.mxu0 %v5605
    %7265 = vmatpush1.msra.mxu0 %v5604
    %7266 = vmatprep.subr.mxu0 %v5601
    %7267 = vmatpush1.msra.mxu0 %v5600
    %7268 = vmatprep.subr.mxu0 0.0
    %7269 = vmatpush2.msra.mxu0 0.0
    %7270 = vmatprep.subr.mxu0 0.0
    %7271 = vmatpush2.msra.mxu0 0.0
    %7272 = vmatprep.subr.mxu0 0.0
    %7273 = vmatpush2.msra.mxu0 0.0
    %7274 = vmatprep.subr.mxu0 0.0
    %7275 = vmatpush2.msra.mxu0 0.0
    %7276 = vmatprep.subr.mxu0 0.0
    %7277 = vmatpush2.msra.mxu0 0.0
    %7278 = vmatprep.subr.mxu0 0.0
    %7279 = vmatpush2.msra.mxu0 0.0
    %7280 = vmatprep.subr.mxu0 0.0
    %7281 = vmatpush2.msra.mxu0 0.0
    %7282 = vmatprep.subr.mxu0 0.0
    %7283 = vmatpush2.msra.mxu0 0.0
    %7284 = vmatprep.subr.mxu0 0.0
    %7285 = vmatpush2.msra.mxu0 0.0
    %7286 = vmatprep.subr.mxu0 0.0
    %7287 = vmatpush2.msra.mxu0 0.0
    %7288 = vmatprep.subr.mxu0 0.0
    %7289 = vmatpush2.msra.mxu0 0.0
    %7290 = vmatprep.subr.mxu0 0.0
    %7291 = vmatpush2.msra.mxu0 0.0
    %7292 = vmatprep.subr.mxu0 0.0
    %7293 = vmatpush2.msra.mxu0 0.0
    %7294 = vmatprep.subr.mxu0 0.0
    %7295 = vmatpush2.msra.mxu0 0.0
    %7296 = vmatprep.subr.mxu0 0.0
    %7297 = vmatpush2.msra.mxu0 0.0
    %7298 = vmatprep.subr.mxu0 0.0
    %7299 = vmatpush2.msra.mxu0 0.0
    %7300 = vmatprep.mubr.f32.mxu0 0.0
    %7301 = vmatmul.mubr.f32.gmra.mxu0 %v7007
    %v7302 = vpop.f32.mrf.mxu0
    %v7303 = vadd.f32 0.0, %v7302
    %v7304 = vpop.f32.mrf.mxu0
    %v7305 = vadd.f32 0.0, %v7304
    %7306 = vdwg.mxu0
    %v7311 = vrot.slane %v7232, 2
    %v7312 = vrot.slane %v7234, 2
    %v7313 = vrot.slane %v7303, 2
    %v7314 = vrot.slane %v7305, 2
    %v7319 = vadd.f32 %v7161, %v7311
    %v7320 = vadd.f32 %v7162, %v7312
    %v7321 = vadd.f32 %v7163, %v7313
    %v7322 = vadd.f32 %v7164, %v7314
    %v7323 = vxor.u32 %v7157, 2147483648
    %v7324 = vmul.f32 %v7323, 1.442695
    %v7325 = vpow.pop %v7324
    %v7326 = vadd.f32 %v7325, 1.0
    %v7327 = vrcp.pop %v7326
    %v7328 = vmul.f32 1.0, %v7327
    %v7329 = vxor.u32 %v7158, 2147483648
    %v7330 = vmul.f32 %v7329, 1.442695
    %v7331 = vpow.pop %v7330
    %v7332 = vadd.f32 %v7331, 1.0
    %v7333 = vrcp.pop %v7332
    %v7334 = vmul.f32 1.0, %v7333
    %v7335 = vtanh.pop %v7159
    %v7336 = vxor.u32 %v7160, 2147483648
    %v7337 = vmul.f32 %v7336, 1.442695
    %v7338 = vpow.pop %v7337
    %v7339 = vadd.f32 %v7338, 1.0
    %v7340 = vrcp.pop %v7339
    %v7341 = vmul.f32 1.0, %v7340
    %v7343 = vrot.slane %v6978, 6
    %v7345 = vmul.f32 %v7334, %v7343
    %v7346 = vmul.f32 %v7328, %v7335
    %v7347 = vadd.f32 %v7345, %v7346
    %v7348 = vtanh.pop %v7347
    %v7349 = vmul.f32 %v7341, %v7348
    %v7350 = vxor.u32 %v7319, 2147483648
    %v7351 = vmul.f32 %v7350, 1.442695
    %v7352 = vpow.pop %v7351
    %v7353 = vadd.f32 %v7352, 1.0
    %v7354 = vrcp.pop %v7353
    %v7355 = vmul.f32 1.0, %v7354
    %v7356 = vxor.u32 %v7320, 2147483648
    %v7357 = vmul.f32 %v7356, 1.442695
    %v7358 = vpow.pop %v7357
    %v7359 = vadd.f32 %v7358, 1.0
    %v7360 = vrcp.pop %v7359
    %v7361 = vmul.f32 1.0, %v7360
    %v7362 = vtanh.pop %v7321
    %v7363 = vxor.u32 %v7322, 2147483648
    %v7364 = vmul.f32 %v7363, 1.442695
    %v7365 = vpow.pop %v7364
    %v7366 = vadd.f32 %v7365, 1.0
    %v7367 = vrcp.pop %v7366
    %v7368 = vmul.f32 1.0, %v7367
    %v7370 = vrot.slane %v7005, 2
    %v7372 = vmul.f32 %v7361, %v7370
    %v7373 = vmul.f32 %v7355, %v7362
    %v7374 = vadd.f32 %v7372, %v7373
    %v7375 = vtanh.pop %v7374
    %v7376 = vmul.f32 %v7368, %v7375
    %v7377 = vld [vmem:[#allocation2 + $0x40] sm:$0xc]
    %v7378 = vld [vmem:[#allocation2 + $0x48] sm:$0xc]
    %v7379 = vld [vmem:[#allocation2 + $0x50] sm:$0xc]
    %v7380 = vld [vmem:[#allocation2 + $0x58] sm:$0xc]
    %7381 = vmatprep.subr.mxu0 %v5445
    %7382 = vmatpush1.msra.mxu0 %v5444
    %7383 = vmatprep.subr.mxu0 %v5441
    %7384 = vmatpush1.msra.mxu0 %v5440
    %7385 = vmatprep.subr.mxu0 %v5437
    %7386 = vmatpush1.msra.mxu0 %v5436
    %7387 = vmatprep.subr.mxu0 %v5433
    %7388 = vmatpush1.msra.mxu0 %v5432
    %7389 = vmatprep.subr.mxu0 %v5429
    %7390 = vmatpush1.msra.mxu0 %v5428
    %7391 = vmatprep.subr.mxu0 %v5425
    %7392 = vmatpush1.msra.mxu0 %v5424
    %7393 = vmatprep.subr.mxu0 %v5421
    %7394 = vmatpush1.msra.mxu0 %v5420
    %7395 = vmatprep.subr.mxu0 %v5417
    %7396 = vmatpush1.msra.mxu0 %v5416
    %7397 = vmatprep.subr.mxu0 %v5413
    %7398 = vmatpush1.msra.mxu0 %v5412
    %7399 = vmatprep.subr.mxu0 %v5409
    %7400 = vmatpush1.msra.mxu0 %v5408
    %7401 = vmatprep.subr.mxu0 %v5405
    %7402 = vmatpush1.msra.mxu0 %v5404
    %7403 = vmatprep.subr.mxu0 %v5401
    %7404 = vmatpush1.msra.mxu0 %v5400
    %7405 = vmatprep.subr.mxu0 %v5397
    %7406 = vmatpush1.msra.mxu0 %v5396
    %7407 = vmatprep.subr.mxu0 %v5393
    %7408 = vmatpush1.msra.mxu0 %v5392
    %7409 = vmatprep.subr.mxu0 %v5389
    %7410 = vmatpush1.msra.mxu0 %v5388
    %7411 = vmatprep.subr.mxu0 %v5385
    %7412 = vmatpush1.msra.mxu0 %v5384
    %7413 = vmatprep.subr.mxu0 0.0
    %7414 = vmatpush2.msra.mxu0 0.0
    %7415 = vmatprep.subr.mxu0 0.0
    %7416 = vmatpush2.msra.mxu0 0.0
    %7417 = vmatprep.subr.mxu0 0.0
    %7418 = vmatpush2.msra.mxu0 0.0
    %7419 = vmatprep.subr.mxu0 0.0
    %7420 = vmatpush2.msra.mxu0 0.0
    %7421 = vmatprep.subr.mxu0 0.0
    %7422 = vmatpush2.msra.mxu0 0.0
    %7423 = vmatprep.subr.mxu0 0.0
    %7424 = vmatpush2.msra.mxu0 0.0
    %7425 = vmatprep.subr.mxu0 0.0
    %7426 = vmatpush2.msra.mxu0 0.0
    %7427 = vmatprep.subr.mxu0 0.0
    %7428 = vmatpush2.msra.mxu0 0.0
    %7429 = vmatprep.subr.mxu0 0.0
    %7430 = vmatpush2.msra.mxu0 0.0
    %7431 = vmatprep.subr.mxu0 0.0
    %7432 = vmatpush2.msra.mxu0 0.0
    %7433 = vmatprep.subr.mxu0 0.0
    %7434 = vmatpush2.msra.mxu0 0.0
    %7435 = vmatprep.subr.mxu0 0.0
    %7436 = vmatpush2.msra.mxu0 0.0
    %7437 = vmatprep.subr.mxu0 0.0
    %7438 = vmatpush2.msra.mxu0 0.0
    %7439 = vmatprep.subr.mxu0 0.0
    %7440 = vmatpush2.msra.mxu0 0.0
    %7441 = vmatprep.subr.mxu0 0.0
    %7442 = vmatpush2.msra.mxu0 0.0
    %7443 = vmatprep.subr.mxu0 0.0
    %7444 = vmatpush2.msra.mxu0 0.0
    %7445 = vmatprep.mubr.f32.mxu0 0.0
    %7446 = vmatmul.mubr.f32.gmra.mxu0 %v7349
    %v7447 = vpop.f32.mrf.mxu0
    %v7448 = vadd.f32 0.0, %v7447
    %v7449 = vpop.f32.mrf.mxu0
    %v7450 = vadd.f32 0.0, %v7449
    %7451 = vdwg.mxu0
    %7452 = vmatprep.subr.mxu0 %v5447
    %7453 = vmatpush1.msra.mxu0 %v5446
    %7454 = vmatprep.subr.mxu0 %v5443
    %7455 = vmatpush1.msra.mxu0 %v5442
    %7456 = vmatprep.subr.mxu0 %v5439
    %7457 = vmatpush1.msra.mxu0 %v5438
    %7458 = vmatprep.subr.mxu0 %v5435
    %7459 = vmatpush1.msra.mxu0 %v5434
    %7460 = vmatprep.subr.mxu0 %v5431
    %7461 = vmatpush1.msra.mxu0 %v5430
    %7462 = vmatprep.subr.mxu0 %v5427
    %7463 = vmatpush1.msra.mxu0 %v5426
    %7464 = vmatprep.subr.mxu0 %v5423
    %7465 = vmatpush1.msra.mxu0 %v5422
    %7466 = vmatprep.subr.mxu0 %v5419
    %7467 = vmatpush1.msra.mxu0 %v5418
    %7468 = vmatprep.subr.mxu0 %v5415
    %7469 = vmatpush1.msra.mxu0 %v5414
    %7470 = vmatprep.subr.mxu0 %v5411
    %7471 = vmatpush1.msra.mxu0 %v5410
    %7472 = vmatprep.subr.mxu0 %v5407
    %7473 = vmatpush1.msra.mxu0 %v5406
    %7474 = vmatprep.subr.mxu0 %v5403
    %7475 = vmatpush1.msra.mxu0 %v5402
    %7476 = vmatprep.subr.mxu0 %v5399
    %7477 = vmatpush1.msra.mxu0 %v5398
    %7478 = vmatprep.subr.mxu0 %v5395
    %7479 = vmatpush1.msra.mxu0 %v5394
    %7480 = vmatprep.subr.mxu0 %v5391
    %7481 = vmatpush1.msra.mxu0 %v5390
    %7482 = vmatprep.subr.mxu0 %v5387
    %7483 = vmatpush1.msra.mxu0 %v5386
    %7484 = vmatprep.subr.mxu0 0.0
    %7485 = vmatpush2.msra.mxu0 0.0
    %7486 = vmatprep.subr.mxu0 0.0
    %7487 = vmatpush2.msra.mxu0 0.0
    %7488 = vmatprep.subr.mxu0 0.0
    %7489 = vmatpush2.msra.mxu0 0.0
    %7490 = vmatprep.subr.mxu0 0.0
    %7491 = vmatpush2.msra.mxu0 0.0
    %7492 = vmatprep.subr.mxu0 0.0
    %7493 = vmatpush2.msra.mxu0 0.0
    %7494 = vmatprep.subr.mxu0 0.0
    %7495 = vmatpush2.msra.mxu0 0.0
    %7496 = vmatprep.subr.mxu0 0.0
    %7497 = vmatpush2.msra.mxu0 0.0
    %7498 = vmatprep.subr.mxu0 0.0
    %7499 = vmatpush2.msra.mxu0 0.0
    %7500 = vmatprep.subr.mxu0 0.0
    %7501 = vmatpush2.msra.mxu0 0.0
    %7502 = vmatprep.subr.mxu0 0.0
    %7503 = vmatpush2.msra.mxu0 0.0
    %7504 = vmatprep.subr.mxu0 0.0
    %7505 = vmatpush2.msra.mxu0 0.0
    %7506 = vmatprep.subr.mxu0 0.0
    %7507 = vmatpush2.msra.mxu0 0.0
    %7508 = vmatprep.subr.mxu0 0.0
    %7509 = vmatpush2.msra.mxu0 0.0
    %7510 = vmatprep.subr.mxu0 0.0
    %7511 = vmatpush2.msra.mxu0 0.0
    %7512 = vmatprep.subr.mxu0 0.0
    %7513 = vmatpush2.msra.mxu0 0.0
    %7514 = vmatprep.subr.mxu0 0.0
    %7515 = vmatpush2.msra.mxu0 0.0
    %7516 = vmatprep.mubr.f32.mxu0 0.0
    %7517 = vmatmul.mubr.f32.gmra.mxu0 %v7349
    %v7518 = vpop.f32.mrf.mxu0
    %v7519 = vadd.f32 0.0, %v7518
    %v7520 = vpop.f32.mrf.mxu0
    %v7521 = vadd.f32 0.0, %v7520
    %7522 = vdwg.mxu0
    %v7527 = vrot.slane %v7448, 6
    %v7528 = vrot.slane %v7450, 6
    %v7529 = vrot.slane %v7519, 6
    %v7530 = vrot.slane %v7521, 6
    %v7535 = vadd.f32 %v7377, %v7527
    %v7536 = vadd.f32 %v7378, %v7528
    %v7537 = vadd.f32 %v7379, %v7529
    %v7538 = vadd.f32 %v7380, %v7530
    %v7539 = vld [vmem:[#allocation2 + $0x20] sm:$0x30]
    %v7540 = vld [vmem:[#allocation2 + $0x28] sm:$0x30]
    %v7541 = vld [vmem:[#allocation2 + $0x30] sm:$0x30]
    %v7542 = vld [vmem:[#allocation2 + $0x38] sm:$0x30]
    %v7544 = vrot.slane %v7376, 6
    %7546 = vmatprep.subr.mxu0 %v5659
    %7547 = vmatpush1.msra.mxu0 %v5658
    %7548 = vmatprep.subr.mxu0 %v5655
    %7549 = vmatpush1.msra.mxu0 %v5654
    %7550 = vmatprep.subr.mxu0 %v5651
    %7551 = vmatpush1.msra.mxu0 %v5650
    %7552 = vmatprep.subr.mxu0 %v5647
    %7553 = vmatpush1.msra.mxu0 %v5646
    %7554 = vmatprep.subr.mxu0 %v5643
    %7555 = vmatpush1.msra.mxu0 %v5642
    %7556 = vmatprep.subr.mxu0 %v5639
    %7557 = vmatpush1.msra.mxu0 %v5638
    %7558 = vmatprep.subr.mxu0 %v5635
    %7559 = vmatpush1.msra.mxu0 %v5634
    %7560 = vmatprep.subr.mxu0 %v5631
    %7561 = vmatpush1.msra.mxu0 %v5630
    %7562 = vmatprep.subr.mxu0 %v5627
    %7563 = vmatpush1.msra.mxu0 %v5626
    %7564 = vmatprep.subr.mxu0 %v5623
    %7565 = vmatpush1.msra.mxu0 %v5622
    %7566 = vmatprep.subr.mxu0 %v5619
    %7567 = vmatpush1.msra.mxu0 %v5618
    %7568 = vmatprep.subr.mxu0 %v5615
    %7569 = vmatpush1.msra.mxu0 %v5614
    %7570 = vmatprep.subr.mxu0 %v5611
    %7571 = vmatpush1.msra.mxu0 %v5610
    %7572 = vmatprep.subr.mxu0 %v5607
    %7573 = vmatpush1.msra.mxu0 %v5606
    %7574 = vmatprep.subr.mxu0 %v5603
    %7575 = vmatpush1.msra.mxu0 %v5602
    %7576 = vmatprep.subr.mxu0 %v5599
    %7577 = vmatpush1.msra.mxu0 %v5598
    %7578 = vmatprep.subr.mxu0 0.0
    %7579 = vmatpush2.msra.mxu0 0.0
    %7580 = vmatprep.subr.mxu0 0.0
    %7581 = vmatpush2.msra.mxu0 0.0
    %7582 = vmatprep.subr.mxu0 0.0
    %7583 = vmatpush2.msra.mxu0 0.0
    %7584 = vmatprep.subr.mxu0 0.0
    %7585 = vmatpush2.msra.mxu0 0.0
    %7586 = vmatprep.subr.mxu0 0.0
    %7587 = vmatpush2.msra.mxu0 0.0
    %7588 = vmatprep.subr.mxu0 0.0
    %7589 = vmatpush2.msra.mxu0 0.0
    %7590 = vmatprep.subr.mxu0 0.0
    %7591 = vmatpush2.msra.mxu0 0.0
    %7592 = vmatprep.subr.mxu0 0.0
    %7593 = vmatpush2.msra.mxu0 0.0
    %7594 = vmatprep.subr.mxu0 0.0
    %7595 = vmatpush2.msra.mxu0 0.0
    %7596 = vmatprep.subr.mxu0 0.0
    %7597 = vmatpush2.msra.mxu0 0.0
    %7598 = vmatprep.subr.mxu0 0.0
    %7599 = vmatpush2.msra.mxu0 0.0
    %7600 = vmatprep.subr.mxu0 0.0
    %7601 = vmatpush2.msra.mxu0 0.0
    %7602 = vmatprep.subr.mxu0 0.0
    %7603 = vmatpush2.msra.mxu0 0.0
    %7604 = vmatprep.subr.mxu0 0.0
    %7605 = vmatpush2.msra.mxu0 0.0
    %7606 = vmatprep.subr.mxu0 0.0
    %7607 = vmatpush2.msra.mxu0 0.0
    %7608 = vmatprep.subr.mxu0 0.0
    %7609 = vmatpush2.msra.mxu0 0.0
    %7610 = vmatprep.mubr.f32.mxu0 0.0
    %7611 = vmatmul.mubr.f32.gmra.mxu0 %v7544
    %v7612 = vpop.f32.mrf.mxu0
    %v7613 = vadd.f32 0.0, %v7612
    %v7614 = vpop.f32.mrf.mxu0
    %v7615 = vadd.f32 0.0, %v7614
    %7616 = vdwg.mxu0
    %7617 = vmatprep.subr.mxu0 %v5661
    %7618 = vmatpush1.msra.mxu0 %v5660
    %7619 = vmatprep.subr.mxu0 %v5657
    %7620 = vmatpush1.msra.mxu0 %v5656
    %7621 = vmatprep.subr.mxu0 %v5653
    %7622 = vmatpush1.msra.mxu0 %v5652
    %7623 = vmatprep.subr.mxu0 %v5649
    %7624 = vmatpush1.msra.mxu0 %v5648
    %7625 = vmatprep.subr.mxu0 %v5645
    %7626 = vmatpush1.msra.mxu0 %v5644
    %7627 = vmatprep.subr.mxu0 %v5641
    %7628 = vmatpush1.msra.mxu0 %v5640
    %7629 = vmatprep.subr.mxu0 %v5637
    %7630 = vmatpush1.msra.mxu0 %v5636
    %7631 = vmatprep.subr.mxu0 %v5633
    %7632 = vmatpush1.msra.mxu0 %v5632
    %7633 = vmatprep.subr.mxu0 %v5629
    %7634 = vmatpush1.msra.mxu0 %v5628
    %7635 = vmatprep.subr.mxu0 %v5625
    %7636 = vmatpush1.msra.mxu0 %v5624
    %7637 = vmatprep.subr.mxu0 %v5621
    %7638 = vmatpush1.msra.mxu0 %v5620
    %7639 = vmatprep.subr.mxu0 %v5617
    %7640 = vmatpush1.msra.mxu0 %v5616
    %7641 = vmatprep.subr.mxu0 %v5613
    %7642 = vmatpush1.msra.mxu0 %v5612
    %7643 = vmatprep.subr.mxu0 %v5609
    %7644 = vmatpush1.msra.mxu0 %v5608
    %7645 = vmatprep.subr.mxu0 %v5605
    %7646 = vmatpush1.msra.mxu0 %v5604
    %7647 = vmatprep.subr.mxu0 %v5601
    %7648 = vmatpush1.msra.mxu0 %v5600
    %7649 = vmatprep.subr.mxu0 0.0
    %7650 = vmatpush2.msra.mxu0 0.0
    %7651 = vmatprep.subr.mxu0 0.0
    %7652 = vmatpush2.msra.mxu0 0.0
    %7653 = vmatprep.subr.mxu0 0.0
    %7654 = vmatpush2.msra.mxu0 0.0
    %7655 = vmatprep.subr.mxu0 0.0
    %7656 = vmatpush2.msra.mxu0 0.0
    %7657 = vmatprep.subr.mxu0 0.0
    %7658 = vmatpush2.msra.mxu0 0.0
    %7659 = vmatprep.subr.mxu0 0.0
    %7660 = vmatpush2.msra.mxu0 0.0
    %7661 = vmatprep.subr.mxu0 0.0
    %7662 = vmatpush2.msra.mxu0 0.0
    %7663 = vmatprep.subr.mxu0 0.0
    %7664 = vmatpush2.msra.mxu0 0.0
    %7665 = vmatprep.subr.mxu0 0.0
    %7666 = vmatpush2.msra.mxu0 0.0
    %7667 = vmatprep.subr.mxu0 0.0
    %7668 = vmatpush2.msra.mxu0 0.0
    %7669 = vmatprep.subr.mxu0 0.0
    %7670 = vmatpush2.msra.mxu0 0.0
    %7671 = vmatprep.subr.mxu0 0.0
    %7672 = vmatpush2.msra.mxu0 0.0
    %7673 = vmatprep.subr.mxu0 0.0
    %7674 = vmatpush2.msra.mxu0 0.0
    %7675 = vmatprep.subr.mxu0 0.0
    %7676 = vmatpush2.msra.mxu0 0.0
    %7677 = vmatprep.subr.mxu0 0.0
    %7678 = vmatpush2.msra.mxu0 0.0
    %7679 = vmatprep.subr.mxu0 0.0
    %7680 = vmatpush2.msra.mxu0 0.0
    %7681 = vmatprep.mubr.f32.mxu0 0.0
    %7682 = vmatmul.mubr.f32.gmra.mxu0 %v7544
    %v7683 = vpop.f32.mrf.mxu0
    %v7684 = vadd.f32 0.0, %v7683
    %v7685 = vpop.f32.mrf.mxu0
    %v7686 = vadd.f32 0.0, %v7685
    %7687 = vdwg.mxu0
    %v7692 = vrot.slane %v7613, 4
    %v7693 = vrot.slane %v7615, 4
    %v7694 = vrot.slane %v7684, 4
    %v7695 = vrot.slane %v7686, 4
    %v7700 = vadd.f32 %v7539, %v7692
    %v7701 = vadd.f32 %v7540, %v7693
    %v7702 = vadd.f32 %v7541, %v7694
    %v7703 = vadd.f32 %v7542, %v7695
    %v7704 = vxor.u32 %v7535, 2147483648
    %v7705 = vmul.f32 %v7704, 1.442695
    %v7706 = vpow.pop %v7705
    %v7707 = vadd.f32 %v7706, 1.0
    %v7708 = vrcp.pop %v7707
    %v7709 = vmul.f32 1.0, %v7708
    %v7710 = vxor.u32 %v7536, 2147483648
    %v7711 = vmul.f32 %v7710, 1.442695
    %v7712 = vpow.pop %v7711
    %v7713 = vadd.f32 %v7712, 1.0
    %v7714 = vrcp.pop %v7713
    %v7715 = vmul.f32 1.0, %v7714
    %v7716 = vtanh.pop %v7537
    %v7717 = vxor.u32 %v7538, 2147483648
    %v7718 = vmul.f32 %v7717, 1.442695
    %v7719 = vpow.pop %v7718
    %v7720 = vadd.f32 %v7719, 1.0
    %v7721 = vrcp.pop %v7720
    %v7722 = vmul.f32 1.0, %v7721
    %v7724 = vrot.slane %v7347, 6
    %v7726 = vmul.f32 %v7715, %v7724
    %v7727 = vmul.f32 %v7709, %v7716
    %v7728 = vadd.f32 %v7726, %v7727
    %v7729 = vtanh.pop %v7728
    %v7730 = vmul.f32 %v7722, %v7729
    %v7731 = vxor.u32 %v7700, 2147483648
    %v7732 = vmul.f32 %v7731, 1.442695
    %v7733 = vpow.pop %v7732
    %v7734 = vadd.f32 %v7733, 1.0
    %v7735 = vrcp.pop %v7734
    %v7736 = vmul.f32 1.0, %v7735
    %v7737 = vxor.u32 %v7701, 2147483648
    %v7738 = vmul.f32 %v7737, 1.442695
    %v7739 = vpow.pop %v7738
    %v7740 = vadd.f32 %v7739, 1.0
    %v7741 = vrcp.pop %v7740
    %v7742 = vmul.f32 1.0, %v7741
    %v7743 = vtanh.pop %v7702
    %v7744 = vxor.u32 %v7703, 2147483648
    %v7745 = vmul.f32 %v7744, 1.442695
    %v7746 = vpow.pop %v7745
    %v7747 = vadd.f32 %v7746, 1.0
    %v7748 = vrcp.pop %v7747
    %v7749 = vmul.f32 1.0, %v7748
    %v7751 = vrot.slane %v7374, 2
    %v7753 = vmul.f32 %v7742, %v7751
    %v7754 = vmul.f32 %v7736, %v7743
    %v7755 = vadd.f32 %v7753, %v7754
    %v7756 = vtanh.pop %v7755
    %v7757 = vmul.f32 %v7749, %v7756
    %v7758 = vld [vmem:[#allocation2 + $0x40] sm:$0x30]
    %v7759 = vld [vmem:[#allocation2 + $0x48] sm:$0x30]
    %v7760 = vld [vmem:[#allocation2 + $0x50] sm:$0x30]
    %v7761 = vld [vmem:[#allocation2 + $0x58] sm:$0x30]
    %v7763 = vrot.slane %v7730, 2
    %7765 = vmatprep.subr.mxu0 %v5445
    %7766 = vmatpush1.msra.mxu0 %v5444
    %7767 = vmatprep.subr.mxu0 %v5441
    %7768 = vmatpush1.msra.mxu0 %v5440
    %7769 = vmatprep.subr.mxu0 %v5437
    %7770 = vmatpush1.msra.mxu0 %v5436
    %7771 = vmatprep.subr.mxu0 %v5433
    %7772 = vmatpush1.msra.mxu0 %v5432
    %7773 = vmatprep.subr.mxu0 %v5429
    %7774 = vmatpush1.msra.mxu0 %v5428
    %7775 = vmatprep.subr.mxu0 %v5425
    %7776 = vmatpush1.msra.mxu0 %v5424
    %7777 = vmatprep.subr.mxu0 %v5421
    %7778 = vmatpush1.msra.mxu0 %v5420
    %7779 = vmatprep.subr.mxu0 %v5417
    %7780 = vmatpush1.msra.mxu0 %v5416
    %7781 = vmatprep.subr.mxu0 %v5413
    %7782 = vmatpush1.msra.mxu0 %v5412
    %7783 = vmatprep.subr.mxu0 %v5409
    %7784 = vmatpush1.msra.mxu0 %v5408
    %7785 = vmatprep.subr.mxu0 %v5405
    %7786 = vmatpush1.msra.mxu0 %v5404
    %7787 = vmatprep.subr.mxu0 %v5401
    %7788 = vmatpush1.msra.mxu0 %v5400
    %7789 = vmatprep.subr.mxu0 %v5397
    %7790 = vmatpush1.msra.mxu0 %v5396
    %7791 = vmatprep.subr.mxu0 %v5393
    %7792 = vmatpush1.msra.mxu0 %v5392
    %7793 = vmatprep.subr.mxu0 %v5389
    %7794 = vmatpush1.msra.mxu0 %v5388
    %7795 = vmatprep.subr.mxu0 %v5385
    %7796 = vmatpush1.msra.mxu0 %v5384
    %7797 = vmatprep.subr.mxu0 0.0
    %7798 = vmatpush2.msra.mxu0 0.0
    %7799 = vmatprep.subr.mxu0 0.0
    %7800 = vmatpush2.msra.mxu0 0.0
    %7801 = vmatprep.subr.mxu0 0.0
    %7802 = vmatpush2.msra.mxu0 0.0
    %7803 = vmatprep.subr.mxu0 0.0
    %7804 = vmatpush2.msra.mxu0 0.0
    %7805 = vmatprep.subr.mxu0 0.0
    %7806 = vmatpush2.msra.mxu0 0.0
    %7807 = vmatprep.subr.mxu0 0.0
    %7808 = vmatpush2.msra.mxu0 0.0
    %7809 = vmatprep.subr.mxu0 0.0
    %7810 = vmatpush2.msra.mxu0 0.0
    %7811 = vmatprep.subr.mxu0 0.0
    %7812 = vmatpush2.msra.mxu0 0.0
    %7813 = vmatprep.subr.mxu0 0.0
    %7814 = vmatpush2.msra.mxu0 0.0
    %7815 = vmatprep.subr.mxu0 0.0
    %7816 = vmatpush2.msra.mxu0 0.0
    %7817 = vmatprep.subr.mxu0 0.0
    %7818 = vmatpush2.msra.mxu0 0.0
    %7819 = vmatprep.subr.mxu0 0.0
    %7820 = vmatpush2.msra.mxu0 0.0
    %7821 = vmatprep.subr.mxu0 0.0
    %7822 = vmatpush2.msra.mxu0 0.0
    %7823 = vmatprep.subr.mxu0 0.0
    %7824 = vmatpush2.msra.mxu0 0.0
    %7825 = vmatprep.subr.mxu0 0.0
    %7826 = vmatpush2.msra.mxu0 0.0
    %7827 = vmatprep.subr.mxu0 0.0
    %7828 = vmatpush2.msra.mxu0 0.0
    %7829 = vmatprep.mubr.f32.mxu0 0.0
    %7830 = vmatmul.mubr.f32.gmra.mxu0 %v7763
    %v7831 = vpop.f32.mrf.mxu0
    %v7832 = vadd.f32 0.0, %v7831
    %v7833 = vpop.f32.mrf.mxu0
    %v7834 = vadd.f32 0.0, %v7833
    %7835 = vdwg.mxu0
    %7836 = vmatprep.subr.mxu0 %v5447
    %7837 = vmatpush1.msra.mxu0 %v5446
    %7838 = vmatprep.subr.mxu0 %v5443
    %7839 = vmatpush1.msra.mxu0 %v5442
    %7840 = vmatprep.subr.mxu0 %v5439
    %7841 = vmatpush1.msra.mxu0 %v5438
    %7842 = vmatprep.subr.mxu0 %v5435
    %7843 = vmatpush1.msra.mxu0 %v5434
    %7844 = vmatprep.subr.mxu0 %v5431
    %7845 = vmatpush1.msra.mxu0 %v5430
    %7846 = vmatprep.subr.mxu0 %v5427
    %7847 = vmatpush1.msra.mxu0 %v5426
    %7848 = vmatprep.subr.mxu0 %v5423
    %7849 = vmatpush1.msra.mxu0 %v5422
    %7850 = vmatprep.subr.mxu0 %v5419
    %7851 = vmatpush1.msra.mxu0 %v5418
    %7852 = vmatprep.subr.mxu0 %v5415
    %7853 = vmatpush1.msra.mxu0 %v5414
    %7854 = vmatprep.subr.mxu0 %v5411
    %7855 = vmatpush1.msra.mxu0 %v5410
    %7856 = vmatprep.subr.mxu0 %v5407
    %7857 = vmatpush1.msra.mxu0 %v5406
    %7858 = vmatprep.subr.mxu0 %v5403
    %7859 = vmatpush1.msra.mxu0 %v5402
    %7860 = vmatprep.subr.mxu0 %v5399
    %7861 = vmatpush1.msra.mxu0 %v5398
    %7862 = vmatprep.subr.mxu0 %v5395
    %7863 = vmatpush1.msra.mxu0 %v5394
    %7864 = vmatprep.subr.mxu0 %v5391
    %7865 = vmatpush1.msra.mxu0 %v5390
    %7866 = vmatprep.subr.mxu0 %v5387
    %7867 = vmatpush1.msra.mxu0 %v5386
    %7868 = vmatprep.subr.mxu0 0.0
    %7869 = vmatpush2.msra.mxu0 0.0
    %7870 = vmatprep.subr.mxu0 0.0
    %7871 = vmatpush2.msra.mxu0 0.0
    %7872 = vmatprep.subr.mxu0 0.0
    %7873 = vmatpush2.msra.mxu0 0.0
    %7874 = vmatprep.subr.mxu0 0.0
    %7875 = vmatpush2.msra.mxu0 0.0
    %7876 = vmatprep.subr.mxu0 0.0
    %7877 = vmatpush2.msra.mxu0 0.0
    %7878 = vmatprep.subr.mxu0 0.0
    %7879 = vmatpush2.msra.mxu0 0.0
    %7880 = vmatprep.subr.mxu0 0.0
    %7881 = vmatpush2.msra.mxu0 0.0
    %7882 = vmatprep.subr.mxu0 0.0
    %7883 = vmatpush2.msra.mxu0 0.0
    %7884 = vmatprep.subr.mxu0 0.0
    %7885 = vmatpush2.msra.mxu0 0.0
    %7886 = vmatprep.subr.mxu0 0.0
    %7887 = vmatpush2.msra.mxu0 0.0
    %7888 = vmatprep.subr.mxu0 0.0
    %7889 = vmatpush2.msra.mxu0 0.0
    %7890 = vmatprep.subr.mxu0 0.0
    %7891 = vmatpush2.msra.mxu0 0.0
    %7892 = vmatprep.subr.mxu0 0.0
    %7893 = vmatpush2.msra.mxu0 0.0
    %7894 = vmatprep.subr.mxu0 0.0
    %7895 = vmatpush2.msra.mxu0 0.0
    %7896 = vmatprep.subr.mxu0 0.0
    %7897 = vmatpush2.msra.mxu0 0.0
    %7898 = vmatprep.subr.mxu0 0.0
    %7899 = vmatpush2.msra.mxu0 0.0
    %7900 = vmatprep.mubr.f32.mxu0 0.0
    %7901 = vmatmul.mubr.f32.gmra.mxu0 %v7763
    %v7902 = vpop.f32.mrf.mxu0
    %v7903 = vadd.f32 0.0, %v7902
    %v7904 = vpop.f32.mrf.mxu0
    %v7905 = vadd.f32 0.0, %v7904
    %7906 = vdwg.mxu0
    %v7911 = vrot.slane %v7832, 4
    %v7912 = vrot.slane %v7834, 4
    %v7913 = vrot.slane %v7903, 4
    %v7914 = vrot.slane %v7905, 4
    %v7919 = vadd.f32 %v7758, %v7911
    %v7920 = vadd.f32 %v7759, %v7912
    %v7921 = vadd.f32 %v7760, %v7913
    %v7922 = vadd.f32 %v7761, %v7914
    %v7923 = vld [vmem:[#allocation2 + $0x20] sm:$0xc]
    %v7924 = vld [vmem:[#allocation2 + $0x28] sm:$0xc]
    %v7925 = vld [vmem:[#allocation2 + $0x30] sm:$0xc]
    %v7926 = vld [vmem:[#allocation2 + $0x38] sm:$0xc]
    %v7928 = vrot.slane %v7757, 4
    %7930 = vmatprep.subr.mxu0 %v5659
    %7931 = vmatpush1.msra.mxu0 %v5658
    %7932 = vmatprep.subr.mxu0 %v5655
    %7933 = vmatpush1.msra.mxu0 %v5654
    %7934 = vmatprep.subr.mxu0 %v5651
    %7935 = vmatpush1.msra.mxu0 %v5650
    %7936 = vmatprep.subr.mxu0 %v5647
    %7937 = vmatpush1.msra.mxu0 %v5646
    %7938 = vmatprep.subr.mxu0 %v5643
    %7939 = vmatpush1.msra.mxu0 %v5642
    %7940 = vmatprep.subr.mxu0 %v5639
    %7941 = vmatpush1.msra.mxu0 %v5638
    %7942 = vmatprep.subr.mxu0 %v5635
    %7943 = vmatpush1.msra.mxu0 %v5634
    %7944 = vmatprep.subr.mxu0 %v5631
    %7945 = vmatpush1.msra.mxu0 %v5630
    %7946 = vmatprep.subr.mxu0 %v5627
    %7947 = vmatpush1.msra.mxu0 %v5626
    %7948 = vmatprep.subr.mxu0 %v5623
    %7949 = vmatpush1.msra.mxu0 %v5622
    %7950 = vmatprep.subr.mxu0 %v5619
    %7951 = vmatpush1.msra.mxu0 %v5618
    %7952 = vmatprep.subr.mxu0 %v5615
    %7953 = vmatpush1.msra.mxu0 %v5614
    %7954 = vmatprep.subr.mxu0 %v5611
    %7955 = vmatpush1.msra.mxu0 %v5610
    %7956 = vmatprep.subr.mxu0 %v5607
    %7957 = vmatpush1.msra.mxu0 %v5606
    %7958 = vmatprep.subr.mxu0 %v5603
    %7959 = vmatpush1.msra.mxu0 %v5602
    %7960 = vmatprep.subr.mxu0 %v5599
    %7961 = vmatpush1.msra.mxu0 %v5598
    %7962 = vmatprep.subr.mxu0 0.0
    %7963 = vmatpush2.msra.mxu0 0.0
    %7964 = vmatprep.subr.mxu0 0.0
    %7965 = vmatpush2.msra.mxu0 0.0
    %7966 = vmatprep.subr.mxu0 0.0
    %7967 = vmatpush2.msra.mxu0 0.0
    %7968 = vmatprep.subr.mxu0 0.0
    %7969 = vmatpush2.msra.mxu0 0.0
    %7970 = vmatprep.subr.mxu0 0.0
    %7971 = vmatpush2.msra.mxu0 0.0
    %7972 = vmatprep.subr.mxu0 0.0
    %7973 = vmatpush2.msra.mxu0 0.0
    %7974 = vmatprep.subr.mxu0 0.0
    %7975 = vmatpush2.msra.mxu0 0.0
    %7976 = vmatprep.subr.mxu0 0.0
    %7977 = vmatpush2.msra.mxu0 0.0
    %7978 = vmatprep.subr.mxu0 0.0
    %7979 = vmatpush2.msra.mxu0 0.0
    %7980 = vmatprep.subr.mxu0 0.0
    %7981 = vmatpush2.msra.mxu0 0.0
    %7982 = vmatprep.subr.mxu0 0.0
    %7983 = vmatpush2.msra.mxu0 0.0
    %7984 = vmatprep.subr.mxu0 0.0
    %7985 = vmatpush2.msra.mxu0 0.0
    %7986 = vmatprep.subr.mxu0 0.0
    %7987 = vmatpush2.msra.mxu0 0.0
    %7988 = vmatprep.subr.mxu0 0.0
    %7989 = vmatpush2.msra.mxu0 0.0
    %7990 = vmatprep.subr.mxu0 0.0
    %7991 = vmatpush2.msra.mxu0 0.0
    %7992 = vmatprep.subr.mxu0 0.0
    %7993 = vmatpush2.msra.mxu0 0.0
    %7994 = vmatprep.mubr.f32.mxu0 0.0
    %7995 = vmatmul.mubr.f32.gmra.mxu0 %v7928
    %v7996 = vpop.f32.mrf.mxu0
    %v7997 = vadd.f32 0.0, %v7996
    %v7998 = vpop.f32.mrf.mxu0
    %v7999 = vadd.f32 0.0, %v7998
    %8000 = vdwg.mxu0
    %8001 = vmatprep.subr.mxu0 %v5661
    %8002 = vmatpush1.msra.mxu0 %v5660
    %8003 = vmatprep.subr.mxu0 %v5657
    %8004 = vmatpush1.msra.mxu0 %v5656
    %8005 = vmatprep.subr.mxu0 %v5653
    %8006 = vmatpush1.msra.mxu0 %v5652
    %8007 = vmatprep.subr.mxu0 %v5649
    %8008 = vmatpush1.msra.mxu0 %v5648
    %8009 = vmatprep.subr.mxu0 %v5645
    %8010 = vmatpush1.msra.mxu0 %v5644
    %8011 = vmatprep.subr.mxu0 %v5641
    %8012 = vmatpush1.msra.mxu0 %v5640
    %8013 = vmatprep.subr.mxu0 %v5637
    %8014 = vmatpush1.msra.mxu0 %v5636
    %8015 = vmatprep.subr.mxu0 %v5633
    %8016 = vmatpush1.msra.mxu0 %v5632
    %8017 = vmatprep.subr.mxu0 %v5629
    %8018 = vmatpush1.msra.mxu0 %v5628
    %8019 = vmatprep.subr.mxu0 %v5625
    %8020 = vmatpush1.msra.mxu0 %v5624
    %8021 = vmatprep.subr.mxu0 %v5621
    %8022 = vmatpush1.msra.mxu0 %v5620
    %8023 = vmatprep.subr.mxu0 %v5617
    %8024 = vmatpush1.msra.mxu0 %v5616
    %8025 = vmatprep.subr.mxu0 %v5613
    %8026 = vmatpush1.msra.mxu0 %v5612
    %8027 = vmatprep.subr.mxu0 %v5609
    %8028 = vmatpush1.msra.mxu0 %v5608
    %8029 = vmatprep.subr.mxu0 %v5605
    %8030 = vmatpush1.msra.mxu0 %v5604
    %8031 = vmatprep.subr.mxu0 %v5601
    %8032 = vmatpush1.msra.mxu0 %v5600
    %8033 = vmatprep.subr.mxu0 0.0
    %8034 = vmatpush2.msra.mxu0 0.0
    %8035 = vmatprep.subr.mxu0 0.0
    %8036 = vmatpush2.msra.mxu0 0.0
    %8037 = vmatprep.subr.mxu0 0.0
    %8038 = vmatpush2.msra.mxu0 0.0
    %8039 = vmatprep.subr.mxu0 0.0
    %8040 = vmatpush2.msra.mxu0 0.0
    %8041 = vmatprep.subr.mxu0 0.0
    %8042 = vmatpush2.msra.mxu0 0.0
    %8043 = vmatprep.subr.mxu0 0.0
    %8044 = vmatpush2.msra.mxu0 0.0
    %8045 = vmatprep.subr.mxu0 0.0
    %8046 = vmatpush2.msra.mxu0 0.0
    %8047 = vmatprep.subr.mxu0 0.0
    %8048 = vmatpush2.msra.mxu0 0.0
    %8049 = vmatprep.subr.mxu0 0.0
    %8050 = vmatpush2.msra.mxu0 0.0
    %8051 = vmatprep.subr.mxu0 0.0
    %8052 = vmatpush2.msra.mxu0 0.0
    %8053 = vmatprep.subr.mxu0 0.0
    %8054 = vmatpush2.msra.mxu0 0.0
    %8055 = vmatprep.subr.mxu0 0.0
    %8056 = vmatpush2.msra.mxu0 0.0
    %8057 = vmatprep.subr.mxu0 0.0
    %8058 = vmatpush2.msra.mxu0 0.0
    %8059 = vmatprep.subr.mxu0 0.0
    %8060 = vmatpush2.msra.mxu0 0.0
    %8061 = vmatprep.subr.mxu0 0.0
    %8062 = vmatpush2.msra.mxu0 0.0
    %8063 = vmatprep.subr.mxu0 0.0
    %8064 = vmatpush2.msra.mxu0 0.0
    %8065 = vmatprep.mubr.f32.mxu0 0.0
    %8066 = vmatmul.mubr.f32.gmra.mxu0 %v7928
    %v8067 = vpop.f32.mrf.mxu0
    %v8068 = vadd.f32 0.0, %v8067
    %v8069 = vpop.f32.mrf.mxu0
    %v8070 = vadd.f32 0.0, %v8069
    %8071 = vdwg.mxu0
    %v8076 = vrot.slane %v7997, 6
    %v8077 = vrot.slane %v7999, 6
    %v8078 = vrot.slane %v8068, 6
    %v8079 = vrot.slane %v8070, 6
    %v8084 = vadd.f32 %v7923, %v8076
    %v8085 = vadd.f32 %v7924, %v8077
    %v8086 = vadd.f32 %v7925, %v8078
    %v8087 = vadd.f32 %v7926, %v8079
    %v8088 = vxor.u32 %v7919, 2147483648
    %v8089 = vmul.f32 %v8088, 1.442695
    %v8090 = vpow.pop %v8089
    %v8091 = vadd.f32 %v8090, 1.0
    %v8092 = vrcp.pop %v8091
    %v8093 = vmul.f32 1.0, %v8092
    %v8094 = vxor.u32 %v7920, 2147483648
    %v8095 = vmul.f32 %v8094, 1.442695
    %v8096 = vpow.pop %v8095
    %v8097 = vadd.f32 %v8096, 1.0
    %v8098 = vrcp.pop %v8097
    %v8099 = vmul.f32 1.0, %v8098
    %v8100 = vtanh.pop %v7921
    %v8101 = vxor.u32 %v7922, 2147483648
    %v8102 = vmul.f32 %v8101, 1.442695
    %v8103 = vpow.pop %v8102
    %v8104 = vadd.f32 %v8103, 1.0
    %v8105 = vrcp.pop %v8104
    %v8106 = vmul.f32 1.0, %v8105
    %v8108 = vrot.slane %v7728, 6
    %v8110 = vmul.f32 %v8099, %v8108
    %v8111 = vmul.f32 %v8093, %v8100
    %v8112 = vadd.f32 %v8110, %v8111
    %v8113 = vtanh.pop %v8112
    %v8114 = vmul.f32 %v8106, %v8113
    %v8115 = vxor.u32 %v8084, 2147483648
    %v8116 = vmul.f32 %v8115, 1.442695
    %v8117 = vpow.pop %v8116
    %v8118 = vadd.f32 %v8117, 1.0
    %v8119 = vrcp.pop %v8118
    %v8120 = vmul.f32 1.0, %v8119
    %v8121 = vxor.u32 %v8085, 2147483648
    %v8122 = vmul.f32 %v8121, 1.442695
    %v8123 = vpow.pop %v8122
    %v8124 = vadd.f32 %v8123, 1.0
    %v8125 = vrcp.pop %v8124
    %v8126 = vmul.f32 1.0, %v8125
    %v8127 = vtanh.pop %v8086
    %v8128 = vxor.u32 %v8087, 2147483648
    %v8129 = vmul.f32 %v8128, 1.442695
    %v8130 = vpow.pop %v8129
    %v8131 = vadd.f32 %v8130, 1.0
    %v8132 = vrcp.pop %v8131
    %v8133 = vmul.f32 1.0, %v8132
    %v8135 = vrot.slane %v7755, 2
    %v8137 = vmul.f32 %v8126, %v8135
    %v8138 = vmul.f32 %v8120, %v8127
    %v8139 = vadd.f32 %v8137, %v8138
    %v8140 = vtanh.pop %v8139
    %v8141 = vmul.f32 %v8133, %v8140
    %v8142 = vld [vmem:[#allocation2 + $0x40] sm:$0xc0]
    %v8143 = vld [vmem:[#allocation2 + $0x48] sm:$0xc0]
    %v8144 = vld [vmem:[#allocation2 + $0x50] sm:$0xc0]
    %v8145 = vld [vmem:[#allocation2 + $0x58] sm:$0xc0]
    %v8147 = vrot.slane %v8114, 4
    %8149 = vmatprep.subr.mxu0 %v5445
    %8150 = vmatpush1.msra.mxu0 %v5444
    %8151 = vmatprep.subr.mxu0 %v5441
    %8152 = vmatpush1.msra.mxu0 %v5440
    %8153 = vmatprep.subr.mxu0 %v5437
    %8154 = vmatpush1.msra.mxu0 %v5436
    %8155 = vmatprep.subr.mxu0 %v5433
    %8156 = vmatpush1.msra.mxu0 %v5432
    %8157 = vmatprep.subr.mxu0 %v5429
    %8158 = vmatpush1.msra.mxu0 %v5428
    %8159 = vmatprep.subr.mxu0 %v5425
    %8160 = vmatpush1.msra.mxu0 %v5424
    %8161 = vmatprep.subr.mxu0 %v5421
    %8162 = vmatpush1.msra.mxu0 %v5420
    %8163 = vmatprep.subr.mxu0 %v5417
    %8164 = vmatpush1.msra.mxu0 %v5416
    %8165 = vmatprep.subr.mxu0 %v5413
    %8166 = vmatpush1.msra.mxu0 %v5412
    %8167 = vmatprep.subr.mxu0 %v5409
    %8168 = vmatpush1.msra.mxu0 %v5408
    %8169 = vmatprep.subr.mxu0 %v5405
    %8170 = vmatpush1.msra.mxu0 %v5404
    %8171 = vmatprep.subr.mxu0 %v5401
    %8172 = vmatpush1.msra.mxu0 %v5400
    %8173 = vmatprep.subr.mxu0 %v5397
    %8174 = vmatpush1.msra.mxu0 %v5396
    %8175 = vmatprep.subr.mxu0 %v5393
    %8176 = vmatpush1.msra.mxu0 %v5392
    %8177 = vmatprep.subr.mxu0 %v5389
    %8178 = vmatpush1.msra.mxu0 %v5388
    %8179 = vmatprep.subr.mxu0 %v5385
    %8180 = vmatpush1.msra.mxu0 %v5384
    %8181 = vmatprep.subr.mxu0 0.0
    %8182 = vmatpush2.msra.mxu0 0.0
    %8183 = vmatprep.subr.mxu0 0.0
    %8184 = vmatpush2.msra.mxu0 0.0
    %8185 = vmatprep.subr.mxu0 0.0
    %8186 = vmatpush2.msra.mxu0 0.0
    %8187 = vmatprep.subr.mxu0 0.0
    %8188 = vmatpush2.msra.mxu0 0.0
    %8189 = vmatprep.subr.mxu0 0.0
    %8190 = vmatpush2.msra.mxu0 0.0
    %8191 = vmatprep.subr.mxu0 0.0
    %8192 = vmatpush2.msra.mxu0 0.0
    %8193 = vmatprep.subr.mxu0 0.0
    %8194 = vmatpush2.msra.mxu0 0.0
    %8195 = vmatprep.subr.mxu0 0.0
    %8196 = vmatpush2.msra.mxu0 0.0
    %8197 = vmatprep.subr.mxu0 0.0
    %8198 = vmatpush2.msra.mxu0 0.0
    %8199 = vmatprep.subr.mxu0 0.0
    %8200 = vmatpush2.msra.mxu0 0.0
    %8201 = vmatprep.subr.mxu0 0.0
    %8202 = vmatpush2.msra.mxu0 0.0
    %8203 = vmatprep.subr.mxu0 0.0
    %8204 = vmatpush2.msra.mxu0 0.0
    %8205 = vmatprep.subr.mxu0 0.0
    %8206 = vmatpush2.msra.mxu0 0.0
    %8207 = vmatprep.subr.mxu0 0.0
    %8208 = vmatpush2.msra.mxu0 0.0
    %8209 = vmatprep.subr.mxu0 0.0
    %8210 = vmatpush2.msra.mxu0 0.0
    %8211 = vmatprep.subr.mxu0 0.0
    %8212 = vmatpush2.msra.mxu0 0.0
    %8213 = vmatprep.mubr.f32.mxu0 0.0
    %8214 = vmatmul.mubr.f32.gmra.mxu0 %v8147
    %v8215 = vpop.f32.mrf.mxu0
    %v8216 = vadd.f32 0.0, %v8215
    %v8217 = vpop.f32.mrf.mxu0
    %v8218 = vadd.f32 0.0, %v8217
    %8219 = vdwg.mxu0
    %8220 = vmatprep.subr.mxu0 %v5447
    %8221 = vmatpush1.msra.mxu0 %v5446
    %8222 = vmatprep.subr.mxu0 %v5443
    %8223 = vmatpush1.msra.mxu0 %v5442
    %8224 = vmatprep.subr.mxu0 %v5439
    %8225 = vmatpush1.msra.mxu0 %v5438
    %8226 = vmatprep.subr.mxu0 %v5435
    %8227 = vmatpush1.msra.mxu0 %v5434
    %8228 = vmatprep.subr.mxu0 %v5431
    %8229 = vmatpush1.msra.mxu0 %v5430
    %8230 = vmatprep.subr.mxu0 %v5427
    %8231 = vmatpush1.msra.mxu0 %v5426
    %8232 = vmatprep.subr.mxu0 %v5423
    %8233 = vmatpush1.msra.mxu0 %v5422
    %8234 = vmatprep.subr.mxu0 %v5419
    %8235 = vmatpush1.msra.mxu0 %v5418
    %8236 = vmatprep.subr.mxu0 %v5415
    %8237 = vmatpush1.msra.mxu0 %v5414
    %8238 = vmatprep.subr.mxu0 %v5411
    %8239 = vmatpush1.msra.mxu0 %v5410
    %8240 = vmatprep.subr.mxu0 %v5407
    %8241 = vmatpush1.msra.mxu0 %v5406
    %8242 = vmatprep.subr.mxu0 %v5403
    %8243 = vmatpush1.msra.mxu0 %v5402
    %8244 = vmatprep.subr.mxu0 %v5399
    %8245 = vmatpush1.msra.mxu0 %v5398
    %8246 = vmatprep.subr.mxu0 %v5395
    %8247 = vmatpush1.msra.mxu0 %v5394
    %8248 = vmatprep.subr.mxu0 %v5391
    %8249 = vmatpush1.msra.mxu0 %v5390
    %8250 = vmatprep.subr.mxu0 %v5387
    %8251 = vmatpush1.msra.mxu0 %v5386
    %8252 = vmatprep.subr.mxu0 0.0
    %8253 = vmatpush2.msra.mxu0 0.0
    %8254 = vmatprep.subr.mxu0 0.0
    %8255 = vmatpush2.msra.mxu0 0.0
    %8256 = vmatprep.subr.mxu0 0.0
    %8257 = vmatpush2.msra.mxu0 0.0
    %8258 = vmatprep.subr.mxu0 0.0
    %8259 = vmatpush2.msra.mxu0 0.0
    %8260 = vmatprep.subr.mxu0 0.0
    %8261 = vmatpush2.msra.mxu0 0.0
    %8262 = vmatprep.subr.mxu0 0.0
    %8263 = vmatpush2.msra.mxu0 0.0
    %8264 = vmatprep.subr.mxu0 0.0
    %8265 = vmatpush2.msra.mxu0 0.0
    %8266 = vmatprep.subr.mxu0 0.0
    %8267 = vmatpush2.msra.mxu0 0.0
    %8268 = vmatprep.subr.mxu0 0.0
    %8269 = vmatpush2.msra.mxu0 0.0
    %8270 = vmatprep.subr.mxu0 0.0
    %8271 = vmatpush2.msra.mxu0 0.0
    %8272 = vmatprep.subr.mxu0 0.0
    %8273 = vmatpush2.msra.mxu0 0.0
    %8274 = vmatprep.subr.mxu0 0.0
    %8275 = vmatpush2.msra.mxu0 0.0
    %8276 = vmatprep.subr.mxu0 0.0
    %8277 = vmatpush2.msra.mxu0 0.0
    %8278 = vmatprep.subr.mxu0 0.0
    %8279 = vmatpush2.msra.mxu0 0.0
    %8280 = vmatprep.subr.mxu0 0.0
    %8281 = vmatpush2.msra.mxu0 0.0
    %8282 = vmatprep.subr.mxu0 0.0
    %8283 = vmatpush2.msra.mxu0 0.0
    %8284 = vmatprep.mubr.f32.mxu0 0.0
    %8285 = vmatmul.mubr.f32.gmra.mxu0 %v8147
    %v8286 = vpop.f32.mrf.mxu0
    %v8287 = vadd.f32 0.0, %v8286
    %v8288 = vpop.f32.mrf.mxu0
    %v8289 = vadd.f32 0.0, %v8288
    %8290 = vdwg.mxu0
    %v8295 = vrot.slane %v8216, 2
    %v8296 = vrot.slane %v8218, 2
    %v8297 = vrot.slane %v8287, 2
    %v8298 = vrot.slane %v8289, 2
    %v8303 = vadd.f32 %v8142, %v8295
    %v8304 = vadd.f32 %v8143, %v8296
    %v8305 = vadd.f32 %v8144, %v8297
    %v8306 = vadd.f32 %v8145, %v8298
    %v8307 = vld [vmem:[#allocation2 + $0x20] sm:$0x3]
    %v8308 = vld [vmem:[#allocation2 + $0x28] sm:$0x3]
    %v8309 = vld [vmem:[#allocation2 + $0x30] sm:$0x3]
    %v8310 = vld [vmem:[#allocation2 + $0x38] sm:$0x3]
    %v8312 = vrot.slane %v8141, 2
    %8314 = vmatprep.subr.mxu0 %v5659
    %8315 = vmatpush1.msra.mxu0 %v5658
    %8316 = vmatprep.subr.mxu0 %v5655
    %8317 = vmatpush1.msra.mxu0 %v5654
    %8318 = vmatprep.subr.mxu0 %v5651
    %8319 = vmatpush1.msra.mxu0 %v5650
    %8320 = vmatprep.subr.mxu0 %v5647
    %8321 = vmatpush1.msra.mxu0 %v5646
    %8322 = vmatprep.subr.mxu0 %v5643
    %8323 = vmatpush1.msra.mxu0 %v5642
    %8324 = vmatprep.subr.mxu0 %v5639
    %8325 = vmatpush1.msra.mxu0 %v5638
    %8326 = vmatprep.subr.mxu0 %v5635
    %8327 = vmatpush1.msra.mxu0 %v5634
    %8328 = vmatprep.subr.mxu0 %v5631
    %8329 = vmatpush1.msra.mxu0 %v5630
    %8330 = vmatprep.subr.mxu0 %v5627
    %8331 = vmatpush1.msra.mxu0 %v5626
    %8332 = vmatprep.subr.mxu0 %v5623
    %8333 = vmatpush1.msra.mxu0 %v5622
    %8334 = vmatprep.subr.mxu0 %v5619
    %8335 = vmatpush1.msra.mxu0 %v5618
    %8336 = vmatprep.subr.mxu0 %v5615
    %8337 = vmatpush1.msra.mxu0 %v5614
    %8338 = vmatprep.subr.mxu0 %v5611
    %8339 = vmatpush1.msra.mxu0 %v5610
    %8340 = vmatprep.subr.mxu0 %v5607
    %8341 = vmatpush1.msra.mxu0 %v5606
    %8342 = vmatprep.subr.mxu0 %v5603
    %8343 = vmatpush1.msra.mxu0 %v5602
    %8344 = vmatprep.subr.mxu0 %v5599
    %8345 = vmatpush1.msra.mxu0 %v5598
    %8346 = vmatprep.subr.mxu0 0.0
    %8347 = vmatpush2.msra.mxu0 0.0
    %8348 = vmatprep.subr.mxu0 0.0
    %8349 = vmatpush2.msra.mxu0 0.0
    %8350 = vmatprep.subr.mxu0 0.0
    %8351 = vmatpush2.msra.mxu0 0.0
    %8352 = vmatprep.subr.mxu0 0.0
    %8353 = vmatpush2.msra.mxu0 0.0
    %8354 = vmatprep.subr.mxu0 0.0
    %8355 = vmatpush2.msra.mxu0 0.0
    %8356 = vmatprep.subr.mxu0 0.0
    %8357 = vmatpush2.msra.mxu0 0.0
    %8358 = vmatprep.subr.mxu0 0.0
    %8359 = vmatpush2.msra.mxu0 0.0
    %8360 = vmatprep.subr.mxu0 0.0
    %8361 = vmatpush2.msra.mxu0 0.0
    %8362 = vmatprep.subr.mxu0 0.0
    %8363 = vmatpush2.msra.mxu0 0.0
    %8364 = vmatprep.subr.mxu0 0.0
    %8365 = vmatpush2.msra.mxu0 0.0
    %8366 = vmatprep.subr.mxu0 0.0
    %8367 = vmatpush2.msra.mxu0 0.0
    %8368 = vmatprep.subr.mxu0 0.0
    %8369 = vmatpush2.msra.mxu0 0.0
    %8370 = vmatprep.subr.mxu0 0.0
    %8371 = vmatpush2.msra.mxu0 0.0
    %8372 = vmatprep.subr.mxu0 0.0
    %8373 = vmatpush2.msra.mxu0 0.0
    %8374 = vmatprep.subr.mxu0 0.0
    %8375 = vmatpush2.msra.mxu0 0.0
    %8376 = vmatprep.subr.mxu0 0.0
    %8377 = vmatpush2.msra.mxu0 0.0
    %8378 = vmatprep.mubr.f32.mxu0 0.0
    %8379 = vmatmul.mubr.f32.gmra.mxu0 %v8312
    %v8380 = vpop.f32.mrf.mxu0
    %v8381 = vadd.f32 0.0, %v8380
    %v8382 = vpop.f32.mrf.mxu0
    %v8383 = vadd.f32 0.0, %v8382
    %8384 = vdwg.mxu0
    %8385 = vmatprep.subr.mxu0 %v5661
    %8386 = vmatpush1.msra.mxu0 %v5660
    %8387 = vmatprep.subr.mxu0 %v5657
    %8388 = vmatpush1.msra.mxu0 %v5656
    %8389 = vmatprep.subr.mxu0 %v5653
    %8390 = vmatpush1.msra.mxu0 %v5652
    %8391 = vmatprep.subr.mxu0 %v5649
    %8392 = vmatpush1.msra.mxu0 %v5648
    %8393 = vmatprep.subr.mxu0 %v5645
    %8394 = vmatpush1.msra.mxu0 %v5644
    %8395 = vmatprep.subr.mxu0 %v5641
    %8396 = vmatpush1.msra.mxu0 %v5640
    %8397 = vmatprep.subr.mxu0 %v5637
    %8398 = vmatpush1.msra.mxu0 %v5636
    %8399 = vmatprep.subr.mxu0 %v5633
    %8400 = vmatpush1.msra.mxu0 %v5632
    %8401 = vmatprep.subr.mxu0 %v5629
    %8402 = vmatpush1.msra.mxu0 %v5628
    %8403 = vmatprep.subr.mxu0 %v5625
    %8404 = vmatpush1.msra.mxu0 %v5624
    %8405 = vmatprep.subr.mxu0 %v5621
    %8406 = vmatpush1.msra.mxu0 %v5620
    %8407 = vmatprep.subr.mxu0 %v5617
    %8408 = vmatpush1.msra.mxu0 %v5616
    %8409 = vmatprep.subr.mxu0 %v5613
    %8410 = vmatpush1.msra.mxu0 %v5612
    %8411 = vmatprep.subr.mxu0 %v5609
    %8412 = vmatpush1.msra.mxu0 %v5608
    %8413 = vmatprep.subr.mxu0 %v5605
    %8414 = vmatpush1.msra.mxu0 %v5604
    %8415 = vmatprep.subr.mxu0 %v5601
    %8416 = vmatpush1.msra.mxu0 %v5600
    %8417 = vmatprep.subr.mxu0 0.0
    %8418 = vmatpush2.msra.mxu0 0.0
    %8419 = vmatprep.subr.mxu0 0.0
    %8420 = vmatpush2.msra.mxu0 0.0
    %8421 = vmatprep.subr.mxu0 0.0
    %8422 = vmatpush2.msra.mxu0 0.0
    %8423 = vmatprep.subr.mxu0 0.0
    %8424 = vmatpush2.msra.mxu0 0.0
    %8425 = vmatprep.subr.mxu0 0.0
    %8426 = vmatpush2.msra.mxu0 0.0
    %8427 = vmatprep.subr.mxu0 0.0
    %8428 = vmatpush2.msra.mxu0 0.0
    %8429 = vmatprep.subr.mxu0 0.0
    %8430 = vmatpush2.msra.mxu0 0.0
    %8431 = vmatprep.subr.mxu0 0.0
    %8432 = vmatpush2.msra.mxu0 0.0
    %8433 = vmatprep.subr.mxu0 0.0
    %8434 = vmatpush2.msra.mxu0 0.0
    %8435 = vmatprep.subr.mxu0 0.0
    %8436 = vmatpush2.msra.mxu0 0.0
    %8437 = vmatprep.subr.mxu0 0.0
    %8438 = vmatpush2.msra.mxu0 0.0
    %8439 = vmatprep.subr.mxu0 0.0
    %8440 = vmatpush2.msra.mxu0 0.0
    %8441 = vmatprep.subr.mxu0 0.0
    %8442 = vmatpush2.msra.mxu0 0.0
    %8443 = vmatprep.subr.mxu0 0.0
    %8444 = vmatpush2.msra.mxu0 0.0
    %8445 = vmatprep.subr.mxu0 0.0
    %8446 = vmatpush2.msra.mxu0 0.0
    %8447 = vmatprep.subr.mxu0 0.0
    %8448 = vmatpush2.msra.mxu0 0.0
    %8449 = vmatprep.mubr.f32.mxu0 0.0
    %8450 = vmatmul.mubr.f32.gmra.mxu0 %v8312
    %v8451 = vpop.f32.mrf.mxu0
    %v8452 = vadd.f32 0.0, %v8451
    %v8453 = vpop.f32.mrf.mxu0
    %v8454 = vadd.f32 0.0, %v8453
    %8455 = vdwg.mxu0
    %v8456 = vadd.f32 %v8307, %v8381
    %v8457 = vadd.f32 %v8308, %v8383
    %v8458 = vadd.f32 %v8309, %v8452
    %v8459 = vadd.f32 %v8310, %v8454
    %v8460 = vxor.u32 %v8303, 2147483648
    %v8461 = vmul.f32 %v8460, 1.442695
    %v8462 = vpow.pop %v8461
    %v8463 = vadd.f32 %v8462, 1.0
    %v8464 = vrcp.pop %v8463
    %v8465 = vmul.f32 1.0, %v8464
    %v8466 = vxor.u32 %v8304, 2147483648
    %v8467 = vmul.f32 %v8466, 1.442695
    %v8468 = vpow.pop %v8467
    %v8469 = vadd.f32 %v8468, 1.0
    %v8470 = vrcp.pop %v8469
    %v8471 = vmul.f32 1.0, %v8470
    %v8472 = vtanh.pop %v8305
    %v8473 = vxor.u32 %v8306, 2147483648
    %v8474 = vmul.f32 %v8473, 1.442695
    %v8475 = vpow.pop %v8474
    %v8476 = vadd.f32 %v8475, 1.0
    %v8477 = vrcp.pop %v8476
    %v8478 = vmul.f32 1.0, %v8477
    %v8480 = vrot.slane %v8112, 6
    %v8482 = vmul.f32 %v8471, %v8480
    %v8483 = vmul.f32 %v8465, %v8472
    %v8484 = vadd.f32 %v8482, %v8483
    %v8485 = vtanh.pop %v8484
    %v8486 = vmul.f32 %v8478, %v8485
    %v8487 = vxor.u32 %v8456, 2147483648
    %v8488 = vmul.f32 %v8487, 1.442695
    %v8489 = vpow.pop %v8488
    %v8490 = vadd.f32 %v8489, 1.0
    %v8491 = vrcp.pop %v8490
    %v8492 = vmul.f32 1.0, %v8491
    %v8493 = vxor.u32 %v8457, 2147483648
    %v8494 = vmul.f32 %v8493, 1.442695
    %v8495 = vpow.pop %v8494
    %v8496 = vadd.f32 %v8495, 1.0
    %v8497 = vrcp.pop %v8496
    %v8498 = vmul.f32 1.0, %v8497
    %v8499 = vtanh.pop %v8458
    %v8500 = vxor.u32 %v8459, 2147483648
    %v8501 = vmul.f32 %v8500, 1.442695
    %v8502 = vpow.pop %v8501
    %v8503 = vadd.f32 %v8502, 1.0
    %v8504 = vrcp.pop %v8503
    %v8505 = vmul.f32 1.0, %v8504
    %v8507 = vrot.slane %v8139, 2
    %v8509 = vmul.f32 %v8498, %v8507
    %v8510 = vmul.f32 %v8492, %v8499
    %v8511 = vadd.f32 %v8509, %v8510
    %v8512 = vtanh.pop %v8511
    %v8513 = vmul.f32 %v8505, %v8512
    %v8515 = vcombine.high %v8486, %v8486
    %v8517 = vunpack.c.l.s4 1983009808
    %v8518 = vunpack.c.0.s8 %v8517
    %v8519 = vlaneseq
    %v8520 = vshrl.u32 %v8519, 7
    %v8521 = vsub.s32 %v8518, %v8520
    %v8522 = vrot.slane %v8515, %v8521
    %v8523 = vcombine.high %v8522, %v8522
    %8525 = vst [vmem:[#allocation4 + $0x1] sm:$0x1] %v8523
    %v8527 = vcombine.high %v8484, %v8484
    %v8529 = vunpack.c.l.s4 1983009808
    %v8530 = vunpack.c.0.s8 %v8529
    %v8531 = vlaneseq
    %v8532 = vshrl.u32 %v8531, 7
    %v8533 = vsub.s32 %v8530, %v8532
    %v8534 = vrot.slane %v8527, %v8533
    %v8535 = vcombine.high %v8534, %v8534
    %8537 = vst [vmem:[#allocation4 + $0x9] sm:$0x1] %v8535
    %v8538 = vrot.slane %v8523, 7
    %v8539 = vrot.slane %v8538, 2
    %8541 = vst [vmem:[#allocation4 + $0x3] sm:$0x1] %v8539
    %v8542 = vrot.slane %v8535, 7
    %v8543 = vrot.slane %v8542, 2
    %8545 = vst [vmem:[#allocation4 + $0xb] sm:$0x1] %v8543
    %8546 = vst [vmem:[#allocation4 + $0x5] sm:$0x1] %v8513
    %8547 = vst [vmem:[#allocation4 + $0xd] sm:$0x1] %v8511
    %v8550 = vunpack.c.l.s4 1983009808
    %v8551 = vunpack.c.0.s8 %v8550
    %v8552 = vlaneseq
    %v8553 = vshrl.u32 %v8552, 7
    %v8554 = vsub.s32 %v8551, %v8553
    %v8555 = vrot.slane %v8513, %v8554
    %v8556 = vrot.slane %v8555, 7
    %v8557 = vrot.slane %v8556, 2
    %8559 = vst [vmem:[#allocation4 + $0x7] sm:$0x1] %v8557
    %v8562 = vunpack.c.l.s4 1983009808
    %v8563 = vunpack.c.0.s8 %v8562
    %v8564 = vlaneseq
    %v8565 = vshrl.u32 %v8564, 7
    %v8566 = vsub.s32 %v8563, %v8565
    %v8567 = vrot.slane %v8511, %v8566
    %v8568 = vrot.slane %v8567, 7
    %v8569 = vrot.slane %v8568, 2
    %8571 = vst [vmem:[#allocation4 + $0xf] sm:$0x1] %v8569
    %v8572 = vld [vmem:[#allocation4] sm:$0xff]
    %v8573 = vld [vmem:[#allocation4 + $0x8] sm:$0xff]
    %v8574 = vld [vmem:[#allocation16] sm:$0xff]
    %v8575 = vld [vmem:[#allocation16 + $0x8] sm:$0xff]
    %v8576 = vld [vmem:[#allocation16 + $0x10] sm:$0xff]
    %v8577 = vld [vmem:[#allocation16 + $0x18] sm:$0xff]
    %v8578 = vld [vmem:[#allocation16 + $0x20] sm:$0xff]
    %v8579 = vld [vmem:[#allocation16 + $0x28] sm:$0xff]
    %v8580 = vld [vmem:[#allocation16 + $0x30] sm:$0xff]
    %v8581 = vld [vmem:[#allocation16 + $0x38] sm:$0xff]
    %v8582 = vld [vmem:[#allocation16 + $0x40] sm:$0xff]
    %v8583 = vld [vmem:[#allocation16 + $0x48] sm:$0xff]
    %v8584 = vld [vmem:[#allocation16 + $0x50] sm:$0xff]
    %v8585 = vld [vmem:[#allocation16 + $0x58] sm:$0xff]
    %v8586 = vld [vmem:[#allocation16 + $0x60] sm:$0xff]
    %v8587 = vld [vmem:[#allocation16 + $0x68] sm:$0xff]
    %v8588 = vld [vmem:[#allocation16 + $0x70] sm:$0xff]
    %v8589 = vld [vmem:[#allocation16 + $0x78] sm:$0xff]
    %v8590 = vld [vmem:[#allocation16 + $0x80] sm:$0xff]
    %v8591 = vld [vmem:[#allocation16 + $0x88] sm:$0xff]
    %v8592 = vld [vmem:[#allocation16 + $0x90] sm:$0xff]
    %v8593 = vld [vmem:[#allocation16 + $0x98] sm:$0xff]
    %v8594 = vld [vmem:[#allocation16 + $0xa0] sm:$0xff]
    %v8595 = vld [vmem:[#allocation16 + $0xa8] sm:$0xff]
    %v8596 = vld [vmem:[#allocation16 + $0xb0] sm:$0xff]
    %v8597 = vld [vmem:[#allocation16 + $0xb8] sm:$0xff]
    %v8598 = vld [vmem:[#allocation16 + $0xc0] sm:$0xff]
    %v8599 = vld [vmem:[#allocation16 + $0xc8] sm:$0xff]
    %v8600 = vld [vmem:[#allocation16 + $0xd0] sm:$0xff]
    %v8601 = vld [vmem:[#allocation16 + $0xd8] sm:$0xff]
    %v8602 = vld [vmem:[#allocation16 + $0xe0] sm:$0xff]
    %v8603 = vld [vmem:[#allocation16 + $0xe8] sm:$0xff]
    %v8604 = vld [vmem:[#allocation16 + $0xf0] sm:$0xff]
    %v8605 = vld [vmem:[#allocation16 + $0xf8] sm:$0xff]
    %v8606 = vld [vmem:[#allocation16 + $0x100] sm:$0xff]
    %v8607 = vld [vmem:[#allocation16 + $0x108] sm:$0xff]
    %v8608 = vld [vmem:[#allocation16 + $0x110] sm:$0xff]
    %v8609 = vld [vmem:[#allocation16 + $0x118] sm:$0xff]
    %v8610 = vld [vmem:[#allocation16 + $0x120] sm:$0xff]
    %v8611 = vld [vmem:[#allocation16 + $0x128] sm:$0xff]
    %v8612 = vld [vmem:[#allocation16 + $0x130] sm:$0xff]
    %v8613 = vld [vmem:[#allocation16 + $0x138] sm:$0xff]
    %v8614 = vld [vmem:[#allocation16 + $0x140] sm:$0xff]
    %v8615 = vld [vmem:[#allocation16 + $0x148] sm:$0xff]
    %v8616 = vld [vmem:[#allocation16 + $0x150] sm:$0xff]
    %v8617 = vld [vmem:[#allocation16 + $0x158] sm:$0xff]
    %v8618 = vld [vmem:[#allocation16 + $0x160] sm:$0xff]
    %v8619 = vld [vmem:[#allocation16 + $0x168] sm:$0xff]
    %v8620 = vld [vmem:[#allocation16 + $0x170] sm:$0xff]
    %v8621 = vld [vmem:[#allocation16 + $0x178] sm:$0xff]
    %v8622 = vld [vmem:[#allocation16 + $0x180] sm:$0xff]
    %v8623 = vld [vmem:[#allocation16 + $0x188] sm:$0xff]
    %v8624 = vld [vmem:[#allocation16 + $0x190] sm:$0xff]
    %v8625 = vld [vmem:[#allocation16 + $0x198] sm:$0xff]
    %v8626 = vld [vmem:[#allocation16 + $0x1a0] sm:$0xff]
    %v8627 = vld [vmem:[#allocation16 + $0x1a8] sm:$0xff]
    %v8628 = vld [vmem:[#allocation16 + $0x1b0] sm:$0xff]
    %v8629 = vld [vmem:[#allocation16 + $0x1b8] sm:$0xff]
    %v8630 = vld [vmem:[#allocation16 + $0x1c0] sm:$0xff]
    %v8631 = vld [vmem:[#allocation16 + $0x1c8] sm:$0xff]
    %v8632 = vld [vmem:[#allocation16 + $0x1d0] sm:$0xff]
    %v8633 = vld [vmem:[#allocation16 + $0x1d8] sm:$0xff]
    %v8634 = vld [vmem:[#allocation16 + $0x1e0] sm:$0xff]
    %v8635 = vld [vmem:[#allocation16 + $0x1e8] sm:$0xff]
    %v8636 = vld [vmem:[#allocation16 + $0x1f0] sm:$0xff]
    %v8637 = vld [vmem:[#allocation16 + $0x1f8] sm:$0xff]
    %v8638 = vld [vmem:[#allocation16 + $0x200] sm:$0xff]
    %v8639 = vld [vmem:[#allocation16 + $0x208] sm:$0xff]
    %v8640 = vld [vmem:[#allocation16 + $0x210] sm:$0xff]
    %v8641 = vld [vmem:[#allocation16 + $0x218] sm:$0xff]
    %v8642 = vld [vmem:[#allocation16 + $0x220] sm:$0xff]
    %v8643 = vld [vmem:[#allocation16 + $0x228] sm:$0xff]
    %v8644 = vld [vmem:[#allocation16 + $0x230] sm:$0xff]
    %v8645 = vld [vmem:[#allocation16 + $0x238] sm:$0xff]
    %v8646 = vld [vmem:[#allocation16 + $0x240] sm:$0xff]
    %v8647 = vld [vmem:[#allocation16 + $0x248] sm:$0xff]
    %v8648 = vld [vmem:[#allocation16 + $0x250] sm:$0xff]
    %v8649 = vld [vmem:[#allocation16 + $0x258] sm:$0xff]
    %v8650 = vld [vmem:[#allocation16 + $0x260] sm:$0xff]
    %v8651 = vld [vmem:[#allocation16 + $0x268] sm:$0xff]
    %v8652 = vld [vmem:[#allocation16 + $0x270] sm:$0xff]
    %v8653 = vld [vmem:[#allocation16 + $0x278] sm:$0xff]
    %v8654 = vld [vmem:[#allocation16 + $0x280] sm:$0xff]
    %v8655 = vld [vmem:[#allocation16 + $0x288] sm:$0xff]
    %v8656 = vld [vmem:[#allocation16 + $0x290] sm:$0xff]
    %v8657 = vld [vmem:[#allocation16 + $0x298] sm:$0xff]
    %v8658 = vld [vmem:[#allocation16 + $0x2a0] sm:$0xff]
    %v8659 = vld [vmem:[#allocation16 + $0x2a8] sm:$0xff]
    %v8660 = vld [vmem:[#allocation16 + $0x2b0] sm:$0xff]
    %v8661 = vld [vmem:[#allocation16 + $0x2b8] sm:$0xff]
    %v8662 = vld [vmem:[#allocation16 + $0x2c0] sm:$0xff]
    %v8663 = vld [vmem:[#allocation16 + $0x2c8] sm:$0xff]
    %v8664 = vld [vmem:[#allocation16 + $0x2d0] sm:$0xff]
    %v8665 = vld [vmem:[#allocation16 + $0x2d8] sm:$0xff]
    %v8666 = vld [vmem:[#allocation16 + $0x2e0] sm:$0xff]
    %v8667 = vld [vmem:[#allocation16 + $0x2e8] sm:$0xff]
    %v8668 = vld [vmem:[#allocation16 + $0x2f0] sm:$0xff]
    %v8669 = vld [vmem:[#allocation16 + $0x2f8] sm:$0xff]
    %v8670 = vld [vmem:[#allocation16 + $0x300] sm:$0xff]
    %v8671 = vld [vmem:[#allocation16 + $0x308] sm:$0xff]
    %v8672 = vld [vmem:[#allocation16 + $0x310] sm:$0xff]
    %v8673 = vld [vmem:[#allocation16 + $0x318] sm:$0xff]
    %v8674 = vld [vmem:[#allocation16 + $0x320] sm:$0xff]
    %v8675 = vld [vmem:[#allocation16 + $0x328] sm:$0xff]
    %v8676 = vld [vmem:[#allocation16 + $0x330] sm:$0xff]
    %v8677 = vld [vmem:[#allocation16 + $0x338] sm:$0xff]
    %v8678 = vld [vmem:[#allocation16 + $0x340] sm:$0xff]
    %v8679 = vld [vmem:[#allocation16 + $0x348] sm:$0xff]
    %v8680 = vld [vmem:[#allocation16 + $0x350] sm:$0xff]
    %v8681 = vld [vmem:[#allocation16 + $0x358] sm:$0xff]
    %v8682 = vld [vmem:[#allocation16 + $0x360] sm:$0xff]
    %v8683 = vld [vmem:[#allocation16 + $0x368] sm:$0xff]
    %v8684 = vld [vmem:[#allocation16 + $0x370] sm:$0xff]
    %v8685 = vld [vmem:[#allocation16 + $0x378] sm:$0xff]
    %v8686 = vld [vmem:[#allocation16 + $0x380] sm:$0xff]
    %v8687 = vld [vmem:[#allocation16 + $0x388] sm:$0xff]
    %v8688 = vld [vmem:[#allocation16 + $0x390] sm:$0xff]
    %v8689 = vld [vmem:[#allocation16 + $0x398] sm:$0xff]
    %v8690 = vld [vmem:[#allocation16 + $0x3a0] sm:$0xff]
    %v8691 = vld [vmem:[#allocation16 + $0x3a8] sm:$0xff]
    %v8692 = vld [vmem:[#allocation16 + $0x3b0] sm:$0xff]
    %v8693 = vld [vmem:[#allocation16 + $0x3b8] sm:$0xff]
    %v8694 = vld [vmem:[#allocation16 + $0x3c0] sm:$0xff]
    %v8695 = vld [vmem:[#allocation16 + $0x3c8] sm:$0xff]
    %v8696 = vld [vmem:[#allocation16 + $0x3d0] sm:$0xff]
    %v8697 = vld [vmem:[#allocation16 + $0x3d8] sm:$0xff]
    %v8698 = vld [vmem:[#allocation16 + $0x3e0] sm:$0xff]
    %v8699 = vld [vmem:[#allocation16 + $0x3e8] sm:$0xff]
    %v8700 = vld [vmem:[#allocation16 + $0x3f0] sm:$0xff]
    %v8701 = vld [vmem:[#allocation16 + $0x3f8] sm:$0xff]
    %v8702 = vld [vmem:[%s12] sm:$0x1]
    %v8704 = vlaneseq
    %v8705 = vshrl.u32 %v8704, 7
    %v8706 = vsub.s32 0, %v8705
    %v8707 = vrot.slane %v8702, %v8706
    %v8711 = vcombine.high %v8572, %v8572
    %v8713 = vunpack.c.l.s4 1983009808
    %v8714 = vunpack.c.0.s8 %v8713
    %v8715 = vlaneseq
    %v8716 = vshrl.u32 %v8715, 7
    %v8717 = vsub.s32 %v8714, %v8716
    %v8718 = vrot.slane %v8572, %v8717
    %v8720 = vunpack.c.l.s4 1983009808
    %v8721 = vunpack.c.0.s8 %v8720
    %v8722 = vlaneseq
    %v8723 = vshrl.u32 %v8722, 7
    %v8724 = vsub.s32 %v8721, %v8723
    %v8725 = vrot.slane %v8711, %v8724
    %v8726 = vcombine.high %v8718, %v8718
    %v8727 = vcombine.high %v8725, %v8725
    %v8728 = vcombine.high %v8573, %v8573
    %v8730 = vunpack.c.l.s4 1983009808
    %v8731 = vunpack.c.0.s8 %v8730
    %v8732 = vlaneseq
    %v8733 = vshrl.u32 %v8732, 7
    %v8734 = vsub.s32 %v8731, %v8733
    %v8735 = vrot.slane %v8573, %v8734
    %v8737 = vunpack.c.l.s4 1983009808
    %v8738 = vunpack.c.0.s8 %v8737
    %v8739 = vlaneseq
    %v8740 = vshrl.u32 %v8739, 7
    %v8741 = vsub.s32 %v8738, %v8740
    %v8742 = vrot.slane %v8728, %v8741
    %v8743 = vcombine.high %v8735, %v8735
    %v8744 = vcombine.high %v8742, %v8742
    %8753 = vmatprep.subr.mxu0 0.0
    %8754 = vmatpush1.msra.mxu0 %v8589
    %8755 = vmatprep.subr.mxu0 0.0
    %8756 = vmatpush1.msra.mxu0 %v8588
    %8757 = vmatprep.subr.mxu0 0.0
    %8758 = vmatpush1.msra.mxu0 %v8587
    %8759 = vmatprep.subr.mxu0 0.0
    %8760 = vmatpush1.msra.mxu0 %v8586
    %8761 = vmatprep.subr.mxu0 0.0
    %8762 = vmatpush1.msra.mxu0 %v8585
    %8763 = vmatprep.subr.mxu0 0.0
    %8764 = vmatpush1.msra.mxu0 %v8584
    %8765 = vmatprep.subr.mxu0 0.0
    %8766 = vmatpush1.msra.mxu0 %v8583
    %8767 = vmatprep.subr.mxu0 0.0
    %8768 = vmatpush1.msra.mxu0 %v8582
    %8769 = vmatprep.subr.mxu0 0.0
    %8770 = vmatpush1.msra.mxu0 %v8581
    %8771 = vmatprep.subr.mxu0 0.0
    %8772 = vmatpush1.msra.mxu0 %v8580
    %8773 = vmatprep.subr.mxu0 0.0
    %8774 = vmatpush1.msra.mxu0 %v8579
    %8775 = vmatprep.subr.mxu0 0.0
    %8776 = vmatpush1.msra.mxu0 %v8578
    %8777 = vmatprep.subr.mxu0 0.0
    %8778 = vmatpush1.msra.mxu0 %v8577
    %8779 = vmatprep.subr.mxu0 0.0
    %8780 = vmatpush1.msra.mxu0 %v8576
    %8781 = vmatprep.subr.mxu0 0.0
    %8782 = vmatpush1.msra.mxu0 %v8575
    %8783 = vmatprep.subr.mxu0 0.0
    %8784 = vmatpush1.msra.mxu0 %v8574
    %8785 = vmatprep.subr.mxu0 0.0
    %8786 = vmatpush2.msra.mxu0 %v8605
    %8787 = vmatprep.subr.mxu0 0.0
    %8788 = vmatpush2.msra.mxu0 %v8604
    %8789 = vmatprep.subr.mxu0 0.0
    %8790 = vmatpush2.msra.mxu0 %v8603
    %8791 = vmatprep.subr.mxu0 0.0
    %8792 = vmatpush2.msra.mxu0 %v8602
    %8793 = vmatprep.subr.mxu0 0.0
    %8794 = vmatpush2.msra.mxu0 %v8601
    %8795 = vmatprep.subr.mxu0 0.0
    %8796 = vmatpush2.msra.mxu0 %v8600
    %8797 = vmatprep.subr.mxu0 0.0
    %8798 = vmatpush2.msra.mxu0 %v8599
    %8799 = vmatprep.subr.mxu0 0.0
    %8800 = vmatpush2.msra.mxu0 %v8598
    %8801 = vmatprep.subr.mxu0 0.0
    %8802 = vmatpush2.msra.mxu0 %v8597
    %8803 = vmatprep.subr.mxu0 0.0
    %8804 = vmatpush2.msra.mxu0 %v8596
    %8805 = vmatprep.subr.mxu0 0.0
    %8806 = vmatpush2.msra.mxu0 %v8595
    %8807 = vmatprep.subr.mxu0 0.0
    %8808 = vmatpush2.msra.mxu0 %v8594
    %8809 = vmatprep.subr.mxu0 0.0
    %8810 = vmatpush2.msra.mxu0 %v8593
    %8811 = vmatprep.subr.mxu0 0.0
    %8812 = vmatpush2.msra.mxu0 %v8592
    %8813 = vmatprep.subr.mxu0 0.0
    %8814 = vmatpush2.msra.mxu0 %v8591
    %8815 = vmatprep.subr.mxu0 0.0
    %8816 = vmatpush2.msra.mxu0 %v8590
    %8817 = vmatprep.mubr.f32.mxu0 %v8726
    %8818 = vmatmul.mubr.f32.gmra.mxu0 %v8718
    %v8819 = vpop.f32.mrf.mxu0
    %v8820 = vadd.f32 %v8707, %v8819
    %v8821 = vpop.f32.mrf.mxu0
    %8822 = vdwg.mxu0
    %8823 = vmatprep.subr.mxu0 0.0
    %8824 = vmatpush1.msra.mxu0 %v8621
    %8825 = vmatprep.subr.mxu0 0.0
    %8826 = vmatpush1.msra.mxu0 %v8620
    %8827 = vmatprep.subr.mxu0 0.0
    %8828 = vmatpush1.msra.mxu0 %v8619
    %8829 = vmatprep.subr.mxu0 0.0
    %8830 = vmatpush1.msra.mxu0 %v8618
    %8831 = vmatprep.subr.mxu0 0.0
    %8832 = vmatpush1.msra.mxu0 %v8617
    %8833 = vmatprep.subr.mxu0 0.0
    %8834 = vmatpush1.msra.mxu0 %v8616
    %8835 = vmatprep.subr.mxu0 0.0
    %8836 = vmatpush1.msra.mxu0 %v8615
    %8837 = vmatprep.subr.mxu0 0.0
    %8838 = vmatpush1.msra.mxu0 %v8614
    %8839 = vmatprep.subr.mxu0 0.0
    %8840 = vmatpush1.msra.mxu0 %v8613
    %8841 = vmatprep.subr.mxu0 0.0
    %8842 = vmatpush1.msra.mxu0 %v8612
    %8843 = vmatprep.subr.mxu0 0.0
    %8844 = vmatpush1.msra.mxu0 %v8611
    %8845 = vmatprep.subr.mxu0 0.0
    %8846 = vmatpush1.msra.mxu0 %v8610
    %8847 = vmatprep.subr.mxu0 0.0
    %8848 = vmatpush1.msra.mxu0 %v8609
    %8849 = vmatprep.subr.mxu0 0.0
    %8850 = vmatpush1.msra.mxu0 %v8608
    %8851 = vmatprep.subr.mxu0 0.0
    %8852 = vmatpush1.msra.mxu0 %v8607
    %8853 = vmatprep.subr.mxu0 0.0
    %8854 = vmatpush1.msra.mxu0 %v8606
    %8855 = vmatprep.subr.mxu0 0.0
    %8856 = vmatpush2.msra.mxu0 %v8637
    %8857 = vmatprep.subr.mxu0 0.0
    %8858 = vmatpush2.msra.mxu0 %v8636
    %8859 = vmatprep.subr.mxu0 0.0
    %8860 = vmatpush2.msra.mxu0 %v8635
    %8861 = vmatprep.subr.mxu0 0.0
    %8862 = vmatpush2.msra.mxu0 %v8634
    %8863 = vmatprep.subr.mxu0 0.0
    %8864 = vmatpush2.msra.mxu0 %v8633
    %8865 = vmatprep.subr.mxu0 0.0
    %8866 = vmatpush2.msra.mxu0 %v8632
    %8867 = vmatprep.subr.mxu0 0.0
    %8868 = vmatpush2.msra.mxu0 %v8631
    %8869 = vmatprep.subr.mxu0 0.0
    %8870 = vmatpush2.msra.mxu0 %v8630
    %8871 = vmatprep.subr.mxu0 0.0
    %8872 = vmatpush2.msra.mxu0 %v8629
    %8873 = vmatprep.subr.mxu0 0.0
    %8874 = vmatpush2.msra.mxu0 %v8628
    %8875 = vmatprep.subr.mxu0 0.0
    %8876 = vmatpush2.msra.mxu0 %v8627
    %8877 = vmatprep.subr.mxu0 0.0
    %8878 = vmatpush2.msra.mxu0 %v8626
    %8879 = vmatprep.subr.mxu0 0.0
    %8880 = vmatpush2.msra.mxu0 %v8625
    %8881 = vmatprep.subr.mxu0 0.0
    %8882 = vmatpush2.msra.mxu0 %v8624
    %8883 = vmatprep.subr.mxu0 0.0
    %8884 = vmatpush2.msra.mxu0 %v8623
    %8885 = vmatprep.subr.mxu0 0.0
    %8886 = vmatpush2.msra.mxu0 %v8622
    %8887 = vmatprep.mubr.f32.mxu0 %v8727
    %8888 = vmatmul.mubr.f32.gmra.mxu0 %v8725
    %v8889 = vpop.f32.mrf.mxu0
    %v8890 = vadd.f32 %v8820, %v8889
    %v8891 = vpop.f32.mrf.mxu0
    %8892 = vdwg.mxu0
    %8893 = vmatprep.subr.mxu0 0.0
    %8894 = vmatpush1.msra.mxu0 %v8653
    %8895 = vmatprep.subr.mxu0 0.0
    %8896 = vmatpush1.msra.mxu0 %v8652
    %8897 = vmatprep.subr.mxu0 0.0
    %8898 = vmatpush1.msra.mxu0 %v8651
    %8899 = vmatprep.subr.mxu0 0.0
    %8900 = vmatpush1.msra.mxu0 %v8650
    %8901 = vmatprep.subr.mxu0 0.0
    %8902 = vmatpush1.msra.mxu0 %v8649
    %8903 = vmatprep.subr.mxu0 0.0
    %8904 = vmatpush1.msra.mxu0 %v8648
    %8905 = vmatprep.subr.mxu0 0.0
    %8906 = vmatpush1.msra.mxu0 %v8647
    %8907 = vmatprep.subr.mxu0 0.0
    %8908 = vmatpush1.msra.mxu0 %v8646
    %8909 = vmatprep.subr.mxu0 0.0
    %8910 = vmatpush1.msra.mxu0 %v8645
    %8911 = vmatprep.subr.mxu0 0.0
    %8912 = vmatpush1.msra.mxu0 %v8644
    %8913 = vmatprep.subr.mxu0 0.0
    %8914 = vmatpush1.msra.mxu0 %v8643
    %8915 = vmatprep.subr.mxu0 0.0
    %8916 = vmatpush1.msra.mxu0 %v8642
    %8917 = vmatprep.subr.mxu0 0.0
    %8918 = vmatpush1.msra.mxu0 %v8641
    %8919 = vmatprep.subr.mxu0 0.0
    %8920 = vmatpush1.msra.mxu0 %v8640
    %8921 = vmatprep.subr.mxu0 0.0
    %8922 = vmatpush1.msra.mxu0 %v8639
    %8923 = vmatprep.subr.mxu0 0.0
    %8924 = vmatpush1.msra.mxu0 %v8638
    %8925 = vmatprep.subr.mxu0 0.0
    %8926 = vmatpush2.msra.mxu0 %v8669
    %8927 = vmatprep.subr.mxu0 0.0
    %8928 = vmatpush2.msra.mxu0 %v8668
    %8929 = vmatprep.subr.mxu0 0.0
    %8930 = vmatpush2.msra.mxu0 %v8667
    %8931 = vmatprep.subr.mxu0 0.0
    %8932 = vmatpush2.msra.mxu0 %v8666
    %8933 = vmatprep.subr.mxu0 0.0
    %8934 = vmatpush2.msra.mxu0 %v8665
    %8935 = vmatprep.subr.mxu0 0.0
    %8936 = vmatpush2.msra.mxu0 %v8664
    %8937 = vmatprep.subr.mxu0 0.0
    %8938 = vmatpush2.msra.mxu0 %v8663
    %8939 = vmatprep.subr.mxu0 0.0
    %8940 = vmatpush2.msra.mxu0 %v8662
    %8941 = vmatprep.subr.mxu0 0.0
    %8942 = vmatpush2.msra.mxu0 %v8661
    %8943 = vmatprep.subr.mxu0 0.0
    %8944 = vmatpush2.msra.mxu0 %v8660
    %8945 = vmatprep.subr.mxu0 0.0
    %8946 = vmatpush2.msra.mxu0 %v8659
    %8947 = vmatprep.subr.mxu0 0.0
    %8948 = vmatpush2.msra.mxu0 %v8658
    %8949 = vmatprep.subr.mxu0 0.0
    %8950 = vmatpush2.msra.mxu0 %v8657
    %8951 = vmatprep.subr.mxu0 0.0
    %8952 = vmatpush2.msra.mxu0 %v8656
    %8953 = vmatprep.subr.mxu0 0.0
    %8954 = vmatpush2.msra.mxu0 %v8655
    %8955 = vmatprep.subr.mxu0 0.0
    %8956 = vmatpush2.msra.mxu0 %v8654
    %8957 = vmatprep.mubr.f32.mxu0 %v8743
    %8958 = vmatmul.mubr.f32.gmra.mxu0 %v8735
    %v8959 = vpop.f32.mrf.mxu0
    %v8960 = vadd.f32 %v8890, %v8959
    %v8961 = vpop.f32.mrf.mxu0
    %8962 = vdwg.mxu0
    %8963 = vmatprep.subr.mxu0 0.0
    %8964 = vmatpush1.msra.mxu0 %v8685
    %8965 = vmatprep.subr.mxu0 0.0
    %8966 = vmatpush1.msra.mxu0 %v8684
    %8967 = vmatprep.subr.mxu0 0.0
    %8968 = vmatpush1.msra.mxu0 %v8683
    %8969 = vmatprep.subr.mxu0 0.0
    %8970 = vmatpush1.msra.mxu0 %v8682
    %8971 = vmatprep.subr.mxu0 0.0
    %8972 = vmatpush1.msra.mxu0 %v8681
    %8973 = vmatprep.subr.mxu0 0.0
    %8974 = vmatpush1.msra.mxu0 %v8680
    %8975 = vmatprep.subr.mxu0 0.0
    %8976 = vmatpush1.msra.mxu0 %v8679
    %8977 = vmatprep.subr.mxu0 0.0
    %8978 = vmatpush1.msra.mxu0 %v8678
    %8979 = vmatprep.subr.mxu0 0.0
    %8980 = vmatpush1.msra.mxu0 %v8677
    %8981 = vmatprep.subr.mxu0 0.0
    %8982 = vmatpush1.msra.mxu0 %v8676
    %8983 = vmatprep.subr.mxu0 0.0
    %8984 = vmatpush1.msra.mxu0 %v8675
    %8985 = vmatprep.subr.mxu0 0.0
    %8986 = vmatpush1.msra.mxu0 %v8674
    %8987 = vmatprep.subr.mxu0 0.0
    %8988 = vmatpush1.msra.mxu0 %v8673
    %8989 = vmatprep.subr.mxu0 0.0
    %8990 = vmatpush1.msra.mxu0 %v8672
    %8991 = vmatprep.subr.mxu0 0.0
    %8992 = vmatpush1.msra.mxu0 %v8671
    %8993 = vmatprep.subr.mxu0 0.0
    %8994 = vmatpush1.msra.mxu0 %v8670
    %8995 = vmatprep.subr.mxu0 0.0
    %8996 = vmatpush2.msra.mxu0 %v8701
    %8997 = vmatprep.subr.mxu0 0.0
    %8998 = vmatpush2.msra.mxu0 %v8700
    %8999 = vmatprep.subr.mxu0 0.0
    %9000 = vmatpush2.msra.mxu0 %v8699
    %9001 = vmatprep.subr.mxu0 0.0
    %9002 = vmatpush2.msra.mxu0 %v8698
    %9003 = vmatprep.subr.mxu0 0.0
    %9004 = vmatpush2.msra.mxu0 %v8697
    %9005 = vmatprep.subr.mxu0 0.0
    %9006 = vmatpush2.msra.mxu0 %v8696
    %9007 = vmatprep.subr.mxu0 0.0
    %9008 = vmatpush2.msra.mxu0 %v8695
    %9009 = vmatprep.subr.mxu0 0.0
    %9010 = vmatpush2.msra.mxu0 %v8694
    %9011 = vmatprep.subr.mxu0 0.0
    %9012 = vmatpush2.msra.mxu0 %v8693
    %9013 = vmatprep.subr.mxu0 0.0
    %9014 = vmatpush2.msra.mxu0 %v8692
    %9015 = vmatprep.subr.mxu0 0.0
    %9016 = vmatpush2.msra.mxu0 %v8691
    %9017 = vmatprep.subr.mxu0 0.0
    %9018 = vmatpush2.msra.mxu0 %v8690
    %9019 = vmatprep.subr.mxu0 0.0
    %9020 = vmatpush2.msra.mxu0 %v8689
    %9021 = vmatprep.subr.mxu0 0.0
    %9022 = vmatpush2.msra.mxu0 %v8688
    %9023 = vmatprep.subr.mxu0 0.0
    %9024 = vmatpush2.msra.mxu0 %v8687
    %9025 = vmatprep.subr.mxu0 0.0
    %9026 = vmatpush2.msra.mxu0 %v8686
    %9027 = vmatprep.mubr.f32.mxu0 %v8744
    %9028 = vmatmul.mubr.f32.gmra.mxu0 %v8742
    %v9029 = vpop.f32.mrf.mxu0
    %v9030 = vadd.f32 %v8960, %v9029
    %v9031 = vpop.f32.mrf.mxu0
    %9032 = vdwg.mxu0
    %vm9033 = vcmask 1041408
    %v9034 = vsel %vm9033, %v9030, -inf
    %9035 = vmax.xlane.f32.xlu0 %v9034
    %v9036 = vpop.xlane.xlu0 %9035
    %v9037 = vsub.f32 %v9030, %v9036
    %v9038 = vmul.f32 %v9037, 1.442695
    %v9039 = vpow.pop %v9038
    %v9040 = vsel %vm9033, %v9039, 0.0
    %9041 = vadd.xlane.f32.xlu0 %v9040
    %v9042 = vpop.xlane.xlu0 %9041
    %v9043 = vlog2.pop %v9042
    %v9044 = vmul.f32 %v9043, 0.6931472
    %v9045 = vsub.f32 %v9037, %v9044
    %9046 = vst [vmem:[#allocation17] sm:$0x3] %v9045
    // Predicated region
    $region82: #{bilstm_forward.1} parent=1 // pred_check
      _
    $region83: #{bilstm_forward.1} parent=1 // pred_check_branch
      %9048 = sbr.rel (0) target = $region85
    $region84: #{bilstm_forward.1} parent=1 // pred_region
      %s9050 = ssub.s32 32, 32
      %9051 = vsyncadd [#allocation7], %s9050
      %s9053 = sshll.u32 [#allocation17], 4
      %s9054 = int_to_ptr.vmem [resolvable:$true] %s9053
      %9056 = dma.vmem_to_hbm [thread:$0]  %s9054, 32, %s13, [#allocation7]
    $region85: #{bilstm_forward.1} parent=1 // pred_fallthru
      _
    // Predicated region
    $region86: #{bilstm_forward.1} parent=1 // pred_check
      _
    $region87: #{bilstm_forward.1} parent=1 // pred_check_branch
      %9058 = sbr.rel (0) target = $region89
    $region88: #{bilstm_forward.1} parent=1 // pred_region
      %9059 = dma.done [#allocation7], 32
    $region89: #{bilstm_forward.1} parent=1 // pred_fallthru
      _
    %9060 = vsyncpa [#allocation6], 1
    %9061 = vsyncpa [#allocation9], 1
    %9062 = vsyncpa [#allocation12], 1
    %9063 = vsyncpa [#allocation15], 1
    %9064 = vsyncpa [#allocation7], 1

</llo_original>
